<compile_context>
chip_gen: v6e
topology: v6e:2x2x1
jax: 0.10.0
libtpu: 0.0.40
codegen_flags: <defaults>
</compile_context>

<pallas_src>
import jax
import jax.numpy as jnp
from jax import lax
from jax.experimental import pallas as pl
from jax.experimental.pallas import tpu as pltpu


# ----------------------------------------------------------------------------
# Pallas kernels
# ----------------------------------------------------------------------------

def _sigmoid(x):
    return 1.0 / (1.0 + jnp.exp(-x))


def _make_stage1_kernel(C: int):
    """Stage 1: spatial attention (both branches) + conv1 (both branches)
    + channel attention, for one batch element per grid step.

    refs (per grid step):
      pi_ref : (9C, HW)  bf16  im2col patches of i   (centre tap = rows [4C:5C))
      pt_ref : (9C, HW)  bf16  im2col patches of t
      w1_ref : (2, C, 9C) bf16 conv1 weights, BN scale folded  [0]=i-branch
      b1_ref : (2, C, 1)  f32  folded BN shift
      ma_ref : (HW, HW)  bf16  folded 7x7 matrix for the channel-mean row
      mm_ref : (HW, HW)  bf16  folded 7x7 matrix for the channel-max row
      wc1_ref: (Cmid, 3C) bf16 channel-attention fc1
      wc2_ref: (3C, Cmid) bf16 channel-attention fc2
      res_ref: (2C, HW)  f32  OUT  pre-swapped residual [sa_t ; sa_i]
      ca_ref : (3C, HW)  bf16 OUT  ca = mix2 * att_c(mix2)
    """
    C4, C5 = 4 * C, 5 * C

    def kernel(pi_ref, pt_ref, w1_ref, b1_ref, ma_ref, mm_ref,
               wc1_ref, wc2_ref, res_ref, ca_ref):
        f32 = jnp.float32
        bf16 = jnp.bfloat16

        # ---- conv1 + folded BN + ReLU (scale pre-folded into weights) -------
        i1 = jnp.maximum(
            jnp.dot(w1_ref[0], pi_ref[...], preferred_element_type=f32)
            + b1_ref[0], 0.0)                                          # (C, HW)
        t1 = jnp.maximum(
            jnp.dot(w1_ref[1], pt_ref[...], preferred_element_type=f32)
            + b1_ref[1], 0.0)                                          # (C, HW)
        it = i1 * t1

        # ---- channel attention; mix2 = [i1, i1*t1, t1] never materialized ----
        def pool(seg):                                                 # (C, HW) -> (C, 2)
            return jnp.concatenate(
                [jnp.mean(seg, axis=1, keepdims=True),
                 jnp.max(seg, axis=1, keepdims=True)], axis=1)

        pooled = jnp.concatenate([pool(i1), pool(it), pool(t1)], axis=0)  # (3C, 2)
        h = jnp.maximum(
            jnp.dot(wc1_ref[...], pooled.astype(bf16),
                    preferred_element_type=f32), 0.0)                  # (Cmid, 2)
        z = jnp.dot(wc2_ref[...], h.astype(bf16),
                    preferred_element_type=f32)                        # (3C, 2)
        att = _sigmoid(jnp.sum(z, axis=1, keepdims=True))              # (3C, 1)

        ca_ref[0:C, :] = (i1 * att[0:C]).astype(ca_ref.dtype)
        ca_ref[C:2 * C, :] = (it * att[C:2 * C]).astype(ca_ref.dtype)
        ca_ref[2 * C:3 * C, :] = (t1 * att[2 * C:3 * C]).astype(ca_ref.dtype)

        # ---- spatial attention, x taken from the centre im2col tap ----------
        x_i = pi_ref[C4:C5, :].astype(f32)                             # (C, HW)
        x_t = pt_ref[C4:C5, :].astype(f32)

        def spatial(x):                                                # (C, HW) -> (C, HW)
            avg = jnp.mean(x, axis=0, keepdims=True)                   # (1, HW)
            mx = jnp.max(x, axis=0, keepdims=True)                     # (1, HW)
            s = (jnp.dot(avg.astype(bf16), ma_ref[...], preferred_element_type=f32)
                 + jnp.dot(mx.astype(bf16), mm_ref[...], preferred_element_type=f32))
            return x * _sigmoid(s)

        # residual for stage 2 is written pre-swapped: [sa_t ; sa_i]
        res_ref[0:C, :] = spatial(x_t).astype(res_ref.dtype)
        res_ref[C:2 * C, :] = spatial(x_i).astype(res_ref.dtype)

    return kernel


def _stage2_kernel(p_ref, w2_ref, b2_ref, res_ref, o_ref):
    """Stage 2: both conv2 branches as ONE (2C, 9*3C) @ (9*3C, HW) matmul,
    folded BN + ReLU + fused (pre-swapped) residual add.

    p_ref  : (9*3C, HW) bf16   im2col patches of ca
    w2_ref : (2C, 9*3C) bf16   [w_i2 ; w_t2], BN scale folded
    b2_ref : (2C, 1)    f32    folded BN shift
    res_ref: (2C, HW)   f32    [sa_t ; sa_i]
    o_ref  : (2C, HW)   f32    [atti ; attt]
    """
    acc = jnp.dot(w2_ref[...], p_ref[...], preferred_element_type=jnp.float32)
    y = jnp.maximum(acc + b2_ref[...], 0.0) + res_ref[...]
    o_ref[...] = y.astype(o_ref.dtype)


# ----------------------------------------------------------------------------
# Wrapper-side layout / weight plumbing (plain JAX, no compute hoisting)
# ----------------------------------------------------------------------------

def _im2col_3x3(x_nchw):
    """(N, C, H, W) -> (N, 9*C, H*W) patches for a pad=1 3x3 conv."""
    N, C, H, W = x_nchw.shape
    xp = jnp.pad(x_nchw, ((0, 0), (0, 0), (1, 1), (1, 1)))
    cols = [xp[:, :, kh:kh + H, kw:kw + W].reshape(N, C, H * W)
            for kh in range(3) for kw in range(3)]
    return jnp.concatenate(cols, axis=1)


def _conv_weight_matrix(w_oihw):
    """(Cout, Cin, 3, 3) -> (Cout, 9*Cin) matching _im2col_3x3 tap ordering."""
    co, ci, kh, kw = w_oihw.shape
    return jnp.transpose(w_oihw, (0, 2, 3, 1)).reshape(co, kh * kw * ci).astype(jnp.float32)


def _fold_bn(gamma, beta, mean, var, eps=1e-5):
    scale = gamma.astype(jnp.float32) / jnp.sqrt(var.astype(jnp.float32) + eps)
    shift = beta.astype(jnp.float32) - mean.astype(jnp.float32) * scale
    return scale.reshape(-1, 1), shift.reshape(-1, 1)


def _spatial_conv_matrices(w_s, H, W, dtype):
    """Fold the (2->1, 7x7, pad=3) conv into two (HW, HW) matrices so that
       s(1, HW) = avg(1, HW) @ M_avg + max(1, HW) @ M_max."""
    K = w_s.shape[-1]
    P = K // 2
    oy = jnp.arange(H)[:, None, None, None]
    ox = jnp.arange(W)[None, :, None, None]
    iy = jnp.arange(H)[None, None, :, None]
    ix = jnp.arange(W)[None, None, None, :]
    dy = iy - oy + P
    dx = ix - ox + P
    valid = (dy >= 0) & (dy < K) & (dx >= 0) & (dx < K)
    dyc = jnp.clip(dy, 0, K - 1)
    dxc = jnp.clip(dx, 0, K - 1)

    def one(wk):                                            # (K, K) -> (HW_in, HW_out)
        vals = jnp.where(valid, wk[dyc, dxc], 0.0)
        return vals.reshape(H * W, H * W).T

    m_avg = one(w_s[0, 0].astype(jnp.float32))
    m_max = one(w_s[0, 1].astype(jnp.float32))
    return m_avg.astype(dtype), m_max.astype(dtype)


# ----------------------------------------------------------------------------
# Attention forward pass
# ----------------------------------------------------------------------------

def attention_forward(i, t, params, *, compute_dtype=jnp.bfloat16):
    N, C, H, W = i.shape
    HW = H * W
    C3 = 3 * C
    C2 = 2 * C
    K1 = 9 * C
    K2 = 9 * C3
    f32 = jnp.float32

    # ---- weight prep: fold BN scale into weights (f32), cast to bf16 --------
    s_i1, sh_i1 = _fold_bn(*params["bn_i1"])
    s_t1, sh_t1 = _fold_bn(*params["bn_t1"])
    s_i2, sh_i2 = _fold_bn(*params["bn_i2"])
    s_t2, sh_t2 = _fold_bn(*params["bn_t2"])

    w1s = jnp.stack([_conv_weight_matrix(params["w_i1"]) * s_i1,
                     _conv_weight_matrix(params["w_t1"]) * s_t1]
                    ).astype(compute_dtype)                            # (2, C, 9C)
    b1s = jnp.stack([sh_i1, sh_t1])                                    # (2, C, 1) f32

    w2s = jnp.concatenate([_conv_weight_matrix(params["w_i2"]) * s_i2,
                           _conv_weight_matrix(params["w_t2"]) * s_t2],
                          axis=0).astype(compute_dtype)                # (2C, 9*3C)
    b2s = jnp.concatenate([sh_i2, sh_t2], axis=0)                      # (2C, 1) f32

    m_avg, m_max = _spatial_conv_matrices(params["w_s"], H, W, compute_dtype)  # (HW, HW)
    w_c1 = params["w_c1"].astype(compute_dtype)                        # (Cmid, 3C)
    w_c2 = params["w_c2"].astype(compute_dtype)                        # (3C, Cmid)

    # ---- stage 1: SA (both) + conv1 (both) + channel attention --------------
    patches_i = _im2col_3x3(i.astype(compute_dtype))                   # (N, 9C, HW)
    patches_t = _im2col_3x3(t.astype(compute_dtype))

    res, ca = pl.pallas_call(
        _make_stage1_kernel(C),
        out_shape=(jax.ShapeDtypeStruct((N, C2, HW), f32),
                   jax.ShapeDtypeStruct((N, C3, HW), compute_dtype)),
        grid=(N,),
        in_specs=[
            pl.BlockSpec((None, K1, HW), lambda n: (n, 0, 0)),
            pl.BlockSpec((None, K1, HW), lambda n: (n, 0, 0)),
            pl.BlockSpec((2, C, K1), lambda n: (0, 0, 0)),
            pl.BlockSpec((2, C, 1), lambda n: (0, 0, 0)),
            pl.BlockSpec((HW, HW), lambda n: (0, 0)),
            pl.BlockSpec((HW, HW), lambda n: (0, 0)),
            pl.BlockSpec(w_c1.shape, lambda n: (0, 0)),
            pl.BlockSpec(w_c2.shape, lambda n: (0, 0)),
        ],
        out_specs=[
            pl.BlockSpec((None, C2, HW), lambda n: (n, 0, 0)),
            pl.BlockSpec((None, C3, HW), lambda n: (n, 0, 0)),
        ],
        compiler_params=pltpu.CompilerParams(dimension_semantics=("parallel",)),
    )(patches_i, patches_t, w1s, b1s, m_avg, m_max, w_c1, w_c2)

    # ---- stage 2: conv2 (branches stacked to 2C=128 rows) + residual --------
    patches_ca = _im2col_3x3(ca.reshape(N, C3, H, W))                  # (N, 9*3C, HW) bf16

    out = pl.pallas_call(
        _stage2_kernel,
        out_shape=jax.ShapeDtypeStruct((N, C2, HW), f32),
        grid=(N,),
        in_specs=[
            pl.BlockSpec((None, K2, HW), lambda n: (n, 0, 0)),
            pl.BlockSpec((C2, K2), lambda n: (0, 0)),
            pl.BlockSpec((C2, 1), lambda n: (0, 0)),
            pl.BlockSpec((None, C2, HW), lambda n: (n, 0, 0)),
        ],
        out_specs=pl.BlockSpec((None, C2, HW), lambda n: (n, 0, 0)),
        compiler_params=pltpu.CompilerParams(dimension_semantics=("parallel",)),
    )(patches_ca, w2s, b2s, res)

    atti = out[:, :C].reshape(N, C, H, W)
    attt = out[:, C:].reshape(N, C, H, W)
    return atti, attt


# ----------------------------------------------------------------------------
# Pure-JAX reference (f32) for correctness checking
# ----------------------------------------------------------------------------

def _ref_attention(i, t, params, eps=1e-5):
    def conv(x, w, pad):
        return lax.conv_general_dilated(
            x.astype(jnp.float32), w.astype(jnp.float32), (1, 1),
            [(pad, pad), (pad, pad)],
            dimension_numbers=("NCHW", "OIHW", "NCHW"))

    def conv_bn_relu(x, w, bn):
        g, b, m, v = bn
        y = conv(x, w, 1)
        y = (y - m[None, :, None, None]) / jnp.sqrt(v[None, :, None, None] + eps)
        y = y * g[None, :, None, None] + b[None, :, None, None]
        return jnp.maximum(y, 0.0)

    def att_s(x):
        avg = jnp.mean(x, axis=1, keepdims=True)
        mx = jnp.max(x, axis=1, keepdims=True)
        s = conv(jnp.concatenate([avg, mx], axis=1), params["w_s"], 3)
        return jax.nn.sigmoid(s)

    def att_c(x):
        avg = jnp.mean(x, axis=(2, 3), keepdims=True)
        mx = jnp.max(x, axis=(2, 3), keepdims=True)

        def mlp(v):
            h = jnp.einsum("oc,ncxy->noxy", params["w_c1"], v)
            return jnp.einsum("oc,ncxy->noxy", params["w_c2"], jnp.maximum(h, 0.0))

        return jax.nn.sigmoid(mlp(avg) + mlp(mx))

    sa_i = i * att_s(i)
    sa_t = t * att_s(t)
    i1 = conv_bn_relu(i, params["w_i1"], params["bn_i1"])
    t1 = conv_bn_relu(t, params["w_t1"], params["bn_t1"])
    mix2 = jnp.concatenate([i1, i1 * t1, t1], axis=1)
    ca = mix2 * att_c(mix2)
    atti = conv_bn_relu(ca, params["w_i2"], params["bn_i2"]) + sa_t
    attt = conv_bn_relu(ca, params["w_t2"], params["bn_t2"]) + sa_i
    return atti, attt


# ----------------------------------------------------------------------------
# Example run
# ----------------------------------------------------------------------------

if __name__ == "__main__":
    N, C, H, W = 2, 64, 16, 16
    key = jax.random.PRNGKey(0)
    ks = jax.random.split(key, 13)

    def conv_init(k, co, ci, kh, kw):
        fan_in = ci * kh * kw
        return jax.random.normal(k, (co, ci, kh, kw), jnp.float32) / jnp.sqrt(fan_in)

    def bn_init(k, c):
        kg, kb, km, kv = jax.random.split(k, 4)
        return (1.0 + 0.1 * jax.random.normal(kg, (c,), jnp.float32),   # gamma
                0.1 * jax.random.normal(kb, (c,), jnp.float32),          # beta
                0.1 * jax.random.normal(km, (c,), jnp.float32),          # running_mean
                jax.random.uniform(kv, (c,), jnp.float32, 0.5, 1.5))     # running_var

    params = dict(
        w_i1=conv_init(ks[0], C, C, 3, 3), bn_i1=bn_init(ks[1], C),
        w_t1=conv_init(ks[2], C, C, 3, 3), bn_t1=bn_init(ks[3], C),
        w_i2=conv_init(ks[4], C, 3 * C, 3, 3), bn_i2=bn_init(ks[5], C),
        w_t2=conv_init(ks[6], C, 3 * C, 3, 3), bn_t2=bn_init(ks[7], C),
        w_s=conv_init(ks[8], 1, 2, 7, 7),                                          # SpatialAttention 7x7
        w_c1=jax.random.normal(ks[9], (3 * C // 16, 3 * C), jnp.float32)
             / jnp.sqrt(3.0 * C),                                                  # fc1: 192 -> 12
        w_c2=jax.random.normal(ks[10], (3 * C, 3 * C // 16), jnp.float32)
             / jnp.sqrt(3.0 * C / 16),                                             # fc2: 12 -> 192
    )
    i = jax.random.normal(ks[11], (N, C, H, W), jnp.float32)
    t = jax.random.normal(ks[12], (N, C, H, W), jnp.float32)

    atti, attt = jax.jit(attention_forward)(i, t, params)
    atti, attt = jax.block_until_ready((atti, attt))

    ref_i, ref_t = _ref_attention(i, t, params)
    assert atti.shape == (N, C, H, W) and attt.shape == (N, C, H, W)
    err = max(float(jnp.max(jnp.abs(atti - ref_i))),
              float(jnp.max(jnp.abs(attt - ref_t))))
    assert err < 5e-2, f"max abs error {err}"
    print("KERNEL_OK")
</pallas_src>

<mosaic_0001>
module attributes {stable_mosaic.version = 11 : i64} {
  func.func @kernel(%arg0: i32, %arg1: memref<1x576x256xbf16, #tpu.memory_space<vmem>>, %arg2: memref<1x576x256xbf16, #tpu.memory_space<vmem>>, %arg3: memref<2x64x576xbf16, #tpu.memory_space<vmem>>, %arg4: memref<2x64x1xf32, #tpu.memory_space<vmem>>, %arg5: memref<256x256xbf16, #tpu.memory_space<vmem>>, %arg6: memref<256x256xbf16, #tpu.memory_space<vmem>>, %arg7: memref<12x192xbf16, #tpu.memory_space<vmem>>, %arg8: memref<192x12xbf16, #tpu.memory_space<vmem>>, %arg9: memref<1x128x256xf32, #tpu.memory_space<vmem>>, %arg10: memref<1x192x256xbf16, #tpu.memory_space<vmem>>) attributes {dimension_semantics = [#tpu.dimension_semantics<parallel>], iteration_bounds = array<i64: 2>, scalar_prefetch = 0 : i64, scratch_operands = 0 : i64, tpu.core_type = #tpu.core_type<tc>, window_params = [{transform_indices = @transform_0, window_bounds = array<i64: 1, 576, 256>}, {transform_indices = @transform_1, window_bounds = array<i64: 1, 576, 256>}, {pipeline_mode = #tpu.pipeline_mode<synchronous>, transform_indices = @transform_2, window_bounds = array<i64: 2, 64, 576>}, {pipeline_mode = #tpu.pipeline_mode<synchronous>, transform_indices = @transform_3, window_bounds = array<i64: 2, 64, 1>}, {pipeline_mode = #tpu.pipeline_mode<synchronous>, transform_indices = @transform_4, window_bounds = array<i64: 256, 256>}, {pipeline_mode = #tpu.pipeline_mode<synchronous>, transform_indices = @transform_5, window_bounds = array<i64: 256, 256>}, {pipeline_mode = #tpu.pipeline_mode<synchronous>, transform_indices = @transform_6, window_bounds = array<i64: 12, 192>}, {pipeline_mode = #tpu.pipeline_mode<synchronous>, transform_indices = @transform_7, window_bounds = array<i64: 192, 12>}, {transform_indices = @transform_8, window_bounds = array<i64: 1, 128, 256>}, {transform_indices = @transform_9, window_bounds = array<i64: 1, 192, 256>}]} {
    %c0 = arith.constant 0 : index
    %c0_0 = arith.constant 0 : index
    %c0_1 = arith.constant 0 : index
    %0 = vector.load %arg3[%c0, %c0_0, %c0_1] : memref<2x64x576xbf16, #tpu.memory_space<vmem>>, vector<1x64x576xbf16>
    %1 = vector.shape_cast %0 : vector<1x64x576xbf16> to vector<64x576xbf16>
    %c0_2 = arith.constant 0 : index
    %c0_3 = arith.constant 0 : index
    %c0_4 = arith.constant 0 : index
    %2 = vector.load %arg1[%c0_2, %c0_3, %c0_4] : memref<1x576x256xbf16, #tpu.memory_space<vmem>>, vector<1x576x256xbf16>
    %3 = vector.shape_cast %2 : vector<1x576x256xbf16> to vector<576x256xbf16>
    %cst = arith.constant dense<0.000000e+00> : vector<64x256xf32>
    %4 = tpu.matmul %1, %3, %cst {dimension_numbers = #tpu.dot_dimension_numbers<[1], [0], [0], [1], [0, 0, 1, 1], [], []>} : vector<64x576xbf16>, vector<576x256xbf16>, vector<64x256xf32> -> vector<64x256xf32>
    %c0_5 = arith.constant 0 : index
    %c0_6 = arith.constant 0 : index
    %c0_7 = arith.constant 0 : index
    %5 = vector.load %arg4[%c0_5, %c0_6, %c0_7] : memref<2x64x1xf32, #tpu.memory_space<vmem>>, vector<1x64x1xf32>
    %6 = vector.shape_cast %5 : vector<1x64x1xf32> to vector<64x1xf32>
    %7 = vector.broadcast %6 : vector<64x1xf32> to vector<64x256xf32>
    %8 = arith.addf %4, %7 : vector<64x256xf32>
    %cst_8 = arith.constant 0.000000e+00 : f32
    %9 = vector.broadcast %cst_8 : f32 to vector<64x256xf32>
    %10 = arith.maximumf %8, %9 : vector<64x256xf32>
    %c1 = arith.constant 1 : index
    %c0_9 = arith.constant 0 : index
    %c0_10 = arith.constant 0 : index
    %11 = vector.load %arg3[%c1, %c0_9, %c0_10] : memref<2x64x576xbf16, #tpu.memory_space<vmem>>, vector<1x64x576xbf16>
    %12 = vector.shape_cast %11 : vector<1x64x576xbf16> to vector<64x576xbf16>
    %c0_11 = arith.constant 0 : index
    %c0_12 = arith.constant 0 : index
    %c0_13 = arith.constant 0 : index
    %13 = vector.load %arg2[%c0_11, %c0_12, %c0_13] : memref<1x576x256xbf16, #tpu.memory_space<vmem>>, vector<1x576x256xbf16>
    %14 = vector.shape_cast %13 : vector<1x576x256xbf16> to vector<576x256xbf16>
    %cst_14 = arith.constant dense<0.000000e+00> : vector<64x256xf32>
    %15 = tpu.matmul %12, %14, %cst_14 {dimension_numbers = #tpu.dot_dimension_numbers<[1], [0], [0], [1], [0, 0, 1, 1], [], []>} : vector<64x576xbf16>, vector<576x256xbf16>, vector<64x256xf32> -> vector<64x256xf32>
    %c1_15 = arith.constant 1 : index
    %c0_16 = arith.constant 0 : index
    %c0_17 = arith.constant 0 : index
    %16 = vector.load %arg4[%c1_15, %c0_16, %c0_17] : memref<2x64x1xf32, #tpu.memory_space<vmem>>, vector<1x64x1xf32>
    %17 = vector.shape_cast %16 : vector<1x64x1xf32> to vector<64x1xf32>
    %18 = vector.broadcast %17 : vector<64x1xf32> to vector<64x256xf32>
    %19 = arith.addf %15, %18 : vector<64x256xf32>
    %cst_18 = arith.constant 0.000000e+00 : f32
    %20 = vector.broadcast %cst_18 : f32 to vector<64x256xf32>
    %21 = arith.maximumf %19, %20 : vector<64x256xf32>
    %22 = arith.mulf %10, %21 : vector<64x256xf32>
    %cst_19 = arith.constant dense<0.000000e+00> : vector<64xf32>
    %23 = vector.multi_reduction <add>, %10, %cst_19 [1] : vector<64x256xf32> to vector<64xf32>
    %24 = vector.shape_cast %23 : vector<64xf32> to vector<64x1xf32>
    %cst_20 = arith.constant 2.560000e+02 : f32
    %25 = vector.broadcast %cst_20 : f32 to vector<64x1xf32>
    %26 = arith.divf %24, %25 : vector<64x1xf32>
    %cst_21 = arith.constant dense<0xFF800000> : vector<64xf32>
    %27 = vector.multi_reduction <maximumf>, %10, %cst_21 [1] : vector<64x256xf32> to vector<64xf32>
    %28 = vector.shape_cast %27 : vector<64xf32> to vector<64x1xf32>
    %29 = tpu.concatenate %26, %28 in 1 : vector<64x1xf32>, vector<64x1xf32> -> vector<64x2xf32>
    %cst_22 = arith.constant dense<0.000000e+00> : vector<64xf32>
    %30 = vector.multi_reduction <add>, %22, %cst_22 [1] : vector<64x256xf32> to vector<64xf32>
    %31 = vector.shape_cast %30 : vector<64xf32> to vector<64x1xf32>
    %cst_23 = arith.constant 2.560000e+02 : f32
    %32 = vector.broadcast %cst_23 : f32 to vector<64x1xf32>
    %33 = arith.divf %31, %32 : vector<64x1xf32>
    %cst_24 = arith.constant dense<0xFF800000> : vector<64xf32>
    %34 = vector.multi_reduction <maximumf>, %22, %cst_24 [1] : vector<64x256xf32> to vector<64xf32>
    %35 = vector.shape_cast %34 : vector<64xf32> to vector<64x1xf32>
    %36 = tpu.concatenate %33, %35 in 1 : vector<64x1xf32>, vector<64x1xf32> -> vector<64x2xf32>
    %cst_25 = arith.constant dense<0.000000e+00> : vector<64xf32>
    %37 = vector.multi_reduction <add>, %21, %cst_25 [1] : vector<64x256xf32> to vector<64xf32>
    %38 = vector.shape_cast %37 : vector<64xf32> to vector<64x1xf32>
    %cst_26 = arith.constant 2.560000e+02 : f32
    %39 = vector.broadcast %cst_26 : f32 to vector<64x1xf32>
    %40 = arith.divf %38, %39 : vector<64x1xf32>
    %cst_27 = arith.constant dense<0xFF800000> : vector<64xf32>
    %41 = vector.multi_reduction <maximumf>, %21, %cst_27 [1] : vector<64x256xf32> to vector<64xf32>
    %42 = vector.shape_cast %41 : vector<64xf32> to vector<64x1xf32>
    %43 = tpu.concatenate %40, %42 in 1 : vector<64x1xf32>, vector<64x1xf32> -> vector<64x2xf32>
    %44 = tpu.concatenate %29, %36, %43 in 0 : vector<64x2xf32>, vector<64x2xf32>, vector<64x2xf32> -> vector<192x2xf32>
    %c0_28 = arith.constant 0 : index
    %c0_29 = arith.constant 0 : index
    %45 = vector.load %arg7[%c0_28, %c0_29] : memref<12x192xbf16, #tpu.memory_space<vmem>>, vector<12x192xbf16>
    %46 = arith.truncf %44 : vector<192x2xf32> to vector<192x2xbf16>
    %cst_30 = arith.constant dense<0.000000e+00> : vector<12x2xf32>
    %47 = tpu.matmul %45, %46, %cst_30 {dimension_numbers = #tpu.dot_dimension_numbers<[1], [0], [0], [1], [0, 0, 1, 1], [], []>} : vector<12x192xbf16>, vector<192x2xbf16>, vector<12x2xf32> -> vector<12x2xf32>
    %cst_31 = arith.constant 0.000000e+00 : f32
    %48 = vector.broadcast %cst_31 : f32 to vector<12x2xf32>
    %49 = arith.maximumf %47, %48 : vector<12x2xf32>
    %c0_32 = arith.constant 0 : index
    %c0_33 = arith.constant 0 : index
    %50 = vector.load %arg8[%c0_32, %c0_33] : memref<192x12xbf16, #tpu.memory_space<vmem>>, vector<192x12xbf16>
    %51 = arith.truncf %49 : vector<12x2xf32> to vector<12x2xbf16>
    %cst_34 = arith.constant dense<0.000000e+00> : vector<192x2xf32>
    %52 = tpu.matmul %50, %51, %cst_34 {dimension_numbers = #tpu.dot_dimension_numbers<[1], [0], [0], [1], [0, 0, 1, 1], [], []>} : vector<192x12xbf16>, vector<12x2xbf16>, vector<192x2xf32> -> vector<192x2xf32>
    %cst_35 = arith.constant dense<0.000000e+00> : vector<192xf32>
    %53 = vector.multi_reduction <add>, %52, %cst_35 [1] : vector<192x2xf32> to vector<192xf32>
    %54 = vector.shape_cast %53 : vector<192xf32> to vector<192x1xf32>
    %cst_36 = arith.constant 0.000000e+00 : f32
    %55 = vector.broadcast %cst_36 : f32 to vector<192x1xf32>
    %56 = arith.subf %55, %54 : vector<192x1xf32>
    %57 = math.exp %56 : vector<192x1xf32>
    %cst_37 = arith.constant 1.000000e+00 : f32
    %58 = vector.broadcast %cst_37 : f32 to vector<192x1xf32>
    %59 = arith.addf %58, %57 : vector<192x1xf32>
    %cst_38 = arith.constant 1.000000e+00 : f32
    %60 = vector.broadcast %cst_38 : f32 to vector<192x1xf32>
    %61 = arith.divf %60, %59 : vector<192x1xf32>
    %62 = vector.extract_strided_slice %61 {offsets = [0, 0], sizes = [64, 1], strides = [1, 1]} : vector<192x1xf32> to vector<64x1xf32>
    %63 = vector.broadcast %62 : vector<64x1xf32> to vector<64x256xf32>
    %64 = arith.mulf %10, %63 : vector<64x256xf32>
    %65 = arith.truncf %64 : vector<64x256xf32> to vector<64x256xbf16>
    %c0_39 = arith.constant 0 : index
    %c0_40 = arith.constant 0 : index
    %c0_41 = arith.constant 0 : index
    %66 = vector.load %arg10[%c0_39, %c0_40, %c0_41] : memref<1x192x256xbf16, #tpu.memory_space<vmem>>, vector<1x64x256xbf16>
    %67 = vector.shape_cast %66 : vector<1x64x256xbf16> to vector<64x256xbf16>
    %68 = vector.shape_cast %65 : vector<64x256xbf16> to vector<1x64x256xbf16>
    tpu.vector_store %arg10[%c0_39, %c0_40, %c0_41], %68 {strides = array<i32>} : memref<1x192x256xbf16, #tpu.memory_space<vmem>>, vector<1x64x256xbf16>,
    %69 = vector.extract_strided_slice %61 {offsets = [64, 0], sizes = [64, 1], strides = [1, 1]} : vector<192x1xf32> to vector<64x1xf32>
    %70 = vector.broadcast %69 : vector<64x1xf32> to vector<64x256xf32>
    %71 = arith.mulf %22, %70 : vector<64x256xf32>
    %72 = arith.truncf %71 : vector<64x256xf32> to vector<64x256xbf16>
    %c0_42 = arith.constant 0 : index
    %c64 = arith.constant 64 : index
    %c0_43 = arith.constant 0 : index
    %73 = vector.load %arg10[%c0_42, %c64, %c0_43] : memref<1x192x256xbf16, #tpu.memory_space<vmem>>, vector<1x64x256xbf16>
    %74 = vector.shape_cast %73 : vector<1x64x256xbf16> to vector<64x256xbf16>
    %75 = vector.shape_cast %72 : vector<64x256xbf16> to vector<1x64x256xbf16>
    tpu.vector_store %arg10[%c0_42, %c64, %c0_43], %75 {strides = array<i32>} : memref<1x192x256xbf16, #tpu.memory_space<vmem>>, vector<1x64x256xbf16>,
    %76 = vector.extract_strided_slice %61 {offsets = [128, 0], sizes = [64, 1], strides = [1, 1]} : vector<192x1xf32> to vector<64x1xf32>
    %77 = vector.broadcast %76 : vector<64x1xf32> to vector<64x256xf32>
    %78 = arith.mulf %21, %77 : vector<64x256xf32>
    %79 = arith.truncf %78 : vector<64x256xf32> to vector<64x256xbf16>
    %c0_44 = arith.constant 0 : index
    %c128 = arith.constant 128 : index
    %c0_45 = arith.constant 0 : index
    %80 = vector.load %arg10[%c0_44, %c128, %c0_45] : memref<1x192x256xbf16, #tpu.memory_space<vmem>>, vector<1x64x256xbf16>
    %81 = vector.shape_cast %80 : vector<1x64x256xbf16> to vector<64x256xbf16>
    %82 = vector.shape_cast %79 : vector<64x256xbf16> to vector<1x64x256xbf16>
    tpu.vector_store %arg10[%c0_44, %c128, %c0_45], %82 {strides = array<i32>} : memref<1x192x256xbf16, #tpu.memory_space<vmem>>, vector<1x64x256xbf16>,
    %c0_46 = arith.constant 0 : index
    %c256 = arith.constant 256 : index
    %c0_47 = arith.constant 0 : index
    %83 = vector.load %arg1[%c0_46, %c256, %c0_47] : memref<1x576x256xbf16, #tpu.memory_space<vmem>>, vector<1x64x256xbf16>
    %84 = vector.shape_cast %83 : vector<1x64x256xbf16> to vector<64x256xbf16>
    %85 = arith.extf %84 : vector<64x256xbf16> to vector<64x256xf32>
    %c0_48 = arith.constant 0 : index
    %c256_49 = arith.constant 256 : index
    %c0_50 = arith.constant 0 : index
    %86 = vector.load %arg2[%c0_48, %c256_49, %c0_50] : memref<1x576x256xbf16, #tpu.memory_space<vmem>>, vector<1x64x256xbf16>
    %87 = vector.shape_cast %86 : vector<1x64x256xbf16> to vector<64x256xbf16>
    %88 = arith.extf %87 : vector<64x256xbf16> to vector<64x256xf32>
    %cst_51 = arith.constant dense<0.000000e+00> : vector<256xf32>
    %89 = vector.multi_reduction <add>, %88, %cst_51 [0] : vector<64x256xf32> to vector<256xf32>
    %90 = vector.shape_cast %89 : vector<256xf32> to vector<1x256xf32>
    %cst_52 = arith.constant 6.400000e+01 : f32
    %91 = vector.broadcast %cst_52 : f32 to vector<1x256xf32>
    %92 = arith.divf %90, %91 : vector<1x256xf32>
    %cst_53 = arith.constant dense<0xFF800000> : vector<256xf32>
    %93 = vector.multi_reduction <maximumf>, %88, %cst_53 [0] : vector<64x256xf32> to vector<256xf32>
    %94 = vector.shape_cast %93 : vector<256xf32> to vector<1x256xf32>
    %95 = arith.truncf %92 : vector<1x256xf32> to vector<1x256xbf16>
    %c0_54 = arith.constant 0 : index
    %c0_55 = arith.constant 0 : index
    %96 = vector.load %arg5[%c0_54, %c0_55] : memref<256x256xbf16, #tpu.memory_space<vmem>>, vector<256x256xbf16>
    %cst_56 = arith.constant dense<0.000000e+00> : vector<1x256xf32>
    %97 = tpu.matmul %95, %96, %cst_56 {dimension_numbers = #tpu.dot_dimension_numbers<[1], [0], [0], [1], [0, 0, 1, 1], [], []>} : vector<1x256xbf16>, vector<256x256xbf16>, vector<1x256xf32> -> vector<1x256xf32>
    %98 = arith.truncf %94 : vector<1x256xf32> to vector<1x256xbf16>
    %c0_57 = arith.constant 0 : index
    %c0_58 = arith.constant 0 : index
    %99 = vector.load %arg6[%c0_57, %c0_58] : memref<256x256xbf16, #tpu.memory_space<vmem>>, vector<256x256xbf16>
    %cst_59 = arith.constant dense<0.000000e+00> : vector<1x256xf32>
    %100 = tpu.matmul %98, %99, %cst_59 {dimension_numbers = #tpu.dot_dimension_numbers<[1], [0], [0], [1], [0, 0, 1, 1], [], []>} : vector<1x256xbf16>, vector<256x256xbf16>, vector<1x256xf32> -> vector<1x256xf32>
    %101 = arith.addf %97, %100 : vector<1x256xf32>
    %cst_60 = arith.constant 0.000000e+00 : f32
    %102 = vector.broadcast %cst_60 : f32 to vector<1x256xf32>
    %103 = arith.subf %102, %101 : vector<1x256xf32>
    %104 = math.exp %103 : vector<1x256xf32>
    %cst_61 = arith.constant 1.000000e+00 : f32
    %105 = vector.broadcast %cst_61 : f32 to vector<1x256xf32>
    %106 = arith.addf %105, %104 : vector<1x256xf32>
    %cst_62 = arith.constant 1.000000e+00 : f32
    %107 = vector.broadcast %cst_62 : f32 to vector<1x256xf32>
    %108 = arith.divf %107, %106 : vector<1x256xf32>
    %109 = vector.broadcast %108 : vector<1x256xf32> to vector<64x256xf32>
    %110 = arith.mulf %88, %109 : vector<64x256xf32>
    %c0_63 = arith.constant 0 : index
    %c0_64 = arith.constant 0 : index
    %c0_65 = arith.constant 0 : index
    %111 = vector.load %arg9[%c0_63, %c0_64, %c0_65] : memref<1x128x256xf32, #tpu.memory_space<vmem>>, vector<1x64x256xf32>
    %112 = vector.shape_cast %111 : vector<1x64x256xf32> to vector<64x256xf32>
    %113 = vector.shape_cast %110 : vector<64x256xf32> to vector<1x64x256xf32>
    tpu.vector_store %arg9[%c0_63, %c0_64, %c0_65], %113 {strides = array<i32>} : memref<1x128x256xf32, #tpu.memory_space<vmem>>, vector<1x64x256xf32>,
    %cst_66 = arith.constant dense<0.000000e+00> : vector<256xf32>
    %114 = vector.multi_reduction <add>, %85, %cst_66 [0] : vector<64x256xf32> to vector<256xf32>
    %115 = vector.shape_cast %114 : vector<256xf32> to vector<1x256xf32>
    %cst_67 = arith.constant 6.400000e+01 : f32
    %116 = vector.broadcast %cst_67 : f32 to vector<1x256xf32>
    %117 = arith.divf %115, %116 : vector<1x256xf32>
    %cst_68 = arith.constant dense<0xFF800000> : vector<256xf32>
    %118 = vector.multi_reduction <maximumf>, %85, %cst_68 [0] : vector<64x256xf32> to vector<256xf32>
    %119 = vector.shape_cast %118 : vector<256xf32> to vector<1x256xf32>
    %120 = arith.truncf %117 : vector<1x256xf32> to vector<1x256xbf16>
    %c0_69 = arith.constant 0 : index
    %c0_70 = arith.constant 0 : index
    %121 = vector.load %arg5[%c0_69, %c0_70] : memref<256x256xbf16, #tpu.memory_space<vmem>>, vector<256x256xbf16>
    %cst_71 = arith.constant dense<0.000000e+00> : vector<1x256xf32>
    %122 = tpu.matmul %120, %121, %cst_71 {dimension_numbers = #tpu.dot_dimension_numbers<[1], [0], [0], [1], [0, 0, 1, 1], [], []>} : vector<1x256xbf16>, vector<256x256xbf16>, vector<1x256xf32> -> vector<1x256xf32>
    %123 = arith.truncf %119 : vector<1x256xf32> to vector<1x256xbf16>
    %c0_72 = arith.constant 0 : index
    %c0_73 = arith.constant 0 : index
    %124 = vector.load %arg6[%c0_72, %c0_73] : memref<256x256xbf16, #tpu.memory_space<vmem>>, vector<256x256xbf16>
    %cst_74 = arith.constant dense<0.000000e+00> : vector<1x256xf32>
    %125 = tpu.matmul %123, %124, %cst_74 {dimension_numbers = #tpu.dot_dimension_numbers<[1], [0], [0], [1], [0, 0, 1, 1], [], []>} : vector<1x256xbf16>, vector<256x256xbf16>, vector<1x256xf32> -> vector<1x256xf32>
    %126 = arith.addf %122, %125 : vector<1x256xf32>
    %cst_75 = arith.constant 0.000000e+00 : f32
    %127 = vector.broadcast %cst_75 : f32 to vector<1x256xf32>
    %128 = arith.subf %127, %126 : vector<1x256xf32>
    %129 = math.exp %128 : vector<1x256xf32>
    %cst_76 = arith.constant 1.000000e+00 : f32
    %130 = vector.broadcast %cst_76 : f32 to vector<1x256xf32>
    %131 = arith.addf %130, %129 : vector<1x256xf32>
    %cst_77 = arith.constant 1.000000e+00 : f32
    %132 = vector.broadcast %cst_77 : f32 to vector<1x256xf32>
    %133 = arith.divf %132, %131 : vector<1x256xf32>
    %134 = vector.broadcast %133 : vector<1x256xf32> to vector<64x256xf32>
    %135 = arith.mulf %85, %134 : vector<64x256xf32>
    %c0_78 = arith.constant 0 : index
    %c64_79 = arith.constant 64 : index
    %c0_80 = arith.constant 0 : index
    %136 = vector.load %arg9[%c0_78, %c64_79, %c0_80] : memref<1x128x256xf32, #tpu.memory_space<vmem>>, vector<1x64x256xf32>
    %137 = vector.shape_cast %136 : vector<1x64x256xf32> to vector<64x256xf32>
    %138 = vector.shape_cast %135 : vector<64x256xf32> to vector<1x64x256xf32>
    tpu.vector_store %arg9[%c0_78, %c64_79, %c0_80], %138 {strides = array<i32>} : memref<1x128x256xf32, #tpu.memory_space<vmem>>, vector<1x64x256xf32>,
    return
  }
  func.func @transform_0(%arg0: i32) -> (i32, i32, i32) {
    %c0_i32 = arith.constant 0 : i32
    %c0_i32_0 = arith.constant 0 : i32
    %c0_i32_1 = arith.constant 0 : i32
    return %arg0, %c0_i32, %c0_i32_0 : i32, i32, i32
  }
  func.func @transform_1(%arg0: i32) -> (i32, i32, i32) {
    %c0_i32 = arith.constant 0 : i32
    %c0_i32_0 = arith.constant 0 : i32
    %c0_i32_1 = arith.constant 0 : i32
    return %arg0, %c0_i32, %c0_i32_0 : i32, i32, i32
  }
  func.func @transform_2(%arg0: i32) -> (i32, i32, i32) {
    %c0_i32 = arith.constant 0 : i32
    %c0_i32_0 = arith.constant 0 : i32
    %c0_i32_1 = arith.constant 0 : i32
    %c0_i32_2 = arith.constant 0 : i32
    return %c0_i32, %c0_i32_0, %c0_i32_1 : i32, i32, i32
  }
  func.func @transform_3(%arg0: i32) -> (i32, i32, i32) {
    %c0_i32 = arith.constant 0 : i32
    %c0_i32_0 = arith.constant 0 : i32
    %c0_i32_1 = arith.constant 0 : i32
    %c0_i32_2 = arith.constant 0 : i32
    return %c0_i32, %c0_i32_0, %c0_i32_1 : i32, i32, i32
  }
  func.func @transform_4(%arg0: i32) -> (i32, i32) {
    %c0_i32 = arith.constant 0 : i32
    %c0_i32_0 = arith.constant 0 : i32
    %c0_i32_1 = arith.constant 0 : i32
    return %c0_i32, %c0_i32_0 : i32, i32
  }
  func.func @transform_5(%arg0: i32) -> (i32, i32) {
    %c0_i32 = arith.constant 0 : i32
    %c0_i32_0 = arith.constant 0 : i32
    %c0_i32_1 = arith.constant 0 : i32
    return %c0_i32, %c0_i32_0 : i32, i32
  }
  func.func @transform_6(%arg0: i32) -> (i32, i32) {
    %c0_i32 = arith.constant 0 : i32
    %c0_i32_0 = arith.constant 0 : i32
    %c0_i32_1 = arith.constant 0 : i32
    return %c0_i32, %c0_i32_0 : i32, i32
  }
  func.func @transform_7(%arg0: i32) -> (i32, i32) {
    %c0_i32 = arith.constant 0 : i32
    %c0_i32_0 = arith.constant 0 : i32
    %c0_i32_1 = arith.constant 0 : i32
    return %c0_i32, %c0_i32_0 : i32, i32
  }
  func.func @transform_8(%arg0: i32) -> (i32, i32, i32) {
    %c0_i32 = arith.constant 0 : i32
    %c0_i32_0 = arith.constant 0 : i32
    %c0_i32_1 = arith.constant 0 : i32
    return %arg0, %c0_i32, %c0_i32_0 : i32, i32, i32
  }
  func.func @transform_9(%arg0: i32) -> (i32, i32, i32) {
    %c0_i32 = arith.constant 0 : i32
    %c0_i32_0 = arith.constant 0 : i32
    %c0_i32_1 = arith.constant 0 : i32
    return %arg0, %c0_i32, %c0_i32_0 : i32, i32, i32
  }
}

module attributes {stable_mosaic.version = 11 : i64} {
  func.func @_stage2_kernel(%arg0: i32, %arg1: memref<1x1728x256xbf16, #tpu.memory_space<vmem>>, %arg2: memref<128x1728xbf16, #tpu.memory_space<vmem>>, %arg3: memref<128x1xf32, #tpu.memory_space<vmem>>, %arg4: memref<1x128x256xf32, #tpu.memory_space<vmem>>, %arg5: memref<1x128x256xf32, #tpu.memory_space<vmem>>) attributes {dimension_semantics = [#tpu.dimension_semantics<parallel>], iteration_bounds = array<i64: 2>, scalar_prefetch = 0 : i64, scratch_operands = 0 : i64, tpu.core_type = #tpu.core_type<tc>, window_params = [{transform_indices = @transform_0, window_bounds = array<i64: 1, 1728, 256>}, {pipeline_mode = #tpu.pipeline_mode<synchronous>, transform_indices = @transform_1, window_bounds = array<i64: 128, 1728>}, {pipeline_mode = #tpu.pipeline_mode<synchronous>, transform_indices = @transform_2, window_bounds = array<i64: 128, 1>}, {transform_indices = @transform_3, window_bounds = array<i64: 1, 128, 256>}, {transform_indices = @transform_4, window_bounds = array<i64: 1, 128, 256>}]} {
    %c0 = arith.constant 0 : index
    %c0_0 = arith.constant 0 : index
    %0 = vector.load %arg2[%c0, %c0_0] : memref<128x1728xbf16, #tpu.memory_space<vmem>>, vector<128x1728xbf16>
    %c0_1 = arith.constant 0 : index
    %c0_2 = arith.constant 0 : index
    %c0_3 = arith.constant 0 : index
    %1 = vector.load %arg1[%c0_1, %c0_2, %c0_3] : memref<1x1728x256xbf16, #tpu.memory_space<vmem>>, vector<1x1728x256xbf16>
    %2 = vector.shape_cast %1 : vector<1x1728x256xbf16> to vector<1728x256xbf16>
    %cst = arith.constant dense<0.000000e+00> : vector<128x256xf32>
    %3 = tpu.matmul %0, %2, %cst {dimension_numbers = #tpu.dot_dimension_numbers<[1], [0], [0], [1], [0, 0, 1, 1], [], []>} : vector<128x1728xbf16>, vector<1728x256xbf16>, vector<128x256xf32> -> vector<128x256xf32>
    %c0_4 = arith.constant 0 : index
    %c0_5 = arith.constant 0 : index
    %4 = vector.load %arg3[%c0_4, %c0_5] : memref<128x1xf32, #tpu.memory_space<vmem>>, vector<128x1xf32>
    %5 = vector.broadcast %4 : vector<128x1xf32> to vector<128x256xf32>
    %6 = arith.addf %3, %5 : vector<128x256xf32>
    %cst_6 = arith.constant 0.000000e+00 : f32
    %7 = vector.broadcast %cst_6 : f32 to vector<128x256xf32>
    %8 = arith.maximumf %6, %7 : vector<128x256xf32>
    %c0_7 = arith.constant 0 : index
    %c0_8 = arith.constant 0 : index
    %c0_9 = arith.constant 0 : index
    %9 = vector.load %arg4[%c0_7, %c0_8, %c0_9] : memref<1x128x256xf32, #tpu.memory_space<vmem>>, vector<1x128x256xf32>
    %10 = vector.shape_cast %9 : vector<1x128x256xf32> to vector<128x256xf32>
    %11 = arith.addf %8, %10 : vector<128x256xf32>
    %c0_10 = arith.constant 0 : index
    %c0_11 = arith.constant 0 : index
    %c0_12 = arith.constant 0 : index
    %12 = vector.load %arg5[%c0_10, %c0_11, %c0_12] : memref<1x128x256xf32, #tpu.memory_space<vmem>>, vector<1x128x256xf32>
    %13 = vector.shape_cast %12 : vector<1x128x256xf32> to vector<128x256xf32>
    %14 = vector.shape_cast %11 : vector<128x256xf32> to vector<1x128x256xf32>
    tpu.vector_store %arg5[%c0_10, %c0_11, %c0_12], %14 {strides = array<i32>} : memref<1x128x256xf32, #tpu.memory_space<vmem>>, vector<1x128x256xf32>,
    return
  }
  func.func @transform_0(%arg0: i32) -> (i32, i32, i32) {
    %c0_i32 = arith.constant 0 : i32
    %c0_i32_0 = arith.constant 0 : i32
    %c0_i32_1 = arith.constant 0 : i32
    return %arg0, %c0_i32, %c0_i32_0 : i32, i32, i32
  }
  func.func @transform_1(%arg0: i32) -> (i32, i32) {
    %c0_i32 = arith.constant 0 : i32
    %c0_i32_0 = arith.constant 0 : i32
    %c0_i32_1 = arith.constant 0 : i32
    return %c0_i32, %c0_i32_0 : i32, i32
  }
  func.func @transform_2(%arg0: i32) -> (i32, i32) {
    %c0_i32 = arith.constant 0 : i32
    %c0_i32_0 = arith.constant 0 : i32
    %c0_i32_1 = arith.constant 0 : i32
    return %c0_i32, %c0_i32_0 : i32, i32
  }
  func.func @transform_3(%arg0: i32) -> (i32, i32, i32) {
    %c0_i32 = arith.constant 0 : i32
    %c0_i32_0 = arith.constant 0 : i32
    %c0_i32_1 = arith.constant 0 : i32
    return %arg0, %c0_i32, %c0_i32_0 : i32, i32, i32
  }
  func.func @transform_4(%arg0: i32) -> (i32, i32, i32) {
    %c0_i32 = arith.constant 0 : i32
    %c0_i32_0 = arith.constant 0 : i32
    %c0_i32_1 = arith.constant 0 : i32
    return %arg0, %c0_i32, %c0_i32_0 : i32, i32, i32
  }
}

</mosaic_0001>

<llo_original>
// kernel: attention_forward.2
$region0: #{attention_forward.2}
  #allocation0 [shape = 'u32[]', space=smem, size = 0x4, offset = 0x4, fixed_abs, tag = 'smem constant byte address 0x4 - core index']
  #allocation1 [shape = 'u32[144,128]{1,0:T(1,128)}', space=vmem, size = 0x12000, scoped, tag = 'internal scratch']
  %s0 = inlined_call_operand.vmem [shape: bf16[2,576,256], index: 0, kind: input, shape index: {}]
  %s1 = inlined_call_operand.vmem [shape: bf16[2,576,256], index: 1, kind: input, shape index: {}]
  %s2 = inlined_call_operand.vmem [shape: bf16[2,64,576], index: 2, kind: input, shape index: {}]
  %s3 = inlined_call_operand.vmem [shape: f32[2,64,1], index: 3, kind: input, shape index: {}]
  %s4 = inlined_call_operand.vmem [shape: bf16[256,256], index: 4, kind: input, shape index: {}]
  %s5 = inlined_call_operand.vmem [shape: bf16[256,256], index: 5, kind: input, shape index: {}]
  %s6 = inlined_call_operand.vmem [shape: bf16[12,192], index: 6, kind: input, shape index: {}]
  %s7 = inlined_call_operand.vmem [shape: bf16[192,12], index: 7, kind: input, shape index: {}]
  %s8 = inlined_call_operand.vmem [shape: f32[2,128,256], index: 8, kind: output, shape index: {0}]
  %s9 = inlined_call_operand.vmem [shape: bf16[2,192,256], index: 9, kind: output, shape index: {1}]
  %10 = xla_tuple %s8, %s9
  %s11 = sld [smem:[#allocation0]]
  $region73: #{attention_forward.2} parent=0
    _
  %s13 = ssub.s32 1, %s11
  %s14 = scalar_select 0, %s13, %s11
  loop: start=0, step=1, limit=4
  $region2: #{attention_forward.2} parent=0 // loop_pre_header
    _
  $region3: #{attention_forward.2} parent=0 // loop_header
    %s16 = sphi 0, %s20
    %p17 = scmp.ge.s32.totalorder %s16, 4
    %s26 = sphi 0, %s28
    %s29 = sphi 0, %s26
    %s30 = sphi 0, %s29
    %s46 = sphi 0, %s30
    %s52 = sphi 0, %s54
    %s55 = sphi 0, %s52
    %s56 = sphi 0, %s55
    %s72 = sphi 0, %s56
    %s76 = sphi 0, %s76
    %s78 = sphi 0, %s76
    %s79 = sphi 0, %s78
    %s93 = sphi 0, %s79
    %s97 = sphi 0, %s97
    %s99 = sphi 0, %s97
    %s100 = sphi 0, %s99
    %s114 = sphi 0, %s100
    %s118 = sphi 0, %s118
    %s120 = sphi 0, %s118
    %s121 = sphi 0, %s120
    %s135 = sphi 0, %s121
    %s139 = sphi 0, %s139
    %s141 = sphi 0, %s139
    %s142 = sphi 0, %s141
    %s156 = sphi 0, %s142
    %s160 = sphi 0, %s160
    %s162 = sphi 0, %s160
    %s163 = sphi 0, %s162
    %s177 = sphi 0, %s163
    %s181 = sphi 0, %s181
    %s183 = sphi 0, %s181
    %s184 = sphi 0, %s183
    %s198 = sphi 0, %s184
    %s204 = sphi 0, %s206
    %s207 = sphi 0, %s204
    %s208 = sphi 0, %s207
    %s224 = sphi 0, %s208
    %s230 = sphi 0, %s232
    %s233 = sphi 0, %s230
    %s234 = sphi 0, %s233
    %s250 = sphi 0, %s234
  $region4: #{attention_forward.2} parent=0 // loop_header_branch
    %19 = sbr.rel (%p17) target = $region8
  $region5: #{attention_forward.2} parent=0 // loop_body
    %s21 = ssub.s32 %s16, 1
    %s22 = ssub.s32 %s16, 2
    %s23 = sadd.s32 %s16, 1
    %s24 = ssub.s32 %s16, %s23
    %p25 = scmp.eq.s32.totalorder %s24, 0
    %s27 = sadd.s32 %s26, 1
    %s28 = scalar_select %p25, %s26, %s27
    %p31 = pneg %p25
    %p32 = scmp.eq.s32.totalorder %s16, 1
    %p33 = por %p31, %p32
    %p34 = scmp.ne.s32.totalorder %s26, %s29
    %p35 = scmp.eq.s32.totalorder %s16, 0
    %p36 = por %p34, %p35
    %p37 = scmp.ne.s32.totalorder %s26, %s29
    %p38 = scmp.eq.s32.totalorder %s21, 1
    %p39 = por %p37, %p38
    %p40 = scmp.ne.s32.totalorder %s29, %s30
    %p41 = scmp.eq.s32.totalorder %s21, 0
    %p42 = por %p40, %p41
    %p43 = scmp.ne.s32.totalorder %s29, %s30
    %p44 = scmp.eq.s32.totalorder %s22, 1
    %p45 = por %p43, %p44
    %p47 = scmp.ne.s32.totalorder %s30, %s46
    %p48 = scmp.eq.s32.totalorder %s22, 0
    %p49 = por %p47, %p48
    %s50 = ssub.s32 %s16, %s23
    %p51 = scmp.eq.s32.totalorder %s50, 0
    %s53 = sadd.s32 %s52, 1
    %s54 = scalar_select %p51, %s52, %s53
    %p57 = pneg %p51
    %p58 = scmp.eq.s32.totalorder %s16, 1
    %p59 = por %p57, %p58
    %p60 = scmp.ne.s32.totalorder %s52, %s55
    %p61 = scmp.eq.s32.totalorder %s16, 0
    %p62 = por %p60, %p61
    %p63 = scmp.ne.s32.totalorder %s52, %s55
    %p64 = scmp.eq.s32.totalorder %s21, 1
    %p65 = por %p63, %p64
    %p66 = scmp.ne.s32.totalorder %s55, %s56
    %p67 = scmp.eq.s32.totalorder %s21, 0
    %p68 = por %p66, %p67
    %p69 = scmp.ne.s32.totalorder %s55, %s56
    %p70 = scmp.eq.s32.totalorder %s22, 1
    %p71 = por %p69, %p70
    %p73 = scmp.ne.s32.totalorder %s56, %s72
    %p74 = scmp.eq.s32.totalorder %s22, 0
    %p75 = por %p73, %p74
    %s77 = sadd.s32 %s76, 1
    %p80 = scmp.eq.s32.totalorder %s16, 1
    %p81 = scmp.ne.s32.totalorder %s76, %s78
    %p82 = scmp.eq.s32.totalorder %s16, 0
    %p83 = por %p81, %p82
    %p84 = scmp.ne.s32.totalorder %s76, %s78
    %p85 = scmp.eq.s32.totalorder %s21, 1
    %p86 = por %p84, %p85
    %p87 = scmp.ne.s32.totalorder %s78, %s79
    %p88 = scmp.eq.s32.totalorder %s21, 0
    %p89 = por %p87, %p88
    %p90 = scmp.ne.s32.totalorder %s78, %s79
    %p91 = scmp.eq.s32.totalorder %s22, 1
    %p92 = por %p90, %p91
    %p94 = scmp.ne.s32.totalorder %s79, %s93
    %p95 = scmp.eq.s32.totalorder %s22, 0
    %p96 = por %p94, %p95
    %s98 = sadd.s32 %s97, 1
    %p101 = scmp.eq.s32.totalorder %s16, 1
    %p102 = scmp.ne.s32.totalorder %s97, %s99
    %p103 = scmp.eq.s32.totalorder %s16, 0
    %p104 = por %p102, %p103
    %p105 = scmp.ne.s32.totalorder %s97, %s99
    %p106 = scmp.eq.s32.totalorder %s21, 1
    %p107 = por %p105, %p106
    %p108 = scmp.ne.s32.totalorder %s99, %s100
    %p109 = scmp.eq.s32.totalorder %s21, 0
    %p110 = por %p108, %p109
    %p111 = scmp.ne.s32.totalorder %s99, %s100
    %p112 = scmp.eq.s32.totalorder %s22, 1
    %p113 = por %p111, %p112
    %p115 = scmp.ne.s32.totalorder %s100, %s114
    %p116 = scmp.eq.s32.totalorder %s22, 0
    %p117 = por %p115, %p116
    %s119 = sadd.s32 %s118, 1
    %p122 = scmp.eq.s32.totalorder %s16, 1
    %p123 = scmp.ne.s32.totalorder %s118, %s120
    %p124 = scmp.eq.s32.totalorder %s16, 0
    %p125 = por %p123, %p124
    %p126 = scmp.ne.s32.totalorder %s118, %s120
    %p127 = scmp.eq.s32.totalorder %s21, 1
    %p128 = por %p126, %p127
    %p129 = scmp.ne.s32.totalorder %s120, %s121
    %p130 = scmp.eq.s32.totalorder %s21, 0
    %p131 = por %p129, %p130
    %p132 = scmp.ne.s32.totalorder %s120, %s121
    %p133 = scmp.eq.s32.totalorder %s22, 1
    %p134 = por %p132, %p133
    %p136 = scmp.ne.s32.totalorder %s121, %s135
    %p137 = scmp.eq.s32.totalorder %s22, 0
    %p138 = por %p136, %p137
    %s140 = sadd.s32 %s139, 1
    %p143 = scmp.eq.s32.totalorder %s16, 1
    %p144 = scmp.ne.s32.totalorder %s139, %s141
    %p145 = scmp.eq.s32.totalorder %s16, 0
    %p146 = por %p144, %p145
    %p147 = scmp.ne.s32.totalorder %s139, %s141
    %p148 = scmp.eq.s32.totalorder %s21, 1
    %p149 = por %p147, %p148
    %p150 = scmp.ne.s32.totalorder %s141, %s142
    %p151 = scmp.eq.s32.totalorder %s21, 0
    %p152 = por %p150, %p151
    %p153 = scmp.ne.s32.totalorder %s141, %s142
    %p154 = scmp.eq.s32.totalorder %s22, 1
    %p155 = por %p153, %p154
    %p157 = scmp.ne.s32.totalorder %s142, %s156
    %p158 = scmp.eq.s32.totalorder %s22, 0
    %p159 = por %p157, %p158
    %s161 = sadd.s32 %s160, 1
    %p164 = scmp.eq.s32.totalorder %s16, 1
    %p165 = scmp.ne.s32.totalorder %s160, %s162
    %p166 = scmp.eq.s32.totalorder %s16, 0
    %p167 = por %p165, %p166
    %p168 = scmp.ne.s32.totalorder %s160, %s162
    %p169 = scmp.eq.s32.totalorder %s21, 1
    %p170 = por %p168, %p169
    %p171 = scmp.ne.s32.totalorder %s162, %s163
    %p172 = scmp.eq.s32.totalorder %s21, 0
    %p173 = por %p171, %p172
    %p174 = scmp.ne.s32.totalorder %s162, %s163
    %p175 = scmp.eq.s32.totalorder %s22, 1
    %p176 = por %p174, %p175
    %p178 = scmp.ne.s32.totalorder %s163, %s177
    %p179 = scmp.eq.s32.totalorder %s22, 0
    %p180 = por %p178, %p179
    %s182 = sadd.s32 %s181, 1
    %p185 = scmp.eq.s32.totalorder %s16, 1
    %p186 = scmp.ne.s32.totalorder %s181, %s183
    %p187 = scmp.eq.s32.totalorder %s16, 0
    %p188 = por %p186, %p187
    %p189 = scmp.ne.s32.totalorder %s181, %s183
    %p190 = scmp.eq.s32.totalorder %s21, 1
    %p191 = por %p189, %p190
    %p192 = scmp.ne.s32.totalorder %s183, %s184
    %p193 = scmp.eq.s32.totalorder %s21, 0
    %p194 = por %p192, %p193
    %p195 = scmp.ne.s32.totalorder %s183, %s184
    %p196 = scmp.eq.s32.totalorder %s22, 1
    %p197 = por %p195, %p196
    %p199 = scmp.ne.s32.totalorder %s184, %s198
    %p200 = scmp.eq.s32.totalorder %s22, 0
    %p201 = por %p199, %p200
    %s202 = ssub.s32 %s16, %s23
    %p203 = scmp.eq.s32.totalorder %s202, 0
    %s205 = sadd.s32 %s204, 1
    %s206 = scalar_select %p203, %s204, %s205
    %p209 = pneg %p203
    %p210 = scmp.eq.s32.totalorder %s16, 1
    %p211 = por %p209, %p210
    %p212 = scmp.ne.s32.totalorder %s204, %s207
    %p213 = scmp.eq.s32.totalorder %s16, 0
    %p214 = por %p212, %p213
    %p215 = scmp.ne.s32.totalorder %s204, %s207
    %p216 = scmp.eq.s32.totalorder %s21, 1
    %p217 = por %p215, %p216
    %p218 = scmp.ne.s32.totalorder %s207, %s208
    %p219 = scmp.eq.s32.totalorder %s21, 0
    %p220 = por %p218, %p219
    %p221 = scmp.ne.s32.totalorder %s207, %s208
    %p222 = scmp.eq.s32.totalorder %s22, 1
    %p223 = por %p221, %p222
    %p225 = scmp.ne.s32.totalorder %s208, %s224
    %p226 = scmp.eq.s32.totalorder %s22, 0
    %p227 = por %p225, %p226
    %s228 = ssub.s32 %s16, %s23
    %p229 = scmp.eq.s32.totalorder %s228, 0
    %s231 = sadd.s32 %s230, 1
    %s232 = scalar_select %p229, %s230, %s231
    %p235 = pneg %p229
    %p236 = scmp.eq.s32.totalorder %s16, 1
    %p237 = por %p235, %p236
    %p238 = scmp.ne.s32.totalorder %s230, %s233
    %p239 = scmp.eq.s32.totalorder %s16, 0
    %p240 = por %p238, %p239
    %p241 = scmp.ne.s32.totalorder %s230, %s233
    %p242 = scmp.eq.s32.totalorder %s21, 1
    %p243 = por %p241, %p242
    %p244 = scmp.ne.s32.totalorder %s233, %s234
    %p245 = scmp.eq.s32.totalorder %s21, 0
    %p246 = por %p244, %p245
    %p247 = scmp.ne.s32.totalorder %s233, %s234
    %p248 = scmp.eq.s32.totalorder %s22, 1
    %p249 = por %p247, %p248
    %p251 = scmp.ne.s32.totalorder %s234, %s250
    %p252 = scmp.eq.s32.totalorder %s22, 0
    %p253 = por %p251, %p252
    %p254 = scmp.le.s32.totalorder 1, %s16
    %p255 = scmp.lt.s32.totalorder %s16, 3
    %p256 = pnand %p254, %p255
    %p257 = pneg %p256
    // Predicated region
    $region9: #{attention_forward.2} parent=5 // pred_check
      _
    $region10: #{attention_forward.2} parent=5 // pred_check_branch
      %259 = sbr.rel (%p256) target = $region12
    $region11: #{attention_forward.2} parent=5 // pred_region
      %s260 = ssub.s32 %s16, 1
      // Predicated region
      $region13: #{attention_forward.2} parent=11 // pred_check
        %p261 = pneg %p89
      $region14: #{attention_forward.2} parent=11 // pred_check_branch
        %263 = sbr.rel (%p261) target = $region16
      $region15: #{attention_forward.2} parent=11 // pred_region
        _
      $region16: #{attention_forward.2} parent=11 // pred_fallthru
        _
      // Predicated region
      $region17: #{attention_forward.2} parent=11 // pred_check
        %p264 = pneg %p110
      $region18: #{attention_forward.2} parent=11 // pred_check_branch
        %266 = sbr.rel (%p264) target = $region20
      $region19: #{attention_forward.2} parent=11 // pred_region
        _
      $region20: #{attention_forward.2} parent=11 // pred_fallthru
        _
      // Predicated region
      $region21: #{attention_forward.2} parent=11 // pred_check
        %p267 = pneg %p131
      $region22: #{attention_forward.2} parent=11 // pred_check_branch
        %269 = sbr.rel (%p267) target = $region24
      $region23: #{attention_forward.2} parent=11 // pred_region
        _
      $region24: #{attention_forward.2} parent=11 // pred_fallthru
        _
      // Predicated region
      $region25: #{attention_forward.2} parent=11 // pred_check
        %p270 = pneg %p152
      $region26: #{attention_forward.2} parent=11 // pred_check_branch
        %272 = sbr.rel (%p270) target = $region28
      $region27: #{attention_forward.2} parent=11 // pred_region
        _
      $region28: #{attention_forward.2} parent=11 // pred_fallthru
        _
      // Predicated region
      $region29: #{attention_forward.2} parent=11 // pred_check
        %p273 = pneg %p173
      $region30: #{attention_forward.2} parent=11 // pred_check_branch
        %275 = sbr.rel (%p273) target = $region32
      $region31: #{attention_forward.2} parent=11 // pred_region
        _
      $region32: #{attention_forward.2} parent=11 // pred_fallthru
        _
      // Predicated region
      $region33: #{attention_forward.2} parent=11 // pred_check
        %p276 = pneg %p194
      $region34: #{attention_forward.2} parent=11 // pred_check_branch
        %278 = sbr.rel (%p276) target = $region36
      $region35: #{attention_forward.2} parent=11 // pred_region
        _
      $region36: #{attention_forward.2} parent=11 // pred_fallthru
        _
    $region12: #{attention_forward.2} parent=5 // pred_fallthru
      _
    %p279 = scmp.lt.s32.totalorder %s16, 2
    // Predicated region
    $region37: #{attention_forward.2} parent=5 // pred_check
      %p280 = pneg %p279
    $region38: #{attention_forward.2} parent=5 // pred_check_branch
      %282 = sbr.rel (%p280) target = $region40
    $region39: #{attention_forward.2} parent=5 // pred_region
      // Predicated region
      $region41: #{attention_forward.2} parent=39 // pred_check
        %p283 = pneg %p36
      $region42: #{attention_forward.2} parent=39 // pred_check_branch
        %285 = sbr.rel (%p283) target = $region44
      $region43: #{attention_forward.2} parent=39 // pred_region
        %p286 = scmp.lt.s32.totalorder %s16, 1
        %s287 = scalar_select %p286, %s16, 1
        %s288 = smul.addr %s287, 144
        %s289 = smul.addr %s288, 4
        %s290 = scalar_lea.vmem %s0, %s289
      $region44: #{attention_forward.2} parent=39 // pred_fallthru
        _
      // Predicated region
      $region45: #{attention_forward.2} parent=39 // pred_check
        %p291 = pneg %p62
      $region46: #{attention_forward.2} parent=39 // pred_check_branch
        %293 = sbr.rel (%p291) target = $region48
      $region47: #{attention_forward.2} parent=39 // pred_region
        %p294 = scmp.lt.s32.totalorder %s16, 1
        %s295 = scalar_select %p294, %s16, 1
        %s296 = smul.addr %s295, 144
        %s297 = smul.addr %s296, 4
        %s298 = scalar_lea.vmem %s1, %s297
      $region48: #{attention_forward.2} parent=39 // pred_fallthru
        _
    $region40: #{attention_forward.2} parent=5 // pred_fallthru
      _
    %p299 = scmp.le.s32.totalorder 1, %s16
    %p300 = scmp.lt.s32.totalorder %s16, 3
    %p301 = pnand %p299, %p300
    %p302 = pneg %p301
    // Predicated region
    $region49: #{attention_forward.2} parent=5 // pred_check
      _
    $region50: #{attention_forward.2} parent=5 // pred_check_branch
      %304 = sbr.rel (%p301) target = $region52
    $region51: #{attention_forward.2} parent=5 // pred_region
      %s305 = ssub.s32 %s16, 1
      %p306 = scmp.lt.s32.totalorder %s21, 1
      %s307 = scalar_select %p306, %s21, 1
      %s308 = smul.addr %s307, 144
      %s309 = smul.addr %s308, 4
      %s310 = scalar_lea.vmem %s0, %s309
      %p311 = pneg %p42
      %p312 = pneg %p39
      %p313 = scmp.lt.s32.totalorder %s21, 1
      %s314 = scalar_select %p313, %s21, 1
      %s315 = smul.addr %s314, 144
      %s316 = smul.addr %s315, 4
      %s317 = scalar_lea.vmem %s1, %s316
      %p318 = pneg %p68
      %p319 = pneg %p65
      %p320 = pneg %p89
      %p321 = pneg %p86
      %p322 = pneg %p110
      %p323 = pneg %p107
      %p324 = pneg %p131
      %p325 = pneg %p128
      %p326 = pneg %p152
      %p327 = pneg %p149
      %p328 = pneg %p173
      %p329 = pneg %p170
      %p330 = pneg %p194
      %p331 = pneg %p191
      %p332 = pneg %p220
      %p333 = pneg %p217
      %p334 = scmp.lt.s32.totalorder %s21, 1
      %s335 = scalar_select %p334, %s21, 1
      %s336 = smul.addr %s335, 32
      %s337 = smul.addr %s336, 8
      %s338 = scalar_lea.vmem %s8, %s337
      %p339 = pneg %p246
      %p340 = pneg %p243
      %p341 = scmp.lt.s32.totalorder %s21, 1
      %s342 = scalar_select %p341, %s21, 1
      %s343 = smul.addr %s342, 48
      %s344 = smul.addr %s343, 4
      %s345 = scalar_lea.vmem %s9, %s344
      %p346 = scmp.lt.s32.totalorder %s21, 1
      %s347 = scalar_select %p346, %s21, 1
      %s348 = smul.addr %s347, 144
      %s349 = smul.addr %s348, 4
      %s350 = scalar_lea.vmem %s0, %s349
      %p351 = scmp.lt.s32.totalorder %s21, 1
      %s352 = scalar_select %p351, %s21, 1
      %s353 = smul.addr %s352, 144
      %s354 = smul.addr %s353, 4
      %s355 = scalar_lea.vmem %s1, %s354
      %p356 = scmp.lt.s32.totalorder %s21, 1
      %s357 = scalar_select %p356, %s21, 1
      %s358 = smul.addr %s357, 32
      %s359 = smul.addr %s358, 8
      %s360 = scalar_lea.vmem %s8, %s359
      %p361 = scmp.lt.s32.totalorder %s21, 1
      %s362 = scalar_select %p361, %s21, 1
      %s363 = smul.addr %s362, 48
      %s364 = smul.addr %s363, 4
      %s365 = scalar_lea.vmem %s9, %s364
      %v367 = vld [vmem:[%s2] sm:$0xff]
      %v368 = vld [vmem:[%s2 + $0x8] sm:$0xff]
      %v369 = vld [vmem:[%s2 + $0x10] sm:$0xf]
      %v370 = vld [vmem:[%s2 + $0x14] sm:$0xff]
      %v371 = vld [vmem:[%s2 + $0x1c] sm:$0xff]
      %v372 = vld [vmem:[%s2 + $0x24] sm:$0xf]
      %v373 = vld [vmem:[%s2 + $0x28] sm:$0xff]
      %v374 = vld [vmem:[%s2 + $0x30] sm:$0xff]
      %v375 = vld [vmem:[%s2 + $0x38] sm:$0xf]
      %v376 = vld [vmem:[%s2 + $0x3c] sm:$0xff]
      %v377 = vld [vmem:[%s2 + $0x44] sm:$0xff]
      %v378 = vld [vmem:[%s2 + $0x4c] sm:$0xf]
      %v379 = vld [vmem:[%s2 + $0x50] sm:$0xff]
      %v380 = vld [vmem:[%s2 + $0x58] sm:$0xff]
      %v381 = vld [vmem:[%s2 + $0x60] sm:$0xf]
      %v382 = vld [vmem:[%s2 + $0x64] sm:$0xff]
      %v383 = vld [vmem:[%s2 + $0x6c] sm:$0xff]
      %v384 = vld [vmem:[%s2 + $0x74] sm:$0xf]
      %v385 = vld [vmem:[%s2 + $0x78] sm:$0xff]
      %v386 = vld [vmem:[%s2 + $0x80] sm:$0xff]
      %v387 = vld [vmem:[%s2 + $0x88] sm:$0xf]
      %v388 = vld [vmem:[%s2 + $0x8c] sm:$0xff]
      %v389 = vld [vmem:[%s2 + $0x94] sm:$0xff]
      %v390 = vld [vmem:[%s2 + $0x9c] sm:$0xf]
      %v391 = vld [vmem:[%s350] sm:$0xff]
      %v392 = vld [vmem:[%s350 + $0x8] sm:$0xff]
      %v393 = vld [vmem:[%s350 + $0x10] sm:$0xff]
      %v394 = vld [vmem:[%s350 + $0x18] sm:$0xff]
      %v395 = vld [vmem:[%s350 + $0x20] sm:$0xff]
      %v396 = vld [vmem:[%s350 + $0x28] sm:$0xff]
      %v397 = vld [vmem:[%s350 + $0x30] sm:$0xff]
      %v398 = vld [vmem:[%s350 + $0x38] sm:$0xff]
      %v399 = vld [vmem:[%s350 + $0x40] sm:$0xff]
      %v400 = vld [vmem:[%s350 + $0x48] sm:$0xff]
      %v401 = vld [vmem:[%s350 + $0x50] sm:$0xff]
      %v402 = vld [vmem:[%s350 + $0x58] sm:$0xff]
      %v403 = vld [vmem:[%s350 + $0x60] sm:$0xff]
      %v404 = vld [vmem:[%s350 + $0x68] sm:$0xff]
      %v405 = vld [vmem:[%s350 + $0x70] sm:$0xff]
      %v406 = vld [vmem:[%s350 + $0x78] sm:$0xff]
      %v407 = vld [vmem:[%s350 + $0x80] sm:$0xff]
      %v408 = vld [vmem:[%s350 + $0x88] sm:$0xff]
      %v409 = vld [vmem:[%s350 + $0x90] sm:$0xff]
      %v410 = vld [vmem:[%s350 + $0x98] sm:$0xff]
      %v411 = vld [vmem:[%s350 + $0xa0] sm:$0xff]
      %v412 = vld [vmem:[%s350 + $0xa8] sm:$0xff]
      %v413 = vld [vmem:[%s350 + $0xb0] sm:$0xff]
      %v414 = vld [vmem:[%s350 + $0xb8] sm:$0xff]
      %v415 = vld [vmem:[%s350 + $0xc0] sm:$0xff]
      %v416 = vld [vmem:[%s350 + $0xc8] sm:$0xff]
      %v417 = vld [vmem:[%s350 + $0xd0] sm:$0xff]
      %v418 = vld [vmem:[%s350 + $0xd8] sm:$0xff]
      %v419 = vld [vmem:[%s350 + $0xe0] sm:$0xff]
      %v420 = vld [vmem:[%s350 + $0xe8] sm:$0xff]
      %v421 = vld [vmem:[%s350 + $0xf0] sm:$0xff]
      %v422 = vld [vmem:[%s350 + $0xf8] sm:$0xff]
      %v423 = vld [vmem:[%s350 + $0x100] sm:$0xff]
      %v424 = vld [vmem:[%s350 + $0x108] sm:$0xff]
      %v425 = vld [vmem:[%s350 + $0x110] sm:$0xff]
      %v426 = vld [vmem:[%s350 + $0x118] sm:$0xff]
      %v427 = vld [vmem:[%s350 + $0x120] sm:$0xff]
      %v428 = vld [vmem:[%s350 + $0x128] sm:$0xff]
      %v429 = vld [vmem:[%s350 + $0x130] sm:$0xff]
      %v430 = vld [vmem:[%s350 + $0x138] sm:$0xff]
      %v431 = vld [vmem:[%s350 + $0x140] sm:$0xff]
      %v432 = vld [vmem:[%s350 + $0x148] sm:$0xff]
      %v433 = vld [vmem:[%s350 + $0x150] sm:$0xff]
      %v434 = vld [vmem:[%s350 + $0x158] sm:$0xff]
      %v435 = vld [vmem:[%s350 + $0x160] sm:$0xff]
      %v436 = vld [vmem:[%s350 + $0x168] sm:$0xff]
      %v437 = vld [vmem:[%s350 + $0x170] sm:$0xff]
      %v438 = vld [vmem:[%s350 + $0x178] sm:$0xff]
      %v439 = vld [vmem:[%s350 + $0x180] sm:$0xff]
      %v440 = vld [vmem:[%s350 + $0x188] sm:$0xff]
      %v441 = vld [vmem:[%s350 + $0x190] sm:$0xff]
      %v442 = vld [vmem:[%s350 + $0x198] sm:$0xff]
      %v443 = vld [vmem:[%s350 + $0x1a0] sm:$0xff]
      %v444 = vld [vmem:[%s350 + $0x1a8] sm:$0xff]
      %v445 = vld [vmem:[%s350 + $0x1b0] sm:$0xff]
      %v446 = vld [vmem:[%s350 + $0x1b8] sm:$0xff]
      %v447 = vld [vmem:[%s350 + $0x1c0] sm:$0xff]
      %v448 = vld [vmem:[%s350 + $0x1c8] sm:$0xff]
      %v449 = vld [vmem:[%s350 + $0x1d0] sm:$0xff]
      %v450 = vld [vmem:[%s350 + $0x1d8] sm:$0xff]
      %v451 = vld [vmem:[%s350 + $0x1e0] sm:$0xff]
      %v452 = vld [vmem:[%s350 + $0x1e8] sm:$0xff]
      %v453 = vld [vmem:[%s350 + $0x1f0] sm:$0xff]
      %v454 = vld [vmem:[%s350 + $0x1f8] sm:$0xff]
      %v455 = vld [vmem:[%s350 + $0x200] sm:$0xff]
      %v456 = vld [vmem:[%s350 + $0x208] sm:$0xff]
      %v457 = vld [vmem:[%s350 + $0x210] sm:$0xff]
      %v458 = vld [vmem:[%s350 + $0x218] sm:$0xff]
      %v459 = vld [vmem:[%s350 + $0x220] sm:$0xff]
      %v460 = vld [vmem:[%s350 + $0x228] sm:$0xff]
      %v461 = vld [vmem:[%s350 + $0x230] sm:$0xff]
      %v462 = vld [vmem:[%s350 + $0x238] sm:$0xff]
      %v463 = vld [vmem:[%s3] sm:$0xff]
      %v464 = vld [vmem:[%s3 + $0x8] sm:$0xff]
      %v465 = vld [vmem:[%s3 + $0x10] sm:$0xff]
      %v466 = vld [vmem:[%s3 + $0x18] sm:$0xff]
      %v467 = vld [vmem:[%s3 + $0x20] sm:$0xff]
      %v468 = vld [vmem:[%s3 + $0x28] sm:$0xff]
      %v469 = vld [vmem:[%s3 + $0x30] sm:$0xff]
      %v470 = vld [vmem:[%s3 + $0x38] sm:$0xff]
      %472 = vset.pattern.permute.xlu0 0
      %473 = vperm.xlu0 %472, %v463
      %v474 = vpop.permute.xlu0 %473
      %477 = vset.pattern.permute.xlu0 0
      %478 = vperm.xlu0 %477, %v464
      %v479 = vpop.permute.xlu0 %478
      %482 = vset.pattern.permute.xlu0 0
      %483 = vperm.xlu0 %482, %v465
      %v484 = vpop.permute.xlu0 %483
      %487 = vset.pattern.permute.xlu0 0
      %488 = vperm.xlu0 %487, %v466
      %v489 = vpop.permute.xlu0 %488
      %492 = vset.pattern.permute.xlu0 0
      %493 = vperm.xlu0 %492, %v467
      %v494 = vpop.permute.xlu0 %493
      %497 = vset.pattern.permute.xlu0 0
      %498 = vperm.xlu0 %497, %v468
      %v499 = vpop.permute.xlu0 %498
      %502 = vset.pattern.permute.xlu0 0
      %503 = vperm.xlu0 %502, %v469
      %v504 = vpop.permute.xlu0 %503
      %507 = vset.pattern.permute.xlu0 0
      %508 = vperm.xlu0 %507, %v470
      %v509 = vpop.permute.xlu0 %508
      %v535 = vunpack.c.l.b16 %v367
      %v536 = vunpack.c.h.b16 %v367
      %v537 = vunpack.c.l.b16 %v368
      %v538 = vunpack.c.h.b16 %v368
      %v539 = vunpack.c.l.b16 %v369
      %v540 = vunpack.c.l.b16 %v370
      %v541 = vunpack.c.h.b16 %v370
      %v542 = vunpack.c.l.b16 %v371
      %v543 = vunpack.c.h.b16 %v371
      %v544 = vunpack.c.l.b16 %v372
      %v545 = vunpack.c.l.b16 %v373
      %v546 = vunpack.c.h.b16 %v373
      %v547 = vunpack.c.l.b16 %v374
      %v548 = vunpack.c.h.b16 %v374
      %v549 = vunpack.c.l.b16 %v375
      %v550 = vunpack.c.l.b16 %v376
      %v551 = vunpack.c.h.b16 %v376
      %v552 = vunpack.c.l.b16 %v377
      %v553 = vunpack.c.h.b16 %v377
      %v554 = vunpack.c.l.b16 %v378
      %v555 = vunpack.c.l.b16 %v379
      %v556 = vunpack.c.h.b16 %v379
      %v557 = vunpack.c.l.b16 %v380
      %v558 = vunpack.c.h.b16 %v380
      %v559 = vunpack.c.l.b16 %v381
      %v560 = vunpack.c.l.b16 %v382
      %v561 = vunpack.c.h.b16 %v382
      %v562 = vunpack.c.l.b16 %v383
      %v563 = vunpack.c.h.b16 %v383
      %v564 = vunpack.c.l.b16 %v384
      %v565 = vunpack.c.l.b16 %v385
      %v566 = vunpack.c.h.b16 %v385
      %v567 = vunpack.c.l.b16 %v386
      %v568 = vunpack.c.h.b16 %v386
      %v569 = vunpack.c.l.b16 %v387
      %v570 = vunpack.c.l.b16 %v388
      %v571 = vunpack.c.h.b16 %v388
      %v572 = vunpack.c.l.b16 %v389
      %v573 = vunpack.c.h.b16 %v389
      %v574 = vunpack.c.l.b16 %v390
      %v575 = vpack.c.b16 %v540, %v535
      %v576 = vpack.c.b16 %v541, %v536
      %v577 = vpack.c.b16 %v542, %v537
      %v578 = vpack.c.b16 %v543, %v538
      %v579 = vpack.c.b16 %v544, %v539
      %v580 = vpack.c.b16 %v550, %v545
      %v581 = vpack.c.b16 %v551, %v546
      %v582 = vpack.c.b16 %v552, %v547
      %v583 = vpack.c.b16 %v553, %v548
      %v584 = vpack.c.b16 %v554, %v549
      %v585 = vpack.c.b16 %v560, %v555
      %v586 = vpack.c.b16 %v561, %v556
      %v587 = vpack.c.b16 %v562, %v557
      %v588 = vpack.c.b16 %v563, %v558
      %v589 = vpack.c.b16 %v564, %v559
      %v590 = vpack.c.b16 %v570, %v565
      %v591 = vpack.c.b16 %v571, %v566
      %v592 = vpack.c.b16 %v572, %v567
      %v593 = vpack.c.b16 %v573, %v568
      %v594 = vpack.c.b16 %v574, %v569
      %v683 = vunpack.c.l.b16 %v391
      %v684 = vunpack.c.h.b16 %v391
      %v685 = vunpack.c.l.b16 %v392
      %v686 = vunpack.c.h.b16 %v392
      %v687 = vunpack.c.l.b16 %v393
      %v688 = vunpack.c.h.b16 %v393
      %v689 = vunpack.c.l.b16 %v394
      %v690 = vunpack.c.h.b16 %v394
      %v691 = vunpack.c.l.b16 %v395
      %v692 = vunpack.c.h.b16 %v395
      %v693 = vunpack.c.l.b16 %v396
      %v694 = vunpack.c.h.b16 %v396
      %v695 = vunpack.c.l.b16 %v397
      %v696 = vunpack.c.h.b16 %v397
      %v697 = vunpack.c.l.b16 %v398
      %v698 = vunpack.c.h.b16 %v398
      %v699 = vunpack.c.l.b16 %v399
      %v700 = vunpack.c.h.b16 %v399
      %v701 = vunpack.c.l.b16 %v400
      %v702 = vunpack.c.h.b16 %v400
      %v703 = vunpack.c.l.b16 %v401
      %v704 = vunpack.c.h.b16 %v401
      %v705 = vunpack.c.l.b16 %v402
      %v706 = vunpack.c.h.b16 %v402
      %v707 = vunpack.c.l.b16 %v403
      %v708 = vunpack.c.h.b16 %v403
      %v709 = vunpack.c.l.b16 %v404
      %v710 = vunpack.c.h.b16 %v404
      %v711 = vunpack.c.l.b16 %v405
      %v712 = vunpack.c.h.b16 %v405
      %v713 = vunpack.c.l.b16 %v406
      %v714 = vunpack.c.h.b16 %v406
      %v715 = vunpack.c.l.b16 %v407
      %v716 = vunpack.c.h.b16 %v407
      %v717 = vunpack.c.l.b16 %v408
      %v718 = vunpack.c.h.b16 %v408
      %v719 = vunpack.c.l.b16 %v409
      %v720 = vunpack.c.h.b16 %v409
      %v721 = vunpack.c.l.b16 %v410
      %v722 = vunpack.c.h.b16 %v410
      %v723 = vunpack.c.l.b16 %v411
      %v724 = vunpack.c.h.b16 %v411
      %v725 = vunpack.c.l.b16 %v412
      %v726 = vunpack.c.h.b16 %v412
      %v727 = vunpack.c.l.b16 %v413
      %v728 = vunpack.c.h.b16 %v413
      %v729 = vunpack.c.l.b16 %v414
      %v730 = vunpack.c.h.b16 %v414
      %v731 = vunpack.c.l.b16 %v415
      %v732 = vunpack.c.h.b16 %v415
      %v733 = vunpack.c.l.b16 %v416
      %v734 = vunpack.c.h.b16 %v416
      %v735 = vunpack.c.l.b16 %v417
      %v736 = vunpack.c.h.b16 %v417
      %v737 = vunpack.c.l.b16 %v418
      %v738 = vunpack.c.h.b16 %v418
      %v739 = vunpack.c.l.b16 %v419
      %v740 = vunpack.c.h.b16 %v419
      %v741 = vunpack.c.l.b16 %v420
      %v742 = vunpack.c.h.b16 %v420
      %v743 = vunpack.c.l.b16 %v421
      %v744 = vunpack.c.h.b16 %v421
      %v745 = vunpack.c.l.b16 %v422
      %v746 = vunpack.c.h.b16 %v422
      %v747 = vunpack.c.l.b16 %v423
      %v748 = vunpack.c.h.b16 %v423
      %v749 = vunpack.c.l.b16 %v424
      %v750 = vunpack.c.h.b16 %v424
      %v751 = vunpack.c.l.b16 %v425
      %v752 = vunpack.c.h.b16 %v425
      %v753 = vunpack.c.l.b16 %v426
      %v754 = vunpack.c.h.b16 %v426
      %v755 = vunpack.c.l.b16 %v427
      %v756 = vunpack.c.h.b16 %v427
      %v757 = vunpack.c.l.b16 %v428
      %v758 = vunpack.c.h.b16 %v428
      %v759 = vunpack.c.l.b16 %v429
      %v760 = vunpack.c.h.b16 %v429
      %v761 = vunpack.c.l.b16 %v430
      %v762 = vunpack.c.h.b16 %v430
      %v763 = vunpack.c.l.b16 %v431
      %v764 = vunpack.c.h.b16 %v431
      %v765 = vunpack.c.l.b16 %v432
      %v766 = vunpack.c.h.b16 %v432
      %v767 = vunpack.c.l.b16 %v433
      %v768 = vunpack.c.h.b16 %v433
      %v769 = vunpack.c.l.b16 %v434
      %v770 = vunpack.c.h.b16 %v434
      %v771 = vunpack.c.l.b16 %v435
      %v772 = vunpack.c.h.b16 %v435
      %v773 = vunpack.c.l.b16 %v436
      %v774 = vunpack.c.h.b16 %v436
      %v775 = vunpack.c.l.b16 %v437
      %v776 = vunpack.c.h.b16 %v437
      %v777 = vunpack.c.l.b16 %v438
      %v778 = vunpack.c.h.b16 %v438
      %v779 = vunpack.c.l.b16 %v439
      %v780 = vunpack.c.h.b16 %v439
      %v781 = vunpack.c.l.b16 %v440
      %v782 = vunpack.c.h.b16 %v440
      %v783 = vunpack.c.l.b16 %v441
      %v784 = vunpack.c.h.b16 %v441
      %v785 = vunpack.c.l.b16 %v442
      %v786 = vunpack.c.h.b16 %v442
      %v787 = vunpack.c.l.b16 %v443
      %v788 = vunpack.c.h.b16 %v443
      %v789 = vunpack.c.l.b16 %v444
      %v790 = vunpack.c.h.b16 %v444
      %v791 = vunpack.c.l.b16 %v445
      %v792 = vunpack.c.h.b16 %v445
      %v793 = vunpack.c.l.b16 %v446
      %v794 = vunpack.c.h.b16 %v446
      %v795 = vunpack.c.l.b16 %v447
      %v796 = vunpack.c.h.b16 %v447
      %v797 = vunpack.c.l.b16 %v448
      %v798 = vunpack.c.h.b16 %v448
      %v799 = vunpack.c.l.b16 %v449
      %v800 = vunpack.c.h.b16 %v449
      %v801 = vunpack.c.l.b16 %v450
      %v802 = vunpack.c.h.b16 %v450
      %v803 = vunpack.c.l.b16 %v451
      %v804 = vunpack.c.h.b16 %v451
      %v805 = vunpack.c.l.b16 %v452
      %v806 = vunpack.c.h.b16 %v452
      %v807 = vunpack.c.l.b16 %v453
      %v808 = vunpack.c.h.b16 %v453
      %v809 = vunpack.c.l.b16 %v454
      %v810 = vunpack.c.h.b16 %v454
      %v811 = vunpack.c.l.b16 %v455
      %v812 = vunpack.c.h.b16 %v455
      %v813 = vunpack.c.l.b16 %v456
      %v814 = vunpack.c.h.b16 %v456
      %v815 = vunpack.c.l.b16 %v457
      %v816 = vunpack.c.h.b16 %v457
      %v817 = vunpack.c.l.b16 %v458
      %v818 = vunpack.c.h.b16 %v458
      %v819 = vunpack.c.l.b16 %v459
      %v820 = vunpack.c.h.b16 %v459
      %v821 = vunpack.c.l.b16 %v460
      %v822 = vunpack.c.h.b16 %v460
      %v823 = vunpack.c.l.b16 %v461
      %v824 = vunpack.c.h.b16 %v461
      %v825 = vunpack.c.l.b16 %v462
      %v826 = vunpack.c.h.b16 %v462
      %v827 = vpack.c.b16 %v685, %v683
      %v828 = vpack.c.b16 %v686, %v684
      %v829 = vpack.c.b16 %v689, %v687
      %v830 = vpack.c.b16 %v690, %v688
      %v831 = vpack.c.b16 %v693, %v691
      %v832 = vpack.c.b16 %v694, %v692
      %v833 = vpack.c.b16 %v697, %v695
      %v834 = vpack.c.b16 %v698, %v696
      %v835 = vpack.c.b16 %v701, %v699
      %v836 = vpack.c.b16 %v702, %v700
      %v837 = vpack.c.b16 %v705, %v703
      %v838 = vpack.c.b16 %v706, %v704
      %v839 = vpack.c.b16 %v709, %v707
      %v840 = vpack.c.b16 %v710, %v708
      %v841 = vpack.c.b16 %v713, %v711
      %v842 = vpack.c.b16 %v714, %v712
      %v843 = vpack.c.b16 %v717, %v715
      %v844 = vpack.c.b16 %v718, %v716
      %v845 = vpack.c.b16 %v721, %v719
      %v846 = vpack.c.b16 %v722, %v720
      %v847 = vpack.c.b16 %v725, %v723
      %v848 = vpack.c.b16 %v726, %v724
      %v849 = vpack.c.b16 %v729, %v727
      %v850 = vpack.c.b16 %v730, %v728
      %v851 = vpack.c.b16 %v733, %v731
      %v852 = vpack.c.b16 %v734, %v732
      %v853 = vpack.c.b16 %v737, %v735
      %v854 = vpack.c.b16 %v738, %v736
      %v855 = vpack.c.b16 %v741, %v739
      %v856 = vpack.c.b16 %v742, %v740
      %v857 = vpack.c.b16 %v745, %v743
      %v858 = vpack.c.b16 %v746, %v744
      %v859 = vpack.c.b16 %v749, %v747
      %v860 = vpack.c.b16 %v750, %v748
      %v861 = vpack.c.b16 %v753, %v751
      %v862 = vpack.c.b16 %v754, %v752
      %v863 = vpack.c.b16 %v757, %v755
      %v864 = vpack.c.b16 %v758, %v756
      %v865 = vpack.c.b16 %v761, %v759
      %v866 = vpack.c.b16 %v762, %v760
      %v867 = vpack.c.b16 %v765, %v763
      %v868 = vpack.c.b16 %v766, %v764
      %v869 = vpack.c.b16 %v769, %v767
      %v870 = vpack.c.b16 %v770, %v768
      %v871 = vpack.c.b16 %v773, %v771
      %v872 = vpack.c.b16 %v774, %v772
      %v873 = vpack.c.b16 %v777, %v775
      %v874 = vpack.c.b16 %v778, %v776
      %v875 = vpack.c.b16 %v781, %v779
      %v876 = vpack.c.b16 %v782, %v780
      %v877 = vpack.c.b16 %v785, %v783
      %v878 = vpack.c.b16 %v786, %v784
      %v879 = vpack.c.b16 %v789, %v787
      %v880 = vpack.c.b16 %v790, %v788
      %v881 = vpack.c.b16 %v793, %v791
      %v882 = vpack.c.b16 %v794, %v792
      %v883 = vpack.c.b16 %v797, %v795
      %v884 = vpack.c.b16 %v798, %v796
      %v885 = vpack.c.b16 %v801, %v799
      %v886 = vpack.c.b16 %v802, %v800
      %v887 = vpack.c.b16 %v805, %v803
      %v888 = vpack.c.b16 %v806, %v804
      %v889 = vpack.c.b16 %v809, %v807
      %v890 = vpack.c.b16 %v810, %v808
      %v891 = vpack.c.b16 %v813, %v811
      %v892 = vpack.c.b16 %v814, %v812
      %v893 = vpack.c.b16 %v817, %v815
      %v894 = vpack.c.b16 %v818, %v816
      %v895 = vpack.c.b16 %v821, %v819
      %v896 = vpack.c.b16 %v822, %v820
      %v897 = vpack.c.b16 %v825, %v823
      %v898 = vpack.c.b16 %v826, %v824
      %vm971 = vcmask 523264
      %v973 = vsel %vm971, %v579, 0
      %v976 = vsel %vm971, %v584, 0
      %v979 = vsel %vm971, %v589, 0
      %v982 = vsel %vm971, %v594, 0
      %984 = vmatprep.subr.bf16.mxu0 %v842
      %985 = vmatpush1.bf16.msra.mxu0 %v841
      %986 = vmatprep.subr.bf16.mxu0 %v840
      %987 = vmatpush1.bf16.msra.mxu0 %v839
      %988 = vmatprep.subr.bf16.mxu0 %v838
      %989 = vmatpush1.bf16.msra.mxu0 %v837
      %990 = vmatprep.subr.bf16.mxu0 %v836
      %991 = vmatpush1.bf16.msra.mxu0 %v835
      %992 = vmatprep.subr.bf16.mxu0 %v834
      %993 = vmatpush1.bf16.msra.mxu0 %v833
      %994 = vmatprep.subr.bf16.mxu0 %v832
      %995 = vmatpush1.bf16.msra.mxu0 %v831
      %996 = vmatprep.subr.bf16.mxu0 %v830
      %997 = vmatpush1.bf16.msra.mxu0 %v829
      %998 = vmatprep.subr.bf16.mxu0 %v828
      %999 = vmatpush1.bf16.msra.mxu0 %v827
      %1000 = vmatprep.subr.bf16.mxu0 %v858
      %1001 = vmatpush2.bf16.msra.mxu0 %v857
      %1002 = vmatprep.subr.bf16.mxu0 %v856
      %1003 = vmatpush2.bf16.msra.mxu0 %v855
      %1004 = vmatprep.subr.bf16.mxu0 %v854
      %1005 = vmatpush2.bf16.msra.mxu0 %v853
      %1006 = vmatprep.subr.bf16.mxu0 %v852
      %1007 = vmatpush2.bf16.msra.mxu0 %v851
      %1008 = vmatprep.subr.bf16.mxu0 %v850
      %1009 = vmatpush2.bf16.msra.mxu0 %v849
      %1010 = vmatprep.subr.bf16.mxu0 %v848
      %1011 = vmatpush2.bf16.msra.mxu0 %v847
      %1012 = vmatprep.subr.bf16.mxu0 %v846
      %1013 = vmatpush2.bf16.msra.mxu0 %v845
      %1014 = vmatprep.subr.bf16.mxu0 %v844
      %1015 = vmatpush2.bf16.msra.mxu0 %v843
      %1016 = vmatprep.mubr.bf16.mxu0 %v576
      %1017 = vmatmul.mubr.bf16.gmra.mxu0 %v575
      %v1018 = vpop.f32.mrf.mxu0
      %v1019 = vadd.f32 %v474, %v1018
      %v1020 = vpop.f32.mrf.mxu0
      %v1021 = vadd.f32 %v474, %v1020
      %v1022 = vpop.f32.mrf.mxu0
      %v1023 = vadd.f32 %v479, %v1022
      %v1024 = vpop.f32.mrf.mxu0
      %v1025 = vadd.f32 %v479, %v1024
      %1026 = vmatprep.mubr.bf16.mxu0 %v581
      %1027 = vmatmul.mubr.bf16.gmra.mxu0 %v580
      %v1028 = vpop.f32.mrf.mxu0
      %v1029 = vadd.f32 %v484, %v1028
      %v1030 = vpop.f32.mrf.mxu0
      %v1031 = vadd.f32 %v484, %v1030
      %v1032 = vpop.f32.mrf.mxu0
      %v1033 = vadd.f32 %v489, %v1032
      %v1034 = vpop.f32.mrf.mxu0
      %v1035 = vadd.f32 %v489, %v1034
      %1036 = vmatprep.mubr.bf16.mxu0 %v586
      %1037 = vmatmul.mubr.bf16.gmra.mxu0 %v585
      %v1038 = vpop.f32.mrf.mxu0
      %v1039 = vadd.f32 %v494, %v1038
      %v1040 = vpop.f32.mrf.mxu0
      %v1041 = vadd.f32 %v494, %v1040
      %v1042 = vpop.f32.mrf.mxu0
      %v1043 = vadd.f32 %v499, %v1042
      %v1044 = vpop.f32.mrf.mxu0
      %v1045 = vadd.f32 %v499, %v1044
      %1046 = vmatprep.mubr.bf16.mxu0 %v591
      %1047 = vmatmul.mubr.bf16.gmra.mxu0 %v590
      %v1048 = vpop.f32.mrf.mxu0
      %v1049 = vadd.f32 %v504, %v1048
      %v1050 = vpop.f32.mrf.mxu0
      %v1051 = vadd.f32 %v504, %v1050
      %v1052 = vpop.f32.mrf.mxu0
      %v1053 = vadd.f32 %v509, %v1052
      %v1054 = vpop.f32.mrf.mxu0
      %v1055 = vadd.f32 %v509, %v1054
      %1056 = vdwg.mxu0
      %1057 = vmatprep.subr.bf16.mxu0 %v874
      %1058 = vmatpush1.bf16.msra.mxu0 %v873
      %1059 = vmatprep.subr.bf16.mxu0 %v872
      %1060 = vmatpush1.bf16.msra.mxu0 %v871
      %1061 = vmatprep.subr.bf16.mxu0 %v870
      %1062 = vmatpush1.bf16.msra.mxu0 %v869
      %1063 = vmatprep.subr.bf16.mxu0 %v868
      %1064 = vmatpush1.bf16.msra.mxu0 %v867
      %1065 = vmatprep.subr.bf16.mxu0 %v866
      %1066 = vmatpush1.bf16.msra.mxu0 %v865
      %1067 = vmatprep.subr.bf16.mxu0 %v864
      %1068 = vmatpush1.bf16.msra.mxu0 %v863
      %1069 = vmatprep.subr.bf16.mxu0 %v862
      %1070 = vmatpush1.bf16.msra.mxu0 %v861
      %1071 = vmatprep.subr.bf16.mxu0 %v860
      %1072 = vmatpush1.bf16.msra.mxu0 %v859
      %1073 = vmatprep.subr.bf16.mxu0 %v890
      %1074 = vmatpush2.bf16.msra.mxu0 %v889
      %1075 = vmatprep.subr.bf16.mxu0 %v888
      %1076 = vmatpush2.bf16.msra.mxu0 %v887
      %1077 = vmatprep.subr.bf16.mxu0 %v886
      %1078 = vmatpush2.bf16.msra.mxu0 %v885
      %1079 = vmatprep.subr.bf16.mxu0 %v884
      %1080 = vmatpush2.bf16.msra.mxu0 %v883
      %1081 = vmatprep.subr.bf16.mxu0 %v882
      %1082 = vmatpush2.bf16.msra.mxu0 %v881
      %1083 = vmatprep.subr.bf16.mxu0 %v880
      %1084 = vmatpush2.bf16.msra.mxu0 %v879
      %1085 = vmatprep.subr.bf16.mxu0 %v878
      %1086 = vmatpush2.bf16.msra.mxu0 %v877
      %1087 = vmatprep.subr.bf16.mxu0 %v876
      %1088 = vmatpush2.bf16.msra.mxu0 %v875
      %1089 = vmatprep.mubr.bf16.mxu0 %v578
      %1090 = vmatmul.mubr.bf16.gmra.mxu0 %v577
      %v1091 = vpop.f32.mrf.mxu0
      %v1092 = vadd.f32 %v1019, %v1091
      %v1093 = vpop.f32.mrf.mxu0
      %v1094 = vadd.f32 %v1021, %v1093
      %v1095 = vpop.f32.mrf.mxu0
      %v1096 = vadd.f32 %v1023, %v1095
      %v1097 = vpop.f32.mrf.mxu0
      %v1098 = vadd.f32 %v1025, %v1097
      %1099 = vmatprep.mubr.bf16.mxu0 %v583
      %1100 = vmatmul.mubr.bf16.gmra.mxu0 %v582
      %v1101 = vpop.f32.mrf.mxu0
      %v1102 = vadd.f32 %v1029, %v1101
      %v1103 = vpop.f32.mrf.mxu0
      %v1104 = vadd.f32 %v1031, %v1103
      %v1105 = vpop.f32.mrf.mxu0
      %v1106 = vadd.f32 %v1033, %v1105
      %v1107 = vpop.f32.mrf.mxu0
      %v1108 = vadd.f32 %v1035, %v1107
      %1109 = vmatprep.mubr.bf16.mxu0 %v588
      %1110 = vmatmul.mubr.bf16.gmra.mxu0 %v587
      %v1111 = vpop.f32.mrf.mxu0
      %v1112 = vadd.f32 %v1039, %v1111
      %v1113 = vpop.f32.mrf.mxu0
      %v1114 = vadd.f32 %v1041, %v1113
      %v1115 = vpop.f32.mrf.mxu0
      %v1116 = vadd.f32 %v1043, %v1115
      %v1117 = vpop.f32.mrf.mxu0
      %v1118 = vadd.f32 %v1045, %v1117
      %1119 = vmatprep.mubr.bf16.mxu0 %v593
      %1120 = vmatmul.mubr.bf16.gmra.mxu0 %v592
      %v1121 = vpop.f32.mrf.mxu0
      %v1122 = vadd.f32 %v1049, %v1121
      %v1123 = vpop.f32.mrf.mxu0
      %v1124 = vadd.f32 %v1051, %v1123
      %v1125 = vpop.f32.mrf.mxu0
      %v1126 = vadd.f32 %v1053, %v1125
      %v1127 = vpop.f32.mrf.mxu0
      %v1128 = vadd.f32 %v1055, %v1127
      %1129 = vdwg.mxu0
      %1130 = vmatprep.subr.bf16.mxu0 0
      %1131 = vmatpush1.bf16.msra.mxu0 0
      %1132 = vmatprep.subr.bf16.mxu0 0
      %1133 = vmatpush1.bf16.msra.mxu0 0
      %1134 = vmatprep.subr.bf16.mxu0 0
      %1135 = vmatpush1.bf16.msra.mxu0 0
      %1136 = vmatprep.subr.bf16.mxu0 0
      %1137 = vmatpush1.bf16.msra.mxu0 0
      %1138 = vmatprep.subr.bf16.mxu0 %v898
      %1139 = vmatpush1.bf16.msra.mxu0 %v897
      %1140 = vmatprep.subr.bf16.mxu0 %v896
      %1141 = vmatpush1.bf16.msra.mxu0 %v895
      %1142 = vmatprep.subr.bf16.mxu0 %v894
      %1143 = vmatpush1.bf16.msra.mxu0 %v893
      %1144 = vmatprep.subr.bf16.mxu0 %v892
      %1145 = vmatpush1.bf16.msra.mxu0 %v891
      %1146 = vmatprep.subr.bf16.mxu0 0
      %1147 = vmatpush2.bf16.msra.mxu0 0
      %1148 = vmatprep.subr.bf16.mxu0 0
      %1149 = vmatpush2.bf16.msra.mxu0 0
      %1150 = vmatprep.subr.bf16.mxu0 0
      %1151 = vmatpush2.bf16.msra.mxu0 0
      %1152 = vmatprep.subr.bf16.mxu0 0
      %1153 = vmatpush2.bf16.msra.mxu0 0
      %1154 = vmatprep.subr.bf16.mxu0 0
      %1155 = vmatpush2.bf16.msra.mxu0 0
      %1156 = vmatprep.subr.bf16.mxu0 0
      %1157 = vmatpush2.bf16.msra.mxu0 0
      %1158 = vmatprep.subr.bf16.mxu0 0
      %1159 = vmatpush2.bf16.msra.mxu0 0
      %1160 = vmatprep.subr.bf16.mxu0 0
      %1161 = vmatpush2.bf16.msra.mxu0 0
      %1162 = vmatprep.mubr.bf16.mxu0 0
      %1163 = vmatmul.mubr.bf16.gmra.mxu0 %v973
      %v1164 = vpop.f32.mrf.mxu0
      %v1165 = vadd.f32 %v1092, %v1164
      %v1166 = vpop.f32.mrf.mxu0
      %v1167 = vadd.f32 %v1094, %v1166
      %v1168 = vpop.f32.mrf.mxu0
      %v1169 = vadd.f32 %v1096, %v1168
      %v1170 = vpop.f32.mrf.mxu0
      %v1171 = vadd.f32 %v1098, %v1170
      %1172 = vmatprep.mubr.bf16.mxu0 0
      %1173 = vmatmul.mubr.bf16.gmra.mxu0 %v976
      %v1174 = vpop.f32.mrf.mxu0
      %v1175 = vadd.f32 %v1102, %v1174
      %v1176 = vpop.f32.mrf.mxu0
      %v1177 = vadd.f32 %v1104, %v1176
      %v1178 = vpop.f32.mrf.mxu0
      %v1179 = vadd.f32 %v1106, %v1178
      %v1180 = vpop.f32.mrf.mxu0
      %v1181 = vadd.f32 %v1108, %v1180
      %1182 = vmatprep.mubr.bf16.mxu0 0
      %1183 = vmatmul.mubr.bf16.gmra.mxu0 %v979
      %v1184 = vpop.f32.mrf.mxu0
      %v1185 = vadd.f32 %v1112, %v1184
      %v1186 = vpop.f32.mrf.mxu0
      %v1187 = vadd.f32 %v1114, %v1186
      %v1188 = vpop.f32.mrf.mxu0
      %v1189 = vadd.f32 %v1116, %v1188
      %v1190 = vpop.f32.mrf.mxu0
      %v1191 = vadd.f32 %v1118, %v1190
      %1192 = vmatprep.mubr.bf16.mxu0 0
      %1193 = vmatmul.mubr.bf16.gmra.mxu0 %v982
      %v1194 = vpop.f32.mrf.mxu0
      %v1195 = vadd.f32 %v1122, %v1194
      %v1196 = vpop.f32.mrf.mxu0
      %v1197 = vadd.f32 %v1124, %v1196
      %v1198 = vpop.f32.mrf.mxu0
      %v1199 = vadd.f32 %v1126, %v1198
      %v1200 = vpop.f32.mrf.mxu0
      %v1201 = vadd.f32 %v1128, %v1200
      %1202 = vdwg.mxu0
      %v1203 = vmax.f32 %v1165, 0.0
      %v1204 = vmax.f32 %v1167, 0.0
      %v1205 = vmax.f32 %v1169, 0.0
      %v1206 = vmax.f32 %v1171, 0.0
      %v1207 = vmax.f32 %v1175, 0.0
      %v1208 = vmax.f32 %v1177, 0.0
      %v1209 = vmax.f32 %v1179, 0.0
      %v1210 = vmax.f32 %v1181, 0.0
      %v1211 = vmax.f32 %v1185, 0.0
      %v1212 = vmax.f32 %v1187, 0.0
      %v1213 = vmax.f32 %v1189, 0.0
      %v1214 = vmax.f32 %v1191, 0.0
      %v1215 = vmax.f32 %v1195, 0.0
      %v1216 = vmax.f32 %v1197, 0.0
      %v1217 = vmax.f32 %v1199, 0.0
      %v1218 = vmax.f32 %v1201, 0.0
      %s1219 = scalar_lea.vmem %s2, 160
      %v1220 = vld [vmem:[%s1219] sm:$0xff]
      %v1221 = vld [vmem:[%s1219 + $0x8] sm:$0xff]
      %v1222 = vld [vmem:[%s1219 + $0x10] sm:$0xf]
      %v1223 = vld [vmem:[%s1219 + $0x14] sm:$0xff]
      %v1224 = vld [vmem:[%s1219 + $0x1c] sm:$0xff]
      %v1225 = vld [vmem:[%s1219 + $0x24] sm:$0xf]
      %v1226 = vld [vmem:[%s1219 + $0x28] sm:$0xff]
      %v1227 = vld [vmem:[%s1219 + $0x30] sm:$0xff]
      %v1228 = vld [vmem:[%s1219 + $0x38] sm:$0xf]
      %v1229 = vld [vmem:[%s1219 + $0x3c] sm:$0xff]
      %v1230 = vld [vmem:[%s1219 + $0x44] sm:$0xff]
      %v1231 = vld [vmem:[%s1219 + $0x4c] sm:$0xf]
      %v1232 = vld [vmem:[%s1219 + $0x50] sm:$0xff]
      %v1233 = vld [vmem:[%s1219 + $0x58] sm:$0xff]
      %v1234 = vld [vmem:[%s1219 + $0x60] sm:$0xf]
      %v1235 = vld [vmem:[%s1219 + $0x64] sm:$0xff]
      %v1236 = vld [vmem:[%s1219 + $0x6c] sm:$0xff]
      %v1237 = vld [vmem:[%s1219 + $0x74] sm:$0xf]
      %v1238 = vld [vmem:[%s1219 + $0x78] sm:$0xff]
      %v1239 = vld [vmem:[%s1219 + $0x80] sm:$0xff]
      %v1240 = vld [vmem:[%s1219 + $0x88] sm:$0xf]
      %v1241 = vld [vmem:[%s1219 + $0x8c] sm:$0xff]
      %v1242 = vld [vmem:[%s1219 + $0x94] sm:$0xff]
      %v1243 = vld [vmem:[%s1219 + $0x9c] sm:$0xf]
      %v1244 = vld [vmem:[%s355] sm:$0xff]
      %v1245 = vld [vmem:[%s355 + $0x8] sm:$0xff]
      %v1246 = vld [vmem:[%s355 + $0x10] sm:$0xff]
      %v1247 = vld [vmem:[%s355 + $0x18] sm:$0xff]
      %v1248 = vld [vmem:[%s355 + $0x20] sm:$0xff]
      %v1249 = vld [vmem:[%s355 + $0x28] sm:$0xff]
      %v1250 = vld [vmem:[%s355 + $0x30] sm:$0xff]
      %v1251 = vld [vmem:[%s355 + $0x38] sm:$0xff]
      %v1252 = vld [vmem:[%s355 + $0x40] sm:$0xff]
      %v1253 = vld [vmem:[%s355 + $0x48] sm:$0xff]
      %v1254 = vld [vmem:[%s355 + $0x50] sm:$0xff]
      %v1255 = vld [vmem:[%s355 + $0x58] sm:$0xff]
      %v1256 = vld [vmem:[%s355 + $0x60] sm:$0xff]
      %v1257 = vld [vmem:[%s355 + $0x68] sm:$0xff]
      %v1258 = vld [vmem:[%s355 + $0x70] sm:$0xff]
      %v1259 = vld [vmem:[%s355 + $0x78] sm:$0xff]
      %v1260 = vld [vmem:[%s355 + $0x80] sm:$0xff]
      %v1261 = vld [vmem:[%s355 + $0x88] sm:$0xff]
      %v1262 = vld [vmem:[%s355 + $0x90] sm:$0xff]
      %v1263 = vld [vmem:[%s355 + $0x98] sm:$0xff]
      %v1264 = vld [vmem:[%s355 + $0xa0] sm:$0xff]
      %v1265 = vld [vmem:[%s355 + $0xa8] sm:$0xff]
      %v1266 = vld [vmem:[%s355 + $0xb0] sm:$0xff]
      %v1267 = vld [vmem:[%s355 + $0xb8] sm:$0xff]
      %v1268 = vld [vmem:[%s355 + $0xc0] sm:$0xff]
      %v1269 = vld [vmem:[%s355 + $0xc8] sm:$0xff]
      %v1270 = vld [vmem:[%s355 + $0xd0] sm:$0xff]
      %v1271 = vld [vmem:[%s355 + $0xd8] sm:$0xff]
      %v1272 = vld [vmem:[%s355 + $0xe0] sm:$0xff]
      %v1273 = vld [vmem:[%s355 + $0xe8] sm:$0xff]
      %v1274 = vld [vmem:[%s355 + $0xf0] sm:$0xff]
      %v1275 = vld [vmem:[%s355 + $0xf8] sm:$0xff]
      %v1276 = vld [vmem:[%s355 + $0x100] sm:$0xff]
      %v1277 = vld [vmem:[%s355 + $0x108] sm:$0xff]
      %v1278 = vld [vmem:[%s355 + $0x110] sm:$0xff]
      %v1279 = vld [vmem:[%s355 + $0x118] sm:$0xff]
      %v1280 = vld [vmem:[%s355 + $0x120] sm:$0xff]
      %v1281 = vld [vmem:[%s355 + $0x128] sm:$0xff]
      %v1282 = vld [vmem:[%s355 + $0x130] sm:$0xff]
      %v1283 = vld [vmem:[%s355 + $0x138] sm:$0xff]
      %v1284 = vld [vmem:[%s355 + $0x140] sm:$0xff]
      %v1285 = vld [vmem:[%s355 + $0x148] sm:$0xff]
      %v1286 = vld [vmem:[%s355 + $0x150] sm:$0xff]
      %v1287 = vld [vmem:[%s355 + $0x158] sm:$0xff]
      %v1288 = vld [vmem:[%s355 + $0x160] sm:$0xff]
      %v1289 = vld [vmem:[%s355 + $0x168] sm:$0xff]
      %v1290 = vld [vmem:[%s355 + $0x170] sm:$0xff]
      %v1291 = vld [vmem:[%s355 + $0x178] sm:$0xff]
      %v1292 = vld [vmem:[%s355 + $0x180] sm:$0xff]
      %v1293 = vld [vmem:[%s355 + $0x188] sm:$0xff]
      %v1294 = vld [vmem:[%s355 + $0x190] sm:$0xff]
      %v1295 = vld [vmem:[%s355 + $0x198] sm:$0xff]
      %v1296 = vld [vmem:[%s355 + $0x1a0] sm:$0xff]
      %v1297 = vld [vmem:[%s355 + $0x1a8] sm:$0xff]
      %v1298 = vld [vmem:[%s355 + $0x1b0] sm:$0xff]
      %v1299 = vld [vmem:[%s355 + $0x1b8] sm:$0xff]
      %v1300 = vld [vmem:[%s355 + $0x1c0] sm:$0xff]
      %v1301 = vld [vmem:[%s355 + $0x1c8] sm:$0xff]
      %v1302 = vld [vmem:[%s355 + $0x1d0] sm:$0xff]
      %v1303 = vld [vmem:[%s355 + $0x1d8] sm:$0xff]
      %v1304 = vld [vmem:[%s355 + $0x1e0] sm:$0xff]
      %v1305 = vld [vmem:[%s355 + $0x1e8] sm:$0xff]
      %v1306 = vld [vmem:[%s355 + $0x1f0] sm:$0xff]
      %v1307 = vld [vmem:[%s355 + $0x1f8] sm:$0xff]
      %v1308 = vld [vmem:[%s355 + $0x200] sm:$0xff]
      %v1309 = vld [vmem:[%s355 + $0x208] sm:$0xff]
      %v1310 = vld [vmem:[%s355 + $0x210] sm:$0xff]
      %v1311 = vld [vmem:[%s355 + $0x218] sm:$0xff]
      %v1312 = vld [vmem:[%s355 + $0x220] sm:$0xff]
      %v1313 = vld [vmem:[%s355 + $0x228] sm:$0xff]
      %v1314 = vld [vmem:[%s355 + $0x230] sm:$0xff]
      %v1315 = vld [vmem:[%s355 + $0x238] sm:$0xff]
      %s1316 = scalar_lea.vmem %s3, 64
      %v1317 = vld [vmem:[%s1316] sm:$0xff]
      %v1318 = vld [vmem:[%s1316 + $0x8] sm:$0xff]
      %v1319 = vld [vmem:[%s1316 + $0x10] sm:$0xff]
      %v1320 = vld [vmem:[%s1316 + $0x18] sm:$0xff]
      %v1321 = vld [vmem:[%s1316 + $0x20] sm:$0xff]
      %v1322 = vld [vmem:[%s1316 + $0x28] sm:$0xff]
      %v1323 = vld [vmem:[%s1316 + $0x30] sm:$0xff]
      %v1324 = vld [vmem:[%s1316 + $0x38] sm:$0xff]
      %1326 = vset.pattern.permute.xlu0 0
      %1327 = vperm.xlu0 %1326, %v1317
      %v1328 = vpop.permute.xlu0 %1327
      %1331 = vset.pattern.permute.xlu0 0
      %1332 = vperm.xlu0 %1331, %v1318
      %v1333 = vpop.permute.xlu0 %1332
      %1336 = vset.pattern.permute.xlu0 0
      %1337 = vperm.xlu0 %1336, %v1319
      %v1338 = vpop.permute.xlu0 %1337
      %1341 = vset.pattern.permute.xlu0 0
      %1342 = vperm.xlu0 %1341, %v1320
      %v1343 = vpop.permute.xlu0 %1342
      %1346 = vset.pattern.permute.xlu0 0
      %1347 = vperm.xlu0 %1346, %v1321
      %v1348 = vpop.permute.xlu0 %1347
      %1351 = vset.pattern.permute.xlu0 0
      %1352 = vperm.xlu0 %1351, %v1322
      %v1353 = vpop.permute.xlu0 %1352
      %1356 = vset.pattern.permute.xlu0 0
      %1357 = vperm.xlu0 %1356, %v1323
      %v1358 = vpop.permute.xlu0 %1357
      %1361 = vset.pattern.permute.xlu0 0
      %1362 = vperm.xlu0 %1361, %v1324
      %v1363 = vpop.permute.xlu0 %1362
      %v1389 = vunpack.c.l.b16 %v1220
      %v1390 = vunpack.c.h.b16 %v1220
      %v1391 = vunpack.c.l.b16 %v1221
      %v1392 = vunpack.c.h.b16 %v1221
      %v1393 = vunpack.c.l.b16 %v1222
      %v1394 = vunpack.c.l.b16 %v1223
      %v1395 = vunpack.c.h.b16 %v1223
      %v1396 = vunpack.c.l.b16 %v1224
      %v1397 = vunpack.c.h.b16 %v1224
      %v1398 = vunpack.c.l.b16 %v1225
      %v1399 = vunpack.c.l.b16 %v1226
      %v1400 = vunpack.c.h.b16 %v1226
      %v1401 = vunpack.c.l.b16 %v1227
      %v1402 = vunpack.c.h.b16 %v1227
      %v1403 = vunpack.c.l.b16 %v1228
      %v1404 = vunpack.c.l.b16 %v1229
      %v1405 = vunpack.c.h.b16 %v1229
      %v1406 = vunpack.c.l.b16 %v1230
      %v1407 = vunpack.c.h.b16 %v1230
      %v1408 = vunpack.c.l.b16 %v1231
      %v1409 = vunpack.c.l.b16 %v1232
      %v1410 = vunpack.c.h.b16 %v1232
      %v1411 = vunpack.c.l.b16 %v1233
      %v1412 = vunpack.c.h.b16 %v1233
      %v1413 = vunpack.c.l.b16 %v1234
      %v1414 = vunpack.c.l.b16 %v1235
      %v1415 = vunpack.c.h.b16 %v1235
      %v1416 = vunpack.c.l.b16 %v1236
      %v1417 = vunpack.c.h.b16 %v1236
      %v1418 = vunpack.c.l.b16 %v1237
      %v1419 = vunpack.c.l.b16 %v1238
      %v1420 = vunpack.c.h.b16 %v1238
      %v1421 = vunpack.c.l.b16 %v1239
      %v1422 = vunpack.c.h.b16 %v1239
      %v1423 = vunpack.c.l.b16 %v1240
      %v1424 = vunpack.c.l.b16 %v1241
      %v1425 = vunpack.c.h.b16 %v1241
      %v1426 = vunpack.c.l.b16 %v1242
      %v1427 = vunpack.c.h.b16 %v1242
      %v1428 = vunpack.c.l.b16 %v1243
      %v1429 = vpack.c.b16 %v1394, %v1389
      %v1430 = vpack.c.b16 %v1395, %v1390
      %v1431 = vpack.c.b16 %v1396, %v1391
      %v1432 = vpack.c.b16 %v1397, %v1392
      %v1433 = vpack.c.b16 %v1398, %v1393
      %v1434 = vpack.c.b16 %v1404, %v1399
      %v1435 = vpack.c.b16 %v1405, %v1400
      %v1436 = vpack.c.b16 %v1406, %v1401
      %v1437 = vpack.c.b16 %v1407, %v1402
      %v1438 = vpack.c.b16 %v1408, %v1403
      %v1439 = vpack.c.b16 %v1414, %v1409
      %v1440 = vpack.c.b16 %v1415, %v1410
      %v1441 = vpack.c.b16 %v1416, %v1411
      %v1442 = vpack.c.b16 %v1417, %v1412
      %v1443 = vpack.c.b16 %v1418, %v1413
      %v1444 = vpack.c.b16 %v1424, %v1419
      %v1445 = vpack.c.b16 %v1425, %v1420
      %v1446 = vpack.c.b16 %v1426, %v1421
      %v1447 = vpack.c.b16 %v1427, %v1422
      %v1448 = vpack.c.b16 %v1428, %v1423
      %v1537 = vunpack.c.l.b16 %v1244
      %v1538 = vunpack.c.h.b16 %v1244
      %v1539 = vunpack.c.l.b16 %v1245
      %v1540 = vunpack.c.h.b16 %v1245
      %v1541 = vunpack.c.l.b16 %v1246
      %v1542 = vunpack.c.h.b16 %v1246
      %v1543 = vunpack.c.l.b16 %v1247
      %v1544 = vunpack.c.h.b16 %v1247
      %v1545 = vunpack.c.l.b16 %v1248
      %v1546 = vunpack.c.h.b16 %v1248
      %v1547 = vunpack.c.l.b16 %v1249
      %v1548 = vunpack.c.h.b16 %v1249
      %v1549 = vunpack.c.l.b16 %v1250
      %v1550 = vunpack.c.h.b16 %v1250
      %v1551 = vunpack.c.l.b16 %v1251
      %v1552 = vunpack.c.h.b16 %v1251
      %v1553 = vunpack.c.l.b16 %v1252
      %v1554 = vunpack.c.h.b16 %v1252
      %v1555 = vunpack.c.l.b16 %v1253
      %v1556 = vunpack.c.h.b16 %v1253
      %v1557 = vunpack.c.l.b16 %v1254
      %v1558 = vunpack.c.h.b16 %v1254
      %v1559 = vunpack.c.l.b16 %v1255
      %v1560 = vunpack.c.h.b16 %v1255
      %v1561 = vunpack.c.l.b16 %v1256
      %v1562 = vunpack.c.h.b16 %v1256
      %v1563 = vunpack.c.l.b16 %v1257
      %v1564 = vunpack.c.h.b16 %v1257
      %v1565 = vunpack.c.l.b16 %v1258
      %v1566 = vunpack.c.h.b16 %v1258
      %v1567 = vunpack.c.l.b16 %v1259
      %v1568 = vunpack.c.h.b16 %v1259
      %v1569 = vunpack.c.l.b16 %v1260
      %v1570 = vunpack.c.h.b16 %v1260
      %v1571 = vunpack.c.l.b16 %v1261
      %v1572 = vunpack.c.h.b16 %v1261
      %v1573 = vunpack.c.l.b16 %v1262
      %v1574 = vunpack.c.h.b16 %v1262
      %v1575 = vunpack.c.l.b16 %v1263
      %v1576 = vunpack.c.h.b16 %v1263
      %v1577 = vunpack.c.l.b16 %v1264
      %v1578 = vunpack.c.h.b16 %v1264
      %v1579 = vunpack.c.l.b16 %v1265
      %v1580 = vunpack.c.h.b16 %v1265
      %v1581 = vunpack.c.l.b16 %v1266
      %v1582 = vunpack.c.h.b16 %v1266
      %v1583 = vunpack.c.l.b16 %v1267
      %v1584 = vunpack.c.h.b16 %v1267
      %v1585 = vunpack.c.l.b16 %v1268
      %v1586 = vunpack.c.h.b16 %v1268
      %v1587 = vunpack.c.l.b16 %v1269
      %v1588 = vunpack.c.h.b16 %v1269
      %v1589 = vunpack.c.l.b16 %v1270
      %v1590 = vunpack.c.h.b16 %v1270
      %v1591 = vunpack.c.l.b16 %v1271
      %v1592 = vunpack.c.h.b16 %v1271
      %v1593 = vunpack.c.l.b16 %v1272
      %v1594 = vunpack.c.h.b16 %v1272
      %v1595 = vunpack.c.l.b16 %v1273
      %v1596 = vunpack.c.h.b16 %v1273
      %v1597 = vunpack.c.l.b16 %v1274
      %v1598 = vunpack.c.h.b16 %v1274
      %v1599 = vunpack.c.l.b16 %v1275
      %v1600 = vunpack.c.h.b16 %v1275
      %v1601 = vunpack.c.l.b16 %v1276
      %v1602 = vunpack.c.h.b16 %v1276
      %v1603 = vunpack.c.l.b16 %v1277
      %v1604 = vunpack.c.h.b16 %v1277
      %v1605 = vunpack.c.l.b16 %v1278
      %v1606 = vunpack.c.h.b16 %v1278
      %v1607 = vunpack.c.l.b16 %v1279
      %v1608 = vunpack.c.h.b16 %v1279
      %v1609 = vunpack.c.l.b16 %v1280
      %v1610 = vunpack.c.h.b16 %v1280
      %v1611 = vunpack.c.l.b16 %v1281
      %v1612 = vunpack.c.h.b16 %v1281
      %v1613 = vunpack.c.l.b16 %v1282
      %v1614 = vunpack.c.h.b16 %v1282
      %v1615 = vunpack.c.l.b16 %v1283
      %v1616 = vunpack.c.h.b16 %v1283
      %v1617 = vunpack.c.l.b16 %v1284
      %v1618 = vunpack.c.h.b16 %v1284
      %v1619 = vunpack.c.l.b16 %v1285
      %v1620 = vunpack.c.h.b16 %v1285
      %v1621 = vunpack.c.l.b16 %v1286
      %v1622 = vunpack.c.h.b16 %v1286
      %v1623 = vunpack.c.l.b16 %v1287
      %v1624 = vunpack.c.h.b16 %v1287
      %v1625 = vunpack.c.l.b16 %v1288
      %v1626 = vunpack.c.h.b16 %v1288
      %v1627 = vunpack.c.l.b16 %v1289
      %v1628 = vunpack.c.h.b16 %v1289
      %v1629 = vunpack.c.l.b16 %v1290
      %v1630 = vunpack.c.h.b16 %v1290
      %v1631 = vunpack.c.l.b16 %v1291
      %v1632 = vunpack.c.h.b16 %v1291
      %v1633 = vunpack.c.l.b16 %v1292
      %v1634 = vunpack.c.h.b16 %v1292
      %v1635 = vunpack.c.l.b16 %v1293
      %v1636 = vunpack.c.h.b16 %v1293
      %v1637 = vunpack.c.l.b16 %v1294
      %v1638 = vunpack.c.h.b16 %v1294
      %v1639 = vunpack.c.l.b16 %v1295
      %v1640 = vunpack.c.h.b16 %v1295
      %v1641 = vunpack.c.l.b16 %v1296
      %v1642 = vunpack.c.h.b16 %v1296
      %v1643 = vunpack.c.l.b16 %v1297
      %v1644 = vunpack.c.h.b16 %v1297
      %v1645 = vunpack.c.l.b16 %v1298
      %v1646 = vunpack.c.h.b16 %v1298
      %v1647 = vunpack.c.l.b16 %v1299
      %v1648 = vunpack.c.h.b16 %v1299
      %v1649 = vunpack.c.l.b16 %v1300
      %v1650 = vunpack.c.h.b16 %v1300
      %v1651 = vunpack.c.l.b16 %v1301
      %v1652 = vunpack.c.h.b16 %v1301
      %v1653 = vunpack.c.l.b16 %v1302
      %v1654 = vunpack.c.h.b16 %v1302
      %v1655 = vunpack.c.l.b16 %v1303
      %v1656 = vunpack.c.h.b16 %v1303
      %v1657 = vunpack.c.l.b16 %v1304
      %v1658 = vunpack.c.h.b16 %v1304
      %v1659 = vunpack.c.l.b16 %v1305
      %v1660 = vunpack.c.h.b16 %v1305
      %v1661 = vunpack.c.l.b16 %v1306
      %v1662 = vunpack.c.h.b16 %v1306
      %v1663 = vunpack.c.l.b16 %v1307
      %v1664 = vunpack.c.h.b16 %v1307
      %v1665 = vunpack.c.l.b16 %v1308
      %v1666 = vunpack.c.h.b16 %v1308
      %v1667 = vunpack.c.l.b16 %v1309
      %v1668 = vunpack.c.h.b16 %v1309
      %v1669 = vunpack.c.l.b16 %v1310
      %v1670 = vunpack.c.h.b16 %v1310
      %v1671 = vunpack.c.l.b16 %v1311
      %v1672 = vunpack.c.h.b16 %v1311
      %v1673 = vunpack.c.l.b16 %v1312
      %v1674 = vunpack.c.h.b16 %v1312
      %v1675 = vunpack.c.l.b16 %v1313
      %v1676 = vunpack.c.h.b16 %v1313
      %v1677 = vunpack.c.l.b16 %v1314
      %v1678 = vunpack.c.h.b16 %v1314
      %v1679 = vunpack.c.l.b16 %v1315
      %v1680 = vunpack.c.h.b16 %v1315
      %v1681 = vpack.c.b16 %v1539, %v1537
      %v1682 = vpack.c.b16 %v1540, %v1538
      %v1683 = vpack.c.b16 %v1543, %v1541
      %v1684 = vpack.c.b16 %v1544, %v1542
      %v1685 = vpack.c.b16 %v1547, %v1545
      %v1686 = vpack.c.b16 %v1548, %v1546
      %v1687 = vpack.c.b16 %v1551, %v1549
      %v1688 = vpack.c.b16 %v1552, %v1550
      %v1689 = vpack.c.b16 %v1555, %v1553
      %v1690 = vpack.c.b16 %v1556, %v1554
      %v1691 = vpack.c.b16 %v1559, %v1557
      %v1692 = vpack.c.b16 %v1560, %v1558
      %v1693 = vpack.c.b16 %v1563, %v1561
      %v1694 = vpack.c.b16 %v1564, %v1562
      %v1695 = vpack.c.b16 %v1567, %v1565
      %v1696 = vpack.c.b16 %v1568, %v1566
      %v1697 = vpack.c.b16 %v1571, %v1569
      %v1698 = vpack.c.b16 %v1572, %v1570
      %v1699 = vpack.c.b16 %v1575, %v1573
      %v1700 = vpack.c.b16 %v1576, %v1574
      %v1701 = vpack.c.b16 %v1579, %v1577
      %v1702 = vpack.c.b16 %v1580, %v1578
      %v1703 = vpack.c.b16 %v1583, %v1581
      %v1704 = vpack.c.b16 %v1584, %v1582
      %v1705 = vpack.c.b16 %v1587, %v1585
      %v1706 = vpack.c.b16 %v1588, %v1586
      %v1707 = vpack.c.b16 %v1591, %v1589
      %v1708 = vpack.c.b16 %v1592, %v1590
      %v1709 = vpack.c.b16 %v1595, %v1593
      %v1710 = vpack.c.b16 %v1596, %v1594
      %v1711 = vpack.c.b16 %v1599, %v1597
      %v1712 = vpack.c.b16 %v1600, %v1598
      %v1713 = vpack.c.b16 %v1603, %v1601
      %v1714 = vpack.c.b16 %v1604, %v1602
      %v1715 = vpack.c.b16 %v1607, %v1605
      %v1716 = vpack.c.b16 %v1608, %v1606
      %v1717 = vpack.c.b16 %v1611, %v1609
      %v1718 = vpack.c.b16 %v1612, %v1610
      %v1719 = vpack.c.b16 %v1615, %v1613
      %v1720 = vpack.c.b16 %v1616, %v1614
      %v1721 = vpack.c.b16 %v1619, %v1617
      %v1722 = vpack.c.b16 %v1620, %v1618
      %v1723 = vpack.c.b16 %v1623, %v1621
      %v1724 = vpack.c.b16 %v1624, %v1622
      %v1725 = vpack.c.b16 %v1627, %v1625
      %v1726 = vpack.c.b16 %v1628, %v1626
      %v1727 = vpack.c.b16 %v1631, %v1629
      %v1728 = vpack.c.b16 %v1632, %v1630
      %v1729 = vpack.c.b16 %v1635, %v1633
      %v1730 = vpack.c.b16 %v1636, %v1634
      %v1731 = vpack.c.b16 %v1639, %v1637
      %v1732 = vpack.c.b16 %v1640, %v1638
      %v1733 = vpack.c.b16 %v1643, %v1641
      %v1734 = vpack.c.b16 %v1644, %v1642
      %v1735 = vpack.c.b16 %v1647, %v1645
      %v1736 = vpack.c.b16 %v1648, %v1646
      %v1737 = vpack.c.b16 %v1651, %v1649
      %v1738 = vpack.c.b16 %v1652, %v1650
      %v1739 = vpack.c.b16 %v1655, %v1653
      %v1740 = vpack.c.b16 %v1656, %v1654
      %v1741 = vpack.c.b16 %v1659, %v1657
      %v1742 = vpack.c.b16 %v1660, %v1658
      %v1743 = vpack.c.b16 %v1663, %v1661
      %v1744 = vpack.c.b16 %v1664, %v1662
      %v1745 = vpack.c.b16 %v1667, %v1665
      %v1746 = vpack.c.b16 %v1668, %v1666
      %v1747 = vpack.c.b16 %v1671, %v1669
      %v1748 = vpack.c.b16 %v1672, %v1670
      %v1749 = vpack.c.b16 %v1675, %v1673
      %v1750 = vpack.c.b16 %v1676, %v1674
      %v1751 = vpack.c.b16 %v1679, %v1677
      %v1752 = vpack.c.b16 %v1680, %v1678
      %v1826 = vsel %vm971, %v1433, 0
      %v1829 = vsel %vm971, %v1438, 0
      %v1832 = vsel %vm971, %v1443, 0
      %v1835 = vsel %vm971, %v1448, 0
      %1837 = vmatprep.subr.bf16.mxu0 %v1696
      %1838 = vmatpush1.bf16.msra.mxu0 %v1695
      %1839 = vmatprep.subr.bf16.mxu0 %v1694
      %1840 = vmatpush1.bf16.msra.mxu0 %v1693
      %1841 = vmatprep.subr.bf16.mxu0 %v1692
      %1842 = vmatpush1.bf16.msra.mxu0 %v1691
      %1843 = vmatprep.subr.bf16.mxu0 %v1690
      %1844 = vmatpush1.bf16.msra.mxu0 %v1689
      %1845 = vmatprep.subr.bf16.mxu0 %v1688
      %1846 = vmatpush1.bf16.msra.mxu0 %v1687
      %1847 = vmatprep.subr.bf16.mxu0 %v1686
      %1848 = vmatpush1.bf16.msra.mxu0 %v1685
      %1849 = vmatprep.subr.bf16.mxu0 %v1684
      %1850 = vmatpush1.bf16.msra.mxu0 %v1683
      %1851 = vmatprep.subr.bf16.mxu0 %v1682
      %1852 = vmatpush1.bf16.msra.mxu0 %v1681
      %1853 = vmatprep.subr.bf16.mxu0 %v1712
      %1854 = vmatpush2.bf16.msra.mxu0 %v1711
      %1855 = vmatprep.subr.bf16.mxu0 %v1710
      %1856 = vmatpush2.bf16.msra.mxu0 %v1709
      %1857 = vmatprep.subr.bf16.mxu0 %v1708
      %1858 = vmatpush2.bf16.msra.mxu0 %v1707
      %1859 = vmatprep.subr.bf16.mxu0 %v1706
      %1860 = vmatpush2.bf16.msra.mxu0 %v1705
      %1861 = vmatprep.subr.bf16.mxu0 %v1704
      %1862 = vmatpush2.bf16.msra.mxu0 %v1703
      %1863 = vmatprep.subr.bf16.mxu0 %v1702
      %1864 = vmatpush2.bf16.msra.mxu0 %v1701
      %1865 = vmatprep.subr.bf16.mxu0 %v1700
      %1866 = vmatpush2.bf16.msra.mxu0 %v1699
      %1867 = vmatprep.subr.bf16.mxu0 %v1698
      %1868 = vmatpush2.bf16.msra.mxu0 %v1697
      %1869 = vmatprep.mubr.bf16.mxu0 %v1430
      %1870 = vmatmul.mubr.bf16.gmra.mxu0 %v1429
      %v1871 = vpop.f32.mrf.mxu0
      %v1872 = vadd.f32 %v1328, %v1871
      %v1873 = vpop.f32.mrf.mxu0
      %v1874 = vadd.f32 %v1328, %v1873
      %v1875 = vpop.f32.mrf.mxu0
      %v1876 = vadd.f32 %v1333, %v1875
      %v1877 = vpop.f32.mrf.mxu0
      %v1878 = vadd.f32 %v1333, %v1877
      %1879 = vmatprep.mubr.bf16.mxu0 %v1435
      %1880 = vmatmul.mubr.bf16.gmra.mxu0 %v1434
      %v1881 = vpop.f32.mrf.mxu0
      %v1882 = vadd.f32 %v1338, %v1881
      %v1883 = vpop.f32.mrf.mxu0
      %v1884 = vadd.f32 %v1338, %v1883
      %v1885 = vpop.f32.mrf.mxu0
      %v1886 = vadd.f32 %v1343, %v1885
      %v1887 = vpop.f32.mrf.mxu0
      %v1888 = vadd.f32 %v1343, %v1887
      %1889 = vmatprep.mubr.bf16.mxu0 %v1440
      %1890 = vmatmul.mubr.bf16.gmra.mxu0 %v1439
      %v1891 = vpop.f32.mrf.mxu0
      %v1892 = vadd.f32 %v1348, %v1891
      %v1893 = vpop.f32.mrf.mxu0
      %v1894 = vadd.f32 %v1348, %v1893
      %v1895 = vpop.f32.mrf.mxu0
      %v1896 = vadd.f32 %v1353, %v1895
      %v1897 = vpop.f32.mrf.mxu0
      %v1898 = vadd.f32 %v1353, %v1897
      %1899 = vmatprep.mubr.bf16.mxu0 %v1445
      %1900 = vmatmul.mubr.bf16.gmra.mxu0 %v1444
      %v1901 = vpop.f32.mrf.mxu0
      %v1902 = vadd.f32 %v1358, %v1901
      %v1903 = vpop.f32.mrf.mxu0
      %v1904 = vadd.f32 %v1358, %v1903
      %v1905 = vpop.f32.mrf.mxu0
      %v1906 = vadd.f32 %v1363, %v1905
      %v1907 = vpop.f32.mrf.mxu0
      %v1908 = vadd.f32 %v1363, %v1907
      %1909 = vdwg.mxu0
      %1910 = vmatprep.subr.bf16.mxu0 %v1728
      %1911 = vmatpush1.bf16.msra.mxu0 %v1727
      %1912 = vmatprep.subr.bf16.mxu0 %v1726
      %1913 = vmatpush1.bf16.msra.mxu0 %v1725
      %1914 = vmatprep.subr.bf16.mxu0 %v1724
      %1915 = vmatpush1.bf16.msra.mxu0 %v1723
      %1916 = vmatprep.subr.bf16.mxu0 %v1722
      %1917 = vmatpush1.bf16.msra.mxu0 %v1721
      %1918 = vmatprep.subr.bf16.mxu0 %v1720
      %1919 = vmatpush1.bf16.msra.mxu0 %v1719
      %1920 = vmatprep.subr.bf16.mxu0 %v1718
      %1921 = vmatpush1.bf16.msra.mxu0 %v1717
      %1922 = vmatprep.subr.bf16.mxu0 %v1716
      %1923 = vmatpush1.bf16.msra.mxu0 %v1715
      %1924 = vmatprep.subr.bf16.mxu0 %v1714
      %1925 = vmatpush1.bf16.msra.mxu0 %v1713
      %1926 = vmatprep.subr.bf16.mxu0 %v1744
      %1927 = vmatpush2.bf16.msra.mxu0 %v1743
      %1928 = vmatprep.subr.bf16.mxu0 %v1742
      %1929 = vmatpush2.bf16.msra.mxu0 %v1741
      %1930 = vmatprep.subr.bf16.mxu0 %v1740
      %1931 = vmatpush2.bf16.msra.mxu0 %v1739
      %1932 = vmatprep.subr.bf16.mxu0 %v1738
      %1933 = vmatpush2.bf16.msra.mxu0 %v1737
      %1934 = vmatprep.subr.bf16.mxu0 %v1736
      %1935 = vmatpush2.bf16.msra.mxu0 %v1735
      %1936 = vmatprep.subr.bf16.mxu0 %v1734
      %1937 = vmatpush2.bf16.msra.mxu0 %v1733
      %1938 = vmatprep.subr.bf16.mxu0 %v1732
      %1939 = vmatpush2.bf16.msra.mxu0 %v1731
      %1940 = vmatprep.subr.bf16.mxu0 %v1730
      %1941 = vmatpush2.bf16.msra.mxu0 %v1729
      %1942 = vmatprep.mubr.bf16.mxu0 %v1432
      %1943 = vmatmul.mubr.bf16.gmra.mxu0 %v1431
      %v1944 = vpop.f32.mrf.mxu0
      %v1945 = vadd.f32 %v1872, %v1944
      %v1946 = vpop.f32.mrf.mxu0
      %v1947 = vadd.f32 %v1874, %v1946
      %v1948 = vpop.f32.mrf.mxu0
      %v1949 = vadd.f32 %v1876, %v1948
      %v1950 = vpop.f32.mrf.mxu0
      %v1951 = vadd.f32 %v1878, %v1950
      %1952 = vmatprep.mubr.bf16.mxu0 %v1437
      %1953 = vmatmul.mubr.bf16.gmra.mxu0 %v1436
      %v1954 = vpop.f32.mrf.mxu0
      %v1955 = vadd.f32 %v1882, %v1954
      %v1956 = vpop.f32.mrf.mxu0
      %v1957 = vadd.f32 %v1884, %v1956
      %v1958 = vpop.f32.mrf.mxu0
      %v1959 = vadd.f32 %v1886, %v1958
      %v1960 = vpop.f32.mrf.mxu0
      %v1961 = vadd.f32 %v1888, %v1960
      %1962 = vmatprep.mubr.bf16.mxu0 %v1442
      %1963 = vmatmul.mubr.bf16.gmra.mxu0 %v1441
      %v1964 = vpop.f32.mrf.mxu0
      %v1965 = vadd.f32 %v1892, %v1964
      %v1966 = vpop.f32.mrf.mxu0
      %v1967 = vadd.f32 %v1894, %v1966
      %v1968 = vpop.f32.mrf.mxu0
      %v1969 = vadd.f32 %v1896, %v1968
      %v1970 = vpop.f32.mrf.mxu0
      %v1971 = vadd.f32 %v1898, %v1970
      %1972 = vmatprep.mubr.bf16.mxu0 %v1447
      %1973 = vmatmul.mubr.bf16.gmra.mxu0 %v1446
      %v1974 = vpop.f32.mrf.mxu0
      %v1975 = vadd.f32 %v1902, %v1974
      %v1976 = vpop.f32.mrf.mxu0
      %v1977 = vadd.f32 %v1904, %v1976
      %v1978 = vpop.f32.mrf.mxu0
      %v1979 = vadd.f32 %v1906, %v1978
      %v1980 = vpop.f32.mrf.mxu0
      %v1981 = vadd.f32 %v1908, %v1980
      %1982 = vdwg.mxu0
      %1983 = vmatprep.subr.bf16.mxu0 0
      %1984 = vmatpush1.bf16.msra.mxu0 0
      %1985 = vmatprep.subr.bf16.mxu0 0
      %1986 = vmatpush1.bf16.msra.mxu0 0
      %1987 = vmatprep.subr.bf16.mxu0 0
      %1988 = vmatpush1.bf16.msra.mxu0 0
      %1989 = vmatprep.subr.bf16.mxu0 0
      %1990 = vmatpush1.bf16.msra.mxu0 0
      %1991 = vmatprep.subr.bf16.mxu0 %v1752
      %1992 = vmatpush1.bf16.msra.mxu0 %v1751
      %1993 = vmatprep.subr.bf16.mxu0 %v1750
      %1994 = vmatpush1.bf16.msra.mxu0 %v1749
      %1995 = vmatprep.subr.bf16.mxu0 %v1748
      %1996 = vmatpush1.bf16.msra.mxu0 %v1747
      %1997 = vmatprep.subr.bf16.mxu0 %v1746
      %1998 = vmatpush1.bf16.msra.mxu0 %v1745
      %1999 = vmatprep.subr.bf16.mxu0 0
      %2000 = vmatpush2.bf16.msra.mxu0 0
      %2001 = vmatprep.subr.bf16.mxu0 0
      %2002 = vmatpush2.bf16.msra.mxu0 0
      %2003 = vmatprep.subr.bf16.mxu0 0
      %2004 = vmatpush2.bf16.msra.mxu0 0
      %2005 = vmatprep.subr.bf16.mxu0 0
      %2006 = vmatpush2.bf16.msra.mxu0 0
      %2007 = vmatprep.subr.bf16.mxu0 0
      %2008 = vmatpush2.bf16.msra.mxu0 0
      %2009 = vmatprep.subr.bf16.mxu0 0
      %2010 = vmatpush2.bf16.msra.mxu0 0
      %2011 = vmatprep.subr.bf16.mxu0 0
      %2012 = vmatpush2.bf16.msra.mxu0 0
      %2013 = vmatprep.subr.bf16.mxu0 0
      %2014 = vmatpush2.bf16.msra.mxu0 0
      %2015 = vmatprep.mubr.bf16.mxu0 0
      %2016 = vmatmul.mubr.bf16.gmra.mxu0 %v1826
      %v2017 = vpop.f32.mrf.mxu0
      %v2018 = vadd.f32 %v1945, %v2017
      %v2019 = vpop.f32.mrf.mxu0
      %v2020 = vadd.f32 %v1947, %v2019
      %v2021 = vpop.f32.mrf.mxu0
      %v2022 = vadd.f32 %v1949, %v2021
      %v2023 = vpop.f32.mrf.mxu0
      %v2024 = vadd.f32 %v1951, %v2023
      %2025 = vmatprep.mubr.bf16.mxu0 0
      %2026 = vmatmul.mubr.bf16.gmra.mxu0 %v1829
      %v2027 = vpop.f32.mrf.mxu0
      %v2028 = vadd.f32 %v1955, %v2027
      %v2029 = vpop.f32.mrf.mxu0
      %v2030 = vadd.f32 %v1957, %v2029
      %v2031 = vpop.f32.mrf.mxu0
      %v2032 = vadd.f32 %v1959, %v2031
      %v2033 = vpop.f32.mrf.mxu0
      %v2034 = vadd.f32 %v1961, %v2033
      %2035 = vmatprep.mubr.bf16.mxu0 0
      %2036 = vmatmul.mubr.bf16.gmra.mxu0 %v1832
      %v2037 = vpop.f32.mrf.mxu0
      %v2038 = vadd.f32 %v1965, %v2037
      %v2039 = vpop.f32.mrf.mxu0
      %v2040 = vadd.f32 %v1967, %v2039
      %v2041 = vpop.f32.mrf.mxu0
      %v2042 = vadd.f32 %v1969, %v2041
      %v2043 = vpop.f32.mrf.mxu0
      %v2044 = vadd.f32 %v1971, %v2043
      %2045 = vmatprep.mubr.bf16.mxu0 0
      %2046 = vmatmul.mubr.bf16.gmra.mxu0 %v1835
      %v2047 = vpop.f32.mrf.mxu0
      %v2048 = vadd.f32 %v1975, %v2047
      %v2049 = vpop.f32.mrf.mxu0
      %v2050 = vadd.f32 %v1977, %v2049
      %v2051 = vpop.f32.mrf.mxu0
      %v2052 = vadd.f32 %v1979, %v2051
      %v2053 = vpop.f32.mrf.mxu0
      %v2054 = vadd.f32 %v1981, %v2053
      %2055 = vdwg.mxu0
      %v2056 = vmax.f32 %v2018, 0.0
      %v2057 = vmax.f32 %v2020, 0.0
      %v2058 = vmax.f32 %v2022, 0.0
      %v2059 = vmax.f32 %v2024, 0.0
      %v2060 = vmax.f32 %v2028, 0.0
      %v2061 = vmax.f32 %v2030, 0.0
      %v2062 = vmax.f32 %v2032, 0.0
      %v2063 = vmax.f32 %v2034, 0.0
      %v2064 = vmax.f32 %v2038, 0.0
      %v2065 = vmax.f32 %v2040, 0.0
      %v2066 = vmax.f32 %v2042, 0.0
      %v2067 = vmax.f32 %v2044, 0.0
      %v2068 = vmax.f32 %v2048, 0.0
      %v2069 = vmax.f32 %v2050, 0.0
      %v2070 = vmax.f32 %v2052, 0.0
      %v2071 = vmax.f32 %v2054, 0.0
      %v2072 = vmul.f32 %v1203, %v2056
      %v2073 = vmul.f32 %v1204, %v2057
      %v2074 = vmul.f32 %v1205, %v2058
      %v2075 = vmul.f32 %v1206, %v2059
      %v2076 = vmul.f32 %v1207, %v2060
      %v2077 = vmul.f32 %v1208, %v2061
      %v2078 = vmul.f32 %v1209, %v2062
      %v2079 = vmul.f32 %v1210, %v2063
      %v2080 = vmul.f32 %v1211, %v2064
      %v2081 = vmul.f32 %v1212, %v2065
      %v2082 = vmul.f32 %v1213, %v2066
      %v2083 = vmul.f32 %v1214, %v2067
      %v2084 = vmul.f32 %v1215, %v2068
      %v2085 = vmul.f32 %v1216, %v2069
      %v2086 = vmul.f32 %v1217, %v2070
      %v2087 = vmul.f32 %v1218, %v2071
      %v2088 = vadd.f32 %v1203, %v1204
      %2089 = vadd.xlane.f32.xlu0 %v2088
      %v2090 = vpop.xlane.xlu0 %2089
      %v2091 = vadd.f32 %v1205, %v1206
      %2092 = vadd.xlane.f32.xlu0 %v2091
      %v2093 = vpop.xlane.xlu0 %2092
      %v2094 = vadd.f32 %v1207, %v1208
      %2095 = vadd.xlane.f32.xlu0 %v2094
      %v2096 = vpop.xlane.xlu0 %2095
      %v2097 = vadd.f32 %v1209, %v1210
      %2098 = vadd.xlane.f32.xlu0 %v2097
      %v2099 = vpop.xlane.xlu0 %2098
      %v2100 = vadd.f32 %v1211, %v1212
      %2101 = vadd.xlane.f32.xlu0 %v2100
      %v2102 = vpop.xlane.xlu0 %2101
      %v2103 = vadd.f32 %v1213, %v1214
      %2104 = vadd.xlane.f32.xlu0 %v2103
      %v2105 = vpop.xlane.xlu0 %2104
      %v2106 = vadd.f32 %v1215, %v1216
      %2107 = vadd.xlane.f32.xlu0 %v2106
      %v2108 = vpop.xlane.xlu0 %2107
      %v2109 = vadd.f32 %v1217, %v1218
      %2110 = vadd.xlane.f32.xlu0 %v2109
      %v2111 = vpop.xlane.xlu0 %2110
      %v2112 = vrcp.pop 256.0
      %v2113 = vmul.f32 %v2090, %v2112
      %v2114 = vmul.f32 %v2093, %v2112
      %v2115 = vmul.f32 %v2096, %v2112
      %v2116 = vmul.f32 %v2099, %v2112
      %v2117 = vmul.f32 %v2102, %v2112
      %v2118 = vmul.f32 %v2105, %v2112
      %v2119 = vmul.f32 %v2108, %v2112
      %v2120 = vmul.f32 %v2111, %v2112
      %v2121 = vmax.f32 %v1203, %v1204
      %2122 = vmax.xlane.f32.xlu0 %v2121
      %v2123 = vpop.xlane.xlu0 %2122
      %v2124 = vmax.f32 %v1205, %v1206
      %2125 = vmax.xlane.f32.xlu0 %v2124
      %v2126 = vpop.xlane.xlu0 %2125
      %v2127 = vmax.f32 %v1207, %v1208
      %2128 = vmax.xlane.f32.xlu0 %v2127
      %v2129 = vpop.xlane.xlu0 %2128
      %v2130 = vmax.f32 %v1209, %v1210
      %2131 = vmax.xlane.f32.xlu0 %v2130
      %v2132 = vpop.xlane.xlu0 %2131
      %v2133 = vmax.f32 %v1211, %v1212
      %2134 = vmax.xlane.f32.xlu0 %v2133
      %v2135 = vpop.xlane.xlu0 %2134
      %v2136 = vmax.f32 %v1213, %v1214
      %2137 = vmax.xlane.f32.xlu0 %v2136
      %v2138 = vpop.xlane.xlu0 %2137
      %v2139 = vmax.f32 %v1215, %v1216
      %2140 = vmax.xlane.f32.xlu0 %v2139
      %v2141 = vpop.xlane.xlu0 %2140
      %v2142 = vmax.f32 %v1217, %v1218
      %2143 = vmax.xlane.f32.xlu0 %v2142
      %v2144 = vpop.xlane.xlu0 %2143
      %vm2145 = vcmask 7168
      %v2146 = vsel %vm2145, %v2113, %v2123
      %v2147 = vsel %vm2145, %v2114, %v2126
      %v2148 = vsel %vm2145, %v2115, %v2129
      %v2149 = vsel %vm2145, %v2116, %v2132
      %v2150 = vsel %vm2145, %v2117, %v2135
      %v2151 = vsel %vm2145, %v2118, %v2138
      %v2152 = vsel %vm2145, %v2119, %v2141
      %v2153 = vsel %vm2145, %v2120, %v2144
      %v2154 = vadd.f32 %v2072, %v2073
      %2155 = vadd.xlane.f32.xlu0 %v2154
      %v2156 = vpop.xlane.xlu0 %2155
      %v2157 = vadd.f32 %v2074, %v2075
      %2158 = vadd.xlane.f32.xlu0 %v2157
      %v2159 = vpop.xlane.xlu0 %2158
      %v2160 = vadd.f32 %v2076, %v2077
      %2161 = vadd.xlane.f32.xlu0 %v2160
      %v2162 = vpop.xlane.xlu0 %2161
      %v2163 = vadd.f32 %v2078, %v2079
      %2164 = vadd.xlane.f32.xlu0 %v2163
      %v2165 = vpop.xlane.xlu0 %2164
      %v2166 = vadd.f32 %v2080, %v2081
      %2167 = vadd.xlane.f32.xlu0 %v2166
      %v2168 = vpop.xlane.xlu0 %2167
      %v2169 = vadd.f32 %v2082, %v2083
      %2170 = vadd.xlane.f32.xlu0 %v2169
      %v2171 = vpop.xlane.xlu0 %2170
      %v2172 = vadd.f32 %v2084, %v2085
      %2173 = vadd.xlane.f32.xlu0 %v2172
      %v2174 = vpop.xlane.xlu0 %2173
      %v2175 = vadd.f32 %v2086, %v2087
      %2176 = vadd.xlane.f32.xlu0 %v2175
      %v2177 = vpop.xlane.xlu0 %2176
      %v2178 = vmul.f32 %v2156, %v2112
      %v2179 = vmul.f32 %v2159, %v2112
      %v2180 = vmul.f32 %v2162, %v2112
      %v2181 = vmul.f32 %v2165, %v2112
      %v2182 = vmul.f32 %v2168, %v2112
      %v2183 = vmul.f32 %v2171, %v2112
      %v2184 = vmul.f32 %v2174, %v2112
      %v2185 = vmul.f32 %v2177, %v2112
      %v2186 = vmax.f32 %v2072, %v2073
      %2187 = vmax.xlane.f32.xlu0 %v2186
      %v2188 = vpop.xlane.xlu0 %2187
      %v2189 = vmax.f32 %v2074, %v2075
      %2190 = vmax.xlane.f32.xlu0 %v2189
      %v2191 = vpop.xlane.xlu0 %2190
      %v2192 = vmax.f32 %v2076, %v2077
      %2193 = vmax.xlane.f32.xlu0 %v2192
      %v2194 = vpop.xlane.xlu0 %2193
      %v2195 = vmax.f32 %v2078, %v2079
      %2196 = vmax.xlane.f32.xlu0 %v2195
      %v2197 = vpop.xlane.xlu0 %2196
      %v2198 = vmax.f32 %v2080, %v2081
      %2199 = vmax.xlane.f32.xlu0 %v2198
      %v2200 = vpop.xlane.xlu0 %2199
      %v2201 = vmax.f32 %v2082, %v2083
      %2202 = vmax.xlane.f32.xlu0 %v2201
      %v2203 = vpop.xlane.xlu0 %2202
      %v2204 = vmax.f32 %v2084, %v2085
      %2205 = vmax.xlane.f32.xlu0 %v2204
      %v2206 = vpop.xlane.xlu0 %2205
      %v2207 = vmax.f32 %v2086, %v2087
      %2208 = vmax.xlane.f32.xlu0 %v2207
      %v2209 = vpop.xlane.xlu0 %2208
      %v2210 = vsel %vm2145, %v2178, %v2188
      %v2211 = vsel %vm2145, %v2179, %v2191
      %v2212 = vsel %vm2145, %v2180, %v2194
      %v2213 = vsel %vm2145, %v2181, %v2197
      %v2214 = vsel %vm2145, %v2182, %v2200
      %v2215 = vsel %vm2145, %v2183, %v2203
      %v2216 = vsel %vm2145, %v2184, %v2206
      %v2217 = vsel %vm2145, %v2185, %v2209
      %v2218 = vadd.f32 %v2056, %v2057
      %2219 = vadd.xlane.f32.xlu0 %v2218
      %v2220 = vpop.xlane.xlu0 %2219
      %v2221 = vadd.f32 %v2058, %v2059
      %2222 = vadd.xlane.f32.xlu0 %v2221
      %v2223 = vpop.xlane.xlu0 %2222
      %v2224 = vadd.f32 %v2060, %v2061
      %2225 = vadd.xlane.f32.xlu0 %v2224
      %v2226 = vpop.xlane.xlu0 %2225
      %v2227 = vadd.f32 %v2062, %v2063
      %2228 = vadd.xlane.f32.xlu0 %v2227
      %v2229 = vpop.xlane.xlu0 %2228
      %v2230 = vadd.f32 %v2064, %v2065
      %2231 = vadd.xlane.f32.xlu0 %v2230
      %v2232 = vpop.xlane.xlu0 %2231
      %v2233 = vadd.f32 %v2066, %v2067
      %2234 = vadd.xlane.f32.xlu0 %v2233
      %v2235 = vpop.xlane.xlu0 %2234
      %v2236 = vadd.f32 %v2068, %v2069
      %2237 = vadd.xlane.f32.xlu0 %v2236
      %v2238 = vpop.xlane.xlu0 %2237
      %v2239 = vadd.f32 %v2070, %v2071
      %2240 = vadd.xlane.f32.xlu0 %v2239
      %v2241 = vpop.xlane.xlu0 %2240
      %v2242 = vmul.f32 %v2220, %v2112
      %v2243 = vmul.f32 %v2223, %v2112
      %v2244 = vmul.f32 %v2226, %v2112
      %v2245 = vmul.f32 %v2229, %v2112
      %v2246 = vmul.f32 %v2232, %v2112
      %v2247 = vmul.f32 %v2235, %v2112
      %v2248 = vmul.f32 %v2238, %v2112
      %v2249 = vmul.f32 %v2241, %v2112
      %v2250 = vmax.f32 %v2056, %v2057
      %2251 = vmax.xlane.f32.xlu0 %v2250
      %v2252 = vpop.xlane.xlu0 %2251
      %v2253 = vmax.f32 %v2058, %v2059
      %2254 = vmax.xlane.f32.xlu0 %v2253
      %v2255 = vpop.xlane.xlu0 %2254
      %v2256 = vmax.f32 %v2060, %v2061
      %2257 = vmax.xlane.f32.xlu0 %v2256
      %v2258 = vpop.xlane.xlu0 %2257
      %v2259 = vmax.f32 %v2062, %v2063
      %2260 = vmax.xlane.f32.xlu0 %v2259
      %v2261 = vpop.xlane.xlu0 %2260
      %v2262 = vmax.f32 %v2064, %v2065
      %2263 = vmax.xlane.f32.xlu0 %v2262
      %v2264 = vpop.xlane.xlu0 %2263
      %v2265 = vmax.f32 %v2066, %v2067
      %2266 = vmax.xlane.f32.xlu0 %v2265
      %v2267 = vpop.xlane.xlu0 %2266
      %v2268 = vmax.f32 %v2068, %v2069
      %2269 = vmax.xlane.f32.xlu0 %v2268
      %v2270 = vpop.xlane.xlu0 %2269
      %v2271 = vmax.f32 %v2070, %v2071
      %2272 = vmax.xlane.f32.xlu0 %v2271
      %v2273 = vpop.xlane.xlu0 %2272
      %v2274 = vsel %vm2145, %v2242, %v2252
      %v2275 = vsel %vm2145, %v2243, %v2255
      %v2276 = vsel %vm2145, %v2244, %v2258
      %v2277 = vsel %vm2145, %v2245, %v2261
      %v2278 = vsel %vm2145, %v2246, %v2264
      %v2279 = vsel %vm2145, %v2247, %v2267
      %v2280 = vsel %vm2145, %v2248, %v2270
      %v2281 = vsel %vm2145, %v2249, %v2273
      %v2282 = vld [vmem:[%s6] sm:$0xff]
      %v2283 = vld [vmem:[%s6 + $0x8] sm:$0x33]
      %v2284 = vpack.c.bf16 %v2147, %v2146
      %v2285 = vpack.c.bf16 %v2149, %v2148
      %v2286 = vpack.c.bf16 %v2151, %v2150
      %v2287 = vpack.c.bf16 %v2153, %v2152
      %v2288 = vpack.c.bf16 %v2211, %v2210
      %v2289 = vpack.c.bf16 %v2213, %v2212
      %v2290 = vpack.c.bf16 %v2215, %v2214
      %v2291 = vpack.c.bf16 %v2217, %v2216
      %v2292 = vpack.c.bf16 %v2275, %v2274
      %v2293 = vpack.c.bf16 %v2277, %v2276
      %v2294 = vpack.c.bf16 %v2279, %v2278
      %v2295 = vpack.c.bf16 %v2281, %v2280
      %v2298 = vunpack.c.l.b16 %v2282
      %v2299 = vunpack.c.h.b16 %v2282
      %v2300 = vunpack.c.l.b16 %v2283
      %v2301 = vunpack.c.h.b16 %v2283
      %v2302 = vpack.c.b16 %v2300, %v2298
      %v2303 = vpack.c.b16 %v2301, %v2299
      %v2306 = vsel %vm971, %v2303, 0
      %2308 = vmatprep.subr.bf16.mxu0 0
      %2309 = vmatpush1.bf16.msra.mxu0 %v2291
      %2310 = vmatprep.subr.bf16.mxu0 0
      %2311 = vmatpush1.bf16.msra.mxu0 %v2290
      %2312 = vmatprep.subr.bf16.mxu0 0
      %2313 = vmatpush1.bf16.msra.mxu0 %v2289
      %2314 = vmatprep.subr.bf16.mxu0 0
      %2315 = vmatpush1.bf16.msra.mxu0 %v2288
      %2316 = vmatprep.subr.bf16.mxu0 0
      %2317 = vmatpush1.bf16.msra.mxu0 %v2287
      %2318 = vmatprep.subr.bf16.mxu0 0
      %2319 = vmatpush1.bf16.msra.mxu0 %v2286
      %2320 = vmatprep.subr.bf16.mxu0 0
      %2321 = vmatpush1.bf16.msra.mxu0 %v2285
      %2322 = vmatprep.subr.bf16.mxu0 0
      %2323 = vmatpush1.bf16.msra.mxu0 %v2284
      %2324 = vmatprep.subr.bf16.mxu0 0
      %2325 = vmatpush2.bf16.msra.mxu0 0
      %2326 = vmatprep.subr.bf16.mxu0 0
      %2327 = vmatpush2.bf16.msra.mxu0 0
      %2328 = vmatprep.subr.bf16.mxu0 0
      %2329 = vmatpush2.bf16.msra.mxu0 0
      %2330 = vmatprep.subr.bf16.mxu0 0
      %2331 = vmatpush2.bf16.msra.mxu0 0
      %2332 = vmatprep.subr.bf16.mxu0 0
      %2333 = vmatpush2.bf16.msra.mxu0 %v2295
      %2334 = vmatprep.subr.bf16.mxu0 0
      %2335 = vmatpush2.bf16.msra.mxu0 %v2294
      %2336 = vmatprep.subr.bf16.mxu0 0
      %2337 = vmatpush2.bf16.msra.mxu0 %v2293
      %2338 = vmatprep.subr.bf16.mxu0 0
      %2339 = vmatpush2.bf16.msra.mxu0 %v2292
      %2340 = vmatprep.mubr.bf16.mxu0 %v2306
      %2341 = vmatmul.mubr.bf16.gmra.mxu0 %v2302
      %v2342 = vpop.f32.mrf.mxu0
      %v2343 = vadd.f32 0.0, %v2342
      %v2344 = vpop.f32.mrf.mxu0
      %v2345 = vpop.f32.mrf.mxu0
      %v2346 = vadd.f32 0.0, %v2345
      %v2347 = vpop.f32.mrf.mxu0
      %2348 = vdwg.mxu0
      %v2349 = vmax.f32 %v2343, 0.0
      %v2350 = vmax.f32 %v2346, 0.0
      %v2351 = vld [vmem:[%s7] sm:$0xf]
      %v2352 = vld [vmem:[%s7 + $0x4] sm:$0xf]
      %v2353 = vld [vmem:[%s7 + $0x8] sm:$0xf]
      %v2354 = vld [vmem:[%s7 + $0xc] sm:$0xf]
      %v2355 = vld [vmem:[%s7 + $0x10] sm:$0xf]
      %v2356 = vld [vmem:[%s7 + $0x14] sm:$0xf]
      %v2357 = vld [vmem:[%s7 + $0x18] sm:$0xf]
      %v2358 = vld [vmem:[%s7 + $0x1c] sm:$0xf]
      %v2359 = vld [vmem:[%s7 + $0x20] sm:$0xf]
      %v2360 = vld [vmem:[%s7 + $0x24] sm:$0xf]
      %v2361 = vld [vmem:[%s7 + $0x28] sm:$0xf]
      %v2362 = vld [vmem:[%s7 + $0x2c] sm:$0xf]
      %v2363 = vld [vmem:[%s7 + $0x30] sm:$0xf]
      %v2364 = vld [vmem:[%s7 + $0x34] sm:$0xf]
      %v2365 = vld [vmem:[%s7 + $0x38] sm:$0xf]
      %v2366 = vld [vmem:[%s7 + $0x3c] sm:$0xf]
      %v2367 = vld [vmem:[%s7 + $0x40] sm:$0xf]
      %v2368 = vld [vmem:[%s7 + $0x44] sm:$0xf]
      %v2369 = vld [vmem:[%s7 + $0x48] sm:$0xf]
      %v2370 = vld [vmem:[%s7 + $0x4c] sm:$0xf]
      %v2371 = vld [vmem:[%s7 + $0x50] sm:$0xf]
      %v2372 = vld [vmem:[%s7 + $0x54] sm:$0xf]
      %v2373 = vld [vmem:[%s7 + $0x58] sm:$0xf]
      %v2374 = vld [vmem:[%s7 + $0x5c] sm:$0xf]
      %v2375 = vpack.c.bf16 %v2350, %v2349
      %v2400 = vunpack.c.l.b16 %v2351
      %v2401 = vunpack.c.l.b16 %v2352
      %v2402 = vunpack.c.l.b16 %v2353
      %v2403 = vunpack.c.l.b16 %v2354
      %v2404 = vunpack.c.l.b16 %v2355
      %v2405 = vunpack.c.l.b16 %v2356
      %v2406 = vunpack.c.l.b16 %v2357
      %v2407 = vunpack.c.l.b16 %v2358
      %v2408 = vunpack.c.l.b16 %v2359
      %v2409 = vunpack.c.l.b16 %v2360
      %v2410 = vunpack.c.l.b16 %v2361
      %v2411 = vunpack.c.l.b16 %v2362
      %v2412 = vunpack.c.l.b16 %v2363
      %v2413 = vunpack.c.l.b16 %v2364
      %v2414 = vunpack.c.l.b16 %v2365
      %v2415 = vunpack.c.l.b16 %v2366
      %v2416 = vunpack.c.l.b16 %v2367
      %v2417 = vunpack.c.l.b16 %v2368
      %v2418 = vunpack.c.l.b16 %v2369
      %v2419 = vunpack.c.l.b16 %v2370
      %v2420 = vunpack.c.l.b16 %v2371
      %v2421 = vunpack.c.l.b16 %v2372
      %v2422 = vunpack.c.l.b16 %v2373
      %v2423 = vunpack.c.l.b16 %v2374
      %v2424 = vpack.c.b16 %v2401, %v2400
      %v2425 = vpack.c.b16 %v2403, %v2402
      %v2426 = vpack.c.b16 %v2405, %v2404
      %v2427 = vpack.c.b16 %v2407, %v2406
      %v2428 = vpack.c.b16 %v2409, %v2408
      %v2429 = vpack.c.b16 %v2411, %v2410
      %v2430 = vpack.c.b16 %v2413, %v2412
      %v2431 = vpack.c.b16 %v2415, %v2414
      %v2432 = vpack.c.b16 %v2417, %v2416
      %v2433 = vpack.c.b16 %v2419, %v2418
      %v2434 = vpack.c.b16 %v2421, %v2420
      %v2435 = vpack.c.b16 %v2423, %v2422
      %vm2436 = vcmask 97280
      %v2438 = vsel %vm2436, %v2424, 0
      %v2441 = vsel %vm2436, %v2425, 0
      %v2444 = vsel %vm2436, %v2426, 0
      %v2447 = vsel %vm2436, %v2427, 0
      %v2450 = vsel %vm2436, %v2428, 0
      %v2453 = vsel %vm2436, %v2429, 0
      %v2456 = vsel %vm2436, %v2430, 0
      %v2459 = vsel %vm2436, %v2431, 0
      %v2462 = vsel %vm2436, %v2432, 0
      %v2465 = vsel %vm2436, %v2433, 0
      %v2468 = vsel %vm2436, %v2434, 0
      %v2471 = vsel %vm2436, %v2435, 0
      %vm2473 = vcmask 1045504
      %v2475 = vsel %vm2473, %v2375, 0
      %2477 = vmatprep.subr.bf16.mxu0 0
      %2478 = vmatpush1.bf16.msra.mxu0 0
      %2479 = vmatprep.subr.bf16.mxu0 0
      %2480 = vmatpush1.bf16.msra.mxu0 0
      %2481 = vmatprep.subr.bf16.mxu0 0
      %2482 = vmatpush1.bf16.msra.mxu0 0
      %2483 = vmatprep.subr.bf16.mxu0 0
      %2484 = vmatpush1.bf16.msra.mxu0 0
      %2485 = vmatprep.subr.bf16.mxu0 0
      %2486 = vmatpush1.bf16.msra.mxu0 0
      %2487 = vmatprep.subr.bf16.mxu0 0
      %2488 = vmatpush1.bf16.msra.mxu0 0
      %2489 = vmatprep.subr.bf16.mxu0 0
      %2490 = vmatpush1.bf16.msra.mxu0 0
      %2491 = vmatprep.subr.bf16.mxu0 0
      %2492 = vmatpush1.bf16.msra.mxu0 %v2475
      %2493 = vmatprep.subr.bf16.mxu0 0
      %2494 = vmatpush2.bf16.msra.mxu0 0
      %2495 = vmatprep.subr.bf16.mxu0 0
      %2496 = vmatpush2.bf16.msra.mxu0 0
      %2497 = vmatprep.subr.bf16.mxu0 0
      %2498 = vmatpush2.bf16.msra.mxu0 0
      %2499 = vmatprep.subr.bf16.mxu0 0
      %2500 = vmatpush2.bf16.msra.mxu0 0
      %2501 = vmatprep.subr.bf16.mxu0 0
      %2502 = vmatpush2.bf16.msra.mxu0 0
      %2503 = vmatprep.subr.bf16.mxu0 0
      %2504 = vmatpush2.bf16.msra.mxu0 0
      %2505 = vmatprep.subr.bf16.mxu0 0
      %2506 = vmatpush2.bf16.msra.mxu0 0
      %2507 = vmatprep.subr.bf16.mxu0 0
      %2508 = vmatpush2.bf16.msra.mxu0 0
      %2509 = vmatprep.mubr.bf16.mxu0 0
      %2510 = vmatmul.mubr.bf16.gmra.mxu0 %v2438
      %v2511 = vpop.f32.mrf.mxu0
      %v2512 = vadd.f32 0.0, %v2511
      %v2513 = vpop.f32.mrf.mxu0
      %v2514 = vpop.f32.mrf.mxu0
      %v2515 = vadd.f32 0.0, %v2514
      %v2516 = vpop.f32.mrf.mxu0
      %2517 = vmatprep.mubr.bf16.mxu0 0
      %2518 = vmatmul.mubr.bf16.gmra.mxu0 %v2441
      %v2519 = vpop.f32.mrf.mxu0
      %v2520 = vadd.f32 0.0, %v2519
      %v2521 = vpop.f32.mrf.mxu0
      %v2522 = vpop.f32.mrf.mxu0
      %v2523 = vadd.f32 0.0, %v2522
      %v2524 = vpop.f32.mrf.mxu0
      %2525 = vmatprep.mubr.bf16.mxu0 0
      %2526 = vmatmul.mubr.bf16.gmra.mxu0 %v2444
      %v2527 = vpop.f32.mrf.mxu0
      %v2528 = vadd.f32 0.0, %v2527
      %v2529 = vpop.f32.mrf.mxu0
      %v2530 = vpop.f32.mrf.mxu0
      %v2531 = vadd.f32 0.0, %v2530
      %v2532 = vpop.f32.mrf.mxu0
      %2533 = vmatprep.mubr.bf16.mxu0 0
      %2534 = vmatmul.mubr.bf16.gmra.mxu0 %v2447
      %v2535 = vpop.f32.mrf.mxu0
      %v2536 = vadd.f32 0.0, %v2535
      %v2537 = vpop.f32.mrf.mxu0
      %v2538 = vpop.f32.mrf.mxu0
      %v2539 = vadd.f32 0.0, %v2538
      %v2540 = vpop.f32.mrf.mxu0
      %2541 = vmatprep.mubr.bf16.mxu0 0
      %2542 = vmatmul.mubr.bf16.gmra.mxu0 %v2450
      %v2543 = vpop.f32.mrf.mxu0
      %v2544 = vadd.f32 0.0, %v2543
      %v2545 = vpop.f32.mrf.mxu0
      %v2546 = vpop.f32.mrf.mxu0
      %v2547 = vadd.f32 0.0, %v2546
      %v2548 = vpop.f32.mrf.mxu0
      %2549 = vmatprep.mubr.bf16.mxu0 0
      %2550 = vmatmul.mubr.bf16.gmra.mxu0 %v2453
      %v2551 = vpop.f32.mrf.mxu0
      %v2552 = vadd.f32 0.0, %v2551
      %v2553 = vpop.f32.mrf.mxu0
      %v2554 = vpop.f32.mrf.mxu0
      %v2555 = vadd.f32 0.0, %v2554
      %v2556 = vpop.f32.mrf.mxu0
      %2557 = vmatprep.mubr.bf16.mxu0 0
      %2558 = vmatmul.mubr.bf16.gmra.mxu0 %v2456
      %v2559 = vpop.f32.mrf.mxu0
      %v2560 = vadd.f32 0.0, %v2559
      %v2561 = vpop.f32.mrf.mxu0
      %v2562 = vpop.f32.mrf.mxu0
      %v2563 = vadd.f32 0.0, %v2562
      %v2564 = vpop.f32.mrf.mxu0
      %2565 = vmatprep.mubr.bf16.mxu0 0
      %2566 = vmatmul.mubr.bf16.gmra.mxu0 %v2459
      %v2567 = vpop.f32.mrf.mxu0
      %v2568 = vadd.f32 0.0, %v2567
      %v2569 = vpop.f32.mrf.mxu0
      %v2570 = vpop.f32.mrf.mxu0
      %v2571 = vadd.f32 0.0, %v2570
      %v2572 = vpop.f32.mrf.mxu0
      %2573 = vmatprep.mubr.bf16.mxu0 0
      %2574 = vmatmul.mubr.bf16.gmra.mxu0 %v2462
      %v2575 = vpop.f32.mrf.mxu0
      %v2576 = vadd.f32 0.0, %v2575
      %v2577 = vpop.f32.mrf.mxu0
      %v2578 = vpop.f32.mrf.mxu0
      %v2579 = vadd.f32 0.0, %v2578
      %v2580 = vpop.f32.mrf.mxu0
      %2581 = vmatprep.mubr.bf16.mxu0 0
      %2582 = vmatmul.mubr.bf16.gmra.mxu0 %v2465
      %v2583 = vpop.f32.mrf.mxu0
      %v2584 = vadd.f32 0.0, %v2583
      %v2585 = vpop.f32.mrf.mxu0
      %v2586 = vpop.f32.mrf.mxu0
      %v2587 = vadd.f32 0.0, %v2586
      %v2588 = vpop.f32.mrf.mxu0
      %2589 = vmatprep.mubr.bf16.mxu0 0
      %2590 = vmatmul.mubr.bf16.gmra.mxu0 %v2468
      %v2591 = vpop.f32.mrf.mxu0
      %v2592 = vadd.f32 0.0, %v2591
      %v2593 = vpop.f32.mrf.mxu0
      %v2594 = vpop.f32.mrf.mxu0
      %v2595 = vadd.f32 0.0, %v2594
      %v2596 = vpop.f32.mrf.mxu0
      %2597 = vmatprep.mubr.bf16.mxu0 0
      %2598 = vmatmul.mubr.bf16.gmra.mxu0 %v2471
      %v2599 = vpop.f32.mrf.mxu0
      %v2600 = vadd.f32 0.0, %v2599
      %v2601 = vpop.f32.mrf.mxu0
      %v2602 = vpop.f32.mrf.mxu0
      %v2603 = vadd.f32 0.0, %v2602
      %v2604 = vpop.f32.mrf.mxu0
      %2605 = vdwg.mxu0
      %vm2606 = vcmask 15360
      %v2607 = vsel %vm2606, %v2512, 0.0
      %2608 = vadd.xlane.f32.xlu0 %v2607
      %v2609 = vpop.xlane.xlu0 %2608
      %v2610 = vsel %vm2606, %v2515, 0.0
      %2611 = vadd.xlane.f32.xlu0 %v2610
      %v2612 = vpop.xlane.xlu0 %2611
      %v2613 = vsel %vm2606, %v2520, 0.0
      %2614 = vadd.xlane.f32.xlu0 %v2613
      %v2615 = vpop.xlane.xlu0 %2614
      %v2616 = vsel %vm2606, %v2523, 0.0
      %2617 = vadd.xlane.f32.xlu0 %v2616
      %v2618 = vpop.xlane.xlu0 %2617
      %v2619 = vsel %vm2606, %v2528, 0.0
      %2620 = vadd.xlane.f32.xlu0 %v2619
      %v2621 = vpop.xlane.xlu0 %2620
      %v2622 = vsel %vm2606, %v2531, 0.0
      %2623 = vadd.xlane.f32.xlu0 %v2622
      %v2624 = vpop.xlane.xlu0 %2623
      %v2625 = vsel %vm2606, %v2536, 0.0
      %2626 = vadd.xlane.f32.xlu0 %v2625
      %v2627 = vpop.xlane.xlu0 %2626
      %v2628 = vsel %vm2606, %v2539, 0.0
      %2629 = vadd.xlane.f32.xlu0 %v2628
      %v2630 = vpop.xlane.xlu0 %2629
      %v2631 = vsel %vm2606, %v2544, 0.0
      %2632 = vadd.xlane.f32.xlu0 %v2631
      %v2633 = vpop.xlane.xlu0 %2632
      %v2634 = vsel %vm2606, %v2547, 0.0
      %2635 = vadd.xlane.f32.xlu0 %v2634
      %v2636 = vpop.xlane.xlu0 %2635
      %v2637 = vsel %vm2606, %v2552, 0.0
      %2638 = vadd.xlane.f32.xlu0 %v2637
      %v2639 = vpop.xlane.xlu0 %2638
      %v2640 = vsel %vm2606, %v2555, 0.0
      %2641 = vadd.xlane.f32.xlu0 %v2640
      %v2642 = vpop.xlane.xlu0 %2641
      %v2643 = vsel %vm2606, %v2560, 0.0
      %2644 = vadd.xlane.f32.xlu0 %v2643
      %v2645 = vpop.xlane.xlu0 %2644
      %v2646 = vsel %vm2606, %v2563, 0.0
      %2647 = vadd.xlane.f32.xlu0 %v2646
      %v2648 = vpop.xlane.xlu0 %2647
      %v2649 = vsel %vm2606, %v2568, 0.0
      %2650 = vadd.xlane.f32.xlu0 %v2649
      %v2651 = vpop.xlane.xlu0 %2650
      %v2652 = vsel %vm2606, %v2571, 0.0
      %2653 = vadd.xlane.f32.xlu0 %v2652
      %v2654 = vpop.xlane.xlu0 %2653
      %v2655 = vsel %vm2606, %v2576, 0.0
      %2656 = vadd.xlane.f32.xlu0 %v2655
      %v2657 = vpop.xlane.xlu0 %2656
      %v2658 = vsel %vm2606, %v2579, 0.0
      %2659 = vadd.xlane.f32.xlu0 %v2658
      %v2660 = vpop.xlane.xlu0 %2659
      %v2661 = vsel %vm2606, %v2584, 0.0
      %2662 = vadd.xlane.f32.xlu0 %v2661
      %v2663 = vpop.xlane.xlu0 %2662
      %v2664 = vsel %vm2606, %v2587, 0.0
      %2665 = vadd.xlane.f32.xlu0 %v2664
      %v2666 = vpop.xlane.xlu0 %2665
      %v2667 = vsel %vm2606, %v2592, 0.0
      %2668 = vadd.xlane.f32.xlu0 %v2667
      %v2669 = vpop.xlane.xlu0 %2668
      %v2670 = vsel %vm2606, %v2595, 0.0
      %2671 = vadd.xlane.f32.xlu0 %v2670
      %v2672 = vpop.xlane.xlu0 %2671
      %v2673 = vsel %vm2606, %v2600, 0.0
      %2674 = vadd.xlane.f32.xlu0 %v2673
      %v2675 = vpop.xlane.xlu0 %2674
      %v2676 = vsel %vm2606, %v2603, 0.0
      %2677 = vadd.xlane.f32.xlu0 %v2676
      %v2678 = vpop.xlane.xlu0 %2677
      %v2679 = vsub.f32 0.0, %v2609
      %v2680 = vsub.f32 0.0, %v2612
      %v2681 = vsub.f32 0.0, %v2615
      %v2682 = vsub.f32 0.0, %v2618
      %v2683 = vsub.f32 0.0, %v2621
      %v2684 = vsub.f32 0.0, %v2624
      %v2685 = vsub.f32 0.0, %v2627
      %v2686 = vsub.f32 0.0, %v2630
      %v2687 = vsub.f32 0.0, %v2633
      %v2688 = vsub.f32 0.0, %v2636
      %v2689 = vsub.f32 0.0, %v2639
      %v2690 = vsub.f32 0.0, %v2642
      %v2691 = vsub.f32 0.0, %v2645
      %v2692 = vsub.f32 0.0, %v2648
      %v2693 = vsub.f32 0.0, %v2651
      %v2694 = vsub.f32 0.0, %v2654
      %v2695 = vsub.f32 0.0, %v2657
      %v2696 = vsub.f32 0.0, %v2660
      %v2697 = vsub.f32 0.0, %v2663
      %v2698 = vsub.f32 0.0, %v2666
      %v2699 = vsub.f32 0.0, %v2669
      %v2700 = vsub.f32 0.0, %v2672
      %v2701 = vsub.f32 0.0, %v2675
      %v2702 = vsub.f32 0.0, %v2678
      %v2703 = vmul.f32 %v2679, 1.442695
      %v2704 = vpow.pop %v2703
      %v2705 = vmul.f32 %v2680, 1.442695
      %v2706 = vpow.pop %v2705
      %v2707 = vmul.f32 %v2681, 1.442695
      %v2708 = vpow.pop %v2707
      %v2709 = vmul.f32 %v2682, 1.442695
      %v2710 = vpow.pop %v2709
      %v2711 = vmul.f32 %v2683, 1.442695
      %v2712 = vpow.pop %v2711
      %v2713 = vmul.f32 %v2684, 1.442695
      %v2714 = vpow.pop %v2713
      %v2715 = vmul.f32 %v2685, 1.442695
      %v2716 = vpow.pop %v2715
      %v2717 = vmul.f32 %v2686, 1.442695
      %v2718 = vpow.pop %v2717
      %v2719 = vmul.f32 %v2687, 1.442695
      %v2720 = vpow.pop %v2719
      %v2721 = vmul.f32 %v2688, 1.442695
      %v2722 = vpow.pop %v2721
      %v2723 = vmul.f32 %v2689, 1.442695
      %v2724 = vpow.pop %v2723
      %v2725 = vmul.f32 %v2690, 1.442695
      %v2726 = vpow.pop %v2725
      %v2727 = vmul.f32 %v2691, 1.442695
      %v2728 = vpow.pop %v2727
      %v2729 = vmul.f32 %v2692, 1.442695
      %v2730 = vpow.pop %v2729
      %v2731 = vmul.f32 %v2693, 1.442695
      %v2732 = vpow.pop %v2731
      %v2733 = vmul.f32 %v2694, 1.442695
      %v2734 = vpow.pop %v2733
      %v2735 = vmul.f32 %v2695, 1.442695
      %v2736 = vpow.pop %v2735
      %v2737 = vmul.f32 %v2696, 1.442695
      %v2738 = vpow.pop %v2737
      %v2739 = vmul.f32 %v2697, 1.442695
      %v2740 = vpow.pop %v2739
      %v2741 = vmul.f32 %v2698, 1.442695
      %v2742 = vpow.pop %v2741
      %v2743 = vmul.f32 %v2699, 1.442695
      %v2744 = vpow.pop %v2743
      %v2745 = vmul.f32 %v2700, 1.442695
      %v2746 = vpow.pop %v2745
      %v2747 = vmul.f32 %v2701, 1.442695
      %v2748 = vpow.pop %v2747
      %v2749 = vmul.f32 %v2702, 1.442695
      %v2750 = vpow.pop %v2749
      %v2751 = vadd.f32 %v2704, 1.0
      %v2752 = vadd.f32 %v2706, 1.0
      %v2753 = vadd.f32 %v2708, 1.0
      %v2754 = vadd.f32 %v2710, 1.0
      %v2755 = vadd.f32 %v2712, 1.0
      %v2756 = vadd.f32 %v2714, 1.0
      %v2757 = vadd.f32 %v2716, 1.0
      %v2758 = vadd.f32 %v2718, 1.0
      %v2759 = vadd.f32 %v2720, 1.0
      %v2760 = vadd.f32 %v2722, 1.0
      %v2761 = vadd.f32 %v2724, 1.0
      %v2762 = vadd.f32 %v2726, 1.0
      %v2763 = vadd.f32 %v2728, 1.0
      %v2764 = vadd.f32 %v2730, 1.0
      %v2765 = vadd.f32 %v2732, 1.0
      %v2766 = vadd.f32 %v2734, 1.0
      %v2767 = vadd.f32 %v2736, 1.0
      %v2768 = vadd.f32 %v2738, 1.0
      %v2769 = vadd.f32 %v2740, 1.0
      %v2770 = vadd.f32 %v2742, 1.0
      %v2771 = vadd.f32 %v2744, 1.0
      %v2772 = vadd.f32 %v2746, 1.0
      %v2773 = vadd.f32 %v2748, 1.0
      %v2774 = vadd.f32 %v2750, 1.0
      %v2775 = vrcp.pop %v2751
      %v2776 = vmul.f32 1.0, %v2775
      %v2777 = vrcp.pop %v2752
      %v2778 = vmul.f32 1.0, %v2777
      %v2779 = vrcp.pop %v2753
      %v2780 = vmul.f32 1.0, %v2779
      %v2781 = vrcp.pop %v2754
      %v2782 = vmul.f32 1.0, %v2781
      %v2783 = vrcp.pop %v2755
      %v2784 = vmul.f32 1.0, %v2783
      %v2785 = vrcp.pop %v2756
      %v2786 = vmul.f32 1.0, %v2785
      %v2787 = vrcp.pop %v2757
      %v2788 = vmul.f32 1.0, %v2787
      %v2789 = vrcp.pop %v2758
      %v2790 = vmul.f32 1.0, %v2789
      %v2791 = vrcp.pop %v2759
      %v2792 = vmul.f32 1.0, %v2791
      %v2793 = vrcp.pop %v2760
      %v2794 = vmul.f32 1.0, %v2793
      %v2795 = vrcp.pop %v2761
      %v2796 = vmul.f32 1.0, %v2795
      %v2797 = vrcp.pop %v2762
      %v2798 = vmul.f32 1.0, %v2797
      %v2799 = vrcp.pop %v2763
      %v2800 = vmul.f32 1.0, %v2799
      %v2801 = vrcp.pop %v2764
      %v2802 = vmul.f32 1.0, %v2801
      %v2803 = vrcp.pop %v2765
      %v2804 = vmul.f32 1.0, %v2803
      %v2805 = vrcp.pop %v2766
      %v2806 = vmul.f32 1.0, %v2805
      %v2807 = vrcp.pop %v2767
      %v2808 = vmul.f32 1.0, %v2807
      %v2809 = vrcp.pop %v2768
      %v2810 = vmul.f32 1.0, %v2809
      %v2811 = vrcp.pop %v2769
      %v2812 = vmul.f32 1.0, %v2811
      %v2813 = vrcp.pop %v2770
      %v2814 = vmul.f32 1.0, %v2813
      %v2815 = vrcp.pop %v2771
      %v2816 = vmul.f32 1.0, %v2815
      %v2817 = vrcp.pop %v2772
      %v2818 = vmul.f32 1.0, %v2817
      %v2819 = vrcp.pop %v2773
      %v2820 = vmul.f32 1.0, %v2819
      %v2821 = vrcp.pop %v2774
      %v2822 = vmul.f32 1.0, %v2821
      %v2823 = vmul.f32 %v1203, %v2776
      %v2824 = vmul.f32 %v1204, %v2776
      %v2825 = vmul.f32 %v1205, %v2778
      %v2826 = vmul.f32 %v1206, %v2778
      %v2827 = vmul.f32 %v1207, %v2780
      %v2828 = vmul.f32 %v1208, %v2780
      %v2829 = vmul.f32 %v1209, %v2782
      %v2830 = vmul.f32 %v1210, %v2782
      %v2831 = vmul.f32 %v1211, %v2784
      %v2832 = vmul.f32 %v1212, %v2784
      %v2833 = vmul.f32 %v1213, %v2786
      %v2834 = vmul.f32 %v1214, %v2786
      %v2835 = vmul.f32 %v1215, %v2788
      %v2836 = vmul.f32 %v1216, %v2788
      %v2837 = vmul.f32 %v1217, %v2790
      %v2838 = vmul.f32 %v1218, %v2790
      %v2839 = vpack.c.bf16 %v2825, %v2823
      %v2840 = vpack.c.bf16 %v2826, %v2824
      %v2841 = vpack.c.bf16 %v2829, %v2827
      %v2842 = vpack.c.bf16 %v2830, %v2828
      %v2843 = vpack.c.bf16 %v2833, %v2831
      %v2844 = vpack.c.bf16 %v2834, %v2832
      %v2845 = vpack.c.bf16 %v2837, %v2835
      %v2846 = vpack.c.bf16 %v2838, %v2836
      %v2855 = vunpack.c.l.b16 %v2839
      %v2856 = vunpack.c.l.b16 %v2840
      %v2857 = vunpack.c.h.b16 %v2839
      %v2858 = vunpack.c.h.b16 %v2840
      %v2859 = vunpack.c.l.b16 %v2841
      %v2860 = vunpack.c.l.b16 %v2842
      %v2861 = vunpack.c.h.b16 %v2841
      %v2862 = vunpack.c.h.b16 %v2842
      %v2863 = vunpack.c.l.b16 %v2843
      %v2864 = vunpack.c.l.b16 %v2844
      %v2865 = vunpack.c.h.b16 %v2843
      %v2866 = vunpack.c.h.b16 %v2844
      %v2867 = vunpack.c.l.b16 %v2845
      %v2868 = vunpack.c.l.b16 %v2846
      %v2869 = vunpack.c.h.b16 %v2845
      %v2870 = vunpack.c.h.b16 %v2846
      %v2871 = vpack.c.b16 %v2856, %v2855
      %v2872 = vpack.c.b16 %v2858, %v2857
      %v2873 = vpack.c.b16 %v2860, %v2859
      %v2874 = vpack.c.b16 %v2862, %v2861
      %v2875 = vpack.c.b16 %v2864, %v2863
      %v2876 = vpack.c.b16 %v2866, %v2865
      %v2877 = vpack.c.b16 %v2868, %v2867
      %v2878 = vpack.c.b16 %v2870, %v2869
      %2887 = vst [vmem:[%s365] sm:$0xff] %v2871
      %2888 = vst [vmem:[%s365 + $0x8] sm:$0xff] %v2872
      %2889 = vst [vmem:[%s365 + $0x10] sm:$0xff] %v2873
      %2890 = vst [vmem:[%s365 + $0x18] sm:$0xff] %v2874
      %2891 = vst [vmem:[%s365 + $0x20] sm:$0xff] %v2875
      %2892 = vst [vmem:[%s365 + $0x28] sm:$0xff] %v2876
      %2893 = vst [vmem:[%s365 + $0x30] sm:$0xff] %v2877
      %2894 = vst [vmem:[%s365 + $0x38] sm:$0xff] %v2878
      %v2895 = vmul.f32 %v2072, %v2792
      %v2896 = vmul.f32 %v2073, %v2792
      %v2897 = vmul.f32 %v2074, %v2794
      %v2898 = vmul.f32 %v2075, %v2794
      %v2899 = vmul.f32 %v2076, %v2796
      %v2900 = vmul.f32 %v2077, %v2796
      %v2901 = vmul.f32 %v2078, %v2798
      %v2902 = vmul.f32 %v2079, %v2798
      %v2903 = vmul.f32 %v2080, %v2800
      %v2904 = vmul.f32 %v2081, %v2800
      %v2905 = vmul.f32 %v2082, %v2802
      %v2906 = vmul.f32 %v2083, %v2802
      %v2907 = vmul.f32 %v2084, %v2804
      %v2908 = vmul.f32 %v2085, %v2804
      %v2909 = vmul.f32 %v2086, %v2806
      %v2910 = vmul.f32 %v2087, %v2806
      %v2911 = vpack.c.bf16 %v2897, %v2895
      %v2912 = vpack.c.bf16 %v2898, %v2896
      %v2913 = vpack.c.bf16 %v2901, %v2899
      %v2914 = vpack.c.bf16 %v2902, %v2900
      %v2915 = vpack.c.bf16 %v2905, %v2903
      %v2916 = vpack.c.bf16 %v2906, %v2904
      %v2917 = vpack.c.bf16 %v2909, %v2907
      %v2918 = vpack.c.bf16 %v2910, %v2908
      %v2927 = vunpack.c.l.b16 %v2911
      %v2928 = vunpack.c.l.b16 %v2912
      %v2929 = vunpack.c.h.b16 %v2911
      %v2930 = vunpack.c.h.b16 %v2912
      %v2931 = vunpack.c.l.b16 %v2913
      %v2932 = vunpack.c.l.b16 %v2914
      %v2933 = vunpack.c.h.b16 %v2913
      %v2934 = vunpack.c.h.b16 %v2914
      %v2935 = vunpack.c.l.b16 %v2915
      %v2936 = vunpack.c.l.b16 %v2916
      %v2937 = vunpack.c.h.b16 %v2915
      %v2938 = vunpack.c.h.b16 %v2916
      %v2939 = vunpack.c.l.b16 %v2917
      %v2940 = vunpack.c.l.b16 %v2918
      %v2941 = vunpack.c.h.b16 %v2917
      %v2942 = vunpack.c.h.b16 %v2918
      %v2943 = vpack.c.b16 %v2928, %v2927
      %v2944 = vpack.c.b16 %v2930, %v2929
      %v2945 = vpack.c.b16 %v2932, %v2931
      %v2946 = vpack.c.b16 %v2934, %v2933
      %v2947 = vpack.c.b16 %v2936, %v2935
      %v2948 = vpack.c.b16 %v2938, %v2937
      %v2949 = vpack.c.b16 %v2940, %v2939
      %v2950 = vpack.c.b16 %v2942, %v2941
      %2959 = vst [vmem:[%s365 + $0x40] sm:$0xff] %v2943
      %2960 = vst [vmem:[%s365 + $0x48] sm:$0xff] %v2944
      %2961 = vst [vmem:[%s365 + $0x50] sm:$0xff] %v2945
      %2962 = vst [vmem:[%s365 + $0x58] sm:$0xff] %v2946
      %2963 = vst [vmem:[%s365 + $0x60] sm:$0xff] %v2947
      %2964 = vst [vmem:[%s365 + $0x68] sm:$0xff] %v2948
      %2965 = vst [vmem:[%s365 + $0x70] sm:$0xff] %v2949
      %2966 = vst [vmem:[%s365 + $0x78] sm:$0xff] %v2950
      %v2967 = vmul.f32 %v2056, %v2808
      %v2968 = vmul.f32 %v2057, %v2808
      %v2969 = vmul.f32 %v2058, %v2810
      %v2970 = vmul.f32 %v2059, %v2810
      %v2971 = vmul.f32 %v2060, %v2812
      %v2972 = vmul.f32 %v2061, %v2812
      %v2973 = vmul.f32 %v2062, %v2814
      %v2974 = vmul.f32 %v2063, %v2814
      %v2975 = vmul.f32 %v2064, %v2816
      %v2976 = vmul.f32 %v2065, %v2816
      %v2977 = vmul.f32 %v2066, %v2818
      %v2978 = vmul.f32 %v2067, %v2818
      %v2979 = vmul.f32 %v2068, %v2820
      %v2980 = vmul.f32 %v2069, %v2820
      %v2981 = vmul.f32 %v2070, %v2822
      %v2982 = vmul.f32 %v2071, %v2822
      %v2983 = vpack.c.bf16 %v2969, %v2967
      %v2984 = vpack.c.bf16 %v2970, %v2968
      %v2985 = vpack.c.bf16 %v2973, %v2971
      %v2986 = vpack.c.bf16 %v2974, %v2972
      %v2987 = vpack.c.bf16 %v2977, %v2975
      %v2988 = vpack.c.bf16 %v2978, %v2976
      %v2989 = vpack.c.bf16 %v2981, %v2979
      %v2990 = vpack.c.bf16 %v2982, %v2980
      %v2999 = vunpack.c.l.b16 %v2983
      %v3000 = vunpack.c.l.b16 %v2984
      %v3001 = vunpack.c.h.b16 %v2983
      %v3002 = vunpack.c.h.b16 %v2984
      %v3003 = vunpack.c.l.b16 %v2985
      %v3004 = vunpack.c.l.b16 %v2986
      %v3005 = vunpack.c.h.b16 %v2985
      %v3006 = vunpack.c.h.b16 %v2986
      %v3007 = vunpack.c.l.b16 %v2987
      %v3008 = vunpack.c.l.b16 %v2988
      %v3009 = vunpack.c.h.b16 %v2987
      %v3010 = vunpack.c.h.b16 %v2988
      %v3011 = vunpack.c.l.b16 %v2989
      %v3012 = vunpack.c.l.b16 %v2990
      %v3013 = vunpack.c.h.b16 %v2989
      %v3014 = vunpack.c.h.b16 %v2990
      %v3015 = vpack.c.b16 %v3000, %v2999
      %v3016 = vpack.c.b16 %v3002, %v3001
      %v3017 = vpack.c.b16 %v3004, %v3003
      %v3018 = vpack.c.b16 %v3006, %v3005
      %v3019 = vpack.c.b16 %v3008, %v3007
      %v3020 = vpack.c.b16 %v3010, %v3009
      %v3021 = vpack.c.b16 %v3012, %v3011
      %v3022 = vpack.c.b16 %v3014, %v3013
      %3031 = vst [vmem:[%s365 + $0x80] sm:$0xff] %v3015
      %3032 = vst [vmem:[%s365 + $0x88] sm:$0xff] %v3016
      %3033 = vst [vmem:[%s365 + $0x90] sm:$0xff] %v3017
      %3034 = vst [vmem:[%s365 + $0x98] sm:$0xff] %v3018
      %3035 = vst [vmem:[%s365 + $0xa0] sm:$0xff] %v3019
      %3036 = vst [vmem:[%s365 + $0xa8] sm:$0xff] %v3020
      %3037 = vst [vmem:[%s365 + $0xb0] sm:$0xff] %v3021
      %3038 = vst [vmem:[%s365 + $0xb8] sm:$0xff] %v3022
      %v3039 = vld [vmem:[%s350 + $0x100] sm:$0xff]
      %v3040 = vld [vmem:[%s350 + $0x108] sm:$0xff]
      %v3041 = vld [vmem:[%s350 + $0x110] sm:$0xff]
      %v3042 = vld [vmem:[%s350 + $0x118] sm:$0xff]
      %v3043 = vld [vmem:[%s350 + $0x120] sm:$0xff]
      %v3044 = vld [vmem:[%s350 + $0x128] sm:$0xff]
      %v3045 = vld [vmem:[%s350 + $0x130] sm:$0xff]
      %v3046 = vld [vmem:[%s350 + $0x138] sm:$0xff]
      %v3047 = vunpack.c.l.bf16 %v3039
      %v3048 = vunpack.c.h.bf16 %v3039
      %v3049 = vunpack.c.l.bf16 %v3040
      %v3050 = vunpack.c.h.bf16 %v3040
      %v3051 = vunpack.c.l.bf16 %v3041
      %v3052 = vunpack.c.h.bf16 %v3041
      %v3053 = vunpack.c.l.bf16 %v3042
      %v3054 = vunpack.c.h.bf16 %v3042
      %v3055 = vunpack.c.l.bf16 %v3043
      %v3056 = vunpack.c.h.bf16 %v3043
      %v3057 = vunpack.c.l.bf16 %v3044
      %v3058 = vunpack.c.h.bf16 %v3044
      %v3059 = vunpack.c.l.bf16 %v3045
      %v3060 = vunpack.c.h.bf16 %v3045
      %v3061 = vunpack.c.l.bf16 %v3046
      %v3062 = vunpack.c.h.bf16 %v3046
      %v3063 = vld [vmem:[%s355 + $0x100] sm:$0xff]
      %v3064 = vld [vmem:[%s355 + $0x108] sm:$0xff]
      %v3065 = vld [vmem:[%s355 + $0x110] sm:$0xff]
      %v3066 = vld [vmem:[%s355 + $0x118] sm:$0xff]
      %v3067 = vld [vmem:[%s355 + $0x120] sm:$0xff]
      %v3068 = vld [vmem:[%s355 + $0x128] sm:$0xff]
      %v3069 = vld [vmem:[%s355 + $0x130] sm:$0xff]
      %v3070 = vld [vmem:[%s355 + $0x138] sm:$0xff]
      %v3071 = vunpack.c.l.bf16 %v3063
      %v3072 = vunpack.c.h.bf16 %v3063
      %v3073 = vunpack.c.l.bf16 %v3064
      %v3074 = vunpack.c.h.bf16 %v3064
      %v3075 = vunpack.c.l.bf16 %v3065
      %v3076 = vunpack.c.h.bf16 %v3065
      %v3077 = vunpack.c.l.bf16 %v3066
      %v3078 = vunpack.c.h.bf16 %v3066
      %v3079 = vunpack.c.l.bf16 %v3067
      %v3080 = vunpack.c.h.bf16 %v3067
      %v3081 = vunpack.c.l.bf16 %v3068
      %v3082 = vunpack.c.h.bf16 %v3068
      %v3083 = vunpack.c.l.bf16 %v3069
      %v3084 = vunpack.c.h.bf16 %v3069
      %v3085 = vunpack.c.l.bf16 %v3070
      %v3086 = vunpack.c.h.bf16 %v3070
      %v3087 = vadd.f32 %v3071, %v3073
      %v3088 = vadd.f32 %v3087, %v3075
      %v3089 = vadd.f32 %v3088, %v3077
      %v3090 = vadd.f32 %v3089, %v3079
      %v3091 = vadd.f32 %v3090, %v3081
      %v3092 = vadd.f32 %v3091, %v3083
      %v3093 = vadd.f32 %v3092, %v3085
      %v3094 = vrot.slane %v3093, 4
      %v3095 = vadd.f32 %v3093, %v3094
      %v3096 = vrot.slane %v3095, 2
      %v3097 = vadd.f32 %v3095, %v3096
      %v3098 = vrot.slane %v3097, 1
      %v3099 = vadd.f32 %v3097, %v3098
      %v3100 = vadd.f32 %v3072, %v3074
      %v3101 = vadd.f32 %v3100, %v3076
      %v3102 = vadd.f32 %v3101, %v3078
      %v3103 = vadd.f32 %v3102, %v3080
      %v3104 = vadd.f32 %v3103, %v3082
      %v3105 = vadd.f32 %v3104, %v3084
      %v3106 = vadd.f32 %v3105, %v3086
      %v3107 = vrot.slane %v3106, 4
      %v3108 = vadd.f32 %v3106, %v3107
      %v3109 = vrot.slane %v3108, 2
      %v3110 = vadd.f32 %v3108, %v3109
      %v3111 = vrot.slane %v3110, 1
      %v3112 = vadd.f32 %v3110, %v3111
      %v3113 = vrcp.pop 64.0
      %v3114 = vmul.f32 %v3099, %v3113
      %v3115 = vmul.f32 %v3112, %v3113
      %v3116 = vmax.f32 %v3071, %v3075
      %v3117 = vmax.f32 %v3073, %v3077
      %v3118 = vmax.f32 %v3116, %v3079
      %v3119 = vmax.f32 %v3117, %v3081
      %v3120 = vmax.f32 %v3118, %v3083
      %v3121 = vmax.f32 %v3119, %v3085
      %v3122 = vmax.f32 %v3120, %v3121
      %v3123 = vrot.slane %v3122, 4
      %v3124 = vmax.f32 %v3122, %v3123
      %v3125 = vrot.slane %v3124, 2
      %v3126 = vmax.f32 %v3124, %v3125
      %v3127 = vrot.slane %v3126, 1
      %v3128 = vmax.f32 %v3126, %v3127
      %v3129 = vmax.f32 %v3072, %v3076
      %v3130 = vmax.f32 %v3074, %v3078
      %v3131 = vmax.f32 %v3129, %v3080
      %v3132 = vmax.f32 %v3130, %v3082
      %v3133 = vmax.f32 %v3131, %v3084
      %v3134 = vmax.f32 %v3132, %v3086
      %v3135 = vmax.f32 %v3133, %v3134
      %v3136 = vrot.slane %v3135, 4
      %v3137 = vmax.f32 %v3135, %v3136
      %v3138 = vrot.slane %v3137, 2
      %v3139 = vmax.f32 %v3137, %v3138
      %v3140 = vrot.slane %v3139, 1
      %v3141 = vmax.f32 %v3139, %v3140
      %v3142 = vpack.c.bf16 %v3114, %v3114
      %v3143 = vpack.c.bf16 %v3115, %v3115
      %v3144 = vld [vmem:[%s4] sm:$0xff]
      %v3145 = vld [vmem:[%s4 + $0x8] sm:$0xff]
      %v3146 = vld [vmem:[%s4 + $0x10] sm:$0xff]
      %v3147 = vld [vmem:[%s4 + $0x18] sm:$0xff]
      %v3148 = vld [vmem:[%s4 + $0x20] sm:$0xff]
      %v3149 = vld [vmem:[%s4 + $0x28] sm:$0xff]
      %v3150 = vld [vmem:[%s4 + $0x30] sm:$0xff]
      %v3151 = vld [vmem:[%s4 + $0x38] sm:$0xff]
      %v3152 = vld [vmem:[%s4 + $0x40] sm:$0xff]
      %v3153 = vld [vmem:[%s4 + $0x48] sm:$0xff]
      %v3154 = vld [vmem:[%s4 + $0x50] sm:$0xff]
      %v3155 = vld [vmem:[%s4 + $0x58] sm:$0xff]
      %v3156 = vld [vmem:[%s4 + $0x60] sm:$0xff]
      %v3157 = vld [vmem:[%s4 + $0x68] sm:$0xff]
      %v3158 = vld [vmem:[%s4 + $0x70] sm:$0xff]
      %v3159 = vld [vmem:[%s4 + $0x78] sm:$0xff]
      %v3160 = vld [vmem:[%s4 + $0x80] sm:$0xff]
      %v3161 = vld [vmem:[%s4 + $0x88] sm:$0xff]
      %v3162 = vld [vmem:[%s4 + $0x90] sm:$0xff]
      %v3163 = vld [vmem:[%s4 + $0x98] sm:$0xff]
      %v3164 = vld [vmem:[%s4 + $0xa0] sm:$0xff]
      %v3165 = vld [vmem:[%s4 + $0xa8] sm:$0xff]
      %v3166 = vld [vmem:[%s4 + $0xb0] sm:$0xff]
      %v3167 = vld [vmem:[%s4 + $0xb8] sm:$0xff]
      %v3168 = vld [vmem:[%s4 + $0xc0] sm:$0xff]
      %v3169 = vld [vmem:[%s4 + $0xc8] sm:$0xff]
      %v3170 = vld [vmem:[%s4 + $0xd0] sm:$0xff]
      %v3171 = vld [vmem:[%s4 + $0xd8] sm:$0xff]
      %v3172 = vld [vmem:[%s4 + $0xe0] sm:$0xff]
      %v3173 = vld [vmem:[%s4 + $0xe8] sm:$0xff]
      %v3174 = vld [vmem:[%s4 + $0xf0] sm:$0xff]
      %v3175 = vld [vmem:[%s4 + $0xf8] sm:$0xff]
      %v3176 = vpack.c.bf16 %v3128, %v3128
      %v3177 = vpack.c.bf16 %v3141, %v3141
      %v3178 = vld [vmem:[%s5] sm:$0xff]
      %v3179 = vld [vmem:[%s5 + $0x8] sm:$0xff]
      %v3180 = vld [vmem:[%s5 + $0x10] sm:$0xff]
      %v3181 = vld [vmem:[%s5 + $0x18] sm:$0xff]
      %v3182 = vld [vmem:[%s5 + $0x20] sm:$0xff]
      %v3183 = vld [vmem:[%s5 + $0x28] sm:$0xff]
      %v3184 = vld [vmem:[%s5 + $0x30] sm:$0xff]
      %v3185 = vld [vmem:[%s5 + $0x38] sm:$0xff]
      %v3186 = vld [vmem:[%s5 + $0x40] sm:$0xff]
      %v3187 = vld [vmem:[%s5 + $0x48] sm:$0xff]
      %v3188 = vld [vmem:[%s5 + $0x50] sm:$0xff]
      %v3189 = vld [vmem:[%s5 + $0x58] sm:$0xff]
      %v3190 = vld [vmem:[%s5 + $0x60] sm:$0xff]
      %v3191 = vld [vmem:[%s5 + $0x68] sm:$0xff]
      %v3192 = vld [vmem:[%s5 + $0x70] sm:$0xff]
      %v3193 = vld [vmem:[%s5 + $0x78] sm:$0xff]
      %v3194 = vld [vmem:[%s5 + $0x80] sm:$0xff]
      %v3195 = vld [vmem:[%s5 + $0x88] sm:$0xff]
      %v3196 = vld [vmem:[%s5 + $0x90] sm:$0xff]
      %v3197 = vld [vmem:[%s5 + $0x98] sm:$0xff]
      %v3198 = vld [vmem:[%s5 + $0xa0] sm:$0xff]
      %v3199 = vld [vmem:[%s5 + $0xa8] sm:$0xff]
      %v3200 = vld [vmem:[%s5 + $0xb0] sm:$0xff]
      %v3201 = vld [vmem:[%s5 + $0xb8] sm:$0xff]
      %v3202 = vld [vmem:[%s5 + $0xc0] sm:$0xff]
      %v3203 = vld [vmem:[%s5 + $0xc8] sm:$0xff]
      %v3204 = vld [vmem:[%s5 + $0xd0] sm:$0xff]
      %v3205 = vld [vmem:[%s5 + $0xd8] sm:$0xff]
      %v3206 = vld [vmem:[%s5 + $0xe0] sm:$0xff]
      %v3207 = vld [vmem:[%s5 + $0xe8] sm:$0xff]
      %v3208 = vld [vmem:[%s5 + $0xf0] sm:$0xff]
      %v3209 = vld [vmem:[%s5 + $0xf8] sm:$0xff]
      %v3242 = vunpack.c.l.b16 %v3178
      %v3243 = vunpack.c.h.b16 %v3178
      %v3244 = vunpack.c.l.b16 %v3179
      %v3245 = vunpack.c.h.b16 %v3179
      %v3246 = vunpack.c.l.b16 %v3180
      %v3247 = vunpack.c.h.b16 %v3180
      %v3248 = vunpack.c.l.b16 %v3181
      %v3249 = vunpack.c.h.b16 %v3181
      %v3250 = vunpack.c.l.b16 %v3182
      %v3251 = vunpack.c.h.b16 %v3182
      %v3252 = vunpack.c.l.b16 %v3183
      %v3253 = vunpack.c.h.b16 %v3183
      %v3254 = vunpack.c.l.b16 %v3184
      %v3255 = vunpack.c.h.b16 %v3184
      %v3256 = vunpack.c.l.b16 %v3185
      %v3257 = vunpack.c.h.b16 %v3185
      %v3258 = vunpack.c.l.b16 %v3186
      %v3259 = vunpack.c.h.b16 %v3186
      %v3260 = vunpack.c.l.b16 %v3187
      %v3261 = vunpack.c.h.b16 %v3187
      %v3262 = vunpack.c.l.b16 %v3188
      %v3263 = vunpack.c.h.b16 %v3188
      %v3264 = vunpack.c.l.b16 %v3189
      %v3265 = vunpack.c.h.b16 %v3189
      %v3266 = vunpack.c.l.b16 %v3190
      %v3267 = vunpack.c.h.b16 %v3190
      %v3268 = vunpack.c.l.b16 %v3191
      %v3269 = vunpack.c.h.b16 %v3191
      %v3270 = vunpack.c.l.b16 %v3192
      %v3271 = vunpack.c.h.b16 %v3192
      %v3272 = vunpack.c.l.b16 %v3193
      %v3273 = vunpack.c.h.b16 %v3193
      %v3274 = vunpack.c.l.b16 %v3194
      %v3275 = vunpack.c.h.b16 %v3194
      %v3276 = vunpack.c.l.b16 %v3195
      %v3277 = vunpack.c.h.b16 %v3195
      %v3278 = vunpack.c.l.b16 %v3196
      %v3279 = vunpack.c.h.b16 %v3196
      %v3280 = vunpack.c.l.b16 %v3197
      %v3281 = vunpack.c.h.b16 %v3197
      %v3282 = vunpack.c.l.b16 %v3198
      %v3283 = vunpack.c.h.b16 %v3198
      %v3284 = vunpack.c.l.b16 %v3199
      %v3285 = vunpack.c.h.b16 %v3199
      %v3286 = vunpack.c.l.b16 %v3200
      %v3287 = vunpack.c.h.b16 %v3200
      %v3288 = vunpack.c.l.b16 %v3201
      %v3289 = vunpack.c.h.b16 %v3201
      %v3290 = vunpack.c.l.b16 %v3202
      %v3291 = vunpack.c.h.b16 %v3202
      %v3292 = vunpack.c.l.b16 %v3203
      %v3293 = vunpack.c.h.b16 %v3203
      %v3294 = vunpack.c.l.b16 %v3204
      %v3295 = vunpack.c.h.b16 %v3204
      %v3296 = vunpack.c.l.b16 %v3205
      %v3297 = vunpack.c.h.b16 %v3205
      %v3298 = vunpack.c.l.b16 %v3206
      %v3299 = vunpack.c.h.b16 %v3206
      %v3300 = vunpack.c.l.b16 %v3207
      %v3301 = vunpack.c.h.b16 %v3207
      %v3302 = vunpack.c.l.b16 %v3208
      %v3303 = vunpack.c.h.b16 %v3208
      %v3304 = vunpack.c.l.b16 %v3209
      %v3305 = vunpack.c.h.b16 %v3209
      %v3306 = vpack.c.b16 %v3244, %v3242
      %v3307 = vpack.c.b16 %v3245, %v3243
      %v3308 = vpack.c.b16 %v3248, %v3246
      %v3309 = vpack.c.b16 %v3249, %v3247
      %v3310 = vpack.c.b16 %v3252, %v3250
      %v3311 = vpack.c.b16 %v3253, %v3251
      %v3312 = vpack.c.b16 %v3256, %v3254
      %v3313 = vpack.c.b16 %v3257, %v3255
      %v3314 = vpack.c.b16 %v3260, %v3258
      %v3315 = vpack.c.b16 %v3261, %v3259
      %v3316 = vpack.c.b16 %v3264, %v3262
      %v3317 = vpack.c.b16 %v3265, %v3263
      %v3318 = vpack.c.b16 %v3268, %v3266
      %v3319 = vpack.c.b16 %v3269, %v3267
      %v3320 = vpack.c.b16 %v3272, %v3270
      %v3321 = vpack.c.b16 %v3273, %v3271
      %v3322 = vpack.c.b16 %v3276, %v3274
      %v3323 = vpack.c.b16 %v3277, %v3275
      %v3324 = vpack.c.b16 %v3280, %v3278
      %v3325 = vpack.c.b16 %v3281, %v3279
      %v3326 = vpack.c.b16 %v3284, %v3282
      %v3327 = vpack.c.b16 %v3285, %v3283
      %v3328 = vpack.c.b16 %v3288, %v3286
      %v3329 = vpack.c.b16 %v3289, %v3287
      %v3330 = vpack.c.b16 %v3292, %v3290
      %v3331 = vpack.c.b16 %v3293, %v3291
      %v3332 = vpack.c.b16 %v3296, %v3294
      %v3333 = vpack.c.b16 %v3297, %v3295
      %v3334 = vpack.c.b16 %v3300, %v3298
      %v3335 = vpack.c.b16 %v3301, %v3299
      %v3336 = vpack.c.b16 %v3304, %v3302
      %v3337 = vpack.c.b16 %v3305, %v3303
      %3370 = vmatprep.subr.bf16.mxu0 %v3321
      %3371 = vmatpush1.bf16.msra.mxu0 %v3320
      %3372 = vmatprep.subr.bf16.mxu0 %v3319
      %3373 = vmatpush1.bf16.msra.mxu0 %v3318
      %3374 = vmatprep.subr.bf16.mxu0 %v3317
      %3375 = vmatpush1.bf16.msra.mxu0 %v3316
      %3376 = vmatprep.subr.bf16.mxu0 %v3315
      %3377 = vmatpush1.bf16.msra.mxu0 %v3314
      %3378 = vmatprep.subr.bf16.mxu0 %v3313
      %3379 = vmatpush1.bf16.msra.mxu0 %v3312
      %3380 = vmatprep.subr.bf16.mxu0 %v3311
      %3381 = vmatpush1.bf16.msra.mxu0 %v3310
      %3382 = vmatprep.subr.bf16.mxu0 %v3309
      %3383 = vmatpush1.bf16.msra.mxu0 %v3308
      %3384 = vmatprep.subr.bf16.mxu0 %v3307
      %3385 = vmatpush1.bf16.msra.mxu0 %v3306
      %3386 = vmatprep.subr.bf16.mxu0 %v3337
      %3387 = vmatpush2.bf16.msra.mxu0 %v3336
      %3388 = vmatprep.subr.bf16.mxu0 %v3335
      %3389 = vmatpush2.bf16.msra.mxu0 %v3334
      %3390 = vmatprep.subr.bf16.mxu0 %v3333
      %3391 = vmatpush2.bf16.msra.mxu0 %v3332
      %3392 = vmatprep.subr.bf16.mxu0 %v3331
      %3393 = vmatpush2.bf16.msra.mxu0 %v3330
      %3394 = vmatprep.subr.bf16.mxu0 %v3329
      %3395 = vmatpush2.bf16.msra.mxu0 %v3328
      %3396 = vmatprep.subr.bf16.mxu0 %v3327
      %3397 = vmatpush2.bf16.msra.mxu0 %v3326
      %3398 = vmatprep.subr.bf16.mxu0 %v3325
      %3399 = vmatpush2.bf16.msra.mxu0 %v3324
      %3400 = vmatprep.subr.bf16.mxu0 %v3323
      %3401 = vmatpush2.bf16.msra.mxu0 %v3322
      %3402 = vmatprep.mubr.bf16.mxu0 %v3177
      %3403 = vmatmul.mubr.bf16.gmra.mxu0 %v3176
      %v3404 = vpop.f32.mrf.mxu0
      %v3405 = vadd.f32 0.0, %v3404
      %v3406 = vpop.f32.mrf.mxu0
      %v3407 = vadd.f32 0.0, %v3406
      %v3408 = vpop.f32.mrf.mxu0
      %v3409 = vpop.f32.mrf.mxu0
      %3410 = vdwg.mxu0
      %v3443 = vunpack.c.l.b16 %v3144
      %v3444 = vunpack.c.h.b16 %v3144
      %v3445 = vunpack.c.l.b16 %v3145
      %v3446 = vunpack.c.h.b16 %v3145
      %v3447 = vunpack.c.l.b16 %v3146
      %v3448 = vunpack.c.h.b16 %v3146
      %v3449 = vunpack.c.l.b16 %v3147
      %v3450 = vunpack.c.h.b16 %v3147
      %v3451 = vunpack.c.l.b16 %v3148
      %v3452 = vunpack.c.h.b16 %v3148
      %v3453 = vunpack.c.l.b16 %v3149
      %v3454 = vunpack.c.h.b16 %v3149
      %v3455 = vunpack.c.l.b16 %v3150
      %v3456 = vunpack.c.h.b16 %v3150
      %v3457 = vunpack.c.l.b16 %v3151
      %v3458 = vunpack.c.h.b16 %v3151
      %v3459 = vunpack.c.l.b16 %v3152
      %v3460 = vunpack.c.h.b16 %v3152
      %v3461 = vunpack.c.l.b16 %v3153
      %v3462 = vunpack.c.h.b16 %v3153
      %v3463 = vunpack.c.l.b16 %v3154
      %v3464 = vunpack.c.h.b16 %v3154
      %v3465 = vunpack.c.l.b16 %v3155
      %v3466 = vunpack.c.h.b16 %v3155
      %v3467 = vunpack.c.l.b16 %v3156
      %v3468 = vunpack.c.h.b16 %v3156
      %v3469 = vunpack.c.l.b16 %v3157
      %v3470 = vunpack.c.h.b16 %v3157
      %v3471 = vunpack.c.l.b16 %v3158
      %v3472 = vunpack.c.h.b16 %v3158
      %v3473 = vunpack.c.l.b16 %v3159
      %v3474 = vunpack.c.h.b16 %v3159
      %v3475 = vunpack.c.l.b16 %v3160
      %v3476 = vunpack.c.h.b16 %v3160
      %v3477 = vunpack.c.l.b16 %v3161
      %v3478 = vunpack.c.h.b16 %v3161
      %v3479 = vunpack.c.l.b16 %v3162
      %v3480 = vunpack.c.h.b16 %v3162
      %v3481 = vunpack.c.l.b16 %v3163
      %v3482 = vunpack.c.h.b16 %v3163
      %v3483 = vunpack.c.l.b16 %v3164
      %v3484 = vunpack.c.h.b16 %v3164
      %v3485 = vunpack.c.l.b16 %v3165
      %v3486 = vunpack.c.h.b16 %v3165
      %v3487 = vunpack.c.l.b16 %v3166
      %v3488 = vunpack.c.h.b16 %v3166
      %v3489 = vunpack.c.l.b16 %v3167
      %v3490 = vunpack.c.h.b16 %v3167
      %v3491 = vunpack.c.l.b16 %v3168
      %v3492 = vunpack.c.h.b16 %v3168
      %v3493 = vunpack.c.l.b16 %v3169
      %v3494 = vunpack.c.h.b16 %v3169
      %v3495 = vunpack.c.l.b16 %v3170
      %v3496 = vunpack.c.h.b16 %v3170
      %v3497 = vunpack.c.l.b16 %v3171
      %v3498 = vunpack.c.h.b16 %v3171
      %v3499 = vunpack.c.l.b16 %v3172
      %v3500 = vunpack.c.h.b16 %v3172
      %v3501 = vunpack.c.l.b16 %v3173
      %v3502 = vunpack.c.h.b16 %v3173
      %v3503 = vunpack.c.l.b16 %v3174
      %v3504 = vunpack.c.h.b16 %v3174
      %v3505 = vunpack.c.l.b16 %v3175
      %v3506 = vunpack.c.h.b16 %v3175
      %v3507 = vpack.c.b16 %v3445, %v3443
      %v3508 = vpack.c.b16 %v3446, %v3444
      %v3509 = vpack.c.b16 %v3449, %v3447
      %v3510 = vpack.c.b16 %v3450, %v3448
      %v3511 = vpack.c.b16 %v3453, %v3451
      %v3512 = vpack.c.b16 %v3454, %v3452
      %v3513 = vpack.c.b16 %v3457, %v3455
      %v3514 = vpack.c.b16 %v3458, %v3456
      %v3515 = vpack.c.b16 %v3461, %v3459
      %v3516 = vpack.c.b16 %v3462, %v3460
      %v3517 = vpack.c.b16 %v3465, %v3463
      %v3518 = vpack.c.b16 %v3466, %v3464
      %v3519 = vpack.c.b16 %v3469, %v3467
      %v3520 = vpack.c.b16 %v3470, %v3468
      %v3521 = vpack.c.b16 %v3473, %v3471
      %v3522 = vpack.c.b16 %v3474, %v3472
      %v3523 = vpack.c.b16 %v3477, %v3475
      %v3524 = vpack.c.b16 %v3478, %v3476
      %v3525 = vpack.c.b16 %v3481, %v3479
      %v3526 = vpack.c.b16 %v3482, %v3480
      %v3527 = vpack.c.b16 %v3485, %v3483
      %v3528 = vpack.c.b16 %v3486, %v3484
      %v3529 = vpack.c.b16 %v3489, %v3487
      %v3530 = vpack.c.b16 %v3490, %v3488
      %v3531 = vpack.c.b16 %v3493, %v3491
      %v3532 = vpack.c.b16 %v3494, %v3492
      %v3533 = vpack.c.b16 %v3497, %v3495
      %v3534 = vpack.c.b16 %v3498, %v3496
      %v3535 = vpack.c.b16 %v3501, %v3499
      %v3536 = vpack.c.b16 %v3502, %v3500
      %v3537 = vpack.c.b16 %v3505, %v3503
      %v3538 = vpack.c.b16 %v3506, %v3504
      %3571 = vmatprep.subr.bf16.mxu0 %v3522
      %3572 = vmatpush1.bf16.msra.mxu0 %v3521
      %3573 = vmatprep.subr.bf16.mxu0 %v3520
      %3574 = vmatpush1.bf16.msra.mxu0 %v3519
      %3575 = vmatprep.subr.bf16.mxu0 %v3518
      %3576 = vmatpush1.bf16.msra.mxu0 %v3517
      %3577 = vmatprep.subr.bf16.mxu0 %v3516
      %3578 = vmatpush1.bf16.msra.mxu0 %v3515
      %3579 = vmatprep.subr.bf16.mxu0 %v3514
      %3580 = vmatpush1.bf16.msra.mxu0 %v3513
      %3581 = vmatprep.subr.bf16.mxu0 %v3512
      %3582 = vmatpush1.bf16.msra.mxu0 %v3511
      %3583 = vmatprep.subr.bf16.mxu0 %v3510
      %3584 = vmatpush1.bf16.msra.mxu0 %v3509
      %3585 = vmatprep.subr.bf16.mxu0 %v3508
      %3586 = vmatpush1.bf16.msra.mxu0 %v3507
      %3587 = vmatprep.subr.bf16.mxu0 %v3538
      %3588 = vmatpush2.bf16.msra.mxu0 %v3537
      %3589 = vmatprep.subr.bf16.mxu0 %v3536
      %3590 = vmatpush2.bf16.msra.mxu0 %v3535
      %3591 = vmatprep.subr.bf16.mxu0 %v3534
      %3592 = vmatpush2.bf16.msra.mxu0 %v3533
      %3593 = vmatprep.subr.bf16.mxu0 %v3532
      %3594 = vmatpush2.bf16.msra.mxu0 %v3531
      %3595 = vmatprep.subr.bf16.mxu0 %v3530
      %3596 = vmatpush2.bf16.msra.mxu0 %v3529
      %3597 = vmatprep.subr.bf16.mxu0 %v3528
      %3598 = vmatpush2.bf16.msra.mxu0 %v3527
      %3599 = vmatprep.subr.bf16.mxu0 %v3526
      %3600 = vmatpush2.bf16.msra.mxu0 %v3525
      %3601 = vmatprep.subr.bf16.mxu0 %v3524
      %3602 = vmatpush2.bf16.msra.mxu0 %v3523
      %3603 = vmatprep.mubr.bf16.mxu0 %v3143
      %3604 = vmatmul.mubr.bf16.gmra.mxu0 %v3142
      %v3605 = vpop.f32.mrf.mxu0
      %v3606 = vadd.f32 %v3405, %v3605
      %v3607 = vpop.f32.mrf.mxu0
      %v3608 = vadd.f32 %v3407, %v3607
      %v3609 = vpop.f32.mrf.mxu0
      %v3610 = vpop.f32.mrf.mxu0
      %3611 = vdwg.mxu0
      %v3612 = vsub.f32 0.0, %v3606
      %v3613 = vsub.f32 0.0, %v3608
      %v3614 = vmul.f32 %v3612, 1.442695
      %v3615 = vpow.pop %v3614
      %v3616 = vmul.f32 %v3613, 1.442695
      %v3617 = vpow.pop %v3616
      %v3618 = vadd.f32 %v3615, 1.0
      %v3619 = vadd.f32 %v3617, 1.0
      %v3620 = vrcp.pop %v3618
      %v3621 = vmul.f32 1.0, %v3620
      %v3622 = vrcp.pop %v3619
      %v3623 = vmul.f32 1.0, %v3622
      %v3624 = vlaneseq
      %v3625 = vshrl.u32 %v3624, 7
      %v3626 = vsub.s32 0, %v3625
      %v3627 = vrot.slane %v3621, %v3626
      %v3628 = vlaneseq
      %v3629 = vshrl.u32 %v3628, 7
      %v3630 = vsub.s32 0, %v3629
      %v3631 = vrot.slane %v3623, %v3630
      %v3632 = vmul.f32 %v3071, %v3627
      %v3633 = vmul.f32 %v3072, %v3631
      %v3634 = vmul.f32 %v3073, %v3627
      %v3635 = vmul.f32 %v3074, %v3631
      %v3636 = vmul.f32 %v3075, %v3627
      %v3637 = vmul.f32 %v3076, %v3631
      %v3638 = vmul.f32 %v3077, %v3627
      %v3639 = vmul.f32 %v3078, %v3631
      %v3640 = vmul.f32 %v3079, %v3627
      %v3641 = vmul.f32 %v3080, %v3631
      %v3642 = vmul.f32 %v3081, %v3627
      %v3643 = vmul.f32 %v3082, %v3631
      %v3644 = vmul.f32 %v3083, %v3627
      %v3645 = vmul.f32 %v3084, %v3631
      %v3646 = vmul.f32 %v3085, %v3627
      %v3647 = vmul.f32 %v3086, %v3631
      %3648 = vst [vmem:[%s360] sm:$0xff] %v3632
      %3649 = vst [vmem:[%s360 + $0x8] sm:$0xff] %v3633
      %3650 = vst [vmem:[%s360 + $0x10] sm:$0xff] %v3634
      %3651 = vst [vmem:[%s360 + $0x18] sm:$0xff] %v3635
      %3652 = vst [vmem:[%s360 + $0x20] sm:$0xff] %v3636
      %3653 = vst [vmem:[%s360 + $0x28] sm:$0xff] %v3637
      %3654 = vst [vmem:[%s360 + $0x30] sm:$0xff] %v3638
      %3655 = vst [vmem:[%s360 + $0x38] sm:$0xff] %v3639
      %3656 = vst [vmem:[%s360 + $0x40] sm:$0xff] %v3640
      %3657 = vst [vmem:[%s360 + $0x48] sm:$0xff] %v3641
      %3658 = vst [vmem:[%s360 + $0x50] sm:$0xff] %v3642
      %3659 = vst [vmem:[%s360 + $0x58] sm:$0xff] %v3643
      %3660 = vst [vmem:[%s360 + $0x60] sm:$0xff] %v3644
      %3661 = vst [vmem:[%s360 + $0x68] sm:$0xff] %v3645
      %3662 = vst [vmem:[%s360 + $0x70] sm:$0xff] %v3646
      %3663 = vst [vmem:[%s360 + $0x78] sm:$0xff] %v3647
      %v3664 = vadd.f32 %v3047, %v3049
      %v3665 = vadd.f32 %v3664, %v3051
      %v3666 = vadd.f32 %v3665, %v3053
      %v3667 = vadd.f32 %v3666, %v3055
      %v3668 = vadd.f32 %v3667, %v3057
      %v3669 = vadd.f32 %v3668, %v3059
      %v3670 = vadd.f32 %v3669, %v3061
      %v3671 = vrot.slane %v3670, 4
      %v3672 = vadd.f32 %v3670, %v3671
      %v3673 = vrot.slane %v3672, 2
      %v3674 = vadd.f32 %v3672, %v3673
      %v3675 = vrot.slane %v3674, 1
      %v3676 = vadd.f32 %v3674, %v3675
      %v3677 = vadd.f32 %v3048, %v3050
      %v3678 = vadd.f32 %v3677, %v3052
      %v3679 = vadd.f32 %v3678, %v3054
      %v3680 = vadd.f32 %v3679, %v3056
      %v3681 = vadd.f32 %v3680, %v3058
      %v3682 = vadd.f32 %v3681, %v3060
      %v3683 = vadd.f32 %v3682, %v3062
      %v3684 = vrot.slane %v3683, 4
      %v3685 = vadd.f32 %v3683, %v3684
      %v3686 = vrot.slane %v3685, 2
      %v3687 = vadd.f32 %v3685, %v3686
      %v3688 = vrot.slane %v3687, 1
      %v3689 = vadd.f32 %v3687, %v3688
      %v3690 = vmul.f32 %v3676, %v3113
      %v3691 = vmul.f32 %v3689, %v3113
      %v3692 = vmax.f32 %v3047, %v3051
      %v3693 = vmax.f32 %v3049, %v3053
      %v3694 = vmax.f32 %v3692, %v3055
      %v3695 = vmax.f32 %v3693, %v3057
      %v3696 = vmax.f32 %v3694, %v3059
      %v3697 = vmax.f32 %v3695, %v3061
      %v3698 = vmax.f32 %v3696, %v3697
      %v3699 = vrot.slane %v3698, 4
      %v3700 = vmax.f32 %v3698, %v3699
      %v3701 = vrot.slane %v3700, 2
      %v3702 = vmax.f32 %v3700, %v3701
      %v3703 = vrot.slane %v3702, 1
      %v3704 = vmax.f32 %v3702, %v3703
      %v3705 = vmax.f32 %v3048, %v3052
      %v3706 = vmax.f32 %v3050, %v3054
      %v3707 = vmax.f32 %v3705, %v3056
      %v3708 = vmax.f32 %v3706, %v3058
      %v3709 = vmax.f32 %v3707, %v3060
      %v3710 = vmax.f32 %v3708, %v3062
      %v3711 = vmax.f32 %v3709, %v3710
      %v3712 = vrot.slane %v3711, 4
      %v3713 = vmax.f32 %v3711, %v3712
      %v3714 = vrot.slane %v3713, 2
      %v3715 = vmax.f32 %v3713, %v3714
      %v3716 = vrot.slane %v3715, 1
      %v3717 = vmax.f32 %v3715, %v3716
      %v3718 = vpack.c.bf16 %v3690, %v3690
      %v3719 = vpack.c.bf16 %v3691, %v3691
      %v3720 = vld [vmem:[%s4] sm:$0xff]
      %v3721 = vld [vmem:[%s4 + $0x8] sm:$0xff]
      %v3722 = vld [vmem:[%s4 + $0x10] sm:$0xff]
      %v3723 = vld [vmem:[%s4 + $0x18] sm:$0xff]
      %v3724 = vld [vmem:[%s4 + $0x20] sm:$0xff]
      %v3725 = vld [vmem:[%s4 + $0x28] sm:$0xff]
      %v3726 = vld [vmem:[%s4 + $0x30] sm:$0xff]
      %v3727 = vld [vmem:[%s4 + $0x38] sm:$0xff]
      %v3728 = vld [vmem:[%s4 + $0x40] sm:$0xff]
      %v3729 = vld [vmem:[%s4 + $0x48] sm:$0xff]
      %v3730 = vld [vmem:[%s4 + $0x50] sm:$0xff]
      %v3731 = vld [vmem:[%s4 + $0x58] sm:$0xff]
      %v3732 = vld [vmem:[%s4 + $0x60] sm:$0xff]
      %v3733 = vld [vmem:[%s4 + $0x68] sm:$0xff]
      %v3734 = vld [vmem:[%s4 + $0x70] sm:$0xff]
      %v3735 = vld [vmem:[%s4 + $0x78] sm:$0xff]
      %v3736 = vld [vmem:[%s4 + $0x80] sm:$0xff]
      %v3737 = vld [vmem:[%s4 + $0x88] sm:$0xff]
      %v3738 = vld [vmem:[%s4 + $0x90] sm:$0xff]
      %v3739 = vld [vmem:[%s4 + $0x98] sm:$0xff]
      %v3740 = vld [vmem:[%s4 + $0xa0] sm:$0xff]
      %v3741 = vld [vmem:[%s4 + $0xa8] sm:$0xff]
      %v3742 = vld [vmem:[%s4 + $0xb0] sm:$0xff]
      %v3743 = vld [vmem:[%s4 + $0xb8] sm:$0xff]
      %v3744 = vld [vmem:[%s4 + $0xc0] sm:$0xff]
      %v3745 = vld [vmem:[%s4 + $0xc8] sm:$0xff]
      %v3746 = vld [vmem:[%s4 + $0xd0] sm:$0xff]
      %v3747 = vld [vmem:[%s4 + $0xd8] sm:$0xff]
      %v3748 = vld [vmem:[%s4 + $0xe0] sm:$0xff]
      %v3749 = vld [vmem:[%s4 + $0xe8] sm:$0xff]
      %v3750 = vld [vmem:[%s4 + $0xf0] sm:$0xff]
      %v3751 = vld [vmem:[%s4 + $0xf8] sm:$0xff]
      %v3752 = vpack.c.bf16 %v3704, %v3704
      %v3753 = vpack.c.bf16 %v3717, %v3717
      %v3754 = vld [vmem:[%s5] sm:$0xff]
      %v3755 = vld [vmem:[%s5 + $0x8] sm:$0xff]
      %v3756 = vld [vmem:[%s5 + $0x10] sm:$0xff]
      %v3757 = vld [vmem:[%s5 + $0x18] sm:$0xff]
      %v3758 = vld [vmem:[%s5 + $0x20] sm:$0xff]
      %v3759 = vld [vmem:[%s5 + $0x28] sm:$0xff]
      %v3760 = vld [vmem:[%s5 + $0x30] sm:$0xff]
      %v3761 = vld [vmem:[%s5 + $0x38] sm:$0xff]
      %v3762 = vld [vmem:[%s5 + $0x40] sm:$0xff]
      %v3763 = vld [vmem:[%s5 + $0x48] sm:$0xff]
      %v3764 = vld [vmem:[%s5 + $0x50] sm:$0xff]
      %v3765 = vld [vmem:[%s5 + $0x58] sm:$0xff]
      %v3766 = vld [vmem:[%s5 + $0x60] sm:$0xff]
      %v3767 = vld [vmem:[%s5 + $0x68] sm:$0xff]
      %v3768 = vld [vmem:[%s5 + $0x70] sm:$0xff]
      %v3769 = vld [vmem:[%s5 + $0x78] sm:$0xff]
      %v3770 = vld [vmem:[%s5 + $0x80] sm:$0xff]
      %v3771 = vld [vmem:[%s5 + $0x88] sm:$0xff]
      %v3772 = vld [vmem:[%s5 + $0x90] sm:$0xff]
      %v3773 = vld [vmem:[%s5 + $0x98] sm:$0xff]
      %v3774 = vld [vmem:[%s5 + $0xa0] sm:$0xff]
      %v3775 = vld [vmem:[%s5 + $0xa8] sm:$0xff]
      %v3776 = vld [vmem:[%s5 + $0xb0] sm:$0xff]
      %v3777 = vld [vmem:[%s5 + $0xb8] sm:$0xff]
      %v3778 = vld [vmem:[%s5 + $0xc0] sm:$0xff]
      %v3779 = vld [vmem:[%s5 + $0xc8] sm:$0xff]
      %v3780 = vld [vmem:[%s5 + $0xd0] sm:$0xff]
      %v3781 = vld [vmem:[%s5 + $0xd8] sm:$0xff]
      %v3782 = vld [vmem:[%s5 + $0xe0] sm:$0xff]
      %v3783 = vld [vmem:[%s5 + $0xe8] sm:$0xff]
      %v3784 = vld [vmem:[%s5 + $0xf0] sm:$0xff]
      %v3785 = vld [vmem:[%s5 + $0xf8] sm:$0xff]
      %v3818 = vunpack.c.l.b16 %v3754
      %v3819 = vunpack.c.h.b16 %v3754
      %v3820 = vunpack.c.l.b16 %v3755
      %v3821 = vunpack.c.h.b16 %v3755
      %v3822 = vunpack.c.l.b16 %v3756
      %v3823 = vunpack.c.h.b16 %v3756
      %v3824 = vunpack.c.l.b16 %v3757
      %v3825 = vunpack.c.h.b16 %v3757
      %v3826 = vunpack.c.l.b16 %v3758
      %v3827 = vunpack.c.h.b16 %v3758
      %v3828 = vunpack.c.l.b16 %v3759
      %v3829 = vunpack.c.h.b16 %v3759
      %v3830 = vunpack.c.l.b16 %v3760
      %v3831 = vunpack.c.h.b16 %v3760
      %v3832 = vunpack.c.l.b16 %v3761
      %v3833 = vunpack.c.h.b16 %v3761
      %v3834 = vunpack.c.l.b16 %v3762
      %v3835 = vunpack.c.h.b16 %v3762
      %v3836 = vunpack.c.l.b16 %v3763
      %v3837 = vunpack.c.h.b16 %v3763
      %v3838 = vunpack.c.l.b16 %v3764
      %v3839 = vunpack.c.h.b16 %v3764
      %v3840 = vunpack.c.l.b16 %v3765
      %v3841 = vunpack.c.h.b16 %v3765
      %v3842 = vunpack.c.l.b16 %v3766
      %v3843 = vunpack.c.h.b16 %v3766
      %v3844 = vunpack.c.l.b16 %v3767
      %v3845 = vunpack.c.h.b16 %v3767
      %v3846 = vunpack.c.l.b16 %v3768
      %v3847 = vunpack.c.h.b16 %v3768
      %v3848 = vunpack.c.l.b16 %v3769
      %v3849 = vunpack.c.h.b16 %v3769
      %v3850 = vunpack.c.l.b16 %v3770
      %v3851 = vunpack.c.h.b16 %v3770
      %v3852 = vunpack.c.l.b16 %v3771
      %v3853 = vunpack.c.h.b16 %v3771
      %v3854 = vunpack.c.l.b16 %v3772
      %v3855 = vunpack.c.h.b16 %v3772
      %v3856 = vunpack.c.l.b16 %v3773
      %v3857 = vunpack.c.h.b16 %v3773
      %v3858 = vunpack.c.l.b16 %v3774
      %v3859 = vunpack.c.h.b16 %v3774
      %v3860 = vunpack.c.l.b16 %v3775
      %v3861 = vunpack.c.h.b16 %v3775
      %v3862 = vunpack.c.l.b16 %v3776
      %v3863 = vunpack.c.h.b16 %v3776
      %v3864 = vunpack.c.l.b16 %v3777
      %v3865 = vunpack.c.h.b16 %v3777
      %v3866 = vunpack.c.l.b16 %v3778
      %v3867 = vunpack.c.h.b16 %v3778
      %v3868 = vunpack.c.l.b16 %v3779
      %v3869 = vunpack.c.h.b16 %v3779
      %v3870 = vunpack.c.l.b16 %v3780
      %v3871 = vunpack.c.h.b16 %v3780
      %v3872 = vunpack.c.l.b16 %v3781
      %v3873 = vunpack.c.h.b16 %v3781
      %v3874 = vunpack.c.l.b16 %v3782
      %v3875 = vunpack.c.h.b16 %v3782
      %v3876 = vunpack.c.l.b16 %v3783
      %v3877 = vunpack.c.h.b16 %v3783
      %v3878 = vunpack.c.l.b16 %v3784
      %v3879 = vunpack.c.h.b16 %v3784
      %v3880 = vunpack.c.l.b16 %v3785
      %v3881 = vunpack.c.h.b16 %v3785
      %v3882 = vpack.c.b16 %v3820, %v3818
      %v3883 = vpack.c.b16 %v3821, %v3819
      %v3884 = vpack.c.b16 %v3824, %v3822
      %v3885 = vpack.c.b16 %v3825, %v3823
      %v3886 = vpack.c.b16 %v3828, %v3826
      %v3887 = vpack.c.b16 %v3829, %v3827
      %v3888 = vpack.c.b16 %v3832, %v3830
      %v3889 = vpack.c.b16 %v3833, %v3831
      %v3890 = vpack.c.b16 %v3836, %v3834
      %v3891 = vpack.c.b16 %v3837, %v3835
      %v3892 = vpack.c.b16 %v3840, %v3838
      %v3893 = vpack.c.b16 %v3841, %v3839
      %v3894 = vpack.c.b16 %v3844, %v3842
      %v3895 = vpack.c.b16 %v3845, %v3843
      %v3896 = vpack.c.b16 %v3848, %v3846
      %v3897 = vpack.c.b16 %v3849, %v3847
      %v3898 = vpack.c.b16 %v3852, %v3850
      %v3899 = vpack.c.b16 %v3853, %v3851
      %v3900 = vpack.c.b16 %v3856, %v3854
      %v3901 = vpack.c.b16 %v3857, %v3855
      %v3902 = vpack.c.b16 %v3860, %v3858
      %v3903 = vpack.c.b16 %v3861, %v3859
      %v3904 = vpack.c.b16 %v3864, %v3862
      %v3905 = vpack.c.b16 %v3865, %v3863
      %v3906 = vpack.c.b16 %v3868, %v3866
      %v3907 = vpack.c.b16 %v3869, %v3867
      %v3908 = vpack.c.b16 %v3872, %v3870
      %v3909 = vpack.c.b16 %v3873, %v3871
      %v3910 = vpack.c.b16 %v3876, %v3874
      %v3911 = vpack.c.b16 %v3877, %v3875
      %v3912 = vpack.c.b16 %v3880, %v3878
      %v3913 = vpack.c.b16 %v3881, %v3879
      %3946 = vmatprep.subr.bf16.mxu0 %v3897
      %3947 = vmatpush1.bf16.msra.mxu0 %v3896
      %3948 = vmatprep.subr.bf16.mxu0 %v3895
      %3949 = vmatpush1.bf16.msra.mxu0 %v3894
      %3950 = vmatprep.subr.bf16.mxu0 %v3893
      %3951 = vmatpush1.bf16.msra.mxu0 %v3892
      %3952 = vmatprep.subr.bf16.mxu0 %v3891
      %3953 = vmatpush1.bf16.msra.mxu0 %v3890
      %3954 = vmatprep.subr.bf16.mxu0 %v3889
      %3955 = vmatpush1.bf16.msra.mxu0 %v3888
      %3956 = vmatprep.subr.bf16.mxu0 %v3887
      %3957 = vmatpush1.bf16.msra.mxu0 %v3886
      %3958 = vmatprep.subr.bf16.mxu0 %v3885
      %3959 = vmatpush1.bf16.msra.mxu0 %v3884
      %3960 = vmatprep.subr.bf16.mxu0 %v3883
      %3961 = vmatpush1.bf16.msra.mxu0 %v3882
      %3962 = vmatprep.subr.bf16.mxu0 %v3913
      %3963 = vmatpush2.bf16.msra.mxu0 %v3912
      %3964 = vmatprep.subr.bf16.mxu0 %v3911
      %3965 = vmatpush2.bf16.msra.mxu0 %v3910
      %3966 = vmatprep.subr.bf16.mxu0 %v3909
      %3967 = vmatpush2.bf16.msra.mxu0 %v3908
      %3968 = vmatprep.subr.bf16.mxu0 %v3907
      %3969 = vmatpush2.bf16.msra.mxu0 %v3906
      %3970 = vmatprep.subr.bf16.mxu0 %v3905
      %3971 = vmatpush2.bf16.msra.mxu0 %v3904
      %3972 = vmatprep.subr.bf16.mxu0 %v3903
      %3973 = vmatpush2.bf16.msra.mxu0 %v3902
      %3974 = vmatprep.subr.bf16.mxu0 %v3901
      %3975 = vmatpush2.bf16.msra.mxu0 %v3900
      %3976 = vmatprep.subr.bf16.mxu0 %v3899
      %3977 = vmatpush2.bf16.msra.mxu0 %v3898
      %3978 = vmatprep.mubr.bf16.mxu0 %v3753
      %3979 = vmatmul.mubr.bf16.gmra.mxu0 %v3752
      %v3980 = vpop.f32.mrf.mxu0
      %v3981 = vadd.f32 0.0, %v3980
      %v3982 = vpop.f32.mrf.mxu0
      %v3983 = vadd.f32 0.0, %v3982
      %v3984 = vpop.f32.mrf.mxu0
      %v3985 = vpop.f32.mrf.mxu0
      %3986 = vdwg.mxu0
      %v4019 = vunpack.c.l.b16 %v3720
      %v4020 = vunpack.c.h.b16 %v3720
      %v4021 = vunpack.c.l.b16 %v3721
      %v4022 = vunpack.c.h.b16 %v3721
      %v4023 = vunpack.c.l.b16 %v3722
      %v4024 = vunpack.c.h.b16 %v3722
      %v4025 = vunpack.c.l.b16 %v3723
      %v4026 = vunpack.c.h.b16 %v3723
      %v4027 = vunpack.c.l.b16 %v3724
      %v4028 = vunpack.c.h.b16 %v3724
      %v4029 = vunpack.c.l.b16 %v3725
      %v4030 = vunpack.c.h.b16 %v3725
      %v4031 = vunpack.c.l.b16 %v3726
      %v4032 = vunpack.c.h.b16 %v3726
      %v4033 = vunpack.c.l.b16 %v3727
      %v4034 = vunpack.c.h.b16 %v3727
      %v4035 = vunpack.c.l.b16 %v3728
      %v4036 = vunpack.c.h.b16 %v3728
      %v4037 = vunpack.c.l.b16 %v3729
      %v4038 = vunpack.c.h.b16 %v3729
      %v4039 = vunpack.c.l.b16 %v3730
      %v4040 = vunpack.c.h.b16 %v3730
      %v4041 = vunpack.c.l.b16 %v3731
      %v4042 = vunpack.c.h.b16 %v3731
      %v4043 = vunpack.c.l.b16 %v3732
      %v4044 = vunpack.c.h.b16 %v3732
      %v4045 = vunpack.c.l.b16 %v3733
      %v4046 = vunpack.c.h.b16 %v3733
      %v4047 = vunpack.c.l.b16 %v3734
      %v4048 = vunpack.c.h.b16 %v3734
      %v4049 = vunpack.c.l.b16 %v3735
      %v4050 = vunpack.c.h.b16 %v3735
      %v4051 = vunpack.c.l.b16 %v3736
      %v4052 = vunpack.c.h.b16 %v3736
      %v4053 = vunpack.c.l.b16 %v3737
      %v4054 = vunpack.c.h.b16 %v3737
      %v4055 = vunpack.c.l.b16 %v3738
      %v4056 = vunpack.c.h.b16 %v3738
      %v4057 = vunpack.c.l.b16 %v3739
      %v4058 = vunpack.c.h.b16 %v3739
      %v4059 = vunpack.c.l.b16 %v3740
      %v4060 = vunpack.c.h.b16 %v3740
      %v4061 = vunpack.c.l.b16 %v3741
      %v4062 = vunpack.c.h.b16 %v3741
      %v4063 = vunpack.c.l.b16 %v3742
      %v4064 = vunpack.c.h.b16 %v3742
      %v4065 = vunpack.c.l.b16 %v3743
      %v4066 = vunpack.c.h.b16 %v3743
      %v4067 = vunpack.c.l.b16 %v3744
      %v4068 = vunpack.c.h.b16 %v3744
      %v4069 = vunpack.c.l.b16 %v3745
      %v4070 = vunpack.c.h.b16 %v3745
      %v4071 = vunpack.c.l.b16 %v3746
      %v4072 = vunpack.c.h.b16 %v3746
      %v4073 = vunpack.c.l.b16 %v3747
      %v4074 = vunpack.c.h.b16 %v3747
      %v4075 = vunpack.c.l.b16 %v3748
      %v4076 = vunpack.c.h.b16 %v3748
      %v4077 = vunpack.c.l.b16 %v3749
      %v4078 = vunpack.c.h.b16 %v3749
      %v4079 = vunpack.c.l.b16 %v3750
      %v4080 = vunpack.c.h.b16 %v3750
      %v4081 = vunpack.c.l.b16 %v3751
      %v4082 = vunpack.c.h.b16 %v3751
      %v4083 = vpack.c.b16 %v4021, %v4019
      %v4084 = vpack.c.b16 %v4022, %v4020
      %v4085 = vpack.c.b16 %v4025, %v4023
      %v4086 = vpack.c.b16 %v4026, %v4024
      %v4087 = vpack.c.b16 %v4029, %v4027
      %v4088 = vpack.c.b16 %v4030, %v4028
      %v4089 = vpack.c.b16 %v4033, %v4031
      %v4090 = vpack.c.b16 %v4034, %v4032
      %v4091 = vpack.c.b16 %v4037, %v4035
      %v4092 = vpack.c.b16 %v4038, %v4036
      %v4093 = vpack.c.b16 %v4041, %v4039
      %v4094 = vpack.c.b16 %v4042, %v4040
      %v4095 = vpack.c.b16 %v4045, %v4043
      %v4096 = vpack.c.b16 %v4046, %v4044
      %v4097 = vpack.c.b16 %v4049, %v4047
      %v4098 = vpack.c.b16 %v4050, %v4048
      %v4099 = vpack.c.b16 %v4053, %v4051
      %v4100 = vpack.c.b16 %v4054, %v4052
      %v4101 = vpack.c.b16 %v4057, %v4055
      %v4102 = vpack.c.b16 %v4058, %v4056
      %v4103 = vpack.c.b16 %v4061, %v4059
      %v4104 = vpack.c.b16 %v4062, %v4060
      %v4105 = vpack.c.b16 %v4065, %v4063
      %v4106 = vpack.c.b16 %v4066, %v4064
      %v4107 = vpack.c.b16 %v4069, %v4067
      %v4108 = vpack.c.b16 %v4070, %v4068
      %v4109 = vpack.c.b16 %v4073, %v4071
      %v4110 = vpack.c.b16 %v4074, %v4072
      %v4111 = vpack.c.b16 %v4077, %v4075
      %v4112 = vpack.c.b16 %v4078, %v4076
      %v4113 = vpack.c.b16 %v4081, %v4079
      %v4114 = vpack.c.b16 %v4082, %v4080
      %4147 = vmatprep.subr.bf16.mxu0 %v4098
      %4148 = vmatpush1.bf16.msra.mxu0 %v4097
      %4149 = vmatprep.subr.bf16.mxu0 %v4096
      %4150 = vmatpush1.bf16.msra.mxu0 %v4095
      %4151 = vmatprep.subr.bf16.mxu0 %v4094
      %4152 = vmatpush1.bf16.msra.mxu0 %v4093
      %4153 = vmatprep.subr.bf16.mxu0 %v4092
      %4154 = vmatpush1.bf16.msra.mxu0 %v4091
      %4155 = vmatprep.subr.bf16.mxu0 %v4090
      %4156 = vmatpush1.bf16.msra.mxu0 %v4089
      %4157 = vmatprep.subr.bf16.mxu0 %v4088
      %4158 = vmatpush1.bf16.msra.mxu0 %v4087
      %4159 = vmatprep.subr.bf16.mxu0 %v4086
      %4160 = vmatpush1.bf16.msra.mxu0 %v4085
      %4161 = vmatprep.subr.bf16.mxu0 %v4084
      %4162 = vmatpush1.bf16.msra.mxu0 %v4083
      %4163 = vmatprep.subr.bf16.mxu0 %v4114
      %4164 = vmatpush2.bf16.msra.mxu0 %v4113
      %4165 = vmatprep.subr.bf16.mxu0 %v4112
      %4166 = vmatpush2.bf16.msra.mxu0 %v4111
      %4167 = vmatprep.subr.bf16.mxu0 %v4110
      %4168 = vmatpush2.bf16.msra.mxu0 %v4109
      %4169 = vmatprep.subr.bf16.mxu0 %v4108
      %4170 = vmatpush2.bf16.msra.mxu0 %v4107
      %4171 = vmatprep.subr.bf16.mxu0 %v4106
      %4172 = vmatpush2.bf16.msra.mxu0 %v4105
      %4173 = vmatprep.subr.bf16.mxu0 %v4104
      %4174 = vmatpush2.bf16.msra.mxu0 %v4103
      %4175 = vmatprep.subr.bf16.mxu0 %v4102
      %4176 = vmatpush2.bf16.msra.mxu0 %v4101
      %4177 = vmatprep.subr.bf16.mxu0 %v4100
      %4178 = vmatpush2.bf16.msra.mxu0 %v4099
      %4179 = vmatprep.mubr.bf16.mxu0 %v3719
      %4180 = vmatmul.mubr.bf16.gmra.mxu0 %v3718
      %v4181 = vpop.f32.mrf.mxu0
      %v4182 = vadd.f32 %v3981, %v4181
      %v4183 = vpop.f32.mrf.mxu0
      %v4184 = vadd.f32 %v3983, %v4183
      %v4185 = vpop.f32.mrf.mxu0
      %v4186 = vpop.f32.mrf.mxu0
      %4187 = vdwg.mxu0
      %v4188 = vsub.f32 0.0, %v4182
      %v4189 = vsub.f32 0.0, %v4184
      %v4190 = vmul.f32 %v4188, 1.442695
      %v4191 = vpow.pop %v4190
      %v4192 = vmul.f32 %v4189, 1.442695
      %v4193 = vpow.pop %v4192
      %v4194 = vadd.f32 %v4191, 1.0
      %v4195 = vadd.f32 %v4193, 1.0
      %v4196 = vrcp.pop %v4194
      %v4197 = vmul.f32 1.0, %v4196
      %v4198 = vrcp.pop %v4195
      %v4199 = vmul.f32 1.0, %v4198
      %v4200 = vlaneseq
      %v4201 = vshrl.u32 %v4200, 7
      %v4202 = vsub.s32 0, %v4201
      %v4203 = vrot.slane %v4197, %v4202
      %v4204 = vlaneseq
      %v4205 = vshrl.u32 %v4204, 7
      %v4206 = vsub.s32 0, %v4205
      %v4207 = vrot.slane %v4199, %v4206
      %v4208 = vmul.f32 %v3047, %v4203
      %v4209 = vmul.f32 %v3048, %v4207
      %v4210 = vmul.f32 %v3049, %v4203
      %v4211 = vmul.f32 %v3050, %v4207
      %v4212 = vmul.f32 %v3051, %v4203
      %v4213 = vmul.f32 %v3052, %v4207
      %v4214 = vmul.f32 %v3053, %v4203
      %v4215 = vmul.f32 %v3054, %v4207
      %v4216 = vmul.f32 %v3055, %v4203
      %v4217 = vmul.f32 %v3056, %v4207
      %v4218 = vmul.f32 %v3057, %v4203
      %v4219 = vmul.f32 %v3058, %v4207
      %v4220 = vmul.f32 %v3059, %v4203
      %v4221 = vmul.f32 %v3060, %v4207
      %v4222 = vmul.f32 %v3061, %v4203
      %v4223 = vmul.f32 %v3062, %v4207
      %4224 = vst [vmem:[%s360 + $0x80] sm:$0xff] %v4208
      %4225 = vst [vmem:[%s360 + $0x88] sm:$0xff] %v4209
      %4226 = vst [vmem:[%s360 + $0x90] sm:$0xff] %v4210
      %4227 = vst [vmem:[%s360 + $0x98] sm:$0xff] %v4211
      %4228 = vst [vmem:[%s360 + $0xa0] sm:$0xff] %v4212
      %4229 = vst [vmem:[%s360 + $0xa8] sm:$0xff] %v4213
      %4230 = vst [vmem:[%s360 + $0xb0] sm:$0xff] %v4214
      %4231 = vst [vmem:[%s360 + $0xb8] sm:$0xff] %v4215
      %4232 = vst [vmem:[%s360 + $0xc0] sm:$0xff] %v4216
      %4233 = vst [vmem:[%s360 + $0xc8] sm:$0xff] %v4217
      %4234 = vst [vmem:[%s360 + $0xd0] sm:$0xff] %v4218
      %4235 = vst [vmem:[%s360 + $0xd8] sm:$0xff] %v4219
      %4236 = vst [vmem:[%s360 + $0xe0] sm:$0xff] %v4220
      %4237 = vst [vmem:[%s360 + $0xe8] sm:$0xff] %v4221
      %4238 = vst [vmem:[%s360 + $0xf0] sm:$0xff] %v4222
      %4239 = vst [vmem:[%s360 + $0xf8] sm:$0xff] %v4223
      %p4240 = scmp.lt.s32.totalorder %s21, 1
      %s4241 = scalar_select %p4240, %s21, 1
      %s4242 = smul.addr %s4241, 32
      %s4243 = smul.addr %s4242, 8
      %s4244 = scalar_lea.vmem %s8, %s4243
      %p4245 = scmp.lt.s32.totalorder %s21, 1
      %s4246 = scalar_select %p4245, %s21, 1
      %s4247 = smul.addr %s4246, 48
      %s4248 = smul.addr %s4247, 4
      %s4249 = scalar_lea.vmem %s9, %s4248
      // Predicated region
      $region53: #{attention_forward.2} parent=51 // pred_check
        %p4250 = pneg %p217
      $region54: #{attention_forward.2} parent=51 // pred_check_branch
        %4252 = sbr.rel (%p4250) target = $region56
      $region55: #{attention_forward.2} parent=51 // pred_region
        _
      $region56: #{attention_forward.2} parent=51 // pred_fallthru
        _
      // Predicated region
      $region57: #{attention_forward.2} parent=51 // pred_check
        %p4253 = pneg %p243
      $region58: #{attention_forward.2} parent=51 // pred_check_branch
        %4255 = sbr.rel (%p4253) target = $region60
      $region59: #{attention_forward.2} parent=51 // pred_region
        _
      $region60: #{attention_forward.2} parent=51 // pred_fallthru
        _
    $region52: #{attention_forward.2} parent=5 // pred_fallthru
      _
    %p4256 = scmp.le.s32.totalorder 2, %s16
    // Predicated region
    $region61: #{attention_forward.2} parent=5 // pred_check
      %p4257 = pneg %p4256
    $region62: #{attention_forward.2} parent=5 // pred_check_branch
      %4259 = sbr.rel (%p4257) target = $region64
    $region63: #{attention_forward.2} parent=5 // pred_region
      %s4260 = ssub.s32 %s16, 2
      // Predicated region
      $region65: #{attention_forward.2} parent=63 // pred_check
        %p4261 = pneg %p223
      $region66: #{attention_forward.2} parent=63 // pred_check_branch
        %4263 = sbr.rel (%p4261) target = $region68
      $region67: #{attention_forward.2} parent=63 // pred_region
        %p4264 = scmp.lt.s32.totalorder %s22, 1
        %s4265 = scalar_select %p4264, %s22, 1
        %s4266 = smul.addr %s4265, 32
        %s4267 = smul.addr %s4266, 8
        %s4268 = scalar_lea.vmem %s8, %s4267
      $region68: #{attention_forward.2} parent=63 // pred_fallthru
        _
      // Predicated region
      $region69: #{attention_forward.2} parent=63 // pred_check
        %p4269 = pneg %p249
      $region70: #{attention_forward.2} parent=63 // pred_check_branch
        %4271 = sbr.rel (%p4269) target = $region72
      $region71: #{attention_forward.2} parent=63 // pred_region
        %p4272 = scmp.lt.s32.totalorder %s22, 1
        %s4273 = scalar_select %p4272, %s22, 1
        %s4274 = smul.addr %s4273, 48
        %s4275 = smul.addr %s4274, 4
        %s4276 = scalar_lea.vmem %s9, %s4275
      $region72: #{attention_forward.2} parent=63 // pred_fallthru
        _
    $region64: #{attention_forward.2} parent=5 // pred_fallthru
      _
  $region6: #{attention_forward.2} parent=0 // loop_footer
    %s20 = sadd.s32 1, %s16
  $region7: #{attention_forward.2} parent=0 // loop_footer_branch
    %15 = sbr.rel target = $region3
  $region8: #{attention_forward.2} parent=0 // loop_exit
    _

// kernel: attention_forward.3
$region0: #{attention_forward.3}
  #allocation0 [shape = 'u32[]', space=smem, size = 0x4, offset = 0x4, fixed_abs, tag = 'smem constant byte address 0x4 - core index']
  #allocation1 [shape = 'u32[144,128]{1,0:T(1,128)}', space=vmem, size = 0x12000, scoped, tag = 'internal scratch']
  %s0 = inlined_call_operand.vmem [shape: bf16[2,1728,256], index: 0, kind: input, shape index: {}]
  %s1 = inlined_call_operand.vmem [shape: bf16[128,1728], index: 1, kind: input, shape index: {}]
  %s2 = inlined_call_operand.vmem [shape: f32[128,1], index: 2, kind: input, shape index: {}]
  %s3 = inlined_call_operand.vmem [shape: f32[2,128,256], index: 3, kind: input, shape index: {}]
  %s4 = inlined_call_operand.vmem [shape: f32[2,128,256], index: 4, kind: output, shape index: {}]
  %s5 = sld [smem:[#allocation0]]
  $region49: #{attention_forward.3} parent=0
    _
  %s7 = ssub.s32 1, %s5
  %s8 = scalar_select 0, %s7, %s5
  loop: start=0, step=1, limit=4
  $region2: #{attention_forward.3} parent=0 // loop_pre_header
    _
  $region3: #{attention_forward.3} parent=0 // loop_header
    %s10 = sphi 0, %s14
    %p11 = scmp.ge.s32.totalorder %s10, 4
    %s20 = sphi 0, %s22
    %s23 = sphi 0, %s20
    %s24 = sphi 0, %s23
    %s40 = sphi 0, %s24
    %s44 = sphi 0, %s44
    %s46 = sphi 0, %s44
    %s47 = sphi 0, %s46
    %s61 = sphi 0, %s47
    %s65 = sphi 0, %s65
    %s67 = sphi 0, %s65
    %s68 = sphi 0, %s67
    %s82 = sphi 0, %s68
    %s88 = sphi 0, %s90
    %s91 = sphi 0, %s88
    %s92 = sphi 0, %s91
    %s108 = sphi 0, %s92
    %s114 = sphi 0, %s116
    %s117 = sphi 0, %s114
    %s118 = sphi 0, %s117
    %s134 = sphi 0, %s118
  $region4: #{attention_forward.3} parent=0 // loop_header_branch
    %13 = sbr.rel (%p11) target = $region8
  $region5: #{attention_forward.3} parent=0 // loop_body
    %s15 = ssub.s32 %s10, 1
    %s16 = ssub.s32 %s10, 2
    %s17 = sadd.s32 %s10, 1
    %s18 = ssub.s32 %s10, %s17
    %p19 = scmp.eq.s32.totalorder %s18, 0
    %s21 = sadd.s32 %s20, 1
    %s22 = scalar_select %p19, %s20, %s21
    %p25 = pneg %p19
    %p26 = scmp.eq.s32.totalorder %s10, 1
    %p27 = por %p25, %p26
    %p28 = scmp.ne.s32.totalorder %s20, %s23
    %p29 = scmp.eq.s32.totalorder %s10, 0
    %p30 = por %p28, %p29
    %p31 = scmp.ne.s32.totalorder %s20, %s23
    %p32 = scmp.eq.s32.totalorder %s15, 1
    %p33 = por %p31, %p32
    %p34 = scmp.ne.s32.totalorder %s23, %s24
    %p35 = scmp.eq.s32.totalorder %s15, 0
    %p36 = por %p34, %p35
    %p37 = scmp.ne.s32.totalorder %s23, %s24
    %p38 = scmp.eq.s32.totalorder %s16, 1
    %p39 = por %p37, %p38
    %p41 = scmp.ne.s32.totalorder %s24, %s40
    %p42 = scmp.eq.s32.totalorder %s16, 0
    %p43 = por %p41, %p42
    %s45 = sadd.s32 %s44, 1
    %p48 = scmp.eq.s32.totalorder %s10, 1
    %p49 = scmp.ne.s32.totalorder %s44, %s46
    %p50 = scmp.eq.s32.totalorder %s10, 0
    %p51 = por %p49, %p50
    %p52 = scmp.ne.s32.totalorder %s44, %s46
    %p53 = scmp.eq.s32.totalorder %s15, 1
    %p54 = por %p52, %p53
    %p55 = scmp.ne.s32.totalorder %s46, %s47
    %p56 = scmp.eq.s32.totalorder %s15, 0
    %p57 = por %p55, %p56
    %p58 = scmp.ne.s32.totalorder %s46, %s47
    %p59 = scmp.eq.s32.totalorder %s16, 1
    %p60 = por %p58, %p59
    %p62 = scmp.ne.s32.totalorder %s47, %s61
    %p63 = scmp.eq.s32.totalorder %s16, 0
    %p64 = por %p62, %p63
    %s66 = sadd.s32 %s65, 1
    %p69 = scmp.eq.s32.totalorder %s10, 1
    %p70 = scmp.ne.s32.totalorder %s65, %s67
    %p71 = scmp.eq.s32.totalorder %s10, 0
    %p72 = por %p70, %p71
    %p73 = scmp.ne.s32.totalorder %s65, %s67
    %p74 = scmp.eq.s32.totalorder %s15, 1
    %p75 = por %p73, %p74
    %p76 = scmp.ne.s32.totalorder %s67, %s68
    %p77 = scmp.eq.s32.totalorder %s15, 0
    %p78 = por %p76, %p77
    %p79 = scmp.ne.s32.totalorder %s67, %s68
    %p80 = scmp.eq.s32.totalorder %s16, 1
    %p81 = por %p79, %p80
    %p83 = scmp.ne.s32.totalorder %s68, %s82
    %p84 = scmp.eq.s32.totalorder %s16, 0
    %p85 = por %p83, %p84
    %s86 = ssub.s32 %s10, %s17
    %p87 = scmp.eq.s32.totalorder %s86, 0
    %s89 = sadd.s32 %s88, 1
    %s90 = scalar_select %p87, %s88, %s89
    %p93 = pneg %p87
    %p94 = scmp.eq.s32.totalorder %s10, 1
    %p95 = por %p93, %p94
    %p96 = scmp.ne.s32.totalorder %s88, %s91
    %p97 = scmp.eq.s32.totalorder %s10, 0
    %p98 = por %p96, %p97
    %p99 = scmp.ne.s32.totalorder %s88, %s91
    %p100 = scmp.eq.s32.totalorder %s15, 1
    %p101 = por %p99, %p100
    %p102 = scmp.ne.s32.totalorder %s91, %s92
    %p103 = scmp.eq.s32.totalorder %s15, 0
    %p104 = por %p102, %p103
    %p105 = scmp.ne.s32.totalorder %s91, %s92
    %p106 = scmp.eq.s32.totalorder %s16, 1
    %p107 = por %p105, %p106
    %p109 = scmp.ne.s32.totalorder %s92, %s108
    %p110 = scmp.eq.s32.totalorder %s16, 0
    %p111 = por %p109, %p110
    %s112 = ssub.s32 %s10, %s17
    %p113 = scmp.eq.s32.totalorder %s112, 0
    %s115 = sadd.s32 %s114, 1
    %s116 = scalar_select %p113, %s114, %s115
    %p119 = pneg %p113
    %p120 = scmp.eq.s32.totalorder %s10, 1
    %p121 = por %p119, %p120
    %p122 = scmp.ne.s32.totalorder %s114, %s117
    %p123 = scmp.eq.s32.totalorder %s10, 0
    %p124 = por %p122, %p123
    %p125 = scmp.ne.s32.totalorder %s114, %s117
    %p126 = scmp.eq.s32.totalorder %s15, 1
    %p127 = por %p125, %p126
    %p128 = scmp.ne.s32.totalorder %s117, %s118
    %p129 = scmp.eq.s32.totalorder %s15, 0
    %p130 = por %p128, %p129
    %p131 = scmp.ne.s32.totalorder %s117, %s118
    %p132 = scmp.eq.s32.totalorder %s16, 1
    %p133 = por %p131, %p132
    %p135 = scmp.ne.s32.totalorder %s118, %s134
    %p136 = scmp.eq.s32.totalorder %s16, 0
    %p137 = por %p135, %p136
    %p138 = scmp.le.s32.totalorder 1, %s10
    %p139 = scmp.lt.s32.totalorder %s10, 3
    %p140 = pnand %p138, %p139
    %p141 = pneg %p140
    // Predicated region
    $region9: #{attention_forward.3} parent=5 // pred_check
      _
    $region10: #{attention_forward.3} parent=5 // pred_check_branch
      %143 = sbr.rel (%p140) target = $region12
    $region11: #{attention_forward.3} parent=5 // pred_region
      %s144 = ssub.s32 %s10, 1
      // Predicated region
      $region13: #{attention_forward.3} parent=11 // pred_check
        %p145 = pneg %p57
      $region14: #{attention_forward.3} parent=11 // pred_check_branch
        %147 = sbr.rel (%p145) target = $region16
      $region15: #{attention_forward.3} parent=11 // pred_region
        _
      $region16: #{attention_forward.3} parent=11 // pred_fallthru
        _
      // Predicated region
      $region17: #{attention_forward.3} parent=11 // pred_check
        %p148 = pneg %p78
      $region18: #{attention_forward.3} parent=11 // pred_check_branch
        %150 = sbr.rel (%p148) target = $region20
      $region19: #{attention_forward.3} parent=11 // pred_region
        _
      $region20: #{attention_forward.3} parent=11 // pred_fallthru
        _
    $region12: #{attention_forward.3} parent=5 // pred_fallthru
      _
    %p151 = scmp.lt.s32.totalorder %s10, 2
    // Predicated region
    $region21: #{attention_forward.3} parent=5 // pred_check
      %p152 = pneg %p151
    $region22: #{attention_forward.3} parent=5 // pred_check_branch
      %154 = sbr.rel (%p152) target = $region24
    $region23: #{attention_forward.3} parent=5 // pred_region
      // Predicated region
      $region25: #{attention_forward.3} parent=23 // pred_check
        %p155 = pneg %p30
      $region26: #{attention_forward.3} parent=23 // pred_check_branch
        %157 = sbr.rel (%p155) target = $region28
      $region27: #{attention_forward.3} parent=23 // pred_region
        %p158 = scmp.lt.s32.totalorder %s10, 1
        %s159 = scalar_select %p158, %s10, 1
        %s160 = smul.addr %s159, 432
        %s161 = smul.addr %s160, 4
        %s162 = scalar_lea.vmem %s0, %s161
      $region28: #{attention_forward.3} parent=23 // pred_fallthru
        _
      // Predicated region
      $region29: #{attention_forward.3} parent=23 // pred_check
        %p163 = pneg %p98
      $region30: #{attention_forward.3} parent=23 // pred_check_branch
        %165 = sbr.rel (%p163) target = $region32
      $region31: #{attention_forward.3} parent=23 // pred_region
        %p166 = scmp.lt.s32.totalorder %s10, 1
        %s167 = scalar_select %p166, %s10, 1
        %s168 = smul.addr %s167, 32
        %s169 = smul.addr %s168, 8
        %s170 = scalar_lea.vmem %s3, %s169
      $region32: #{attention_forward.3} parent=23 // pred_fallthru
        _
    $region24: #{attention_forward.3} parent=5 // pred_fallthru
      _
    %p171 = scmp.le.s32.totalorder 1, %s10
    %p172 = scmp.lt.s32.totalorder %s10, 3
    %p173 = pnand %p171, %p172
    %p174 = pneg %p173
    // Predicated region
    $region33: #{attention_forward.3} parent=5 // pred_check
      _
    $region34: #{attention_forward.3} parent=5 // pred_check_branch
      %176 = sbr.rel (%p173) target = $region36
    $region35: #{attention_forward.3} parent=5 // pred_region
      %s177 = ssub.s32 %s10, 1
      %p178 = scmp.lt.s32.totalorder %s15, 1
      %s179 = scalar_select %p178, %s15, 1
      %s180 = smul.addr %s179, 432
      %s181 = smul.addr %s180, 4
      %s182 = scalar_lea.vmem %s0, %s181
      %p183 = pneg %p36
      %p184 = pneg %p33
      %p185 = pneg %p57
      %p186 = pneg %p54
      %p187 = pneg %p78
      %p188 = pneg %p75
      %p189 = scmp.lt.s32.totalorder %s15, 1
      %s190 = scalar_select %p189, %s15, 1
      %s191 = smul.addr %s190, 32
      %s192 = smul.addr %s191, 8
      %s193 = scalar_lea.vmem %s3, %s192
      %p194 = pneg %p104
      %p195 = pneg %p101
      %p196 = pneg %p130
      %p197 = pneg %p127
      %p198 = scmp.lt.s32.totalorder %s15, 1
      %s199 = scalar_select %p198, %s15, 1
      %s200 = smul.addr %s199, 32
      %s201 = smul.addr %s200, 8
      %s202 = scalar_lea.vmem %s4, %s201
      %p203 = scmp.lt.s32.totalorder %s15, 1
      %s204 = scalar_select %p203, %s15, 1
      %s205 = smul.addr %s204, 432
      %s206 = smul.addr %s205, 4
      %s207 = scalar_lea.vmem %s0, %s206
      %p208 = scmp.lt.s32.totalorder %s15, 1
      %s209 = scalar_select %p208, %s15, 1
      %s210 = smul.addr %s209, 32
      %s211 = smul.addr %s210, 8
      %s212 = scalar_lea.vmem %s3, %s211
      %p213 = scmp.lt.s32.totalorder %s15, 1
      %s214 = scalar_select %p213, %s15, 1
      %s215 = smul.addr %s214, 32
      %s216 = smul.addr %s215, 8
      %s217 = scalar_lea.vmem %s4, %s216
      %v219 = vld [vmem:[%s1] sm:$0xff]
      %v220 = vld [vmem:[%s1 + $0x8] sm:$0xff]
      %v221 = vld [vmem:[%s1 + $0x10] sm:$0xff]
      %v222 = vld [vmem:[%s1 + $0x18] sm:$0xff]
      %v223 = vld [vmem:[%s1 + $0x20] sm:$0xff]
      %v224 = vld [vmem:[%s1 + $0x28] sm:$0xff]
      %v225 = vld [vmem:[%s1 + $0x30] sm:$0xff]
      %v226 = vld [vmem:[%s1 + $0x38] sm:$0xff]
      %v227 = vld [vmem:[%s1 + $0x40] sm:$0xff]
      %v228 = vld [vmem:[%s1 + $0x48] sm:$0xff]
      %v229 = vld [vmem:[%s1 + $0x50] sm:$0xff]
      %v230 = vld [vmem:[%s1 + $0x58] sm:$0xff]
      %v231 = vld [vmem:[%s1 + $0x60] sm:$0xff]
      %v232 = vld [vmem:[%s1 + $0x68] sm:$0xff]
      %v233 = vld [vmem:[%s1 + $0x70] sm:$0xff]
      %v234 = vld [vmem:[%s1 + $0x78] sm:$0xff]
      %v235 = vld [vmem:[%s1 + $0x80] sm:$0xff]
      %v236 = vld [vmem:[%s1 + $0x88] sm:$0xff]
      %v237 = vld [vmem:[%s1 + $0x90] sm:$0xff]
      %v238 = vld [vmem:[%s1 + $0x98] sm:$0xff]
      %v239 = vld [vmem:[%s1 + $0xa0] sm:$0xff]
      %v240 = vld [vmem:[%s1 + $0xa8] sm:$0xff]
      %v241 = vld [vmem:[%s1 + $0xb0] sm:$0xff]
      %v242 = vld [vmem:[%s1 + $0xb8] sm:$0xff]
      %v243 = vld [vmem:[%s1 + $0xc0] sm:$0xff]
      %v244 = vld [vmem:[%s1 + $0xc8] sm:$0xff]
      %v245 = vld [vmem:[%s1 + $0xd0] sm:$0xff]
      %v246 = vld [vmem:[%s1 + $0xd8] sm:$0xff]
      %v247 = vld [vmem:[%s1 + $0xe0] sm:$0xff]
      %v248 = vld [vmem:[%s1 + $0xe8] sm:$0xff]
      %v249 = vld [vmem:[%s1 + $0xf0] sm:$0xff]
      %v250 = vld [vmem:[%s1 + $0xf8] sm:$0xff]
      %v251 = vld [vmem:[%s1 + $0x100] sm:$0xff]
      %v252 = vld [vmem:[%s1 + $0x108] sm:$0xff]
      %v253 = vld [vmem:[%s1 + $0x110] sm:$0xff]
      %v254 = vld [vmem:[%s1 + $0x118] sm:$0xff]
      %v255 = vld [vmem:[%s1 + $0x120] sm:$0xff]
      %v256 = vld [vmem:[%s1 + $0x128] sm:$0xff]
      %v257 = vld [vmem:[%s1 + $0x130] sm:$0xff]
      %v258 = vld [vmem:[%s1 + $0x138] sm:$0xff]
      %v259 = vld [vmem:[%s1 + $0x140] sm:$0xff]
      %v260 = vld [vmem:[%s1 + $0x148] sm:$0xff]
      %v261 = vld [vmem:[%s1 + $0x150] sm:$0xff]
      %v262 = vld [vmem:[%s1 + $0x158] sm:$0xff]
      %v263 = vld [vmem:[%s1 + $0x160] sm:$0xff]
      %v264 = vld [vmem:[%s1 + $0x168] sm:$0xff]
      %v265 = vld [vmem:[%s1 + $0x170] sm:$0xff]
      %v266 = vld [vmem:[%s1 + $0x178] sm:$0xff]
      %v267 = vld [vmem:[%s1 + $0x180] sm:$0xff]
      %v268 = vld [vmem:[%s1 + $0x188] sm:$0xff]
      %v269 = vld [vmem:[%s1 + $0x190] sm:$0xff]
      %v270 = vld [vmem:[%s1 + $0x198] sm:$0xff]
      %v271 = vld [vmem:[%s1 + $0x1a0] sm:$0xff]
      %v272 = vld [vmem:[%s1 + $0x1a8] sm:$0xff]
      %v273 = vld [vmem:[%s1 + $0x1b0] sm:$0xff]
      %v274 = vld [vmem:[%s1 + $0x1b8] sm:$0xff]
      %v275 = vld [vmem:[%s1 + $0x1c0] sm:$0xff]
      %v276 = vld [vmem:[%s1 + $0x1c8] sm:$0xff]
      %v277 = vld [vmem:[%s1 + $0x1d0] sm:$0xff]
      %v278 = vld [vmem:[%s1 + $0x1d8] sm:$0xff]
      %v279 = vld [vmem:[%s1 + $0x1e0] sm:$0xff]
      %v280 = vld [vmem:[%s1 + $0x1e8] sm:$0xff]
      %v281 = vld [vmem:[%s1 + $0x1f0] sm:$0xff]
      %v282 = vld [vmem:[%s1 + $0x1f8] sm:$0xff]
      %v283 = vld [vmem:[%s1 + $0x200] sm:$0xff]
      %v284 = vld [vmem:[%s1 + $0x208] sm:$0xff]
      %v285 = vld [vmem:[%s1 + $0x210] sm:$0xff]
      %v286 = vld [vmem:[%s1 + $0x218] sm:$0xff]
      %v287 = vld [vmem:[%s1 + $0x220] sm:$0xff]
      %v288 = vld [vmem:[%s1 + $0x228] sm:$0xff]
      %v289 = vld [vmem:[%s1 + $0x230] sm:$0xff]
      %v290 = vld [vmem:[%s1 + $0x238] sm:$0xff]
      %v291 = vld [vmem:[%s1 + $0x240] sm:$0xff]
      %v292 = vld [vmem:[%s1 + $0x248] sm:$0xff]
      %v293 = vld [vmem:[%s1 + $0x250] sm:$0xff]
      %v294 = vld [vmem:[%s1 + $0x258] sm:$0xff]
      %v295 = vld [vmem:[%s1 + $0x260] sm:$0xff]
      %v296 = vld [vmem:[%s1 + $0x268] sm:$0xff]
      %v297 = vld [vmem:[%s1 + $0x270] sm:$0xff]
      %v298 = vld [vmem:[%s1 + $0x278] sm:$0xff]
      %v299 = vld [vmem:[%s1 + $0x280] sm:$0xff]
      %v300 = vld [vmem:[%s1 + $0x288] sm:$0xff]
      %v301 = vld [vmem:[%s1 + $0x290] sm:$0xff]
      %v302 = vld [vmem:[%s1 + $0x298] sm:$0xff]
      %v303 = vld [vmem:[%s1 + $0x2a0] sm:$0xff]
      %v304 = vld [vmem:[%s1 + $0x2a8] sm:$0xff]
      %v305 = vld [vmem:[%s1 + $0x2b0] sm:$0xff]
      %v306 = vld [vmem:[%s1 + $0x2b8] sm:$0xff]
      %v307 = vld [vmem:[%s1 + $0x2c0] sm:$0xff]
      %v308 = vld [vmem:[%s1 + $0x2c8] sm:$0xff]
      %v309 = vld [vmem:[%s1 + $0x2d0] sm:$0xff]
      %v310 = vld [vmem:[%s1 + $0x2d8] sm:$0xff]
      %v311 = vld [vmem:[%s1 + $0x2e0] sm:$0xff]
      %v312 = vld [vmem:[%s1 + $0x2e8] sm:$0xff]
      %v313 = vld [vmem:[%s1 + $0x2f0] sm:$0xff]
      %v314 = vld [vmem:[%s1 + $0x2f8] sm:$0xff]
      %v315 = vld [vmem:[%s1 + $0x300] sm:$0xff]
      %v316 = vld [vmem:[%s1 + $0x308] sm:$0xff]
      %v317 = vld [vmem:[%s1 + $0x310] sm:$0xff]
      %v318 = vld [vmem:[%s1 + $0x318] sm:$0xff]
      %v319 = vld [vmem:[%s1 + $0x320] sm:$0xff]
      %v320 = vld [vmem:[%s1 + $0x328] sm:$0xff]
      %v321 = vld [vmem:[%s1 + $0x330] sm:$0xff]
      %v322 = vld [vmem:[%s1 + $0x338] sm:$0xff]
      %v323 = vld [vmem:[%s1 + $0x340] sm:$0xff]
      %v324 = vld [vmem:[%s1 + $0x348] sm:$0xff]
      %v325 = vld [vmem:[%s1 + $0x350] sm:$0xff]
      %v326 = vld [vmem:[%s1 + $0x358] sm:$0xff]
      %v327 = vld [vmem:[%s1 + $0x360] sm:$0xff]
      %v328 = vld [vmem:[%s1 + $0x368] sm:$0xff]
      %v329 = vld [vmem:[%s1 + $0x370] sm:$0xff]
      %v330 = vld [vmem:[%s1 + $0x378] sm:$0xff]
      %v331 = vld [vmem:[%s207] sm:$0xff]
      %v332 = vld [vmem:[%s207 + $0x8] sm:$0xff]
      %v333 = vld [vmem:[%s207 + $0x10] sm:$0xff]
      %v334 = vld [vmem:[%s207 + $0x18] sm:$0xff]
      %v335 = vld [vmem:[%s207 + $0x20] sm:$0xff]
      %v336 = vld [vmem:[%s207 + $0x28] sm:$0xff]
      %v337 = vld [vmem:[%s207 + $0x30] sm:$0xff]
      %v338 = vld [vmem:[%s207 + $0x38] sm:$0xff]
      %v339 = vld [vmem:[%s207 + $0x40] sm:$0xff]
      %v340 = vld [vmem:[%s207 + $0x48] sm:$0xff]
      %v341 = vld [vmem:[%s207 + $0x50] sm:$0xff]
      %v342 = vld [vmem:[%s207 + $0x58] sm:$0xff]
      %v343 = vld [vmem:[%s207 + $0x60] sm:$0xff]
      %v344 = vld [vmem:[%s207 + $0x68] sm:$0xff]
      %v345 = vld [vmem:[%s207 + $0x70] sm:$0xff]
      %v346 = vld [vmem:[%s207 + $0x78] sm:$0xff]
      %v347 = vld [vmem:[%s207 + $0x80] sm:$0xff]
      %v348 = vld [vmem:[%s207 + $0x88] sm:$0xff]
      %v349 = vld [vmem:[%s207 + $0x90] sm:$0xff]
      %v350 = vld [vmem:[%s207 + $0x98] sm:$0xff]
      %v351 = vld [vmem:[%s207 + $0xa0] sm:$0xff]
      %v352 = vld [vmem:[%s207 + $0xa8] sm:$0xff]
      %v353 = vld [vmem:[%s207 + $0xb0] sm:$0xff]
      %v354 = vld [vmem:[%s207 + $0xb8] sm:$0xff]
      %v355 = vld [vmem:[%s207 + $0xc0] sm:$0xff]
      %v356 = vld [vmem:[%s207 + $0xc8] sm:$0xff]
      %v357 = vld [vmem:[%s207 + $0xd0] sm:$0xff]
      %v358 = vld [vmem:[%s207 + $0xd8] sm:$0xff]
      %v359 = vld [vmem:[%s207 + $0xe0] sm:$0xff]
      %v360 = vld [vmem:[%s207 + $0xe8] sm:$0xff]
      %v361 = vld [vmem:[%s207 + $0xf0] sm:$0xff]
      %v362 = vld [vmem:[%s207 + $0xf8] sm:$0xff]
      %v363 = vld [vmem:[%s207 + $0x100] sm:$0xff]
      %v364 = vld [vmem:[%s207 + $0x108] sm:$0xff]
      %v365 = vld [vmem:[%s207 + $0x110] sm:$0xff]
      %v366 = vld [vmem:[%s207 + $0x118] sm:$0xff]
      %v367 = vld [vmem:[%s207 + $0x120] sm:$0xff]
      %v368 = vld [vmem:[%s207 + $0x128] sm:$0xff]
      %v369 = vld [vmem:[%s207 + $0x130] sm:$0xff]
      %v370 = vld [vmem:[%s207 + $0x138] sm:$0xff]
      %v371 = vld [vmem:[%s207 + $0x140] sm:$0xff]
      %v372 = vld [vmem:[%s207 + $0x148] sm:$0xff]
      %v373 = vld [vmem:[%s207 + $0x150] sm:$0xff]
      %v374 = vld [vmem:[%s207 + $0x158] sm:$0xff]
      %v375 = vld [vmem:[%s207 + $0x160] sm:$0xff]
      %v376 = vld [vmem:[%s207 + $0x168] sm:$0xff]
      %v377 = vld [vmem:[%s207 + $0x170] sm:$0xff]
      %v378 = vld [vmem:[%s207 + $0x178] sm:$0xff]
      %v379 = vld [vmem:[%s207 + $0x180] sm:$0xff]
      %v380 = vld [vmem:[%s207 + $0x188] sm:$0xff]
      %v381 = vld [vmem:[%s207 + $0x190] sm:$0xff]
      %v382 = vld [vmem:[%s207 + $0x198] sm:$0xff]
      %v383 = vld [vmem:[%s207 + $0x1a0] sm:$0xff]
      %v384 = vld [vmem:[%s207 + $0x1a8] sm:$0xff]
      %v385 = vld [vmem:[%s207 + $0x1b0] sm:$0xff]
      %v386 = vld [vmem:[%s207 + $0x1b8] sm:$0xff]
      %v387 = vld [vmem:[%s207 + $0x1c0] sm:$0xff]
      %v388 = vld [vmem:[%s207 + $0x1c8] sm:$0xff]
      %v389 = vld [vmem:[%s207 + $0x1d0] sm:$0xff]
      %v390 = vld [vmem:[%s207 + $0x1d8] sm:$0xff]
      %v391 = vld [vmem:[%s207 + $0x1e0] sm:$0xff]
      %v392 = vld [vmem:[%s207 + $0x1e8] sm:$0xff]
      %v393 = vld [vmem:[%s207 + $0x1f0] sm:$0xff]
      %v394 = vld [vmem:[%s207 + $0x1f8] sm:$0xff]
      %v395 = vld [vmem:[%s207 + $0x200] sm:$0xff]
      %v396 = vld [vmem:[%s207 + $0x208] sm:$0xff]
      %v397 = vld [vmem:[%s207 + $0x210] sm:$0xff]
      %v398 = vld [vmem:[%s207 + $0x218] sm:$0xff]
      %v399 = vld [vmem:[%s207 + $0x220] sm:$0xff]
      %v400 = vld [vmem:[%s207 + $0x228] sm:$0xff]
      %v401 = vld [vmem:[%s207 + $0x230] sm:$0xff]
      %v402 = vld [vmem:[%s207 + $0x238] sm:$0xff]
      %v403 = vld [vmem:[%s207 + $0x240] sm:$0xff]
      %v404 = vld [vmem:[%s207 + $0x248] sm:$0xff]
      %v405 = vld [vmem:[%s207 + $0x250] sm:$0xff]
      %v406 = vld [vmem:[%s207 + $0x258] sm:$0xff]
      %v407 = vld [vmem:[%s207 + $0x260] sm:$0xff]
      %v408 = vld [vmem:[%s207 + $0x268] sm:$0xff]
      %v409 = vld [vmem:[%s207 + $0x270] sm:$0xff]
      %v410 = vld [vmem:[%s207 + $0x278] sm:$0xff]
      %v411 = vld [vmem:[%s207 + $0x280] sm:$0xff]
      %v412 = vld [vmem:[%s207 + $0x288] sm:$0xff]
      %v413 = vld [vmem:[%s207 + $0x290] sm:$0xff]
      %v414 = vld [vmem:[%s207 + $0x298] sm:$0xff]
      %v415 = vld [vmem:[%s207 + $0x2a0] sm:$0xff]
      %v416 = vld [vmem:[%s207 + $0x2a8] sm:$0xff]
      %v417 = vld [vmem:[%s207 + $0x2b0] sm:$0xff]
      %v418 = vld [vmem:[%s207 + $0x2b8] sm:$0xff]
      %v419 = vld [vmem:[%s207 + $0x2c0] sm:$0xff]
      %v420 = vld [vmem:[%s207 + $0x2c8] sm:$0xff]
      %v421 = vld [vmem:[%s207 + $0x2d0] sm:$0xff]
      %v422 = vld [vmem:[%s207 + $0x2d8] sm:$0xff]
      %v423 = vld [vmem:[%s207 + $0x2e0] sm:$0xff]
      %v424 = vld [vmem:[%s207 + $0x2e8] sm:$0xff]
      %v425 = vld [vmem:[%s207 + $0x2f0] sm:$0xff]
      %v426 = vld [vmem:[%s207 + $0x2f8] sm:$0xff]
      %v427 = vld [vmem:[%s207 + $0x300] sm:$0xff]
      %v428 = vld [vmem:[%s207 + $0x308] sm:$0xff]
      %v429 = vld [vmem:[%s207 + $0x310] sm:$0xff]
      %v430 = vld [vmem:[%s207 + $0x318] sm:$0xff]
      %v431 = vld [vmem:[%s207 + $0x320] sm:$0xff]
      %v432 = vld [vmem:[%s207 + $0x328] sm:$0xff]
      %v433 = vld [vmem:[%s207 + $0x330] sm:$0xff]
      %v434 = vld [vmem:[%s207 + $0x338] sm:$0xff]
      %v435 = vld [vmem:[%s207 + $0x340] sm:$0xff]
      %v436 = vld [vmem:[%s207 + $0x348] sm:$0xff]
      %v437 = vld [vmem:[%s207 + $0x350] sm:$0xff]
      %v438 = vld [vmem:[%s207 + $0x358] sm:$0xff]
      %v439 = vld [vmem:[%s207 + $0x360] sm:$0xff]
      %v440 = vld [vmem:[%s207 + $0x368] sm:$0xff]
      %v441 = vld [vmem:[%s207 + $0x370] sm:$0xff]
      %v442 = vld [vmem:[%s207 + $0x378] sm:$0xff]
      %v443 = vld [vmem:[%s207 + $0x380] sm:$0xff]
      %v444 = vld [vmem:[%s207 + $0x388] sm:$0xff]
      %v445 = vld [vmem:[%s207 + $0x390] sm:$0xff]
      %v446 = vld [vmem:[%s207 + $0x398] sm:$0xff]
      %v447 = vld [vmem:[%s207 + $0x3a0] sm:$0xff]
      %v448 = vld [vmem:[%s207 + $0x3a8] sm:$0xff]
      %v449 = vld [vmem:[%s207 + $0x3b0] sm:$0xff]
      %v450 = vld [vmem:[%s207 + $0x3b8] sm:$0xff]
      %v451 = vld [vmem:[%s207 + $0x3c0] sm:$0xff]
      %v452 = vld [vmem:[%s207 + $0x3c8] sm:$0xff]
      %v453 = vld [vmem:[%s207 + $0x3d0] sm:$0xff]
      %v454 = vld [vmem:[%s207 + $0x3d8] sm:$0xff]
      %v455 = vld [vmem:[%s207 + $0x3e0] sm:$0xff]
      %v456 = vld [vmem:[%s207 + $0x3e8] sm:$0xff]
      %v457 = vld [vmem:[%s207 + $0x3f0] sm:$0xff]
      %v458 = vld [vmem:[%s207 + $0x3f8] sm:$0xff]
      %v459 = vld [vmem:[%s207 + $0x400] sm:$0xff]
      %v460 = vld [vmem:[%s207 + $0x408] sm:$0xff]
      %v461 = vld [vmem:[%s207 + $0x410] sm:$0xff]
      %v462 = vld [vmem:[%s207 + $0x418] sm:$0xff]
      %v463 = vld [vmem:[%s207 + $0x420] sm:$0xff]
      %v464 = vld [vmem:[%s207 + $0x428] sm:$0xff]
      %v465 = vld [vmem:[%s207 + $0x430] sm:$0xff]
      %v466 = vld [vmem:[%s207 + $0x438] sm:$0xff]
      %v467 = vld [vmem:[%s207 + $0x440] sm:$0xff]
      %v468 = vld [vmem:[%s207 + $0x448] sm:$0xff]
      %v469 = vld [vmem:[%s207 + $0x450] sm:$0xff]
      %v470 = vld [vmem:[%s207 + $0x458] sm:$0xff]
      %v471 = vld [vmem:[%s207 + $0x460] sm:$0xff]
      %v472 = vld [vmem:[%s207 + $0x468] sm:$0xff]
      %v473 = vld [vmem:[%s207 + $0x470] sm:$0xff]
      %v474 = vld [vmem:[%s207 + $0x478] sm:$0xff]
      %v475 = vld [vmem:[%s207 + $0x480] sm:$0xff]
      %v476 = vld [vmem:[%s207 + $0x488] sm:$0xff]
      %v477 = vld [vmem:[%s207 + $0x490] sm:$0xff]
      %v478 = vld [vmem:[%s207 + $0x498] sm:$0xff]
      %v479 = vld [vmem:[%s207 + $0x4a0] sm:$0xff]
      %v480 = vld [vmem:[%s207 + $0x4a8] sm:$0xff]
      %v481 = vld [vmem:[%s207 + $0x4b0] sm:$0xff]
      %v482 = vld [vmem:[%s207 + $0x4b8] sm:$0xff]
      %v483 = vld [vmem:[%s207 + $0x4c0] sm:$0xff]
      %v484 = vld [vmem:[%s207 + $0x4c8] sm:$0xff]
      %v485 = vld [vmem:[%s207 + $0x4d0] sm:$0xff]
      %v486 = vld [vmem:[%s207 + $0x4d8] sm:$0xff]
      %v487 = vld [vmem:[%s207 + $0x4e0] sm:$0xff]
      %v488 = vld [vmem:[%s207 + $0x4e8] sm:$0xff]
      %v489 = vld [vmem:[%s207 + $0x4f0] sm:$0xff]
      %v490 = vld [vmem:[%s207 + $0x4f8] sm:$0xff]
      %v491 = vld [vmem:[%s207 + $0x500] sm:$0xff]
      %v492 = vld [vmem:[%s207 + $0x508] sm:$0xff]
      %v493 = vld [vmem:[%s207 + $0x510] sm:$0xff]
      %v494 = vld [vmem:[%s207 + $0x518] sm:$0xff]
      %v495 = vld [vmem:[%s207 + $0x520] sm:$0xff]
      %v496 = vld [vmem:[%s207 + $0x528] sm:$0xff]
      %v497 = vld [vmem:[%s207 + $0x530] sm:$0xff]
      %v498 = vld [vmem:[%s207 + $0x538] sm:$0xff]
      %v499 = vld [vmem:[%s207 + $0x540] sm:$0xff]
      %v500 = vld [vmem:[%s207 + $0x548] sm:$0xff]
      %v501 = vld [vmem:[%s207 + $0x550] sm:$0xff]
      %v502 = vld [vmem:[%s207 + $0x558] sm:$0xff]
      %v503 = vld [vmem:[%s207 + $0x560] sm:$0xff]
      %v504 = vld [vmem:[%s207 + $0x568] sm:$0xff]
      %v505 = vld [vmem:[%s207 + $0x570] sm:$0xff]
      %v506 = vld [vmem:[%s207 + $0x578] sm:$0xff]
      %v507 = vld [vmem:[%s207 + $0x580] sm:$0xff]
      %v508 = vld [vmem:[%s207 + $0x588] sm:$0xff]
      %v509 = vld [vmem:[%s207 + $0x590] sm:$0xff]
      %v510 = vld [vmem:[%s207 + $0x598] sm:$0xff]
      %v511 = vld [vmem:[%s207 + $0x5a0] sm:$0xff]
      %v512 = vld [vmem:[%s207 + $0x5a8] sm:$0xff]
      %v513 = vld [vmem:[%s207 + $0x5b0] sm:$0xff]
      %v514 = vld [vmem:[%s207 + $0x5b8] sm:$0xff]
      %v515 = vld [vmem:[%s207 + $0x5c0] sm:$0xff]
      %v516 = vld [vmem:[%s207 + $0x5c8] sm:$0xff]
      %v517 = vld [vmem:[%s207 + $0x5d0] sm:$0xff]
      %v518 = vld [vmem:[%s207 + $0x5d8] sm:$0xff]
      %v519 = vld [vmem:[%s207 + $0x5e0] sm:$0xff]
      %v520 = vld [vmem:[%s207 + $0x5e8] sm:$0xff]
      %v521 = vld [vmem:[%s207 + $0x5f0] sm:$0xff]
      %v522 = vld [vmem:[%s207 + $0x5f8] sm:$0xff]
      %v523 = vld [vmem:[%s207 + $0x600] sm:$0xff]
      %v524 = vld [vmem:[%s207 + $0x608] sm:$0xff]
      %v525 = vld [vmem:[%s207 + $0x610] sm:$0xff]
      %v526 = vld [vmem:[%s207 + $0x618] sm:$0xff]
      %v527 = vld [vmem:[%s207 + $0x620] sm:$0xff]
      %v528 = vld [vmem:[%s207 + $0x628] sm:$0xff]
      %v529 = vld [vmem:[%s207 + $0x630] sm:$0xff]
      %v530 = vld [vmem:[%s207 + $0x638] sm:$0xff]
      %v531 = vld [vmem:[%s207 + $0x640] sm:$0xff]
      %v532 = vld [vmem:[%s207 + $0x648] sm:$0xff]
      %v533 = vld [vmem:[%s207 + $0x650] sm:$0xff]
      %v534 = vld [vmem:[%s207 + $0x658] sm:$0xff]
      %v535 = vld [vmem:[%s207 + $0x660] sm:$0xff]
      %v536 = vld [vmem:[%s207 + $0x668] sm:$0xff]
      %v537 = vld [vmem:[%s207 + $0x670] sm:$0xff]
      %v538 = vld [vmem:[%s207 + $0x678] sm:$0xff]
      %v539 = vld [vmem:[%s207 + $0x680] sm:$0xff]
      %v540 = vld [vmem:[%s207 + $0x688] sm:$0xff]
      %v541 = vld [vmem:[%s207 + $0x690] sm:$0xff]
      %v542 = vld [vmem:[%s207 + $0x698] sm:$0xff]
      %v543 = vld [vmem:[%s207 + $0x6a0] sm:$0xff]
      %v544 = vld [vmem:[%s207 + $0x6a8] sm:$0xff]
      %v545 = vld [vmem:[%s207 + $0x6b0] sm:$0xff]
      %v546 = vld [vmem:[%s207 + $0x6b8] sm:$0xff]
      %v547 = vld [vmem:[%s2] sm:$0xff]
      %v548 = vld [vmem:[%s2 + $0x8] sm:$0xff]
      %v549 = vld [vmem:[%s2 + $0x10] sm:$0xff]
      %v550 = vld [vmem:[%s2 + $0x18] sm:$0xff]
      %v551 = vld [vmem:[%s2 + $0x20] sm:$0xff]
      %v552 = vld [vmem:[%s2 + $0x28] sm:$0xff]
      %v553 = vld [vmem:[%s2 + $0x30] sm:$0xff]
      %v554 = vld [vmem:[%s2 + $0x38] sm:$0xff]
      %v555 = vld [vmem:[%s2 + $0x40] sm:$0xff]
      %v556 = vld [vmem:[%s2 + $0x48] sm:$0xff]
      %v557 = vld [vmem:[%s2 + $0x50] sm:$0xff]
      %v558 = vld [vmem:[%s2 + $0x58] sm:$0xff]
      %v559 = vld [vmem:[%s2 + $0x60] sm:$0xff]
      %v560 = vld [vmem:[%s2 + $0x68] sm:$0xff]
      %v561 = vld [vmem:[%s2 + $0x70] sm:$0xff]
      %v562 = vld [vmem:[%s2 + $0x78] sm:$0xff]
      %564 = vset.pattern.permute.xlu0 0
      %565 = vperm.xlu0 %564, %v547
      %v566 = vpop.permute.xlu0 %565
      %569 = vset.pattern.permute.xlu0 0
      %570 = vperm.xlu0 %569, %v548
      %v571 = vpop.permute.xlu0 %570
      %574 = vset.pattern.permute.xlu0 0
      %575 = vperm.xlu0 %574, %v549
      %v576 = vpop.permute.xlu0 %575
      %579 = vset.pattern.permute.xlu0 0
      %580 = vperm.xlu0 %579, %v550
      %v581 = vpop.permute.xlu0 %580
      %584 = vset.pattern.permute.xlu0 0
      %585 = vperm.xlu0 %584, %v551
      %v586 = vpop.permute.xlu0 %585
      %589 = vset.pattern.permute.xlu0 0
      %590 = vperm.xlu0 %589, %v552
      %v591 = vpop.permute.xlu0 %590
      %594 = vset.pattern.permute.xlu0 0
      %595 = vperm.xlu0 %594, %v553
      %v596 = vpop.permute.xlu0 %595
      %599 = vset.pattern.permute.xlu0 0
      %600 = vperm.xlu0 %599, %v554
      %v601 = vpop.permute.xlu0 %600
      %604 = vset.pattern.permute.xlu0 0
      %605 = vperm.xlu0 %604, %v555
      %v606 = vpop.permute.xlu0 %605
      %609 = vset.pattern.permute.xlu0 0
      %610 = vperm.xlu0 %609, %v556
      %v611 = vpop.permute.xlu0 %610
      %614 = vset.pattern.permute.xlu0 0
      %615 = vperm.xlu0 %614, %v557
      %v616 = vpop.permute.xlu0 %615
      %619 = vset.pattern.permute.xlu0 0
      %620 = vperm.xlu0 %619, %v558
      %v621 = vpop.permute.xlu0 %620
      %624 = vset.pattern.permute.xlu0 0
      %625 = vperm.xlu0 %624, %v559
      %v626 = vpop.permute.xlu0 %625
      %629 = vset.pattern.permute.xlu0 0
      %630 = vperm.xlu0 %629, %v560
      %v631 = vpop.permute.xlu0 %630
      %634 = vset.pattern.permute.xlu0 0
      %635 = vperm.xlu0 %634, %v561
      %v636 = vpop.permute.xlu0 %635
      %639 = vset.pattern.permute.xlu0 0
      %640 = vperm.xlu0 %639, %v562
      %v641 = vpop.permute.xlu0 %640
      %v755 = vunpack.c.l.b16 %v219
      %v756 = vunpack.c.h.b16 %v219
      %v757 = vunpack.c.l.b16 %v220
      %v758 = vunpack.c.h.b16 %v220
      %v759 = vunpack.c.l.b16 %v221
      %v760 = vunpack.c.h.b16 %v221
      %v761 = vunpack.c.l.b16 %v222
      %v762 = vunpack.c.h.b16 %v222
      %v763 = vunpack.c.l.b16 %v223
      %v764 = vunpack.c.h.b16 %v223
      %v765 = vunpack.c.l.b16 %v224
      %v766 = vunpack.c.h.b16 %v224
      %v767 = vunpack.c.l.b16 %v225
      %v768 = vunpack.c.h.b16 %v225
      %v769 = vunpack.c.l.b16 %v226
      %v770 = vunpack.c.h.b16 %v226
      %v771 = vunpack.c.l.b16 %v227
      %v772 = vunpack.c.h.b16 %v227
      %v773 = vunpack.c.l.b16 %v228
      %v774 = vunpack.c.h.b16 %v228
      %v775 = vunpack.c.l.b16 %v229
      %v776 = vunpack.c.h.b16 %v229
      %v777 = vunpack.c.l.b16 %v230
      %v778 = vunpack.c.h.b16 %v230
      %v779 = vunpack.c.l.b16 %v231
      %v780 = vunpack.c.h.b16 %v231
      %v781 = vunpack.c.l.b16 %v232
      %v782 = vunpack.c.h.b16 %v232
      %v783 = vunpack.c.l.b16 %v233
      %v784 = vunpack.c.h.b16 %v233
      %v785 = vunpack.c.l.b16 %v234
      %v786 = vunpack.c.h.b16 %v234
      %v787 = vunpack.c.l.b16 %v235
      %v788 = vunpack.c.h.b16 %v235
      %v789 = vunpack.c.l.b16 %v236
      %v790 = vunpack.c.h.b16 %v236
      %v791 = vunpack.c.l.b16 %v237
      %v792 = vunpack.c.h.b16 %v237
      %v793 = vunpack.c.l.b16 %v238
      %v794 = vunpack.c.h.b16 %v238
      %v795 = vunpack.c.l.b16 %v239
      %v796 = vunpack.c.h.b16 %v239
      %v797 = vunpack.c.l.b16 %v240
      %v798 = vunpack.c.h.b16 %v240
      %v799 = vunpack.c.l.b16 %v241
      %v800 = vunpack.c.h.b16 %v241
      %v801 = vunpack.c.l.b16 %v242
      %v802 = vunpack.c.h.b16 %v242
      %v803 = vunpack.c.l.b16 %v243
      %v804 = vunpack.c.h.b16 %v243
      %v805 = vunpack.c.l.b16 %v244
      %v806 = vunpack.c.h.b16 %v244
      %v807 = vunpack.c.l.b16 %v245
      %v808 = vunpack.c.h.b16 %v245
      %v809 = vunpack.c.l.b16 %v246
      %v810 = vunpack.c.h.b16 %v246
      %v811 = vunpack.c.l.b16 %v247
      %v812 = vunpack.c.h.b16 %v247
      %v813 = vunpack.c.l.b16 %v248
      %v814 = vunpack.c.h.b16 %v248
      %v815 = vunpack.c.l.b16 %v249
      %v816 = vunpack.c.h.b16 %v249
      %v817 = vunpack.c.l.b16 %v250
      %v818 = vunpack.c.h.b16 %v250
      %v819 = vunpack.c.l.b16 %v251
      %v820 = vunpack.c.h.b16 %v251
      %v821 = vunpack.c.l.b16 %v252
      %v822 = vunpack.c.h.b16 %v252
      %v823 = vunpack.c.l.b16 %v253
      %v824 = vunpack.c.h.b16 %v253
      %v825 = vunpack.c.l.b16 %v254
      %v826 = vunpack.c.h.b16 %v254
      %v827 = vunpack.c.l.b16 %v255
      %v828 = vunpack.c.h.b16 %v255
      %v829 = vunpack.c.l.b16 %v256
      %v830 = vunpack.c.h.b16 %v256
      %v831 = vunpack.c.l.b16 %v257
      %v832 = vunpack.c.h.b16 %v257
      %v833 = vunpack.c.l.b16 %v258
      %v834 = vunpack.c.h.b16 %v258
      %v835 = vunpack.c.l.b16 %v259
      %v836 = vunpack.c.h.b16 %v259
      %v837 = vunpack.c.l.b16 %v260
      %v838 = vunpack.c.h.b16 %v260
      %v839 = vunpack.c.l.b16 %v261
      %v840 = vunpack.c.h.b16 %v261
      %v841 = vunpack.c.l.b16 %v262
      %v842 = vunpack.c.h.b16 %v262
      %v843 = vunpack.c.l.b16 %v263
      %v844 = vunpack.c.h.b16 %v263
      %v845 = vunpack.c.l.b16 %v264
      %v846 = vunpack.c.h.b16 %v264
      %v847 = vunpack.c.l.b16 %v265
      %v848 = vunpack.c.h.b16 %v265
      %v849 = vunpack.c.l.b16 %v266
      %v850 = vunpack.c.h.b16 %v266
      %v851 = vunpack.c.l.b16 %v267
      %v852 = vunpack.c.h.b16 %v267
      %v853 = vunpack.c.l.b16 %v268
      %v854 = vunpack.c.h.b16 %v268
      %v855 = vunpack.c.l.b16 %v269
      %v856 = vunpack.c.h.b16 %v269
      %v857 = vunpack.c.l.b16 %v270
      %v858 = vunpack.c.h.b16 %v270
      %v859 = vunpack.c.l.b16 %v271
      %v860 = vunpack.c.h.b16 %v271
      %v861 = vunpack.c.l.b16 %v272
      %v862 = vunpack.c.h.b16 %v272
      %v863 = vunpack.c.l.b16 %v273
      %v864 = vunpack.c.h.b16 %v273
      %v865 = vunpack.c.l.b16 %v274
      %v866 = vunpack.c.h.b16 %v274
      %v867 = vunpack.c.l.b16 %v275
      %v868 = vunpack.c.h.b16 %v275
      %v869 = vunpack.c.l.b16 %v276
      %v870 = vunpack.c.h.b16 %v276
      %v871 = vunpack.c.l.b16 %v277
      %v872 = vunpack.c.h.b16 %v277
      %v873 = vunpack.c.l.b16 %v278
      %v874 = vunpack.c.h.b16 %v278
      %v875 = vunpack.c.l.b16 %v279
      %v876 = vunpack.c.h.b16 %v279
      %v877 = vunpack.c.l.b16 %v280
      %v878 = vunpack.c.h.b16 %v280
      %v879 = vunpack.c.l.b16 %v281
      %v880 = vunpack.c.h.b16 %v281
      %v881 = vunpack.c.l.b16 %v282
      %v882 = vunpack.c.h.b16 %v282
      %v883 = vunpack.c.l.b16 %v283
      %v884 = vunpack.c.h.b16 %v283
      %v885 = vunpack.c.l.b16 %v284
      %v886 = vunpack.c.h.b16 %v284
      %v887 = vunpack.c.l.b16 %v285
      %v888 = vunpack.c.h.b16 %v285
      %v889 = vunpack.c.l.b16 %v286
      %v890 = vunpack.c.h.b16 %v286
      %v891 = vunpack.c.l.b16 %v287
      %v892 = vunpack.c.h.b16 %v287
      %v893 = vunpack.c.l.b16 %v288
      %v894 = vunpack.c.h.b16 %v288
      %v895 = vunpack.c.l.b16 %v289
      %v896 = vunpack.c.h.b16 %v289
      %v897 = vunpack.c.l.b16 %v290
      %v898 = vunpack.c.h.b16 %v290
      %v899 = vunpack.c.l.b16 %v291
      %v900 = vunpack.c.h.b16 %v291
      %v901 = vunpack.c.l.b16 %v292
      %v902 = vunpack.c.h.b16 %v292
      %v903 = vunpack.c.l.b16 %v293
      %v904 = vunpack.c.h.b16 %v293
      %v905 = vunpack.c.l.b16 %v294
      %v906 = vunpack.c.h.b16 %v294
      %v907 = vunpack.c.l.b16 %v295
      %v908 = vunpack.c.h.b16 %v295
      %v909 = vunpack.c.l.b16 %v296
      %v910 = vunpack.c.h.b16 %v296
      %v911 = vunpack.c.l.b16 %v297
      %v912 = vunpack.c.h.b16 %v297
      %v913 = vunpack.c.l.b16 %v298
      %v914 = vunpack.c.h.b16 %v298
      %v915 = vunpack.c.l.b16 %v299
      %v916 = vunpack.c.h.b16 %v299
      %v917 = vunpack.c.l.b16 %v300
      %v918 = vunpack.c.h.b16 %v300
      %v919 = vunpack.c.l.b16 %v301
      %v920 = vunpack.c.h.b16 %v301
      %v921 = vunpack.c.l.b16 %v302
      %v922 = vunpack.c.h.b16 %v302
      %v923 = vunpack.c.l.b16 %v303
      %v924 = vunpack.c.h.b16 %v303
      %v925 = vunpack.c.l.b16 %v304
      %v926 = vunpack.c.h.b16 %v304
      %v927 = vunpack.c.l.b16 %v305
      %v928 = vunpack.c.h.b16 %v305
      %v929 = vunpack.c.l.b16 %v306
      %v930 = vunpack.c.h.b16 %v306
      %v931 = vunpack.c.l.b16 %v307
      %v932 = vunpack.c.h.b16 %v307
      %v933 = vunpack.c.l.b16 %v308
      %v934 = vunpack.c.h.b16 %v308
      %v935 = vunpack.c.l.b16 %v309
      %v936 = vunpack.c.h.b16 %v309
      %v937 = vunpack.c.l.b16 %v310
      %v938 = vunpack.c.h.b16 %v310
      %v939 = vunpack.c.l.b16 %v311
      %v940 = vunpack.c.h.b16 %v311
      %v941 = vunpack.c.l.b16 %v312
      %v942 = vunpack.c.h.b16 %v312
      %v943 = vunpack.c.l.b16 %v313
      %v944 = vunpack.c.h.b16 %v313
      %v945 = vunpack.c.l.b16 %v314
      %v946 = vunpack.c.h.b16 %v314
      %v947 = vunpack.c.l.b16 %v315
      %v948 = vunpack.c.h.b16 %v315
      %v949 = vunpack.c.l.b16 %v316
      %v950 = vunpack.c.h.b16 %v316
      %v951 = vunpack.c.l.b16 %v317
      %v952 = vunpack.c.h.b16 %v317
      %v953 = vunpack.c.l.b16 %v318
      %v954 = vunpack.c.h.b16 %v318
      %v955 = vunpack.c.l.b16 %v319
      %v956 = vunpack.c.h.b16 %v319
      %v957 = vunpack.c.l.b16 %v320
      %v958 = vunpack.c.h.b16 %v320
      %v959 = vunpack.c.l.b16 %v321
      %v960 = vunpack.c.h.b16 %v321
      %v961 = vunpack.c.l.b16 %v322
      %v962 = vunpack.c.h.b16 %v322
      %v963 = vunpack.c.l.b16 %v323
      %v964 = vunpack.c.h.b16 %v323
      %v965 = vunpack.c.l.b16 %v324
      %v966 = vunpack.c.h.b16 %v324
      %v967 = vunpack.c.l.b16 %v325
      %v968 = vunpack.c.h.b16 %v325
      %v969 = vunpack.c.l.b16 %v326
      %v970 = vunpack.c.h.b16 %v326
      %v971 = vunpack.c.l.b16 %v327
      %v972 = vunpack.c.h.b16 %v327
      %v973 = vunpack.c.l.b16 %v328
      %v974 = vunpack.c.h.b16 %v328
      %v975 = vunpack.c.l.b16 %v329
      %v976 = vunpack.c.h.b16 %v329
      %v977 = vunpack.c.l.b16 %v330
      %v978 = vunpack.c.h.b16 %v330
      %v979 = vpack.c.b16 %v769, %v755
      %v980 = vpack.c.b16 %v770, %v756
      %v981 = vpack.c.b16 %v771, %v757
      %v982 = vpack.c.b16 %v772, %v758
      %v983 = vpack.c.b16 %v773, %v759
      %v984 = vpack.c.b16 %v774, %v760
      %v985 = vpack.c.b16 %v775, %v761
      %v986 = vpack.c.b16 %v776, %v762
      %v987 = vpack.c.b16 %v777, %v763
      %v988 = vpack.c.b16 %v778, %v764
      %v989 = vpack.c.b16 %v779, %v765
      %v990 = vpack.c.b16 %v780, %v766
      %v991 = vpack.c.b16 %v781, %v767
      %v992 = vpack.c.b16 %v782, %v768
      %v993 = vpack.c.b16 %v797, %v783
      %v994 = vpack.c.b16 %v798, %v784
      %v995 = vpack.c.b16 %v799, %v785
      %v996 = vpack.c.b16 %v800, %v786
      %v997 = vpack.c.b16 %v801, %v787
      %v998 = vpack.c.b16 %v802, %v788
      %v999 = vpack.c.b16 %v803, %v789
      %v1000 = vpack.c.b16 %v804, %v790
      %v1001 = vpack.c.b16 %v805, %v791
      %v1002 = vpack.c.b16 %v806, %v792
      %v1003 = vpack.c.b16 %v807, %v793
      %v1004 = vpack.c.b16 %v808, %v794
      %v1005 = vpack.c.b16 %v809, %v795
      %v1006 = vpack.c.b16 %v810, %v796
      %v1007 = vpack.c.b16 %v825, %v811
      %v1008 = vpack.c.b16 %v826, %v812
      %v1009 = vpack.c.b16 %v827, %v813
      %v1010 = vpack.c.b16 %v828, %v814
      %v1011 = vpack.c.b16 %v829, %v815
      %v1012 = vpack.c.b16 %v830, %v816
      %v1013 = vpack.c.b16 %v831, %v817
      %v1014 = vpack.c.b16 %v832, %v818
      %v1015 = vpack.c.b16 %v833, %v819
      %v1016 = vpack.c.b16 %v834, %v820
      %v1017 = vpack.c.b16 %v835, %v821
      %v1018 = vpack.c.b16 %v836, %v822
      %v1019 = vpack.c.b16 %v837, %v823
      %v1020 = vpack.c.b16 %v838, %v824
      %v1021 = vpack.c.b16 %v853, %v839
      %v1022 = vpack.c.b16 %v854, %v840
      %v1023 = vpack.c.b16 %v855, %v841
      %v1024 = vpack.c.b16 %v856, %v842
      %v1025 = vpack.c.b16 %v857, %v843
      %v1026 = vpack.c.b16 %v858, %v844
      %v1027 = vpack.c.b16 %v859, %v845
      %v1028 = vpack.c.b16 %v860, %v846
      %v1029 = vpack.c.b16 %v861, %v847
      %v1030 = vpack.c.b16 %v862, %v848
      %v1031 = vpack.c.b16 %v863, %v849
      %v1032 = vpack.c.b16 %v864, %v850
      %v1033 = vpack.c.b16 %v865, %v851
      %v1034 = vpack.c.b16 %v866, %v852
      %v1035 = vpack.c.b16 %v881, %v867
      %v1036 = vpack.c.b16 %v882, %v868
      %v1037 = vpack.c.b16 %v883, %v869
      %v1038 = vpack.c.b16 %v884, %v870
      %v1039 = vpack.c.b16 %v885, %v871
      %v1040 = vpack.c.b16 %v886, %v872
      %v1041 = vpack.c.b16 %v887, %v873
      %v1042 = vpack.c.b16 %v888, %v874
      %v1043 = vpack.c.b16 %v889, %v875
      %v1044 = vpack.c.b16 %v890, %v876
      %v1045 = vpack.c.b16 %v891, %v877
      %v1046 = vpack.c.b16 %v892, %v878
      %v1047 = vpack.c.b16 %v893, %v879
      %v1048 = vpack.c.b16 %v894, %v880
      %v1049 = vpack.c.b16 %v909, %v895
      %v1050 = vpack.c.b16 %v910, %v896
      %v1051 = vpack.c.b16 %v911, %v897
      %v1052 = vpack.c.b16 %v912, %v898
      %v1053 = vpack.c.b16 %v913, %v899
      %v1054 = vpack.c.b16 %v914, %v900
      %v1055 = vpack.c.b16 %v915, %v901
      %v1056 = vpack.c.b16 %v916, %v902
      %v1057 = vpack.c.b16 %v917, %v903
      %v1058 = vpack.c.b16 %v918, %v904
      %v1059 = vpack.c.b16 %v919, %v905
      %v1060 = vpack.c.b16 %v920, %v906
      %v1061 = vpack.c.b16 %v921, %v907
      %v1062 = vpack.c.b16 %v922, %v908
      %v1063 = vpack.c.b16 %v937, %v923
      %v1064 = vpack.c.b16 %v938, %v924
      %v1065 = vpack.c.b16 %v939, %v925
      %v1066 = vpack.c.b16 %v940, %v926
      %v1067 = vpack.c.b16 %v941, %v927
      %v1068 = vpack.c.b16 %v942, %v928
      %v1069 = vpack.c.b16 %v943, %v929
      %v1070 = vpack.c.b16 %v944, %v930
      %v1071 = vpack.c.b16 %v945, %v931
      %v1072 = vpack.c.b16 %v946, %v932
      %v1073 = vpack.c.b16 %v947, %v933
      %v1074 = vpack.c.b16 %v948, %v934
      %v1075 = vpack.c.b16 %v949, %v935
      %v1076 = vpack.c.b16 %v950, %v936
      %v1077 = vpack.c.b16 %v965, %v951
      %v1078 = vpack.c.b16 %v966, %v952
      %v1079 = vpack.c.b16 %v967, %v953
      %v1080 = vpack.c.b16 %v968, %v954
      %v1081 = vpack.c.b16 %v969, %v955
      %v1082 = vpack.c.b16 %v970, %v956
      %v1083 = vpack.c.b16 %v971, %v957
      %v1084 = vpack.c.b16 %v972, %v958
      %v1085 = vpack.c.b16 %v973, %v959
      %v1086 = vpack.c.b16 %v974, %v960
      %v1087 = vpack.c.b16 %v975, %v961
      %v1088 = vpack.c.b16 %v976, %v962
      %v1089 = vpack.c.b16 %v977, %v963
      %v1090 = vpack.c.b16 %v978, %v964
      %v1411 = vunpack.c.l.b16 %v331
      %v1412 = vunpack.c.h.b16 %v331
      %v1413 = vunpack.c.l.b16 %v332
      %v1414 = vunpack.c.h.b16 %v332
      %v1415 = vunpack.c.l.b16 %v333
      %v1416 = vunpack.c.h.b16 %v333
      %v1417 = vunpack.c.l.b16 %v334
      %v1418 = vunpack.c.h.b16 %v334
      %v1419 = vunpack.c.l.b16 %v335
      %v1420 = vunpack.c.h.b16 %v335
      %v1421 = vunpack.c.l.b16 %v336
      %v1422 = vunpack.c.h.b16 %v336
      %v1423 = vunpack.c.l.b16 %v337
      %v1424 = vunpack.c.h.b16 %v337
      %v1425 = vunpack.c.l.b16 %v338
      %v1426 = vunpack.c.h.b16 %v338
      %v1427 = vunpack.c.l.b16 %v339
      %v1428 = vunpack.c.h.b16 %v339
      %v1429 = vunpack.c.l.b16 %v340
      %v1430 = vunpack.c.h.b16 %v340
      %v1431 = vunpack.c.l.b16 %v341
      %v1432 = vunpack.c.h.b16 %v341
      %v1433 = vunpack.c.l.b16 %v342
      %v1434 = vunpack.c.h.b16 %v342
      %v1435 = vunpack.c.l.b16 %v343
      %v1436 = vunpack.c.h.b16 %v343
      %v1437 = vunpack.c.l.b16 %v344
      %v1438 = vunpack.c.h.b16 %v344
      %v1439 = vunpack.c.l.b16 %v345
      %v1440 = vunpack.c.h.b16 %v345
      %v1441 = vunpack.c.l.b16 %v346
      %v1442 = vunpack.c.h.b16 %v346
      %v1443 = vunpack.c.l.b16 %v347
      %v1444 = vunpack.c.h.b16 %v347
      %v1445 = vunpack.c.l.b16 %v348
      %v1446 = vunpack.c.h.b16 %v348
      %v1447 = vunpack.c.l.b16 %v349
      %v1448 = vunpack.c.h.b16 %v349
      %v1449 = vunpack.c.l.b16 %v350
      %v1450 = vunpack.c.h.b16 %v350
      %v1451 = vunpack.c.l.b16 %v351
      %v1452 = vunpack.c.h.b16 %v351
      %v1453 = vunpack.c.l.b16 %v352
      %v1454 = vunpack.c.h.b16 %v352
      %v1455 = vunpack.c.l.b16 %v353
      %v1456 = vunpack.c.h.b16 %v353
      %v1457 = vunpack.c.l.b16 %v354
      %v1458 = vunpack.c.h.b16 %v354
      %v1459 = vunpack.c.l.b16 %v355
      %v1460 = vunpack.c.h.b16 %v355
      %v1461 = vunpack.c.l.b16 %v356
      %v1462 = vunpack.c.h.b16 %v356
      %v1463 = vunpack.c.l.b16 %v357
      %v1464 = vunpack.c.h.b16 %v357
      %v1465 = vunpack.c.l.b16 %v358
      %v1466 = vunpack.c.h.b16 %v358
      %v1467 = vunpack.c.l.b16 %v359
      %v1468 = vunpack.c.h.b16 %v359
      %v1469 = vunpack.c.l.b16 %v360
      %v1470 = vunpack.c.h.b16 %v360
      %v1471 = vunpack.c.l.b16 %v361
      %v1472 = vunpack.c.h.b16 %v361
      %v1473 = vunpack.c.l.b16 %v362
      %v1474 = vunpack.c.h.b16 %v362
      %v1475 = vunpack.c.l.b16 %v363
      %v1476 = vunpack.c.h.b16 %v363
      %v1477 = vunpack.c.l.b16 %v364
      %v1478 = vunpack.c.h.b16 %v364
      %v1479 = vunpack.c.l.b16 %v365
      %v1480 = vunpack.c.h.b16 %v365
      %v1481 = vunpack.c.l.b16 %v366
      %v1482 = vunpack.c.h.b16 %v366
      %v1483 = vunpack.c.l.b16 %v367
      %v1484 = vunpack.c.h.b16 %v367
      %v1485 = vunpack.c.l.b16 %v368
      %v1486 = vunpack.c.h.b16 %v368
      %v1487 = vunpack.c.l.b16 %v369
      %v1488 = vunpack.c.h.b16 %v369
      %v1489 = vunpack.c.l.b16 %v370
      %v1490 = vunpack.c.h.b16 %v370
      %v1491 = vunpack.c.l.b16 %v371
      %v1492 = vunpack.c.h.b16 %v371
      %v1493 = vunpack.c.l.b16 %v372
      %v1494 = vunpack.c.h.b16 %v372
      %v1495 = vunpack.c.l.b16 %v373
      %v1496 = vunpack.c.h.b16 %v373
      %v1497 = vunpack.c.l.b16 %v374
      %v1498 = vunpack.c.h.b16 %v374
      %v1499 = vunpack.c.l.b16 %v375
      %v1500 = vunpack.c.h.b16 %v375
      %v1501 = vunpack.c.l.b16 %v376
      %v1502 = vunpack.c.h.b16 %v376
      %v1503 = vunpack.c.l.b16 %v377
      %v1504 = vunpack.c.h.b16 %v377
      %v1505 = vunpack.c.l.b16 %v378
      %v1506 = vunpack.c.h.b16 %v378
      %v1507 = vunpack.c.l.b16 %v379
      %v1508 = vunpack.c.h.b16 %v379
      %v1509 = vunpack.c.l.b16 %v380
      %v1510 = vunpack.c.h.b16 %v380
      %v1511 = vunpack.c.l.b16 %v381
      %v1512 = vunpack.c.h.b16 %v381
      %v1513 = vunpack.c.l.b16 %v382
      %v1514 = vunpack.c.h.b16 %v382
      %v1515 = vunpack.c.l.b16 %v383
      %v1516 = vunpack.c.h.b16 %v383
      %v1517 = vunpack.c.l.b16 %v384
      %v1518 = vunpack.c.h.b16 %v384
      %v1519 = vunpack.c.l.b16 %v385
      %v1520 = vunpack.c.h.b16 %v385
      %v1521 = vunpack.c.l.b16 %v386
      %v1522 = vunpack.c.h.b16 %v386
      %v1523 = vunpack.c.l.b16 %v387
      %v1524 = vunpack.c.h.b16 %v387
      %v1525 = vunpack.c.l.b16 %v388
      %v1526 = vunpack.c.h.b16 %v388
      %v1527 = vunpack.c.l.b16 %v389
      %v1528 = vunpack.c.h.b16 %v389
      %v1529 = vunpack.c.l.b16 %v390
      %v1530 = vunpack.c.h.b16 %v390
      %v1531 = vunpack.c.l.b16 %v391
      %v1532 = vunpack.c.h.b16 %v391
      %v1533 = vunpack.c.l.b16 %v392
      %v1534 = vunpack.c.h.b16 %v392
      %v1535 = vunpack.c.l.b16 %v393
      %v1536 = vunpack.c.h.b16 %v393
      %v1537 = vunpack.c.l.b16 %v394
      %v1538 = vunpack.c.h.b16 %v394
      %v1539 = vunpack.c.l.b16 %v395
      %v1540 = vunpack.c.h.b16 %v395
      %v1541 = vunpack.c.l.b16 %v396
      %v1542 = vunpack.c.h.b16 %v396
      %v1543 = vunpack.c.l.b16 %v397
      %v1544 = vunpack.c.h.b16 %v397
      %v1545 = vunpack.c.l.b16 %v398
      %v1546 = vunpack.c.h.b16 %v398
      %v1547 = vunpack.c.l.b16 %v399
      %v1548 = vunpack.c.h.b16 %v399
      %v1549 = vunpack.c.l.b16 %v400
      %v1550 = vunpack.c.h.b16 %v400
      %v1551 = vunpack.c.l.b16 %v401
      %v1552 = vunpack.c.h.b16 %v401
      %v1553 = vunpack.c.l.b16 %v402
      %v1554 = vunpack.c.h.b16 %v402
      %v1555 = vunpack.c.l.b16 %v403
      %v1556 = vunpack.c.h.b16 %v403
      %v1557 = vunpack.c.l.b16 %v404
      %v1558 = vunpack.c.h.b16 %v404
      %v1559 = vunpack.c.l.b16 %v405
      %v1560 = vunpack.c.h.b16 %v405
      %v1561 = vunpack.c.l.b16 %v406
      %v1562 = vunpack.c.h.b16 %v406
      %v1563 = vunpack.c.l.b16 %v407
      %v1564 = vunpack.c.h.b16 %v407
      %v1565 = vunpack.c.l.b16 %v408
      %v1566 = vunpack.c.h.b16 %v408
      %v1567 = vunpack.c.l.b16 %v409
      %v1568 = vunpack.c.h.b16 %v409
      %v1569 = vunpack.c.l.b16 %v410
      %v1570 = vunpack.c.h.b16 %v410
      %v1571 = vunpack.c.l.b16 %v411
      %v1572 = vunpack.c.h.b16 %v411
      %v1573 = vunpack.c.l.b16 %v412
      %v1574 = vunpack.c.h.b16 %v412
      %v1575 = vunpack.c.l.b16 %v413
      %v1576 = vunpack.c.h.b16 %v413
      %v1577 = vunpack.c.l.b16 %v414
      %v1578 = vunpack.c.h.b16 %v414
      %v1579 = vunpack.c.l.b16 %v415
      %v1580 = vunpack.c.h.b16 %v415
      %v1581 = vunpack.c.l.b16 %v416
      %v1582 = vunpack.c.h.b16 %v416
      %v1583 = vunpack.c.l.b16 %v417
      %v1584 = vunpack.c.h.b16 %v417
      %v1585 = vunpack.c.l.b16 %v418
      %v1586 = vunpack.c.h.b16 %v418
      %v1587 = vunpack.c.l.b16 %v419
      %v1588 = vunpack.c.h.b16 %v419
      %v1589 = vunpack.c.l.b16 %v420
      %v1590 = vunpack.c.h.b16 %v420
      %v1591 = vunpack.c.l.b16 %v421
      %v1592 = vunpack.c.h.b16 %v421
      %v1593 = vunpack.c.l.b16 %v422
      %v1594 = vunpack.c.h.b16 %v422
      %v1595 = vunpack.c.l.b16 %v423
      %v1596 = vunpack.c.h.b16 %v423
      %v1597 = vunpack.c.l.b16 %v424
      %v1598 = vunpack.c.h.b16 %v424
      %v1599 = vunpack.c.l.b16 %v425
      %v1600 = vunpack.c.h.b16 %v425
      %v1601 = vunpack.c.l.b16 %v426
      %v1602 = vunpack.c.h.b16 %v426
      %v1603 = vunpack.c.l.b16 %v427
      %v1604 = vunpack.c.h.b16 %v427
      %v1605 = vunpack.c.l.b16 %v428
      %v1606 = vunpack.c.h.b16 %v428
      %v1607 = vunpack.c.l.b16 %v429
      %v1608 = vunpack.c.h.b16 %v429
      %v1609 = vunpack.c.l.b16 %v430
      %v1610 = vunpack.c.h.b16 %v430
      %v1611 = vunpack.c.l.b16 %v431
      %v1612 = vunpack.c.h.b16 %v431
      %v1613 = vunpack.c.l.b16 %v432
      %v1614 = vunpack.c.h.b16 %v432
      %v1615 = vunpack.c.l.b16 %v433
      %v1616 = vunpack.c.h.b16 %v433
      %v1617 = vunpack.c.l.b16 %v434
      %v1618 = vunpack.c.h.b16 %v434
      %v1619 = vunpack.c.l.b16 %v435
      %v1620 = vunpack.c.h.b16 %v435
      %v1621 = vunpack.c.l.b16 %v436
      %v1622 = vunpack.c.h.b16 %v436
      %v1623 = vunpack.c.l.b16 %v437
      %v1624 = vunpack.c.h.b16 %v437
      %v1625 = vunpack.c.l.b16 %v438
      %v1626 = vunpack.c.h.b16 %v438
      %v1627 = vunpack.c.l.b16 %v439
      %v1628 = vunpack.c.h.b16 %v439
      %v1629 = vunpack.c.l.b16 %v440
      %v1630 = vunpack.c.h.b16 %v440
      %v1631 = vunpack.c.l.b16 %v441
      %v1632 = vunpack.c.h.b16 %v441
      %v1633 = vunpack.c.l.b16 %v442
      %v1634 = vunpack.c.h.b16 %v442
      %v1635 = vunpack.c.l.b16 %v443
      %v1636 = vunpack.c.h.b16 %v443
      %v1637 = vunpack.c.l.b16 %v444
      %v1638 = vunpack.c.h.b16 %v444
      %v1639 = vunpack.c.l.b16 %v445
      %v1640 = vunpack.c.h.b16 %v445
      %v1641 = vunpack.c.l.b16 %v446
      %v1642 = vunpack.c.h.b16 %v446
      %v1643 = vunpack.c.l.b16 %v447
      %v1644 = vunpack.c.h.b16 %v447
      %v1645 = vunpack.c.l.b16 %v448
      %v1646 = vunpack.c.h.b16 %v448
      %v1647 = vunpack.c.l.b16 %v449
      %v1648 = vunpack.c.h.b16 %v449
      %v1649 = vunpack.c.l.b16 %v450
      %v1650 = vunpack.c.h.b16 %v450
      %v1651 = vunpack.c.l.b16 %v451
      %v1652 = vunpack.c.h.b16 %v451
      %v1653 = vunpack.c.l.b16 %v452
      %v1654 = vunpack.c.h.b16 %v452
      %v1655 = vunpack.c.l.b16 %v453
      %v1656 = vunpack.c.h.b16 %v453
      %v1657 = vunpack.c.l.b16 %v454
      %v1658 = vunpack.c.h.b16 %v454
      %v1659 = vunpack.c.l.b16 %v455
      %v1660 = vunpack.c.h.b16 %v455
      %v1661 = vunpack.c.l.b16 %v456
      %v1662 = vunpack.c.h.b16 %v456
      %v1663 = vunpack.c.l.b16 %v457
      %v1664 = vunpack.c.h.b16 %v457
      %v1665 = vunpack.c.l.b16 %v458
      %v1666 = vunpack.c.h.b16 %v458
      %v1667 = vunpack.c.l.b16 %v459
      %v1668 = vunpack.c.h.b16 %v459
      %v1669 = vunpack.c.l.b16 %v460
      %v1670 = vunpack.c.h.b16 %v460
      %v1671 = vunpack.c.l.b16 %v461
      %v1672 = vunpack.c.h.b16 %v461
      %v1673 = vunpack.c.l.b16 %v462
      %v1674 = vunpack.c.h.b16 %v462
      %v1675 = vunpack.c.l.b16 %v463
      %v1676 = vunpack.c.h.b16 %v463
      %v1677 = vunpack.c.l.b16 %v464
      %v1678 = vunpack.c.h.b16 %v464
      %v1679 = vunpack.c.l.b16 %v465
      %v1680 = vunpack.c.h.b16 %v465
      %v1681 = vunpack.c.l.b16 %v466
      %v1682 = vunpack.c.h.b16 %v466
      %v1683 = vunpack.c.l.b16 %v467
      %v1684 = vunpack.c.h.b16 %v467
      %v1685 = vunpack.c.l.b16 %v468
      %v1686 = vunpack.c.h.b16 %v468
      %v1687 = vunpack.c.l.b16 %v469
      %v1688 = vunpack.c.h.b16 %v469
      %v1689 = vunpack.c.l.b16 %v470
      %v1690 = vunpack.c.h.b16 %v470
      %v1691 = vunpack.c.l.b16 %v471
      %v1692 = vunpack.c.h.b16 %v471
      %v1693 = vunpack.c.l.b16 %v472
      %v1694 = vunpack.c.h.b16 %v472
      %v1695 = vunpack.c.l.b16 %v473
      %v1696 = vunpack.c.h.b16 %v473
      %v1697 = vunpack.c.l.b16 %v474
      %v1698 = vunpack.c.h.b16 %v474
      %v1699 = vunpack.c.l.b16 %v475
      %v1700 = vunpack.c.h.b16 %v475
      %v1701 = vunpack.c.l.b16 %v476
      %v1702 = vunpack.c.h.b16 %v476
      %v1703 = vunpack.c.l.b16 %v477
      %v1704 = vunpack.c.h.b16 %v477
      %v1705 = vunpack.c.l.b16 %v478
      %v1706 = vunpack.c.h.b16 %v478
      %v1707 = vunpack.c.l.b16 %v479
      %v1708 = vunpack.c.h.b16 %v479
      %v1709 = vunpack.c.l.b16 %v480
      %v1710 = vunpack.c.h.b16 %v480
      %v1711 = vunpack.c.l.b16 %v481
      %v1712 = vunpack.c.h.b16 %v481
      %v1713 = vunpack.c.l.b16 %v482
      %v1714 = vunpack.c.h.b16 %v482
      %v1715 = vunpack.c.l.b16 %v483
      %v1716 = vunpack.c.h.b16 %v483
      %v1717 = vunpack.c.l.b16 %v484
      %v1718 = vunpack.c.h.b16 %v484
      %v1719 = vunpack.c.l.b16 %v485
      %v1720 = vunpack.c.h.b16 %v485
      %v1721 = vunpack.c.l.b16 %v486
      %v1722 = vunpack.c.h.b16 %v486
      %v1723 = vunpack.c.l.b16 %v487
      %v1724 = vunpack.c.h.b16 %v487
      %v1725 = vunpack.c.l.b16 %v488
      %v1726 = vunpack.c.h.b16 %v488
      %v1727 = vunpack.c.l.b16 %v489
      %v1728 = vunpack.c.h.b16 %v489
      %v1729 = vunpack.c.l.b16 %v490
      %v1730 = vunpack.c.h.b16 %v490
      %v1731 = vunpack.c.l.b16 %v491
      %v1732 = vunpack.c.h.b16 %v491
      %v1733 = vunpack.c.l.b16 %v492
      %v1734 = vunpack.c.h.b16 %v492
      %v1735 = vunpack.c.l.b16 %v493
      %v1736 = vunpack.c.h.b16 %v493
      %v1737 = vunpack.c.l.b16 %v494
      %v1738 = vunpack.c.h.b16 %v494
      %v1739 = vunpack.c.l.b16 %v495
      %v1740 = vunpack.c.h.b16 %v495
      %v1741 = vunpack.c.l.b16 %v496
      %v1742 = vunpack.c.h.b16 %v496
      %v1743 = vunpack.c.l.b16 %v497
      %v1744 = vunpack.c.h.b16 %v497
      %v1745 = vunpack.c.l.b16 %v498
      %v1746 = vunpack.c.h.b16 %v498
      %v1747 = vunpack.c.l.b16 %v499
      %v1748 = vunpack.c.h.b16 %v499
      %v1749 = vunpack.c.l.b16 %v500
      %v1750 = vunpack.c.h.b16 %v500
      %v1751 = vunpack.c.l.b16 %v501
      %v1752 = vunpack.c.h.b16 %v501
      %v1753 = vunpack.c.l.b16 %v502
      %v1754 = vunpack.c.h.b16 %v502
      %v1755 = vunpack.c.l.b16 %v503
      %v1756 = vunpack.c.h.b16 %v503
      %v1757 = vunpack.c.l.b16 %v504
      %v1758 = vunpack.c.h.b16 %v504
      %v1759 = vunpack.c.l.b16 %v505
      %v1760 = vunpack.c.h.b16 %v505
      %v1761 = vunpack.c.l.b16 %v506
      %v1762 = vunpack.c.h.b16 %v506
      %v1763 = vunpack.c.l.b16 %v507
      %v1764 = vunpack.c.h.b16 %v507
      %v1765 = vunpack.c.l.b16 %v508
      %v1766 = vunpack.c.h.b16 %v508
      %v1767 = vunpack.c.l.b16 %v509
      %v1768 = vunpack.c.h.b16 %v509
      %v1769 = vunpack.c.l.b16 %v510
      %v1770 = vunpack.c.h.b16 %v510
      %v1771 = vunpack.c.l.b16 %v511
      %v1772 = vunpack.c.h.b16 %v511
      %v1773 = vunpack.c.l.b16 %v512
      %v1774 = vunpack.c.h.b16 %v512
      %v1775 = vunpack.c.l.b16 %v513
      %v1776 = vunpack.c.h.b16 %v513
      %v1777 = vunpack.c.l.b16 %v514
      %v1778 = vunpack.c.h.b16 %v514
      %v1779 = vunpack.c.l.b16 %v515
      %v1780 = vunpack.c.h.b16 %v515
      %v1781 = vunpack.c.l.b16 %v516
      %v1782 = vunpack.c.h.b16 %v516
      %v1783 = vunpack.c.l.b16 %v517
      %v1784 = vunpack.c.h.b16 %v517
      %v1785 = vunpack.c.l.b16 %v518
      %v1786 = vunpack.c.h.b16 %v518
      %v1787 = vunpack.c.l.b16 %v519
      %v1788 = vunpack.c.h.b16 %v519
      %v1789 = vunpack.c.l.b16 %v520
      %v1790 = vunpack.c.h.b16 %v520
      %v1791 = vunpack.c.l.b16 %v521
      %v1792 = vunpack.c.h.b16 %v521
      %v1793 = vunpack.c.l.b16 %v522
      %v1794 = vunpack.c.h.b16 %v522
      %v1795 = vunpack.c.l.b16 %v523
      %v1796 = vunpack.c.h.b16 %v523
      %v1797 = vunpack.c.l.b16 %v524
      %v1798 = vunpack.c.h.b16 %v524
      %v1799 = vunpack.c.l.b16 %v525
      %v1800 = vunpack.c.h.b16 %v525
      %v1801 = vunpack.c.l.b16 %v526
      %v1802 = vunpack.c.h.b16 %v526
      %v1803 = vunpack.c.l.b16 %v527
      %v1804 = vunpack.c.h.b16 %v527
      %v1805 = vunpack.c.l.b16 %v528
      %v1806 = vunpack.c.h.b16 %v528
      %v1807 = vunpack.c.l.b16 %v529
      %v1808 = vunpack.c.h.b16 %v529
      %v1809 = vunpack.c.l.b16 %v530
      %v1810 = vunpack.c.h.b16 %v530
      %v1811 = vunpack.c.l.b16 %v531
      %v1812 = vunpack.c.h.b16 %v531
      %v1813 = vunpack.c.l.b16 %v532
      %v1814 = vunpack.c.h.b16 %v532
      %v1815 = vunpack.c.l.b16 %v533
      %v1816 = vunpack.c.h.b16 %v533
      %v1817 = vunpack.c.l.b16 %v534
      %v1818 = vunpack.c.h.b16 %v534
      %v1819 = vunpack.c.l.b16 %v535
      %v1820 = vunpack.c.h.b16 %v535
      %v1821 = vunpack.c.l.b16 %v536
      %v1822 = vunpack.c.h.b16 %v536
      %v1823 = vunpack.c.l.b16 %v537
      %v1824 = vunpack.c.h.b16 %v537
      %v1825 = vunpack.c.l.b16 %v538
      %v1826 = vunpack.c.h.b16 %v538
      %v1827 = vunpack.c.l.b16 %v539
      %v1828 = vunpack.c.h.b16 %v539
      %v1829 = vunpack.c.l.b16 %v540
      %v1830 = vunpack.c.h.b16 %v540
      %v1831 = vunpack.c.l.b16 %v541
      %v1832 = vunpack.c.h.b16 %v541
      %v1833 = vunpack.c.l.b16 %v542
      %v1834 = vunpack.c.h.b16 %v542
      %v1835 = vunpack.c.l.b16 %v543
      %v1836 = vunpack.c.h.b16 %v543
      %v1837 = vunpack.c.l.b16 %v544
      %v1838 = vunpack.c.h.b16 %v544
      %v1839 = vunpack.c.l.b16 %v545
      %v1840 = vunpack.c.h.b16 %v545
      %v1841 = vunpack.c.l.b16 %v546
      %v1842 = vunpack.c.h.b16 %v546
      %v1843 = vpack.c.b16 %v1413, %v1411
      %v1844 = vpack.c.b16 %v1414, %v1412
      %v1845 = vpack.c.b16 %v1417, %v1415
      %v1846 = vpack.c.b16 %v1418, %v1416
      %v1847 = vpack.c.b16 %v1421, %v1419
      %v1848 = vpack.c.b16 %v1422, %v1420
      %v1849 = vpack.c.b16 %v1425, %v1423
      %v1850 = vpack.c.b16 %v1426, %v1424
      %v1851 = vpack.c.b16 %v1429, %v1427
      %v1852 = vpack.c.b16 %v1430, %v1428
      %v1853 = vpack.c.b16 %v1433, %v1431
      %v1854 = vpack.c.b16 %v1434, %v1432
      %v1855 = vpack.c.b16 %v1437, %v1435
      %v1856 = vpack.c.b16 %v1438, %v1436
      %v1857 = vpack.c.b16 %v1441, %v1439
      %v1858 = vpack.c.b16 %v1442, %v1440
      %v1859 = vpack.c.b16 %v1445, %v1443
      %v1860 = vpack.c.b16 %v1446, %v1444
      %v1861 = vpack.c.b16 %v1449, %v1447
      %v1862 = vpack.c.b16 %v1450, %v1448
      %v1863 = vpack.c.b16 %v1453, %v1451
      %v1864 = vpack.c.b16 %v1454, %v1452
      %v1865 = vpack.c.b16 %v1457, %v1455
      %v1866 = vpack.c.b16 %v1458, %v1456
      %v1867 = vpack.c.b16 %v1461, %v1459
      %v1868 = vpack.c.b16 %v1462, %v1460
      %v1869 = vpack.c.b16 %v1465, %v1463
      %v1870 = vpack.c.b16 %v1466, %v1464
      %v1871 = vpack.c.b16 %v1469, %v1467
      %v1872 = vpack.c.b16 %v1470, %v1468
      %v1873 = vpack.c.b16 %v1473, %v1471
      %v1874 = vpack.c.b16 %v1474, %v1472
      %v1875 = vpack.c.b16 %v1477, %v1475
      %v1876 = vpack.c.b16 %v1478, %v1476
      %v1877 = vpack.c.b16 %v1481, %v1479
      %v1878 = vpack.c.b16 %v1482, %v1480
      %v1879 = vpack.c.b16 %v1485, %v1483
      %v1880 = vpack.c.b16 %v1486, %v1484
      %v1881 = vpack.c.b16 %v1489, %v1487
      %v1882 = vpack.c.b16 %v1490, %v1488
      %v1883 = vpack.c.b16 %v1493, %v1491
      %v1884 = vpack.c.b16 %v1494, %v1492
      %v1885 = vpack.c.b16 %v1497, %v1495
      %v1886 = vpack.c.b16 %v1498, %v1496
      %v1887 = vpack.c.b16 %v1501, %v1499
      %v1888 = vpack.c.b16 %v1502, %v1500
      %v1889 = vpack.c.b16 %v1505, %v1503
      %v1890 = vpack.c.b16 %v1506, %v1504
      %v1891 = vpack.c.b16 %v1509, %v1507
      %v1892 = vpack.c.b16 %v1510, %v1508
      %v1893 = vpack.c.b16 %v1513, %v1511
      %v1894 = vpack.c.b16 %v1514, %v1512
      %v1895 = vpack.c.b16 %v1517, %v1515
      %v1896 = vpack.c.b16 %v1518, %v1516
      %v1897 = vpack.c.b16 %v1521, %v1519
      %v1898 = vpack.c.b16 %v1522, %v1520
      %v1899 = vpack.c.b16 %v1525, %v1523
      %v1900 = vpack.c.b16 %v1526, %v1524
      %v1901 = vpack.c.b16 %v1529, %v1527
      %v1902 = vpack.c.b16 %v1530, %v1528
      %v1903 = vpack.c.b16 %v1533, %v1531
      %v1904 = vpack.c.b16 %v1534, %v1532
      %v1905 = vpack.c.b16 %v1537, %v1535
      %v1906 = vpack.c.b16 %v1538, %v1536
      %v1907 = vpack.c.b16 %v1541, %v1539
      %v1908 = vpack.c.b16 %v1542, %v1540
      %v1909 = vpack.c.b16 %v1545, %v1543
      %v1910 = vpack.c.b16 %v1546, %v1544
      %v1911 = vpack.c.b16 %v1549, %v1547
      %v1912 = vpack.c.b16 %v1550, %v1548
      %v1913 = vpack.c.b16 %v1553, %v1551
      %v1914 = vpack.c.b16 %v1554, %v1552
      %v1915 = vpack.c.b16 %v1557, %v1555
      %v1916 = vpack.c.b16 %v1558, %v1556
      %v1917 = vpack.c.b16 %v1561, %v1559
      %v1918 = vpack.c.b16 %v1562, %v1560
      %v1919 = vpack.c.b16 %v1565, %v1563
      %v1920 = vpack.c.b16 %v1566, %v1564
      %v1921 = vpack.c.b16 %v1569, %v1567
      %v1922 = vpack.c.b16 %v1570, %v1568
      %v1923 = vpack.c.b16 %v1573, %v1571
      %v1924 = vpack.c.b16 %v1574, %v1572
      %v1925 = vpack.c.b16 %v1577, %v1575
      %v1926 = vpack.c.b16 %v1578, %v1576
      %v1927 = vpack.c.b16 %v1581, %v1579
      %v1928 = vpack.c.b16 %v1582, %v1580
      %v1929 = vpack.c.b16 %v1585, %v1583
      %v1930 = vpack.c.b16 %v1586, %v1584
      %v1931 = vpack.c.b16 %v1589, %v1587
      %v1932 = vpack.c.b16 %v1590, %v1588
      %v1933 = vpack.c.b16 %v1593, %v1591
      %v1934 = vpack.c.b16 %v1594, %v1592
      %v1935 = vpack.c.b16 %v1597, %v1595
      %v1936 = vpack.c.b16 %v1598, %v1596
      %v1937 = vpack.c.b16 %v1601, %v1599
      %v1938 = vpack.c.b16 %v1602, %v1600
      %v1939 = vpack.c.b16 %v1605, %v1603
      %v1940 = vpack.c.b16 %v1606, %v1604
      %v1941 = vpack.c.b16 %v1609, %v1607
      %v1942 = vpack.c.b16 %v1610, %v1608
      %v1943 = vpack.c.b16 %v1613, %v1611
      %v1944 = vpack.c.b16 %v1614, %v1612
      %v1945 = vpack.c.b16 %v1617, %v1615
      %v1946 = vpack.c.b16 %v1618, %v1616
      %v1947 = vpack.c.b16 %v1621, %v1619
      %v1948 = vpack.c.b16 %v1622, %v1620
      %v1949 = vpack.c.b16 %v1625, %v1623
      %v1950 = vpack.c.b16 %v1626, %v1624
      %v1951 = vpack.c.b16 %v1629, %v1627
      %v1952 = vpack.c.b16 %v1630, %v1628
      %v1953 = vpack.c.b16 %v1633, %v1631
      %v1954 = vpack.c.b16 %v1634, %v1632
      %v1955 = vpack.c.b16 %v1637, %v1635
      %v1956 = vpack.c.b16 %v1638, %v1636
      %v1957 = vpack.c.b16 %v1641, %v1639
      %v1958 = vpack.c.b16 %v1642, %v1640
      %v1959 = vpack.c.b16 %v1645, %v1643
      %v1960 = vpack.c.b16 %v1646, %v1644
      %v1961 = vpack.c.b16 %v1649, %v1647
      %v1962 = vpack.c.b16 %v1650, %v1648
      %v1963 = vpack.c.b16 %v1653, %v1651
      %v1964 = vpack.c.b16 %v1654, %v1652
      %v1965 = vpack.c.b16 %v1657, %v1655
      %v1966 = vpack.c.b16 %v1658, %v1656
      %v1967 = vpack.c.b16 %v1661, %v1659
      %v1968 = vpack.c.b16 %v1662, %v1660
      %v1969 = vpack.c.b16 %v1665, %v1663
      %v1970 = vpack.c.b16 %v1666, %v1664
      %v1971 = vpack.c.b16 %v1669, %v1667
      %v1972 = vpack.c.b16 %v1670, %v1668
      %v1973 = vpack.c.b16 %v1673, %v1671
      %v1974 = vpack.c.b16 %v1674, %v1672
      %v1975 = vpack.c.b16 %v1677, %v1675
      %v1976 = vpack.c.b16 %v1678, %v1676
      %v1977 = vpack.c.b16 %v1681, %v1679
      %v1978 = vpack.c.b16 %v1682, %v1680
      %v1979 = vpack.c.b16 %v1685, %v1683
      %v1980 = vpack.c.b16 %v1686, %v1684
      %v1981 = vpack.c.b16 %v1689, %v1687
      %v1982 = vpack.c.b16 %v1690, %v1688
      %v1983 = vpack.c.b16 %v1693, %v1691
      %v1984 = vpack.c.b16 %v1694, %v1692
      %v1985 = vpack.c.b16 %v1697, %v1695
      %v1986 = vpack.c.b16 %v1698, %v1696
      %v1987 = vpack.c.b16 %v1701, %v1699
      %v1988 = vpack.c.b16 %v1702, %v1700
      %v1989 = vpack.c.b16 %v1705, %v1703
      %v1990 = vpack.c.b16 %v1706, %v1704
      %v1991 = vpack.c.b16 %v1709, %v1707
      %v1992 = vpack.c.b16 %v1710, %v1708
      %v1993 = vpack.c.b16 %v1713, %v1711
      %v1994 = vpack.c.b16 %v1714, %v1712
      %v1995 = vpack.c.b16 %v1717, %v1715
      %v1996 = vpack.c.b16 %v1718, %v1716
      %v1997 = vpack.c.b16 %v1721, %v1719
      %v1998 = vpack.c.b16 %v1722, %v1720
      %v1999 = vpack.c.b16 %v1725, %v1723
      %v2000 = vpack.c.b16 %v1726, %v1724
      %v2001 = vpack.c.b16 %v1729, %v1727
      %v2002 = vpack.c.b16 %v1730, %v1728
      %v2003 = vpack.c.b16 %v1733, %v1731
      %v2004 = vpack.c.b16 %v1734, %v1732
      %v2005 = vpack.c.b16 %v1737, %v1735
      %v2006 = vpack.c.b16 %v1738, %v1736
      %v2007 = vpack.c.b16 %v1741, %v1739
      %v2008 = vpack.c.b16 %v1742, %v1740
      %v2009 = vpack.c.b16 %v1745, %v1743
      %v2010 = vpack.c.b16 %v1746, %v1744
      %v2011 = vpack.c.b16 %v1749, %v1747
      %v2012 = vpack.c.b16 %v1750, %v1748
      %v2013 = vpack.c.b16 %v1753, %v1751
      %v2014 = vpack.c.b16 %v1754, %v1752
      %v2015 = vpack.c.b16 %v1757, %v1755
      %v2016 = vpack.c.b16 %v1758, %v1756
      %v2017 = vpack.c.b16 %v1761, %v1759
      %v2018 = vpack.c.b16 %v1762, %v1760
      %v2019 = vpack.c.b16 %v1765, %v1763
      %v2020 = vpack.c.b16 %v1766, %v1764
      %v2021 = vpack.c.b16 %v1769, %v1767
      %v2022 = vpack.c.b16 %v1770, %v1768
      %v2023 = vpack.c.b16 %v1773, %v1771
      %v2024 = vpack.c.b16 %v1774, %v1772
      %v2025 = vpack.c.b16 %v1777, %v1775
      %v2026 = vpack.c.b16 %v1778, %v1776
      %v2027 = vpack.c.b16 %v1781, %v1779
      %v2028 = vpack.c.b16 %v1782, %v1780
      %v2029 = vpack.c.b16 %v1785, %v1783
      %v2030 = vpack.c.b16 %v1786, %v1784
      %v2031 = vpack.c.b16 %v1789, %v1787
      %v2032 = vpack.c.b16 %v1790, %v1788
      %v2033 = vpack.c.b16 %v1793, %v1791
      %v2034 = vpack.c.b16 %v1794, %v1792
      %v2035 = vpack.c.b16 %v1797, %v1795
      %v2036 = vpack.c.b16 %v1798, %v1796
      %v2037 = vpack.c.b16 %v1801, %v1799
      %v2038 = vpack.c.b16 %v1802, %v1800
      %v2039 = vpack.c.b16 %v1805, %v1803
      %v2040 = vpack.c.b16 %v1806, %v1804
      %v2041 = vpack.c.b16 %v1809, %v1807
      %v2042 = vpack.c.b16 %v1810, %v1808
      %v2043 = vpack.c.b16 %v1813, %v1811
      %v2044 = vpack.c.b16 %v1814, %v1812
      %v2045 = vpack.c.b16 %v1817, %v1815
      %v2046 = vpack.c.b16 %v1818, %v1816
      %v2047 = vpack.c.b16 %v1821, %v1819
      %v2048 = vpack.c.b16 %v1822, %v1820
      %v2049 = vpack.c.b16 %v1825, %v1823
      %v2050 = vpack.c.b16 %v1826, %v1824
      %v2051 = vpack.c.b16 %v1829, %v1827
      %v2052 = vpack.c.b16 %v1830, %v1828
      %v2053 = vpack.c.b16 %v1833, %v1831
      %v2054 = vpack.c.b16 %v1834, %v1832
      %v2055 = vpack.c.b16 %v1837, %v1835
      %v2056 = vpack.c.b16 %v1838, %v1836
      %v2057 = vpack.c.b16 %v1841, %v1839
      %v2058 = vpack.c.b16 %v1842, %v1840
      %vm2275 = vcmask 523264
      %v2277 = vsel %vm2275, %v992, 0
      %v2280 = vsel %vm2275, %v1006, 0
      %v2283 = vsel %vm2275, %v1020, 0
      %v2286 = vsel %vm2275, %v1034, 0
      %v2289 = vsel %vm2275, %v1048, 0
      %v2292 = vsel %vm2275, %v1062, 0
      %v2295 = vsel %vm2275, %v1076, 0
      %v2298 = vsel %vm2275, %v1090, 0
      %2300 = vmatprep.subr.bf16.mxu0 %v1858
      %2301 = vmatpush1.bf16.msra.mxu0 %v1857
      %2302 = vmatprep.subr.bf16.mxu0 %v1856
      %2303 = vmatpush1.bf16.msra.mxu0 %v1855
      %2304 = vmatprep.subr.bf16.mxu0 %v1854
      %2305 = vmatpush1.bf16.msra.mxu0 %v1853
      %2306 = vmatprep.subr.bf16.mxu0 %v1852
      %2307 = vmatpush1.bf16.msra.mxu0 %v1851
      %2308 = vmatprep.subr.bf16.mxu0 %v1850
      %2309 = vmatpush1.bf16.msra.mxu0 %v1849
      %2310 = vmatprep.subr.bf16.mxu0 %v1848
      %2311 = vmatpush1.bf16.msra.mxu0 %v1847
      %2312 = vmatprep.subr.bf16.mxu0 %v1846
      %2313 = vmatpush1.bf16.msra.mxu0 %v1845
      %2314 = vmatprep.subr.bf16.mxu0 %v1844
      %2315 = vmatpush1.bf16.msra.mxu0 %v1843
      %2316 = vmatprep.subr.bf16.mxu0 %v1874
      %2317 = vmatpush2.bf16.msra.mxu0 %v1873
      %2318 = vmatprep.subr.bf16.mxu0 %v1872
      %2319 = vmatpush2.bf16.msra.mxu0 %v1871
      %2320 = vmatprep.subr.bf16.mxu0 %v1870
      %2321 = vmatpush2.bf16.msra.mxu0 %v1869
      %2322 = vmatprep.subr.bf16.mxu0 %v1868
      %2323 = vmatpush2.bf16.msra.mxu0 %v1867
      %2324 = vmatprep.subr.bf16.mxu0 %v1866
      %2325 = vmatpush2.bf16.msra.mxu0 %v1865
      %2326 = vmatprep.subr.bf16.mxu0 %v1864
      %2327 = vmatpush2.bf16.msra.mxu0 %v1863
      %2328 = vmatprep.subr.bf16.mxu0 %v1862
      %2329 = vmatpush2.bf16.msra.mxu0 %v1861
      %2330 = vmatprep.subr.bf16.mxu0 %v1860
      %2331 = vmatpush2.bf16.msra.mxu0 %v1859
      %2332 = vmatprep.mubr.bf16.mxu0 %v980
      %2333 = vmatmul.mubr.bf16.gmra.mxu0 %v979
      %v2334 = vpop.f32.mrf.mxu0
      %v2335 = vadd.f32 %v566, %v2334
      %v2336 = vpop.f32.mrf.mxu0
      %v2337 = vadd.f32 %v566, %v2336
      %v2338 = vpop.f32.mrf.mxu0
      %v2339 = vadd.f32 %v571, %v2338
      %v2340 = vpop.f32.mrf.mxu0
      %v2341 = vadd.f32 %v571, %v2340
      %2342 = vmatprep.mubr.bf16.mxu0 %v994
      %2343 = vmatmul.mubr.bf16.gmra.mxu0 %v993
      %v2344 = vpop.f32.mrf.mxu0
      %v2345 = vadd.f32 %v576, %v2344
      %v2346 = vpop.f32.mrf.mxu0
      %v2347 = vadd.f32 %v576, %v2346
      %v2348 = vpop.f32.mrf.mxu0
      %v2349 = vadd.f32 %v581, %v2348
      %v2350 = vpop.f32.mrf.mxu0
      %v2351 = vadd.f32 %v581, %v2350
      %2352 = vmatprep.mubr.bf16.mxu0 %v1008
      %2353 = vmatmul.mubr.bf16.gmra.mxu0 %v1007
      %v2354 = vpop.f32.mrf.mxu0
      %v2355 = vadd.f32 %v586, %v2354
      %v2356 = vpop.f32.mrf.mxu0
      %v2357 = vadd.f32 %v586, %v2356
      %v2358 = vpop.f32.mrf.mxu0
      %v2359 = vadd.f32 %v591, %v2358
      %v2360 = vpop.f32.mrf.mxu0
      %v2361 = vadd.f32 %v591, %v2360
      %2362 = vmatprep.mubr.bf16.mxu0 %v1022
      %2363 = vmatmul.mubr.bf16.gmra.mxu0 %v1021
      %v2364 = vpop.f32.mrf.mxu0
      %v2365 = vadd.f32 %v596, %v2364
      %v2366 = vpop.f32.mrf.mxu0
      %v2367 = vadd.f32 %v596, %v2366
      %v2368 = vpop.f32.mrf.mxu0
      %v2369 = vadd.f32 %v601, %v2368
      %v2370 = vpop.f32.mrf.mxu0
      %v2371 = vadd.f32 %v601, %v2370
      %2372 = vmatprep.mubr.bf16.mxu0 %v1036
      %2373 = vmatmul.mubr.bf16.gmra.mxu0 %v1035
      %v2374 = vpop.f32.mrf.mxu0
      %v2375 = vadd.f32 %v606, %v2374
      %v2376 = vpop.f32.mrf.mxu0
      %v2377 = vadd.f32 %v606, %v2376
      %v2378 = vpop.f32.mrf.mxu0
      %v2379 = vadd.f32 %v611, %v2378
      %v2380 = vpop.f32.mrf.mxu0
      %v2381 = vadd.f32 %v611, %v2380
      %2382 = vmatprep.mubr.bf16.mxu0 %v1050
      %2383 = vmatmul.mubr.bf16.gmra.mxu0 %v1049
      %v2384 = vpop.f32.mrf.mxu0
      %v2385 = vadd.f32 %v616, %v2384
      %v2386 = vpop.f32.mrf.mxu0
      %v2387 = vadd.f32 %v616, %v2386
      %v2388 = vpop.f32.mrf.mxu0
      %v2389 = vadd.f32 %v621, %v2388
      %v2390 = vpop.f32.mrf.mxu0
      %v2391 = vadd.f32 %v621, %v2390
      %2392 = vmatprep.mubr.bf16.mxu0 %v1064
      %2393 = vmatmul.mubr.bf16.gmra.mxu0 %v1063
      %v2394 = vpop.f32.mrf.mxu0
      %v2395 = vadd.f32 %v626, %v2394
      %v2396 = vpop.f32.mrf.mxu0
      %v2397 = vadd.f32 %v626, %v2396
      %v2398 = vpop.f32.mrf.mxu0
      %v2399 = vadd.f32 %v631, %v2398
      %v2400 = vpop.f32.mrf.mxu0
      %v2401 = vadd.f32 %v631, %v2400
      %2402 = vmatprep.mubr.bf16.mxu0 %v1078
      %2403 = vmatmul.mubr.bf16.gmra.mxu0 %v1077
      %v2404 = vpop.f32.mrf.mxu0
      %v2405 = vadd.f32 %v636, %v2404
      %v2406 = vpop.f32.mrf.mxu0
      %v2407 = vadd.f32 %v636, %v2406
      %v2408 = vpop.f32.mrf.mxu0
      %v2409 = vadd.f32 %v641, %v2408
      %v2410 = vpop.f32.mrf.mxu0
      %v2411 = vadd.f32 %v641, %v2410
      %2412 = vdwg.mxu0
      %2413 = vmatprep.subr.bf16.mxu0 %v1890
      %2414 = vmatpush1.bf16.msra.mxu0 %v1889
      %2415 = vmatprep.subr.bf16.mxu0 %v1888
      %2416 = vmatpush1.bf16.msra.mxu0 %v1887
      %2417 = vmatprep.subr.bf16.mxu0 %v1886
      %2418 = vmatpush1.bf16.msra.mxu0 %v1885
      %2419 = vmatprep.subr.bf16.mxu0 %v1884
      %2420 = vmatpush1.bf16.msra.mxu0 %v1883
      %2421 = vmatprep.subr.bf16.mxu0 %v1882
      %2422 = vmatpush1.bf16.msra.mxu0 %v1881
      %2423 = vmatprep.subr.bf16.mxu0 %v1880
      %2424 = vmatpush1.bf16.msra.mxu0 %v1879
      %2425 = vmatprep.subr.bf16.mxu0 %v1878
      %2426 = vmatpush1.bf16.msra.mxu0 %v1877
      %2427 = vmatprep.subr.bf16.mxu0 %v1876
      %2428 = vmatpush1.bf16.msra.mxu0 %v1875
      %2429 = vmatprep.subr.bf16.mxu0 %v1906
      %2430 = vmatpush2.bf16.msra.mxu0 %v1905
      %2431 = vmatprep.subr.bf16.mxu0 %v1904
      %2432 = vmatpush2.bf16.msra.mxu0 %v1903
      %2433 = vmatprep.subr.bf16.mxu0 %v1902
      %2434 = vmatpush2.bf16.msra.mxu0 %v1901
      %2435 = vmatprep.subr.bf16.mxu0 %v1900
      %2436 = vmatpush2.bf16.msra.mxu0 %v1899
      %2437 = vmatprep.subr.bf16.mxu0 %v1898
      %2438 = vmatpush2.bf16.msra.mxu0 %v1897
      %2439 = vmatprep.subr.bf16.mxu0 %v1896
      %2440 = vmatpush2.bf16.msra.mxu0 %v1895
      %2441 = vmatprep.subr.bf16.mxu0 %v1894
      %2442 = vmatpush2.bf16.msra.mxu0 %v1893
      %2443 = vmatprep.subr.bf16.mxu0 %v1892
      %2444 = vmatpush2.bf16.msra.mxu0 %v1891
      %2445 = vmatprep.mubr.bf16.mxu0 %v982
      %2446 = vmatmul.mubr.bf16.gmra.mxu0 %v981
      %v2447 = vpop.f32.mrf.mxu0
      %v2448 = vadd.f32 %v2335, %v2447
      %v2449 = vpop.f32.mrf.mxu0
      %v2450 = vadd.f32 %v2337, %v2449
      %v2451 = vpop.f32.mrf.mxu0
      %v2452 = vadd.f32 %v2339, %v2451
      %v2453 = vpop.f32.mrf.mxu0
      %v2454 = vadd.f32 %v2341, %v2453
      %2455 = vmatprep.mubr.bf16.mxu0 %v996
      %2456 = vmatmul.mubr.bf16.gmra.mxu0 %v995
      %v2457 = vpop.f32.mrf.mxu0
      %v2458 = vadd.f32 %v2345, %v2457
      %v2459 = vpop.f32.mrf.mxu0
      %v2460 = vadd.f32 %v2347, %v2459
      %v2461 = vpop.f32.mrf.mxu0
      %v2462 = vadd.f32 %v2349, %v2461
      %v2463 = vpop.f32.mrf.mxu0
      %v2464 = vadd.f32 %v2351, %v2463
      %2465 = vmatprep.mubr.bf16.mxu0 %v1010
      %2466 = vmatmul.mubr.bf16.gmra.mxu0 %v1009
      %v2467 = vpop.f32.mrf.mxu0
      %v2468 = vadd.f32 %v2355, %v2467
      %v2469 = vpop.f32.mrf.mxu0
      %v2470 = vadd.f32 %v2357, %v2469
      %v2471 = vpop.f32.mrf.mxu0
      %v2472 = vadd.f32 %v2359, %v2471
      %v2473 = vpop.f32.mrf.mxu0
      %v2474 = vadd.f32 %v2361, %v2473
      %2475 = vmatprep.mubr.bf16.mxu0 %v1024
      %2476 = vmatmul.mubr.bf16.gmra.mxu0 %v1023
      %v2477 = vpop.f32.mrf.mxu0
      %v2478 = vadd.f32 %v2365, %v2477
      %v2479 = vpop.f32.mrf.mxu0
      %v2480 = vadd.f32 %v2367, %v2479
      %v2481 = vpop.f32.mrf.mxu0
      %v2482 = vadd.f32 %v2369, %v2481
      %v2483 = vpop.f32.mrf.mxu0
      %v2484 = vadd.f32 %v2371, %v2483
      %2485 = vmatprep.mubr.bf16.mxu0 %v1038
      %2486 = vmatmul.mubr.bf16.gmra.mxu0 %v1037
      %v2487 = vpop.f32.mrf.mxu0
      %v2488 = vadd.f32 %v2375, %v2487
      %v2489 = vpop.f32.mrf.mxu0
      %v2490 = vadd.f32 %v2377, %v2489
      %v2491 = vpop.f32.mrf.mxu0
      %v2492 = vadd.f32 %v2379, %v2491
      %v2493 = vpop.f32.mrf.mxu0
      %v2494 = vadd.f32 %v2381, %v2493
      %2495 = vmatprep.mubr.bf16.mxu0 %v1052
      %2496 = vmatmul.mubr.bf16.gmra.mxu0 %v1051
      %v2497 = vpop.f32.mrf.mxu0
      %v2498 = vadd.f32 %v2385, %v2497
      %v2499 = vpop.f32.mrf.mxu0
      %v2500 = vadd.f32 %v2387, %v2499
      %v2501 = vpop.f32.mrf.mxu0
      %v2502 = vadd.f32 %v2389, %v2501
      %v2503 = vpop.f32.mrf.mxu0
      %v2504 = vadd.f32 %v2391, %v2503
      %2505 = vmatprep.mubr.bf16.mxu0 %v1066
      %2506 = vmatmul.mubr.bf16.gmra.mxu0 %v1065
      %v2507 = vpop.f32.mrf.mxu0
      %v2508 = vadd.f32 %v2395, %v2507
      %v2509 = vpop.f32.mrf.mxu0
      %v2510 = vadd.f32 %v2397, %v2509
      %v2511 = vpop.f32.mrf.mxu0
      %v2512 = vadd.f32 %v2399, %v2511
      %v2513 = vpop.f32.mrf.mxu0
      %v2514 = vadd.f32 %v2401, %v2513
      %2515 = vmatprep.mubr.bf16.mxu0 %v1080
      %2516 = vmatmul.mubr.bf16.gmra.mxu0 %v1079
      %v2517 = vpop.f32.mrf.mxu0
      %v2518 = vadd.f32 %v2405, %v2517
      %v2519 = vpop.f32.mrf.mxu0
      %v2520 = vadd.f32 %v2407, %v2519
      %v2521 = vpop.f32.mrf.mxu0
      %v2522 = vadd.f32 %v2409, %v2521
      %v2523 = vpop.f32.mrf.mxu0
      %v2524 = vadd.f32 %v2411, %v2523
      %2525 = vdwg.mxu0
      %2526 = vmatprep.subr.bf16.mxu0 %v1922
      %2527 = vmatpush1.bf16.msra.mxu0 %v1921
      %2528 = vmatprep.subr.bf16.mxu0 %v1920
      %2529 = vmatpush1.bf16.msra.mxu0 %v1919
      %2530 = vmatprep.subr.bf16.mxu0 %v1918
      %2531 = vmatpush1.bf16.msra.mxu0 %v1917
      %2532 = vmatprep.subr.bf16.mxu0 %v1916
      %2533 = vmatpush1.bf16.msra.mxu0 %v1915
      %2534 = vmatprep.subr.bf16.mxu0 %v1914
      %2535 = vmatpush1.bf16.msra.mxu0 %v1913
      %2536 = vmatprep.subr.bf16.mxu0 %v1912
      %2537 = vmatpush1.bf16.msra.mxu0 %v1911
      %2538 = vmatprep.subr.bf16.mxu0 %v1910
      %2539 = vmatpush1.bf16.msra.mxu0 %v1909
      %2540 = vmatprep.subr.bf16.mxu0 %v1908
      %2541 = vmatpush1.bf16.msra.mxu0 %v1907
      %2542 = vmatprep.subr.bf16.mxu0 %v1938
      %2543 = vmatpush2.bf16.msra.mxu0 %v1937
      %2544 = vmatprep.subr.bf16.mxu0 %v1936
      %2545 = vmatpush2.bf16.msra.mxu0 %v1935
      %2546 = vmatprep.subr.bf16.mxu0 %v1934
      %2547 = vmatpush2.bf16.msra.mxu0 %v1933
      %2548 = vmatprep.subr.bf16.mxu0 %v1932
      %2549 = vmatpush2.bf16.msra.mxu0 %v1931
      %2550 = vmatprep.subr.bf16.mxu0 %v1930
      %2551 = vmatpush2.bf16.msra.mxu0 %v1929
      %2552 = vmatprep.subr.bf16.mxu0 %v1928
      %2553 = vmatpush2.bf16.msra.mxu0 %v1927
      %2554 = vmatprep.subr.bf16.mxu0 %v1926
      %2555 = vmatpush2.bf16.msra.mxu0 %v1925
      %2556 = vmatprep.subr.bf16.mxu0 %v1924
      %2557 = vmatpush2.bf16.msra.mxu0 %v1923
      %2558 = vmatprep.mubr.bf16.mxu0 %v984
      %2559 = vmatmul.mubr.bf16.gmra.mxu0 %v983
      %v2560 = vpop.f32.mrf.mxu0
      %v2561 = vadd.f32 %v2448, %v2560
      %v2562 = vpop.f32.mrf.mxu0
      %v2563 = vadd.f32 %v2450, %v2562
      %v2564 = vpop.f32.mrf.mxu0
      %v2565 = vadd.f32 %v2452, %v2564
      %v2566 = vpop.f32.mrf.mxu0
      %v2567 = vadd.f32 %v2454, %v2566
      %2568 = vmatprep.mubr.bf16.mxu0 %v998
      %2569 = vmatmul.mubr.bf16.gmra.mxu0 %v997
      %v2570 = vpop.f32.mrf.mxu0
      %v2571 = vadd.f32 %v2458, %v2570
      %v2572 = vpop.f32.mrf.mxu0
      %v2573 = vadd.f32 %v2460, %v2572
      %v2574 = vpop.f32.mrf.mxu0
      %v2575 = vadd.f32 %v2462, %v2574
      %v2576 = vpop.f32.mrf.mxu0
      %v2577 = vadd.f32 %v2464, %v2576
      %2578 = vmatprep.mubr.bf16.mxu0 %v1012
      %2579 = vmatmul.mubr.bf16.gmra.mxu0 %v1011
      %v2580 = vpop.f32.mrf.mxu0
      %v2581 = vadd.f32 %v2468, %v2580
      %v2582 = vpop.f32.mrf.mxu0
      %v2583 = vadd.f32 %v2470, %v2582
      %v2584 = vpop.f32.mrf.mxu0
      %v2585 = vadd.f32 %v2472, %v2584
      %v2586 = vpop.f32.mrf.mxu0
      %v2587 = vadd.f32 %v2474, %v2586
      %2588 = vmatprep.mubr.bf16.mxu0 %v1026
      %2589 = vmatmul.mubr.bf16.gmra.mxu0 %v1025
      %v2590 = vpop.f32.mrf.mxu0
      %v2591 = vadd.f32 %v2478, %v2590
      %v2592 = vpop.f32.mrf.mxu0
      %v2593 = vadd.f32 %v2480, %v2592
      %v2594 = vpop.f32.mrf.mxu0
      %v2595 = vadd.f32 %v2482, %v2594
      %v2596 = vpop.f32.mrf.mxu0
      %v2597 = vadd.f32 %v2484, %v2596
      %2598 = vmatprep.mubr.bf16.mxu0 %v1040
      %2599 = vmatmul.mubr.bf16.gmra.mxu0 %v1039
      %v2600 = vpop.f32.mrf.mxu0
      %v2601 = vadd.f32 %v2488, %v2600
      %v2602 = vpop.f32.mrf.mxu0
      %v2603 = vadd.f32 %v2490, %v2602
      %v2604 = vpop.f32.mrf.mxu0
      %v2605 = vadd.f32 %v2492, %v2604
      %v2606 = vpop.f32.mrf.mxu0
      %v2607 = vadd.f32 %v2494, %v2606
      %2608 = vmatprep.mubr.bf16.mxu0 %v1054
      %2609 = vmatmul.mubr.bf16.gmra.mxu0 %v1053
      %v2610 = vpop.f32.mrf.mxu0
      %v2611 = vadd.f32 %v2498, %v2610
      %v2612 = vpop.f32.mrf.mxu0
      %v2613 = vadd.f32 %v2500, %v2612
      %v2614 = vpop.f32.mrf.mxu0
      %v2615 = vadd.f32 %v2502, %v2614
      %v2616 = vpop.f32.mrf.mxu0
      %v2617 = vadd.f32 %v2504, %v2616
      %2618 = vmatprep.mubr.bf16.mxu0 %v1068
      %2619 = vmatmul.mubr.bf16.gmra.mxu0 %v1067
      %v2620 = vpop.f32.mrf.mxu0
      %v2621 = vadd.f32 %v2508, %v2620
      %v2622 = vpop.f32.mrf.mxu0
      %v2623 = vadd.f32 %v2510, %v2622
      %v2624 = vpop.f32.mrf.mxu0
      %v2625 = vadd.f32 %v2512, %v2624
      %v2626 = vpop.f32.mrf.mxu0
      %v2627 = vadd.f32 %v2514, %v2626
      %2628 = vmatprep.mubr.bf16.mxu0 %v1082
      %2629 = vmatmul.mubr.bf16.gmra.mxu0 %v1081
      %v2630 = vpop.f32.mrf.mxu0
      %v2631 = vadd.f32 %v2518, %v2630
      %v2632 = vpop.f32.mrf.mxu0
      %v2633 = vadd.f32 %v2520, %v2632
      %v2634 = vpop.f32.mrf.mxu0
      %v2635 = vadd.f32 %v2522, %v2634
      %v2636 = vpop.f32.mrf.mxu0
      %v2637 = vadd.f32 %v2524, %v2636
      %2638 = vdwg.mxu0
      %2639 = vmatprep.subr.bf16.mxu0 %v1954
      %2640 = vmatpush1.bf16.msra.mxu0 %v1953
      %2641 = vmatprep.subr.bf16.mxu0 %v1952
      %2642 = vmatpush1.bf16.msra.mxu0 %v1951
      %2643 = vmatprep.subr.bf16.mxu0 %v1950
      %2644 = vmatpush1.bf16.msra.mxu0 %v1949
      %2645 = vmatprep.subr.bf16.mxu0 %v1948
      %2646 = vmatpush1.bf16.msra.mxu0 %v1947
      %2647 = vmatprep.subr.bf16.mxu0 %v1946
      %2648 = vmatpush1.bf16.msra.mxu0 %v1945
      %2649 = vmatprep.subr.bf16.mxu0 %v1944
      %2650 = vmatpush1.bf16.msra.mxu0 %v1943
      %2651 = vmatprep.subr.bf16.mxu0 %v1942
      %2652 = vmatpush1.bf16.msra.mxu0 %v1941
      %2653 = vmatprep.subr.bf16.mxu0 %v1940
      %2654 = vmatpush1.bf16.msra.mxu0 %v1939
      %2655 = vmatprep.subr.bf16.mxu0 %v1970
      %2656 = vmatpush2.bf16.msra.mxu0 %v1969
      %2657 = vmatprep.subr.bf16.mxu0 %v1968
      %2658 = vmatpush2.bf16.msra.mxu0 %v1967
      %2659 = vmatprep.subr.bf16.mxu0 %v1966
      %2660 = vmatpush2.bf16.msra.mxu0 %v1965
      %2661 = vmatprep.subr.bf16.mxu0 %v1964
      %2662 = vmatpush2.bf16.msra.mxu0 %v1963
      %2663 = vmatprep.subr.bf16.mxu0 %v1962
      %2664 = vmatpush2.bf16.msra.mxu0 %v1961
      %2665 = vmatprep.subr.bf16.mxu0 %v1960
      %2666 = vmatpush2.bf16.msra.mxu0 %v1959
      %2667 = vmatprep.subr.bf16.mxu0 %v1958
      %2668 = vmatpush2.bf16.msra.mxu0 %v1957
      %2669 = vmatprep.subr.bf16.mxu0 %v1956
      %2670 = vmatpush2.bf16.msra.mxu0 %v1955
      %2671 = vmatprep.mubr.bf16.mxu0 %v986
      %2672 = vmatmul.mubr.bf16.gmra.mxu0 %v985
      %v2673 = vpop.f32.mrf.mxu0
      %v2674 = vadd.f32 %v2561, %v2673
      %v2675 = vpop.f32.mrf.mxu0
      %v2676 = vadd.f32 %v2563, %v2675
      %v2677 = vpop.f32.mrf.mxu0
      %v2678 = vadd.f32 %v2565, %v2677
      %v2679 = vpop.f32.mrf.mxu0
      %v2680 = vadd.f32 %v2567, %v2679
      %2681 = vmatprep.mubr.bf16.mxu0 %v1000
      %2682 = vmatmul.mubr.bf16.gmra.mxu0 %v999
      %v2683 = vpop.f32.mrf.mxu0
      %v2684 = vadd.f32 %v2571, %v2683
      %v2685 = vpop.f32.mrf.mxu0
      %v2686 = vadd.f32 %v2573, %v2685
      %v2687 = vpop.f32.mrf.mxu0
      %v2688 = vadd.f32 %v2575, %v2687
      %v2689 = vpop.f32.mrf.mxu0
      %v2690 = vadd.f32 %v2577, %v2689
      %2691 = vmatprep.mubr.bf16.mxu0 %v1014
      %2692 = vmatmul.mubr.bf16.gmra.mxu0 %v1013
      %v2693 = vpop.f32.mrf.mxu0
      %v2694 = vadd.f32 %v2581, %v2693
      %v2695 = vpop.f32.mrf.mxu0
      %v2696 = vadd.f32 %v2583, %v2695
      %v2697 = vpop.f32.mrf.mxu0
      %v2698 = vadd.f32 %v2585, %v2697
      %v2699 = vpop.f32.mrf.mxu0
      %v2700 = vadd.f32 %v2587, %v2699
      %2701 = vmatprep.mubr.bf16.mxu0 %v1028
      %2702 = vmatmul.mubr.bf16.gmra.mxu0 %v1027
      %v2703 = vpop.f32.mrf.mxu0
      %v2704 = vadd.f32 %v2591, %v2703
      %v2705 = vpop.f32.mrf.mxu0
      %v2706 = vadd.f32 %v2593, %v2705
      %v2707 = vpop.f32.mrf.mxu0
      %v2708 = vadd.f32 %v2595, %v2707
      %v2709 = vpop.f32.mrf.mxu0
      %v2710 = vadd.f32 %v2597, %v2709
      %2711 = vmatprep.mubr.bf16.mxu0 %v1042
      %2712 = vmatmul.mubr.bf16.gmra.mxu0 %v1041
      %v2713 = vpop.f32.mrf.mxu0
      %v2714 = vadd.f32 %v2601, %v2713
      %v2715 = vpop.f32.mrf.mxu0
      %v2716 = vadd.f32 %v2603, %v2715
      %v2717 = vpop.f32.mrf.mxu0
      %v2718 = vadd.f32 %v2605, %v2717
      %v2719 = vpop.f32.mrf.mxu0
      %v2720 = vadd.f32 %v2607, %v2719
      %2721 = vmatprep.mubr.bf16.mxu0 %v1056
      %2722 = vmatmul.mubr.bf16.gmra.mxu0 %v1055
      %v2723 = vpop.f32.mrf.mxu0
      %v2724 = vadd.f32 %v2611, %v2723
      %v2725 = vpop.f32.mrf.mxu0
      %v2726 = vadd.f32 %v2613, %v2725
      %v2727 = vpop.f32.mrf.mxu0
      %v2728 = vadd.f32 %v2615, %v2727
      %v2729 = vpop.f32.mrf.mxu0
      %v2730 = vadd.f32 %v2617, %v2729
      %2731 = vmatprep.mubr.bf16.mxu0 %v1070
      %2732 = vmatmul.mubr.bf16.gmra.mxu0 %v1069
      %v2733 = vpop.f32.mrf.mxu0
      %v2734 = vadd.f32 %v2621, %v2733
      %v2735 = vpop.f32.mrf.mxu0
      %v2736 = vadd.f32 %v2623, %v2735
      %v2737 = vpop.f32.mrf.mxu0
      %v2738 = vadd.f32 %v2625, %v2737
      %v2739 = vpop.f32.mrf.mxu0
      %v2740 = vadd.f32 %v2627, %v2739
      %2741 = vmatprep.mubr.bf16.mxu0 %v1084
      %2742 = vmatmul.mubr.bf16.gmra.mxu0 %v1083
      %v2743 = vpop.f32.mrf.mxu0
      %v2744 = vadd.f32 %v2631, %v2743
      %v2745 = vpop.f32.mrf.mxu0
      %v2746 = vadd.f32 %v2633, %v2745
      %v2747 = vpop.f32.mrf.mxu0
      %v2748 = vadd.f32 %v2635, %v2747
      %v2749 = vpop.f32.mrf.mxu0
      %v2750 = vadd.f32 %v2637, %v2749
      %2751 = vdwg.mxu0
      %2752 = vmatprep.subr.bf16.mxu0 %v1986
      %2753 = vmatpush1.bf16.msra.mxu0 %v1985
      %2754 = vmatprep.subr.bf16.mxu0 %v1984
      %2755 = vmatpush1.bf16.msra.mxu0 %v1983
      %2756 = vmatprep.subr.bf16.mxu0 %v1982
      %2757 = vmatpush1.bf16.msra.mxu0 %v1981
      %2758 = vmatprep.subr.bf16.mxu0 %v1980
      %2759 = vmatpush1.bf16.msra.mxu0 %v1979
      %2760 = vmatprep.subr.bf16.mxu0 %v1978
      %2761 = vmatpush1.bf16.msra.mxu0 %v1977
      %2762 = vmatprep.subr.bf16.mxu0 %v1976
      %2763 = vmatpush1.bf16.msra.mxu0 %v1975
      %2764 = vmatprep.subr.bf16.mxu0 %v1974
      %2765 = vmatpush1.bf16.msra.mxu0 %v1973
      %2766 = vmatprep.subr.bf16.mxu0 %v1972
      %2767 = vmatpush1.bf16.msra.mxu0 %v1971
      %2768 = vmatprep.subr.bf16.mxu0 %v2002
      %2769 = vmatpush2.bf16.msra.mxu0 %v2001
      %2770 = vmatprep.subr.bf16.mxu0 %v2000
      %2771 = vmatpush2.bf16.msra.mxu0 %v1999
      %2772 = vmatprep.subr.bf16.mxu0 %v1998
      %2773 = vmatpush2.bf16.msra.mxu0 %v1997
      %2774 = vmatprep.subr.bf16.mxu0 %v1996
      %2775 = vmatpush2.bf16.msra.mxu0 %v1995
      %2776 = vmatprep.subr.bf16.mxu0 %v1994
      %2777 = vmatpush2.bf16.msra.mxu0 %v1993
      %2778 = vmatprep.subr.bf16.mxu0 %v1992
      %2779 = vmatpush2.bf16.msra.mxu0 %v1991
      %2780 = vmatprep.subr.bf16.mxu0 %v1990
      %2781 = vmatpush2.bf16.msra.mxu0 %v1989
      %2782 = vmatprep.subr.bf16.mxu0 %v1988
      %2783 = vmatpush2.bf16.msra.mxu0 %v1987
      %2784 = vmatprep.mubr.bf16.mxu0 %v988
      %2785 = vmatmul.mubr.bf16.gmra.mxu0 %v987
      %v2786 = vpop.f32.mrf.mxu0
      %v2787 = vadd.f32 %v2674, %v2786
      %v2788 = vpop.f32.mrf.mxu0
      %v2789 = vadd.f32 %v2676, %v2788
      %v2790 = vpop.f32.mrf.mxu0
      %v2791 = vadd.f32 %v2678, %v2790
      %v2792 = vpop.f32.mrf.mxu0
      %v2793 = vadd.f32 %v2680, %v2792
      %2794 = vmatprep.mubr.bf16.mxu0 %v1002
      %2795 = vmatmul.mubr.bf16.gmra.mxu0 %v1001
      %v2796 = vpop.f32.mrf.mxu0
      %v2797 = vadd.f32 %v2684, %v2796
      %v2798 = vpop.f32.mrf.mxu0
      %v2799 = vadd.f32 %v2686, %v2798
      %v2800 = vpop.f32.mrf.mxu0
      %v2801 = vadd.f32 %v2688, %v2800
      %v2802 = vpop.f32.mrf.mxu0
      %v2803 = vadd.f32 %v2690, %v2802
      %2804 = vmatprep.mubr.bf16.mxu0 %v1016
      %2805 = vmatmul.mubr.bf16.gmra.mxu0 %v1015
      %v2806 = vpop.f32.mrf.mxu0
      %v2807 = vadd.f32 %v2694, %v2806
      %v2808 = vpop.f32.mrf.mxu0
      %v2809 = vadd.f32 %v2696, %v2808
      %v2810 = vpop.f32.mrf.mxu0
      %v2811 = vadd.f32 %v2698, %v2810
      %v2812 = vpop.f32.mrf.mxu0
      %v2813 = vadd.f32 %v2700, %v2812
      %2814 = vmatprep.mubr.bf16.mxu0 %v1030
      %2815 = vmatmul.mubr.bf16.gmra.mxu0 %v1029
      %v2816 = vpop.f32.mrf.mxu0
      %v2817 = vadd.f32 %v2704, %v2816
      %v2818 = vpop.f32.mrf.mxu0
      %v2819 = vadd.f32 %v2706, %v2818
      %v2820 = vpop.f32.mrf.mxu0
      %v2821 = vadd.f32 %v2708, %v2820
      %v2822 = vpop.f32.mrf.mxu0
      %v2823 = vadd.f32 %v2710, %v2822
      %2824 = vmatprep.mubr.bf16.mxu0 %v1044
      %2825 = vmatmul.mubr.bf16.gmra.mxu0 %v1043
      %v2826 = vpop.f32.mrf.mxu0
      %v2827 = vadd.f32 %v2714, %v2826
      %v2828 = vpop.f32.mrf.mxu0
      %v2829 = vadd.f32 %v2716, %v2828
      %v2830 = vpop.f32.mrf.mxu0
      %v2831 = vadd.f32 %v2718, %v2830
      %v2832 = vpop.f32.mrf.mxu0
      %v2833 = vadd.f32 %v2720, %v2832
      %2834 = vmatprep.mubr.bf16.mxu0 %v1058
      %2835 = vmatmul.mubr.bf16.gmra.mxu0 %v1057
      %v2836 = vpop.f32.mrf.mxu0
      %v2837 = vadd.f32 %v2724, %v2836
      %v2838 = vpop.f32.mrf.mxu0
      %v2839 = vadd.f32 %v2726, %v2838
      %v2840 = vpop.f32.mrf.mxu0
      %v2841 = vadd.f32 %v2728, %v2840
      %v2842 = vpop.f32.mrf.mxu0
      %v2843 = vadd.f32 %v2730, %v2842
      %2844 = vmatprep.mubr.bf16.mxu0 %v1072
      %2845 = vmatmul.mubr.bf16.gmra.mxu0 %v1071
      %v2846 = vpop.f32.mrf.mxu0
      %v2847 = vadd.f32 %v2734, %v2846
      %v2848 = vpop.f32.mrf.mxu0
      %v2849 = vadd.f32 %v2736, %v2848
      %v2850 = vpop.f32.mrf.mxu0
      %v2851 = vadd.f32 %v2738, %v2850
      %v2852 = vpop.f32.mrf.mxu0
      %v2853 = vadd.f32 %v2740, %v2852
      %2854 = vmatprep.mubr.bf16.mxu0 %v1086
      %2855 = vmatmul.mubr.bf16.gmra.mxu0 %v1085
      %v2856 = vpop.f32.mrf.mxu0
      %v2857 = vadd.f32 %v2744, %v2856
      %v2858 = vpop.f32.mrf.mxu0
      %v2859 = vadd.f32 %v2746, %v2858
      %v2860 = vpop.f32.mrf.mxu0
      %v2861 = vadd.f32 %v2748, %v2860
      %v2862 = vpop.f32.mrf.mxu0
      %v2863 = vadd.f32 %v2750, %v2862
      %2864 = vdwg.mxu0
      %2865 = vmatprep.subr.bf16.mxu0 %v2018
      %2866 = vmatpush1.bf16.msra.mxu0 %v2017
      %2867 = vmatprep.subr.bf16.mxu0 %v2016
      %2868 = vmatpush1.bf16.msra.mxu0 %v2015
      %2869 = vmatprep.subr.bf16.mxu0 %v2014
      %2870 = vmatpush1.bf16.msra.mxu0 %v2013
      %2871 = vmatprep.subr.bf16.mxu0 %v2012
      %2872 = vmatpush1.bf16.msra.mxu0 %v2011
      %2873 = vmatprep.subr.bf16.mxu0 %v2010
      %2874 = vmatpush1.bf16.msra.mxu0 %v2009
      %2875 = vmatprep.subr.bf16.mxu0 %v2008
      %2876 = vmatpush1.bf16.msra.mxu0 %v2007
      %2877 = vmatprep.subr.bf16.mxu0 %v2006
      %2878 = vmatpush1.bf16.msra.mxu0 %v2005
      %2879 = vmatprep.subr.bf16.mxu0 %v2004
      %2880 = vmatpush1.bf16.msra.mxu0 %v2003
      %2881 = vmatprep.subr.bf16.mxu0 %v2034
      %2882 = vmatpush2.bf16.msra.mxu0 %v2033
      %2883 = vmatprep.subr.bf16.mxu0 %v2032
      %2884 = vmatpush2.bf16.msra.mxu0 %v2031
      %2885 = vmatprep.subr.bf16.mxu0 %v2030
      %2886 = vmatpush2.bf16.msra.mxu0 %v2029
      %2887 = vmatprep.subr.bf16.mxu0 %v2028
      %2888 = vmatpush2.bf16.msra.mxu0 %v2027
      %2889 = vmatprep.subr.bf16.mxu0 %v2026
      %2890 = vmatpush2.bf16.msra.mxu0 %v2025
      %2891 = vmatprep.subr.bf16.mxu0 %v2024
      %2892 = vmatpush2.bf16.msra.mxu0 %v2023
      %2893 = vmatprep.subr.bf16.mxu0 %v2022
      %2894 = vmatpush2.bf16.msra.mxu0 %v2021
      %2895 = vmatprep.subr.bf16.mxu0 %v2020
      %2896 = vmatpush2.bf16.msra.mxu0 %v2019
      %2897 = vmatprep.mubr.bf16.mxu0 %v990
      %2898 = vmatmul.mubr.bf16.gmra.mxu0 %v989
      %v2899 = vpop.f32.mrf.mxu0
      %v2900 = vadd.f32 %v2787, %v2899
      %v2901 = vpop.f32.mrf.mxu0
      %v2902 = vadd.f32 %v2789, %v2901
      %v2903 = vpop.f32.mrf.mxu0
      %v2904 = vadd.f32 %v2791, %v2903
      %v2905 = vpop.f32.mrf.mxu0
      %v2906 = vadd.f32 %v2793, %v2905
      %2907 = vmatprep.mubr.bf16.mxu0 %v1004
      %2908 = vmatmul.mubr.bf16.gmra.mxu0 %v1003
      %v2909 = vpop.f32.mrf.mxu0
      %v2910 = vadd.f32 %v2797, %v2909
      %v2911 = vpop.f32.mrf.mxu0
      %v2912 = vadd.f32 %v2799, %v2911
      %v2913 = vpop.f32.mrf.mxu0
      %v2914 = vadd.f32 %v2801, %v2913
      %v2915 = vpop.f32.mrf.mxu0
      %v2916 = vadd.f32 %v2803, %v2915
      %2917 = vmatprep.mubr.bf16.mxu0 %v1018
      %2918 = vmatmul.mubr.bf16.gmra.mxu0 %v1017
      %v2919 = vpop.f32.mrf.mxu0
      %v2920 = vadd.f32 %v2807, %v2919
      %v2921 = vpop.f32.mrf.mxu0
      %v2922 = vadd.f32 %v2809, %v2921
      %v2923 = vpop.f32.mrf.mxu0
      %v2924 = vadd.f32 %v2811, %v2923
      %v2925 = vpop.f32.mrf.mxu0
      %v2926 = vadd.f32 %v2813, %v2925
      %2927 = vmatprep.mubr.bf16.mxu0 %v1032
      %2928 = vmatmul.mubr.bf16.gmra.mxu0 %v1031
      %v2929 = vpop.f32.mrf.mxu0
      %v2930 = vadd.f32 %v2817, %v2929
      %v2931 = vpop.f32.mrf.mxu0
      %v2932 = vadd.f32 %v2819, %v2931
      %v2933 = vpop.f32.mrf.mxu0
      %v2934 = vadd.f32 %v2821, %v2933
      %v2935 = vpop.f32.mrf.mxu0
      %v2936 = vadd.f32 %v2823, %v2935
      %2937 = vmatprep.mubr.bf16.mxu0 %v1046
      %2938 = vmatmul.mubr.bf16.gmra.mxu0 %v1045
      %v2939 = vpop.f32.mrf.mxu0
      %v2940 = vadd.f32 %v2827, %v2939
      %v2941 = vpop.f32.mrf.mxu0
      %v2942 = vadd.f32 %v2829, %v2941
      %v2943 = vpop.f32.mrf.mxu0
      %v2944 = vadd.f32 %v2831, %v2943
      %v2945 = vpop.f32.mrf.mxu0
      %v2946 = vadd.f32 %v2833, %v2945
      %2947 = vmatprep.mubr.bf16.mxu0 %v1060
      %2948 = vmatmul.mubr.bf16.gmra.mxu0 %v1059
      %v2949 = vpop.f32.mrf.mxu0
      %v2950 = vadd.f32 %v2837, %v2949
      %v2951 = vpop.f32.mrf.mxu0
      %v2952 = vadd.f32 %v2839, %v2951
      %v2953 = vpop.f32.mrf.mxu0
      %v2954 = vadd.f32 %v2841, %v2953
      %v2955 = vpop.f32.mrf.mxu0
      %v2956 = vadd.f32 %v2843, %v2955
      %2957 = vmatprep.mubr.bf16.mxu0 %v1074
      %2958 = vmatmul.mubr.bf16.gmra.mxu0 %v1073
      %v2959 = vpop.f32.mrf.mxu0
      %v2960 = vadd.f32 %v2847, %v2959
      %v2961 = vpop.f32.mrf.mxu0
      %v2962 = vadd.f32 %v2849, %v2961
      %v2963 = vpop.f32.mrf.mxu0
      %v2964 = vadd.f32 %v2851, %v2963
      %v2965 = vpop.f32.mrf.mxu0
      %v2966 = vadd.f32 %v2853, %v2965
      %2967 = vmatprep.mubr.bf16.mxu0 %v1088
      %2968 = vmatmul.mubr.bf16.gmra.mxu0 %v1087
      %v2969 = vpop.f32.mrf.mxu0
      %v2970 = vadd.f32 %v2857, %v2969
      %v2971 = vpop.f32.mrf.mxu0
      %v2972 = vadd.f32 %v2859, %v2971
      %v2973 = vpop.f32.mrf.mxu0
      %v2974 = vadd.f32 %v2861, %v2973
      %v2975 = vpop.f32.mrf.mxu0
      %v2976 = vadd.f32 %v2863, %v2975
      %2977 = vdwg.mxu0
      %2978 = vmatprep.subr.bf16.mxu0 %v2050
      %2979 = vmatpush1.bf16.msra.mxu0 %v2049
      %2980 = vmatprep.subr.bf16.mxu0 %v2048
      %2981 = vmatpush1.bf16.msra.mxu0 %v2047
      %2982 = vmatprep.subr.bf16.mxu0 %v2046
      %2983 = vmatpush1.bf16.msra.mxu0 %v2045
      %2984 = vmatprep.subr.bf16.mxu0 %v2044
      %2985 = vmatpush1.bf16.msra.mxu0 %v2043
      %2986 = vmatprep.subr.bf16.mxu0 %v2042
      %2987 = vmatpush1.bf16.msra.mxu0 %v2041
      %2988 = vmatprep.subr.bf16.mxu0 %v2040
      %2989 = vmatpush1.bf16.msra.mxu0 %v2039
      %2990 = vmatprep.subr.bf16.mxu0 %v2038
      %2991 = vmatpush1.bf16.msra.mxu0 %v2037
      %2992 = vmatprep.subr.bf16.mxu0 %v2036
      %2993 = vmatpush1.bf16.msra.mxu0 %v2035
      %2994 = vmatprep.subr.bf16.mxu0 0
      %2995 = vmatpush2.bf16.msra.mxu0 0
      %2996 = vmatprep.subr.bf16.mxu0 0
      %2997 = vmatpush2.bf16.msra.mxu0 0
      %2998 = vmatprep.subr.bf16.mxu0 0
      %2999 = vmatpush2.bf16.msra.mxu0 0
      %3000 = vmatprep.subr.bf16.mxu0 0
      %3001 = vmatpush2.bf16.msra.mxu0 0
      %3002 = vmatprep.subr.bf16.mxu0 %v2058
      %3003 = vmatpush2.bf16.msra.mxu0 %v2057
      %3004 = vmatprep.subr.bf16.mxu0 %v2056
      %3005 = vmatpush2.bf16.msra.mxu0 %v2055
      %3006 = vmatprep.subr.bf16.mxu0 %v2054
      %3007 = vmatpush2.bf16.msra.mxu0 %v2053
      %3008 = vmatprep.subr.bf16.mxu0 %v2052
      %3009 = vmatpush2.bf16.msra.mxu0 %v2051
      %3010 = vmatprep.mubr.bf16.mxu0 %v2277
      %3011 = vmatmul.mubr.bf16.gmra.mxu0 %v991
      %v3012 = vpop.f32.mrf.mxu0
      %v3013 = vadd.f32 %v2900, %v3012
      %v3014 = vpop.f32.mrf.mxu0
      %v3015 = vadd.f32 %v2902, %v3014
      %v3016 = vpop.f32.mrf.mxu0
      %v3017 = vadd.f32 %v2904, %v3016
      %v3018 = vpop.f32.mrf.mxu0
      %v3019 = vadd.f32 %v2906, %v3018
      %3020 = vmatprep.mubr.bf16.mxu0 %v2280
      %3021 = vmatmul.mubr.bf16.gmra.mxu0 %v1005
      %v3022 = vpop.f32.mrf.mxu0
      %v3023 = vadd.f32 %v2910, %v3022
      %v3024 = vpop.f32.mrf.mxu0
      %v3025 = vadd.f32 %v2912, %v3024
      %v3026 = vpop.f32.mrf.mxu0
      %v3027 = vadd.f32 %v2914, %v3026
      %v3028 = vpop.f32.mrf.mxu0
      %v3029 = vadd.f32 %v2916, %v3028
      %3030 = vmatprep.mubr.bf16.mxu0 %v2283
      %3031 = vmatmul.mubr.bf16.gmra.mxu0 %v1019
      %v3032 = vpop.f32.mrf.mxu0
      %v3033 = vadd.f32 %v2920, %v3032
      %v3034 = vpop.f32.mrf.mxu0
      %v3035 = vadd.f32 %v2922, %v3034
      %v3036 = vpop.f32.mrf.mxu0
      %v3037 = vadd.f32 %v2924, %v3036
      %v3038 = vpop.f32.mrf.mxu0
      %v3039 = vadd.f32 %v2926, %v3038
      %3040 = vmatprep.mubr.bf16.mxu0 %v2286
      %3041 = vmatmul.mubr.bf16.gmra.mxu0 %v1033
      %v3042 = vpop.f32.mrf.mxu0
      %v3043 = vadd.f32 %v2930, %v3042
      %v3044 = vpop.f32.mrf.mxu0
      %v3045 = vadd.f32 %v2932, %v3044
      %v3046 = vpop.f32.mrf.mxu0
      %v3047 = vadd.f32 %v2934, %v3046
      %v3048 = vpop.f32.mrf.mxu0
      %v3049 = vadd.f32 %v2936, %v3048
      %3050 = vmatprep.mubr.bf16.mxu0 %v2289
      %3051 = vmatmul.mubr.bf16.gmra.mxu0 %v1047
      %v3052 = vpop.f32.mrf.mxu0
      %v3053 = vadd.f32 %v2940, %v3052
      %v3054 = vpop.f32.mrf.mxu0
      %v3055 = vadd.f32 %v2942, %v3054
      %v3056 = vpop.f32.mrf.mxu0
      %v3057 = vadd.f32 %v2944, %v3056
      %v3058 = vpop.f32.mrf.mxu0
      %v3059 = vadd.f32 %v2946, %v3058
      %3060 = vmatprep.mubr.bf16.mxu0 %v2292
      %3061 = vmatmul.mubr.bf16.gmra.mxu0 %v1061
      %v3062 = vpop.f32.mrf.mxu0
      %v3063 = vadd.f32 %v2950, %v3062
      %v3064 = vpop.f32.mrf.mxu0
      %v3065 = vadd.f32 %v2952, %v3064
      %v3066 = vpop.f32.mrf.mxu0
      %v3067 = vadd.f32 %v2954, %v3066
      %v3068 = vpop.f32.mrf.mxu0
      %v3069 = vadd.f32 %v2956, %v3068
      %3070 = vmatprep.mubr.bf16.mxu0 %v2295
      %3071 = vmatmul.mubr.bf16.gmra.mxu0 %v1075
      %v3072 = vpop.f32.mrf.mxu0
      %v3073 = vadd.f32 %v2960, %v3072
      %v3074 = vpop.f32.mrf.mxu0
      %v3075 = vadd.f32 %v2962, %v3074
      %v3076 = vpop.f32.mrf.mxu0
      %v3077 = vadd.f32 %v2964, %v3076
      %v3078 = vpop.f32.mrf.mxu0
      %v3079 = vadd.f32 %v2966, %v3078
      %3080 = vmatprep.mubr.bf16.mxu0 %v2298
      %3081 = vmatmul.mubr.bf16.gmra.mxu0 %v1089
      %v3082 = vpop.f32.mrf.mxu0
      %v3083 = vadd.f32 %v2970, %v3082
      %v3084 = vpop.f32.mrf.mxu0
      %v3085 = vadd.f32 %v2972, %v3084
      %v3086 = vpop.f32.mrf.mxu0
      %v3087 = vadd.f32 %v2974, %v3086
      %v3088 = vpop.f32.mrf.mxu0
      %v3089 = vadd.f32 %v2976, %v3088
      %3090 = vdwg.mxu0
      %v3091 = vmax.f32 %v3013, 0.0
      %v3092 = vmax.f32 %v3015, 0.0
      %v3093 = vmax.f32 %v3017, 0.0
      %v3094 = vmax.f32 %v3019, 0.0
      %v3095 = vmax.f32 %v3023, 0.0
      %v3096 = vmax.f32 %v3025, 0.0
      %v3097 = vmax.f32 %v3027, 0.0
      %v3098 = vmax.f32 %v3029, 0.0
      %v3099 = vmax.f32 %v3033, 0.0
      %v3100 = vmax.f32 %v3035, 0.0
      %v3101 = vmax.f32 %v3037, 0.0
      %v3102 = vmax.f32 %v3039, 0.0
      %v3103 = vmax.f32 %v3043, 0.0
      %v3104 = vmax.f32 %v3045, 0.0
      %v3105 = vmax.f32 %v3047, 0.0
      %v3106 = vmax.f32 %v3049, 0.0
      %v3107 = vmax.f32 %v3053, 0.0
      %v3108 = vmax.f32 %v3055, 0.0
      %v3109 = vmax.f32 %v3057, 0.0
      %v3110 = vmax.f32 %v3059, 0.0
      %v3111 = vmax.f32 %v3063, 0.0
      %v3112 = vmax.f32 %v3065, 0.0
      %v3113 = vmax.f32 %v3067, 0.0
      %v3114 = vmax.f32 %v3069, 0.0
      %v3115 = vmax.f32 %v3073, 0.0
      %v3116 = vmax.f32 %v3075, 0.0
      %v3117 = vmax.f32 %v3077, 0.0
      %v3118 = vmax.f32 %v3079, 0.0
      %v3119 = vmax.f32 %v3083, 0.0
      %v3120 = vmax.f32 %v3085, 0.0
      %v3121 = vmax.f32 %v3087, 0.0
      %v3122 = vmax.f32 %v3089, 0.0
      %v3123 = vld [vmem:[%s212] sm:$0xff]
      %v3124 = vld [vmem:[%s212 + $0x8] sm:$0xff]
      %v3125 = vld [vmem:[%s212 + $0x10] sm:$0xff]
      %v3126 = vld [vmem:[%s212 + $0x18] sm:$0xff]
      %v3127 = vld [vmem:[%s212 + $0x20] sm:$0xff]
      %v3128 = vld [vmem:[%s212 + $0x28] sm:$0xff]
      %v3129 = vld [vmem:[%s212 + $0x30] sm:$0xff]
      %v3130 = vld [vmem:[%s212 + $0x38] sm:$0xff]
      %v3131 = vld [vmem:[%s212 + $0x40] sm:$0xff]
      %v3132 = vld [vmem:[%s212 + $0x48] sm:$0xff]
      %v3133 = vld [vmem:[%s212 + $0x50] sm:$0xff]
      %v3134 = vld [vmem:[%s212 + $0x58] sm:$0xff]
      %v3135 = vld [vmem:[%s212 + $0x60] sm:$0xff]
      %v3136 = vld [vmem:[%s212 + $0x68] sm:$0xff]
      %v3137 = vld [vmem:[%s212 + $0x70] sm:$0xff]
      %v3138 = vld [vmem:[%s212 + $0x78] sm:$0xff]
      %v3139 = vld [vmem:[%s212 + $0x80] sm:$0xff]
      %v3140 = vld [vmem:[%s212 + $0x88] sm:$0xff]
      %v3141 = vld [vmem:[%s212 + $0x90] sm:$0xff]
      %v3142 = vld [vmem:[%s212 + $0x98] sm:$0xff]
      %v3143 = vld [vmem:[%s212 + $0xa0] sm:$0xff]
      %v3144 = vld [vmem:[%s212 + $0xa8] sm:$0xff]
      %v3145 = vld [vmem:[%s212 + $0xb0] sm:$0xff]
      %v3146 = vld [vmem:[%s212 + $0xb8] sm:$0xff]
      %v3147 = vld [vmem:[%s212 + $0xc0] sm:$0xff]
      %v3148 = vld [vmem:[%s212 + $0xc8] sm:$0xff]
      %v3149 = vld [vmem:[%s212 + $0xd0] sm:$0xff]
      %v3150 = vld [vmem:[%s212 + $0xd8] sm:$0xff]
      %v3151 = vld [vmem:[%s212 + $0xe0] sm:$0xff]
      %v3152 = vld [vmem:[%s212 + $0xe8] sm:$0xff]
      %v3153 = vld [vmem:[%s212 + $0xf0] sm:$0xff]
      %v3154 = vld [vmem:[%s212 + $0xf8] sm:$0xff]
      %v3155 = vadd.f32 %v3091, %v3123
      %v3156 = vadd.f32 %v3092, %v3124
      %v3157 = vadd.f32 %v3093, %v3125
      %v3158 = vadd.f32 %v3094, %v3126
      %v3159 = vadd.f32 %v3095, %v3127
      %v3160 = vadd.f32 %v3096, %v3128
      %v3161 = vadd.f32 %v3097, %v3129
      %v3162 = vadd.f32 %v3098, %v3130
      %v3163 = vadd.f32 %v3099, %v3131
      %v3164 = vadd.f32 %v3100, %v3132
      %v3165 = vadd.f32 %v3101, %v3133
      %v3166 = vadd.f32 %v3102, %v3134
      %v3167 = vadd.f32 %v3103, %v3135
      %v3168 = vadd.f32 %v3104, %v3136
      %v3169 = vadd.f32 %v3105, %v3137
      %v3170 = vadd.f32 %v3106, %v3138
      %v3171 = vadd.f32 %v3107, %v3139
      %v3172 = vadd.f32 %v3108, %v3140
      %v3173 = vadd.f32 %v3109, %v3141
      %v3174 = vadd.f32 %v3110, %v3142
      %v3175 = vadd.f32 %v3111, %v3143
      %v3176 = vadd.f32 %v3112, %v3144
      %v3177 = vadd.f32 %v3113, %v3145
      %v3178 = vadd.f32 %v3114, %v3146
      %v3179 = vadd.f32 %v3115, %v3147
      %v3180 = vadd.f32 %v3116, %v3148
      %v3181 = vadd.f32 %v3117, %v3149
      %v3182 = vadd.f32 %v3118, %v3150
      %v3183 = vadd.f32 %v3119, %v3151
      %v3184 = vadd.f32 %v3120, %v3152
      %v3185 = vadd.f32 %v3121, %v3153
      %v3186 = vadd.f32 %v3122, %v3154
      %3187 = vst [vmem:[%s217] sm:$0xff] %v3155
      %3188 = vst [vmem:[%s217 + $0x8] sm:$0xff] %v3156
      %3189 = vst [vmem:[%s217 + $0x10] sm:$0xff] %v3157
      %3190 = vst [vmem:[%s217 + $0x18] sm:$0xff] %v3158
      %3191 = vst [vmem:[%s217 + $0x20] sm:$0xff] %v3159
      %3192 = vst [vmem:[%s217 + $0x28] sm:$0xff] %v3160
      %3193 = vst [vmem:[%s217 + $0x30] sm:$0xff] %v3161
      %3194 = vst [vmem:[%s217 + $0x38] sm:$0xff] %v3162
      %3195 = vst [vmem:[%s217 + $0x40] sm:$0xff] %v3163
      %3196 = vst [vmem:[%s217 + $0x48] sm:$0xff] %v3164
      %3197 = vst [vmem:[%s217 + $0x50] sm:$0xff] %v3165
      %3198 = vst [vmem:[%s217 + $0x58] sm:$0xff] %v3166
      %3199 = vst [vmem:[%s217 + $0x60] sm:$0xff] %v3167
      %3200 = vst [vmem:[%s217 + $0x68] sm:$0xff] %v3168
      %3201 = vst [vmem:[%s217 + $0x70] sm:$0xff] %v3169
      %3202 = vst [vmem:[%s217 + $0x78] sm:$0xff] %v3170
      %3203 = vst [vmem:[%s217 + $0x80] sm:$0xff] %v3171
      %3204 = vst [vmem:[%s217 + $0x88] sm:$0xff] %v3172
      %3205 = vst [vmem:[%s217 + $0x90] sm:$0xff] %v3173
      %3206 = vst [vmem:[%s217 + $0x98] sm:$0xff] %v3174
      %3207 = vst [vmem:[%s217 + $0xa0] sm:$0xff] %v3175
      %3208 = vst [vmem:[%s217 + $0xa8] sm:$0xff] %v3176
      %3209 = vst [vmem:[%s217 + $0xb0] sm:$0xff] %v3177
      %3210 = vst [vmem:[%s217 + $0xb8] sm:$0xff] %v3178
      %3211 = vst [vmem:[%s217 + $0xc0] sm:$0xff] %v3179
      %3212 = vst [vmem:[%s217 + $0xc8] sm:$0xff] %v3180
      %3213 = vst [vmem:[%s217 + $0xd0] sm:$0xff] %v3181
      %3214 = vst [vmem:[%s217 + $0xd8] sm:$0xff] %v3182
      %3215 = vst [vmem:[%s217 + $0xe0] sm:$0xff] %v3183
      %3216 = vst [vmem:[%s217 + $0xe8] sm:$0xff] %v3184
      %3217 = vst [vmem:[%s217 + $0xf0] sm:$0xff] %v3185
      %3218 = vst [vmem:[%s217 + $0xf8] sm:$0xff] %v3186
      %p3219 = scmp.lt.s32.totalorder %s15, 1
      %s3220 = scalar_select %p3219, %s15, 1
      %s3221 = smul.addr %s3220, 32
      %s3222 = smul.addr %s3221, 8
      %s3223 = scalar_lea.vmem %s4, %s3222
      // Predicated region
      $region37: #{attention_forward.3} parent=35 // pred_check
        %p3224 = pneg %p127
      $region38: #{attention_forward.3} parent=35 // pred_check_branch
        %3226 = sbr.rel (%p3224) target = $region40
      $region39: #{attention_forward.3} parent=35 // pred_region
        _
      $region40: #{attention_forward.3} parent=35 // pred_fallthru
        _
    $region36: #{attention_forward.3} parent=5 // pred_fallthru
      _
    %p3227 = scmp.le.s32.totalorder 2, %s10
    // Predicated region
    $region41: #{attention_forward.3} parent=5 // pred_check
      %p3228 = pneg %p3227
    $region42: #{attention_forward.3} parent=5 // pred_check_branch
      %3230 = sbr.rel (%p3228) target = $region44
    $region43: #{attention_forward.3} parent=5 // pred_region
      %s3231 = ssub.s32 %s10, 2
      // Predicated region
      $region45: #{attention_forward.3} parent=43 // pred_check
        %p3232 = pneg %p133
      $region46: #{attention_forward.3} parent=43 // pred_check_branch
        %3234 = sbr.rel (%p3232) target = $region48
      $region47: #{attention_forward.3} parent=43 // pred_region
        %p3235 = scmp.lt.s32.totalorder %s16, 1
        %s3236 = scalar_select %p3235, %s16, 1
        %s3237 = smul.addr %s3236, 32
        %s3238 = smul.addr %s3237, 8
        %s3239 = scalar_lea.vmem %s4, %s3238
      $region48: #{attention_forward.3} parent=43 // pred_fallthru
        _
    $region44: #{attention_forward.3} parent=5 // pred_fallthru
      _
  $region6: #{attention_forward.3} parent=0 // loop_footer
    %s14 = sadd.s32 1, %s10
  $region7: #{attention_forward.3} parent=0 // loop_footer_branch
    %9 = sbr.rel target = $region3
  $region8: #{attention_forward.3} parent=0 // loop_exit
    _

</llo_original>
